<compile_context>
chip_gen: v7x
topology: tpu7x:2x2x1
jax: 0.10.0
libtpu: 0.0.40
codegen_flags: <defaults>
</compile_context>

<pallas_src>
import functools

import jax
import jax.numpy as jnp
from jax.experimental import pallas as pl
from jax.experimental.pallas import tpu as pltpu


def _round_up(x, m):
    return ((x + m - 1) // m) * m


def _pick_div_tile(n, cap, unit):
    """Largest tile t <= cap with t % unit == 0 and t | n; n itself if n <= cap.

    Returns None if no such divisor exists (caller then pads -- never hit for
    the shapes this network produces)."""
    if n <= cap:
        return n
    t = (cap // unit) * unit
    while t >= unit:
        if n % t == 0:
            return t
        t -= unit
    return None


# ---------------------------------------------------------------------------
# Pallas kernel 1: tiled matmul (conv hot path, bf16 im2col @ bf16 weight,
# f32 MXU accumulation).  No bias: InstanceNorm(affine=False) cancels it.
# ---------------------------------------------------------------------------
def _matmul_kernel(a_ref, b_ref, o_ref, acc_ref):
    @pl.when(pl.program_id(1) == 0)
    def _():
        acc_ref[...] = jnp.zeros_like(acc_ref)

    acc_ref[...] += jnp.dot(a_ref[...], b_ref[...],
                            preferred_element_type=jnp.float32)

    @pl.when(pl.program_id(1) == pl.num_programs(1) - 1)
    def _():
        o_ref[...] = acc_ref[...]


def pallas_matmul(a, b):
    """a: [M, K] bf16, b: [K, N] bf16 -> [M, N] f32."""
    M, K = a.shape
    _, N = b.shape

    # 256-row LHS tiles fill the v6e/v7x 2x256x256 MXU; on v5e (4x128x128) the
    # binding constraint is HBM BW, and 256 is still a valid/efficient tile.
    tm = _pick_div_tile(M, 256, 8)
    tk = _pick_div_tile(K, 512, 128)

    Mp, Kp = M, K
    if tm is None:            # no divisor: pad M (rare; not hit in this net)
        tm = 256
        Mp = _round_up(M, tm)
    if tk is None:            # no divisor: zero-pad K (numerically safe)
        tk = 512
        Kp = _round_up(K, tk)
    if Mp != M or Kp != K:
        a = jnp.pad(a, ((0, Mp - M), (0, Kp - K)))
    if Kp != K:
        b = jnp.pad(b, ((0, Kp - K), (0, 0)))

    # NOTE: for the deep-K layers (K up to 13824) pipeline_mode=pl.Buffered(3)
    # on the A/B specs is a cheap thing to sweep; left at the default depth.
    out = pl.pallas_call(
        _matmul_kernel,
        out_shape=jax.ShapeDtypeStruct((Mp, N), jnp.float32),
        grid_spec=pltpu.PrefetchScalarGridSpec(
            num_scalar_prefetch=0,
            grid=(Mp // tm, Kp // tk),
            in_specs=[
                pl.BlockSpec((tm, tk), lambda i, k: (i, k)),
                pl.BlockSpec((tk, N), lambda i, k: (k, 0)),
            ],
            out_specs=pl.BlockSpec((tm, N), lambda i, k: (i, 0)),
            scratch_shapes=[pltpu.VMEM((tm, N), jnp.float32)],
        ),
        compiler_params=pltpu.CompilerParams(
            dimension_semantics=("parallel", "arbitrary")),
    )(a, b)
    return out[:M] if Mp != M else out


# ---------------------------------------------------------------------------
# Pallas kernels 2+3: tiled InstanceNorm3d (affine=False, eps=1e-5) + ReLU.
# Two passes over the flattened spatial axis S = D*H*W, per (batch, channel):
#   pass 1: per-(b,c) sum and sum-of-squares, accumulated tile by tile
#   pass 2: (x - mean) * rsqrt(var + eps), ReLU, tile by tile
# ---------------------------------------------------------------------------
def _inorm_stats_kernel(x_ref, sum_ref, ssq_ref):
    @pl.when(pl.program_id(1) == 0)
    def _():
        sum_ref[...] = jnp.zeros_like(sum_ref)
        ssq_ref[...] = jnp.zeros_like(ssq_ref)

    x = x_ref[...]                                      # (1, ts, C) f32
    sum_ref[...] += jnp.sum(x, axis=1, keepdims=True)
    ssq_ref[...] += jnp.sum(x * x, axis=1, keepdims=True)


def _inorm_apply_kernel(x_ref, sum_ref, ssq_ref, o_ref, *, inv_s):
    x = x_ref[...]                                      # (1, ts, C)
    mean = sum_ref[...] * inv_s                         # (1, 1, C)
    var = jnp.maximum(ssq_ref[...] * inv_s - mean * mean, 0.0)  # biased var
    y = (x - mean) * jax.lax.rsqrt(var + 1e-5)
    o_ref[...] = jnp.maximum(y, 0.0)


def pallas_instnorm_relu(x):
    """x: [B, S, C] f32 -> InstanceNorm(affine=False) + ReLU, [B, S, C] f32."""
    B, S, C = x.shape
    ts = _pick_div_tile(S, 512, 8)
    if ts is None:
        # TODO(synk): ragged spatial tiles; fall back to a single full-S tile.
        ts = S
    grid = (B, S // ts)

    sums, ssqs = pl.pallas_call(
        _inorm_stats_kernel,
        out_shape=(jax.ShapeDtypeStruct((B, 1, C), jnp.float32),
                   jax.ShapeDtypeStruct((B, 1, C), jnp.float32)),
        grid=grid,
        in_specs=[pl.BlockSpec((1, ts, C), lambda b, s: (b, s, 0))],
        out_specs=(pl.BlockSpec((1, 1, C), lambda b, s: (b, 0, 0)),
                   pl.BlockSpec((1, 1, C), lambda b, s: (b, 0, 0))),
        compiler_params=pltpu.CompilerParams(
            dimension_semantics=("parallel", "arbitrary")),
    )(x)

    return pl.pallas_call(
        functools.partial(_inorm_apply_kernel, inv_s=1.0 / S),
        out_shape=jax.ShapeDtypeStruct((B, S, C), jnp.float32),
        grid=grid,
        in_specs=[pl.BlockSpec((1, ts, C), lambda b, s: (b, s, 0)),
                  pl.BlockSpec((1, 1, C), lambda b, s: (b, 0, 0)),
                  pl.BlockSpec((1, 1, C), lambda b, s: (b, 0, 0))],
        out_specs=pl.BlockSpec((1, ts, C), lambda b, s: (b, s, 0)),
        compiler_params=pltpu.CompilerParams(
            dimension_semantics=("parallel", "parallel")),
    )(x, sums, ssqs)


# ---------------------------------------------------------------------------
# Glue: im2col for 3D conv (pure indexing/reshape, stays in plain JAX).
# Built directly in bf16 so the materialized patch matrix and its DMA traffic
# are half the size of the previous f32 version.
# ---------------------------------------------------------------------------
def im2col_3d(x, ksize, stride, pad):
    """x: [B, D, H, W, C] -> ([B*Do*Ho*Wo, kd*kh*kw*C] bf16, (B, Do, Ho, Wo))."""
    kd, kh, kw = ksize
    sd, sh, sw = stride
    pd, ph, pw = pad
    x = x.astype(jnp.bfloat16)
    x = jnp.pad(x, ((0, 0), (pd, pd), (ph, ph), (pw, pw), (0, 0)))
    B, D, H, W, C = x.shape
    Do = (D - kd) // sd + 1
    Ho = (H - kh) // sh + 1
    Wo = (W - kw) // sw + 1
    taps = []
    for i in range(kd):
        for j in range(kh):
            for l in range(kw):
                taps.append(x[:,
                              i:i + (Do - 1) * sd + 1:sd,
                              j:j + (Ho - 1) * sh + 1:sh,
                              l:l + (Wo - 1) * sw + 1:sw, :])
    p = jnp.stack(taps, axis=-2)        # [B, Do, Ho, Wo, kd*kh*kw, C]
    return p.reshape(B * Do * Ho * Wo, kd * kh * kw * C), (B, Do, Ho, Wo)


def conv3d_in_relu(x, w, stride, pad):
    """Conv3d (no bias; cancelled by InstanceNorm) + InstanceNorm3d + ReLU.

    x: [B, D, H, W, Cin] f32, w: [kd, kh, kw, Cin, Cout] f32."""
    kd, kh, kw, cin, cout = w.shape
    patches, (B, Do, Ho, Wo) = im2col_3d(x, (kd, kh, kw), stride, pad)
    wmat = w.reshape(kd * kh * kw * cin, cout).astype(jnp.bfloat16)
    y = pallas_matmul(patches, wmat)                    # [M, Cout] f32
    y = pallas_instnorm_relu(y.reshape(B, Do * Ho * Wo, cout))
    return y.reshape(B, Do, Ho, Wo, cout)


# ---------------------------------------------------------------------------
# FeatureNet: parameters + forward
# ---------------------------------------------------------------------------
_LAYER_CFG = [
    # (kd, kh, kw, cin, cout, stride, pad)
    (3, 3, 3, 3,   64,  (1, 1, 1), (1, 1, 1)),
    (2, 3, 3, 64,  128, (1, 2, 2), (0, 1, 1)),
    (2, 3, 3, 128, 256, (1, 2, 2), (0, 1, 1)),
    (2, 3, 3, 256, 512, (1, 2, 2), (0, 1, 1)),
    (3, 3, 3, 512, 512, (1, 2, 2), (1, 1, 1)),
]


def init_params(key):
    # Conv bias omitted on purpose: InstanceNorm3d(affine=False) subtracts the
    # per-(b, c) spatial mean right after every conv, so a per-channel bias
    # cancels exactly and is pure wasted compute/traffic.
    params = []
    keys = jax.random.split(key, len(_LAYER_CFG))
    for k, (kd, kh, kw, cin, cout, _, _) in zip(keys, _LAYER_CFG):
        fan_in = kd * kh * kw * cin
        w = jax.random.normal(k, (kd, kh, kw, cin, cout),
                              jnp.float32) * (1.0 / jnp.sqrt(fan_in))
        params.append(w)
    return params


def feature_net(params, haze_0, haze_45, haze_90, haze_135):
    # PyTorch: stack 4 polarization images -> [4,B,3,H,W], permute to NCDHW
    # (B, C=3, D=4, H, W).  We keep NDHWC instead: (B, D=4, H, W, C=3).
    x = jnp.stack([haze_0, haze_45, haze_90, haze_135], axis=0)  # [4,B,3,H,W]
    x = jnp.transpose(x, (1, 0, 3, 4, 2))                        # [B,4,H,W,3]

    # Lane-dense layer 1: zero-pad Cout 64 -> 128 (and layer-2 Cin to match).
    # The padded channels are exactly 0 through InstanceNorm+ReLU and multiply
    # zero weights in layer 2, so results are unchanged; every store becomes a
    # full 128-lane store.  Slice x1 back to 64 channels on output.
    cout1 = _LAYER_CFG[0][4]
    pad_c = 128 - cout1
    w1 = jnp.pad(params[0], ((0, 0),) * 4 + ((0, pad_c),))
    w2 = jnp.pad(params[1], ((0, 0),) * 3 + ((0, pad_c), (0, 0)))
    weights = [w1, w2] + list(params[2:])

    feats = []
    for w, (_, _, _, _, _, stride, pad) in zip(weights, _LAYER_CFG):
        x = conv3d_in_relu(x, w, stride, pad)
        feats.append(x)

    feats[0] = feats[0][..., :cout1]     # drop the lane-padding channels

    # Back to the PyTorch NCDHW output convention.
    return tuple(jnp.transpose(f, (0, 4, 1, 2, 3)) for f in feats)


if __name__ == "__main__":
    key = jax.random.PRNGKey(0)
    pkey, k0, k45, k90, k135 = jax.random.split(key, 5)

    B, C, H, W = 2, 3, 16, 16
    haze_0 = jax.random.normal(k0, (B, C, H, W), jnp.float32)
    haze_45 = jax.random.normal(k45, (B, C, H, W), jnp.float32)
    haze_90 = jax.random.normal(k90, (B, C, H, W), jnp.float32)
    haze_135 = jax.random.normal(k135, (B, C, H, W), jnp.float32)

    params = init_params(pkey)

    fwd = jax.jit(feature_net)
    x1, x2, x3, x4, x5 = fwd(params, haze_0, haze_45, haze_90, haze_135)
    for o in (x1, x2, x3, x4, x5):
        jax.block_until_ready(o)

    assert x1.shape == (B, 64, 4, H, W)
    assert x2.shape == (B, 128, 3, H // 2, W // 2)
    assert x3.shape == (B, 256, 2, H // 4, W // 4)
    assert x4.shape == (B, 512, 1, H // 8, W // 8)
    assert x5.shape == (B, 512, 1, H // 16, W // 16)
    for o in (x1, x2, x3, x4, x5):
        assert bool(jnp.isfinite(o).all())
    print("KERNEL_OK")
</pallas_src>

<mosaic_0001>
module attributes {stable_mosaic.version = 11 : i64} {
  func.func @_matmul_kernel(%arg0: i32, %arg1: i32, %arg2: memref<256x81xbf16, #tpu.memory_space<vmem>>, %arg3: memref<81x128xbf16, #tpu.memory_space<vmem>>, %arg4: memref<256x128xf32, #tpu.memory_space<vmem>>, %arg5: memref<256x128xf32, #tpu.memory_space<vmem>>) attributes {dimension_semantics = [#tpu.dimension_semantics<parallel>, #tpu.dimension_semantics<arbitrary>], iteration_bounds = array<i64: 8, 1>, scalar_prefetch = 0 : i64, scratch_operands = 1 : i64, tpu.core_type = #tpu.core_type<tc>, window_params = [{transform_indices = @transform_0, window_bounds = array<i64: 256, 81>}, {transform_indices = @transform_1, window_bounds = array<i64: 81, 128>}, {transform_indices = @transform_2, window_bounds = array<i64: 256, 128>}]} {
    %c0_i32 = arith.constant 0 : i32
    %0 = arith.cmpi eq, %arg1, %c0_i32 : i32
    %1 = arith.extui %0 : i1 to i32
    %c0_i32_0 = arith.constant 0 : i32
    %2 = arith.cmpi ne, %1, %c0_i32_0 : i32
    scf.if %2 {
      %cst_10 = arith.constant 0.000000e+00 : f32
      %12 = vector.broadcast %cst_10 : f32 to vector<256x128xf32>
      %c0_11 = arith.constant 0 : index
      %c0_12 = arith.constant 0 : index
      %13 = vector.load %arg5[%c0_11, %c0_12] : memref<256x128xf32, #tpu.memory_space<vmem>>, vector<256x128xf32>
      tpu.vector_store %arg5[%c0_11, %c0_12], %12 {strides = array<i32>} : memref<256x128xf32, #tpu.memory_space<vmem>>, vector<256x128xf32>,
    } else {
    }
    %c0 = arith.constant 0 : index
    %c0_1 = arith.constant 0 : index
    %3 = vector.load %arg5[%c0, %c0_1] : memref<256x128xf32, #tpu.memory_space<vmem>>, vector<256x128xf32>
    %c0_2 = arith.constant 0 : index
    %c0_3 = arith.constant 0 : index
    %4 = vector.load %arg2[%c0_2, %c0_3] : memref<256x81xbf16, #tpu.memory_space<vmem>>, vector<256x81xbf16>
    %c0_4 = arith.constant 0 : index
    %c0_5 = arith.constant 0 : index
    %5 = vector.load %arg3[%c0_4, %c0_5] : memref<81x128xbf16, #tpu.memory_space<vmem>>, vector<81x128xbf16>
    %cst = arith.constant dense<0.000000e+00> : vector<256x128xf32>
    %6 = tpu.matmul %4, %5, %cst {dimension_numbers = #tpu.dot_dimension_numbers<[1], [0], [0], [1], [0, 0, 1, 1], [], []>} : vector<256x81xbf16>, vector<81x128xbf16>, vector<256x128xf32> -> vector<256x128xf32>
    %7 = arith.addf %3, %6 : vector<256x128xf32>
    %c0_6 = arith.constant 0 : index
    %c0_7 = arith.constant 0 : index
    %8 = vector.load %arg5[%c0_6, %c0_7] : memref<256x128xf32, #tpu.memory_space<vmem>>, vector<256x128xf32>
    tpu.vector_store %arg5[%c0_6, %c0_7], %7 {strides = array<i32>} : memref<256x128xf32, #tpu.memory_space<vmem>>, vector<256x128xf32>,
    %c0_i32_8 = arith.constant 0 : i32
    %9 = arith.cmpi eq, %arg1, %c0_i32_8 : i32
    %10 = arith.extui %9 : i1 to i32
    %c0_i32_9 = arith.constant 0 : i32
    %11 = arith.cmpi ne, %10, %c0_i32_9 : i32
    scf.if %11 {
      %c0_10 = arith.constant 0 : index
      %c0_11 = arith.constant 0 : index
      %12 = vector.load %arg5[%c0_10, %c0_11] : memref<256x128xf32, #tpu.memory_space<vmem>>, vector<256x128xf32>
      %c0_12 = arith.constant 0 : index
      %c0_13 = arith.constant 0 : index
      %13 = vector.load %arg4[%c0_12, %c0_13] : memref<256x128xf32, #tpu.memory_space<vmem>>, vector<256x128xf32>
      tpu.vector_store %arg4[%c0_12, %c0_13], %12 {strides = array<i32>} : memref<256x128xf32, #tpu.memory_space<vmem>>, vector<256x128xf32>,
    } else {
    }
    return
  }
  func.func @transform_0(%arg0: i32, %arg1: i32) -> (i32, i32) {
    %c0_i32 = arith.constant 0 : i32
    return %arg0, %arg1 : i32, i32
  }
  func.func @transform_1(%arg0: i32, %arg1: i32) -> (i32, i32) {
    %c0_i32 = arith.constant 0 : i32
    %c0_i32_0 = arith.constant 0 : i32
    return %arg1, %c0_i32 : i32, i32
  }
  func.func @transform_2(%arg0: i32, %arg1: i32) -> (i32, i32) {
    %c0_i32 = arith.constant 0 : i32
    %c0_i32_0 = arith.constant 0 : i32
    return %arg0, %c0_i32 : i32, i32
  }
}

module attributes {stable_mosaic.version = 11 : i64} {
  func.func @_inorm_stats_kernel(%arg0: i32, %arg1: i32, %arg2: memref<1x512x128xf32, #tpu.memory_space<vmem>>, %arg3: memref<1x1x128xf32, #tpu.memory_space<vmem>>, %arg4: memref<1x1x128xf32, #tpu.memory_space<vmem>>) attributes {dimension_semantics = [#tpu.dimension_semantics<parallel>, #tpu.dimension_semantics<arbitrary>], iteration_bounds = array<i64: 2, 2>, scalar_prefetch = 0 : i64, scratch_operands = 0 : i64, tpu.core_type = #tpu.core_type<tc>, window_params = [{transform_indices = @transform_0, window_bounds = array<i64: 1, 512, 128>}, {transform_indices = @transform_1, window_bounds = array<i64: 1, 1, 128>}, {transform_indices = @transform_2, window_bounds = array<i64: 1, 1, 128>}]} {
    %c0_i32 = arith.constant 0 : i32
    %0 = arith.cmpi eq, %arg1, %c0_i32 : i32
    %1 = arith.extui %0 : i1 to i32
    %c0_i32_0 = arith.constant 0 : i32
    %2 = arith.cmpi ne, %1, %c0_i32_0 : i32
    scf.if %2 {
      %cst_16 = arith.constant 0.000000e+00 : f32
      %15 = vector.broadcast %cst_16 : f32 to vector<1x1x128xf32>
      %c0_17 = arith.constant 0 : index
      %c0_18 = arith.constant 0 : index
      %c0_19 = arith.constant 0 : index
      %16 = vector.load %arg3[%c0_17, %c0_18, %c0_19] : memref<1x1x128xf32, #tpu.memory_space<vmem>>, vector<1x1x128xf32>
      tpu.vector_store %arg3[%c0_17, %c0_18, %c0_19], %15 {strides = array<i32>} : memref<1x1x128xf32, #tpu.memory_space<vmem>>, vector<1x1x128xf32>,
      %cst_20 = arith.constant 0.000000e+00 : f32
      %17 = vector.broadcast %cst_20 : f32 to vector<1x1x128xf32>
      %c0_21 = arith.constant 0 : index
      %c0_22 = arith.constant 0 : index
      %c0_23 = arith.constant 0 : index
      %18 = vector.load %arg4[%c0_21, %c0_22, %c0_23] : memref<1x1x128xf32, #tpu.memory_space<vmem>>, vector<1x1x128xf32>
      tpu.vector_store %arg4[%c0_21, %c0_22, %c0_23], %17 {strides = array<i32>} : memref<1x1x128xf32, #tpu.memory_space<vmem>>, vector<1x1x128xf32>,
    } else {
    }
    %c0 = arith.constant 0 : index
    %c0_1 = arith.constant 0 : index
    %c0_2 = arith.constant 0 : index
    %3 = vector.load %arg2[%c0, %c0_1, %c0_2] : memref<1x512x128xf32, #tpu.memory_space<vmem>>, vector<1x512x128xf32>
    %c0_3 = arith.constant 0 : index
    %c0_4 = arith.constant 0 : index
    %c0_5 = arith.constant 0 : index
    %4 = vector.load %arg3[%c0_3, %c0_4, %c0_5] : memref<1x1x128xf32, #tpu.memory_space<vmem>>, vector<1x1x128xf32>
    %cst = arith.constant dense<0.000000e+00> : vector<1x128xf32>
    %5 = vector.multi_reduction <add>, %3, %cst [1] : vector<1x512x128xf32> to vector<1x128xf32>
    %6 = vector.shape_cast %5 : vector<1x128xf32> to vector<1x1x128xf32>
    %7 = arith.addf %4, %6 : vector<1x1x128xf32>
    %c0_6 = arith.constant 0 : index
    %c0_7 = arith.constant 0 : index
    %c0_8 = arith.constant 0 : index
    %8 = vector.load %arg3[%c0_6, %c0_7, %c0_8] : memref<1x1x128xf32, #tpu.memory_space<vmem>>, vector<1x1x128xf32>
    tpu.vector_store %arg3[%c0_6, %c0_7, %c0_8], %7 {strides = array<i32>} : memref<1x1x128xf32, #tpu.memory_space<vmem>>, vector<1x1x128xf32>,
    %c0_9 = arith.constant 0 : index
    %c0_10 = arith.constant 0 : index
    %c0_11 = arith.constant 0 : index
    %9 = vector.load %arg4[%c0_9, %c0_10, %c0_11] : memref<1x1x128xf32, #tpu.memory_space<vmem>>, vector<1x1x128xf32>
    %10 = arith.mulf %3, %3 : vector<1x512x128xf32>
    %cst_12 = arith.constant dense<0.000000e+00> : vector<1x128xf32>
    %11 = vector.multi_reduction <add>, %10, %cst_12 [1] : vector<1x512x128xf32> to vector<1x128xf32>
    %12 = vector.shape_cast %11 : vector<1x128xf32> to vector<1x1x128xf32>
    %13 = arith.addf %9, %12 : vector<1x1x128xf32>
    %c0_13 = arith.constant 0 : index
    %c0_14 = arith.constant 0 : index
    %c0_15 = arith.constant 0 : index
    %14 = vector.load %arg4[%c0_13, %c0_14, %c0_15] : memref<1x1x128xf32, #tpu.memory_space<vmem>>, vector<1x1x128xf32>
    tpu.vector_store %arg4[%c0_13, %c0_14, %c0_15], %13 {strides = array<i32>} : memref<1x1x128xf32, #tpu.memory_space<vmem>>, vector<1x1x128xf32>,
    return
  }
  func.func @transform_0(%arg0: i32, %arg1: i32) -> (i32, i32, i32) {
    %c0_i32 = arith.constant 0 : i32
    %c0_i32_0 = arith.constant 0 : i32
    return %arg0, %arg1, %c0_i32 : i32, i32, i32
  }
  func.func @transform_1(%arg0: i32, %arg1: i32) -> (i32, i32, i32) {
    %c0_i32 = arith.constant 0 : i32
    %c0_i32_0 = arith.constant 0 : i32
    %c0_i32_1 = arith.constant 0 : i32
    return %arg0, %c0_i32, %c0_i32_0 : i32, i32, i32
  }
  func.func @transform_2(%arg0: i32, %arg1: i32) -> (i32, i32, i32) {
    %c0_i32 = arith.constant 0 : i32
    %c0_i32_0 = arith.constant 0 : i32
    %c0_i32_1 = arith.constant 0 : i32
    return %arg0, %c0_i32, %c0_i32_0 : i32, i32, i32
  }
}

module attributes {stable_mosaic.version = 11 : i64} {
  func.func @_inorm_apply_kernel(%arg0: i32, %arg1: i32, %arg2: memref<1x512x128xf32, #tpu.memory_space<vmem>>, %arg3: memref<1x1x128xf32, #tpu.memory_space<vmem>>, %arg4: memref<1x1x128xf32, #tpu.memory_space<vmem>>, %arg5: memref<1x512x128xf32, #tpu.memory_space<vmem>>) attributes {dimension_semantics = [#tpu.dimension_semantics<parallel>, #tpu.dimension_semantics<parallel>], iteration_bounds = array<i64: 2, 2>, scalar_prefetch = 0 : i64, scratch_operands = 0 : i64, tpu.core_type = #tpu.core_type<tc>, window_params = [{transform_indices = @transform_0, window_bounds = array<i64: 1, 512, 128>}, {transform_indices = @transform_1, window_bounds = array<i64: 1, 1, 128>}, {transform_indices = @transform_2, window_bounds = array<i64: 1, 1, 128>}, {transform_indices = @transform_3, window_bounds = array<i64: 1, 512, 128>}]} {
    %c0 = arith.constant 0 : index
    %c0_0 = arith.constant 0 : index
    %c0_1 = arith.constant 0 : index
    %0 = vector.load %arg2[%c0, %c0_0, %c0_1] : memref<1x512x128xf32, #tpu.memory_space<vmem>>, vector<1x512x128xf32>
    %c0_2 = arith.constant 0 : index
    %c0_3 = arith.constant 0 : index
    %c0_4 = arith.constant 0 : index
    %1 = vector.load %arg3[%c0_2, %c0_3, %c0_4] : memref<1x1x128xf32, #tpu.memory_space<vmem>>, vector<1x1x128xf32>
    %cst = arith.constant 9.765625E-4 : f32
    %2 = vector.broadcast %cst : f32 to vector<1x1x128xf32>
    %3 = arith.mulf %1, %2 : vector<1x1x128xf32>
    %c0_5 = arith.constant 0 : index
    %c0_6 = arith.constant 0 : index
    %c0_7 = arith.constant 0 : index
    %4 = vector.load %arg4[%c0_5, %c0_6, %c0_7] : memref<1x1x128xf32, #tpu.memory_space<vmem>>, vector<1x1x128xf32>
    %cst_8 = arith.constant 9.765625E-4 : f32
    %5 = vector.broadcast %cst_8 : f32 to vector<1x1x128xf32>
    %6 = arith.mulf %4, %5 : vector<1x1x128xf32>
    %7 = arith.mulf %3, %3 : vector<1x1x128xf32>
    %8 = arith.subf %6, %7 : vector<1x1x128xf32>
    %cst_9 = arith.constant 0.000000e+00 : f32
    %9 = vector.broadcast %cst_9 : f32 to vector<1x1x128xf32>
    %10 = arith.maximumf %8, %9 : vector<1x1x128xf32>
    %11 = vector.broadcast %3 : vector<1x1x128xf32> to vector<1x512x128xf32>
    %12 = arith.subf %0, %11 : vector<1x512x128xf32>
    %cst_10 = arith.constant 9.99999974E-6 : f32
    %13 = vector.broadcast %cst_10 : f32 to vector<1x1x128xf32>
    %14 = arith.addf %10, %13 : vector<1x1x128xf32>
    %15 = math.rsqrt %14 : vector<1x1x128xf32>
    %16 = vector.broadcast %15 : vector<1x1x128xf32> to vector<1x512x128xf32>
    %17 = arith.mulf %12, %16 : vector<1x512x128xf32>
    %cst_11 = arith.constant 0.000000e+00 : f32
    %18 = vector.broadcast %cst_11 : f32 to vector<1x512x128xf32>
    %19 = arith.maximumf %17, %18 : vector<1x512x128xf32>
    %c0_12 = arith.constant 0 : index
    %c0_13 = arith.constant 0 : index
    %c0_14 = arith.constant 0 : index
    %20 = vector.load %arg5[%c0_12, %c0_13, %c0_14] : memref<1x512x128xf32, #tpu.memory_space<vmem>>, vector<1x512x128xf32>
    tpu.vector_store %arg5[%c0_12, %c0_13, %c0_14], %19 {strides = array<i32>} : memref<1x512x128xf32, #tpu.memory_space<vmem>>, vector<1x512x128xf32>,
    return
  }
  func.func @transform_0(%arg0: i32, %arg1: i32) -> (i32, i32, i32) {
    %c0_i32 = arith.constant 0 : i32
    %c0_i32_0 = arith.constant 0 : i32
    return %arg0, %arg1, %c0_i32 : i32, i32, i32
  }
  func.func @transform_1(%arg0: i32, %arg1: i32) -> (i32, i32, i32) {
    %c0_i32 = arith.constant 0 : i32
    %c0_i32_0 = arith.constant 0 : i32
    %c0_i32_1 = arith.constant 0 : i32
    return %arg0, %c0_i32, %c0_i32_0 : i32, i32, i32
  }
  func.func @transform_2(%arg0: i32, %arg1: i32) -> (i32, i32, i32) {
    %c0_i32 = arith.constant 0 : i32
    %c0_i32_0 = arith.constant 0 : i32
    %c0_i32_1 = arith.constant 0 : i32
    return %arg0, %c0_i32, %c0_i32_0 : i32, i32, i32
  }
  func.func @transform_3(%arg0: i32, %arg1: i32) -> (i32, i32, i32) {
    %c0_i32 = arith.constant 0 : i32
    %c0_i32_0 = arith.constant 0 : i32
    return %arg0, %arg1, %c0_i32 : i32, i32, i32
  }
}

module attributes {stable_mosaic.version = 11 : i64} {
  func.func @_inorm_stats_kernel(%arg0: i32, %arg1: i32, %arg2: memref<1x192x128xf32, #tpu.memory_space<vmem>>, %arg3: memref<1x1x128xf32, #tpu.memory_space<vmem>>, %arg4: memref<1x1x128xf32, #tpu.memory_space<vmem>>) attributes {dimension_semantics = [#tpu.dimension_semantics<parallel>, #tpu.dimension_semantics<arbitrary>], iteration_bounds = array<i64: 2, 1>, scalar_prefetch = 0 : i64, scratch_operands = 0 : i64, tpu.core_type = #tpu.core_type<tc>, window_params = [{transform_indices = @transform_0, window_bounds = array<i64: 1, 192, 128>}, {transform_indices = @transform_1, window_bounds = array<i64: 1, 1, 128>}, {transform_indices = @transform_2, window_bounds = array<i64: 1, 1, 128>}]} {
    %c0_i32 = arith.constant 0 : i32
    %0 = arith.cmpi eq, %arg1, %c0_i32 : i32
    %1 = arith.extui %0 : i1 to i32
    %c0_i32_0 = arith.constant 0 : i32
    %2 = arith.cmpi ne, %1, %c0_i32_0 : i32
    scf.if %2 {
      %cst_16 = arith.constant 0.000000e+00 : f32
      %15 = vector.broadcast %cst_16 : f32 to vector<1x1x128xf32>
      %c0_17 = arith.constant 0 : index
      %c0_18 = arith.constant 0 : index
      %c0_19 = arith.constant 0 : index
      %16 = vector.load %arg3[%c0_17, %c0_18, %c0_19] : memref<1x1x128xf32, #tpu.memory_space<vmem>>, vector<1x1x128xf32>
      tpu.vector_store %arg3[%c0_17, %c0_18, %c0_19], %15 {strides = array<i32>} : memref<1x1x128xf32, #tpu.memory_space<vmem>>, vector<1x1x128xf32>,
      %cst_20 = arith.constant 0.000000e+00 : f32
      %17 = vector.broadcast %cst_20 : f32 to vector<1x1x128xf32>
      %c0_21 = arith.constant 0 : index
      %c0_22 = arith.constant 0 : index
      %c0_23 = arith.constant 0 : index
      %18 = vector.load %arg4[%c0_21, %c0_22, %c0_23] : memref<1x1x128xf32, #tpu.memory_space<vmem>>, vector<1x1x128xf32>
      tpu.vector_store %arg4[%c0_21, %c0_22, %c0_23], %17 {strides = array<i32>} : memref<1x1x128xf32, #tpu.memory_space<vmem>>, vector<1x1x128xf32>,
    } else {
    }
    %c0 = arith.constant 0 : index
    %c0_1 = arith.constant 0 : index
    %c0_2 = arith.constant 0 : index
    %3 = vector.load %arg2[%c0, %c0_1, %c0_2] : memref<1x192x128xf32, #tpu.memory_space<vmem>>, vector<1x192x128xf32>
    %c0_3 = arith.constant 0 : index
    %c0_4 = arith.constant 0 : index
    %c0_5 = arith.constant 0 : index
    %4 = vector.load %arg3[%c0_3, %c0_4, %c0_5] : memref<1x1x128xf32, #tpu.memory_space<vmem>>, vector<1x1x128xf32>
    %cst = arith.constant dense<0.000000e+00> : vector<1x128xf32>
    %5 = vector.multi_reduction <add>, %3, %cst [1] : vector<1x192x128xf32> to vector<1x128xf32>
    %6 = vector.shape_cast %5 : vector<1x128xf32> to vector<1x1x128xf32>
    %7 = arith.addf %4, %6 : vector<1x1x128xf32>
    %c0_6 = arith.constant 0 : index
    %c0_7 = arith.constant 0 : index
    %c0_8 = arith.constant 0 : index
    %8 = vector.load %arg3[%c0_6, %c0_7, %c0_8] : memref<1x1x128xf32, #tpu.memory_space<vmem>>, vector<1x1x128xf32>
    tpu.vector_store %arg3[%c0_6, %c0_7, %c0_8], %7 {strides = array<i32>} : memref<1x1x128xf32, #tpu.memory_space<vmem>>, vector<1x1x128xf32>,
    %c0_9 = arith.constant 0 : index
    %c0_10 = arith.constant 0 : index
    %c0_11 = arith.constant 0 : index
    %9 = vector.load %arg4[%c0_9, %c0_10, %c0_11] : memref<1x1x128xf32, #tpu.memory_space<vmem>>, vector<1x1x128xf32>
    %10 = arith.mulf %3, %3 : vector<1x192x128xf32>
    %cst_12 = arith.constant dense<0.000000e+00> : vector<1x128xf32>
    %11 = vector.multi_reduction <add>, %10, %cst_12 [1] : vector<1x192x128xf32> to vector<1x128xf32>
    %12 = vector.shape_cast %11 : vector<1x128xf32> to vector<1x1x128xf32>
    %13 = arith.addf %9, %12 : vector<1x1x128xf32>
    %c0_13 = arith.constant 0 : index
    %c0_14 = arith.constant 0 : index
    %c0_15 = arith.constant 0 : index
    %14 = vector.load %arg4[%c0_13, %c0_14, %c0_15] : memref<1x1x128xf32, #tpu.memory_space<vmem>>, vector<1x1x128xf32>
    tpu.vector_store %arg4[%c0_13, %c0_14, %c0_15], %13 {strides = array<i32>} : memref<1x1x128xf32, #tpu.memory_space<vmem>>, vector<1x1x128xf32>,
    return
  }
  func.func @transform_0(%arg0: i32, %arg1: i32) -> (i32, i32, i32) {
    %c0_i32 = arith.constant 0 : i32
    %c0_i32_0 = arith.constant 0 : i32
    return %arg0, %arg1, %c0_i32 : i32, i32, i32
  }
  func.func @transform_1(%arg0: i32, %arg1: i32) -> (i32, i32, i32) {
    %c0_i32 = arith.constant 0 : i32
    %c0_i32_0 = arith.constant 0 : i32
    %c0_i32_1 = arith.constant 0 : i32
    return %arg0, %c0_i32, %c0_i32_0 : i32, i32, i32
  }
  func.func @transform_2(%arg0: i32, %arg1: i32) -> (i32, i32, i32) {
    %c0_i32 = arith.constant 0 : i32
    %c0_i32_0 = arith.constant 0 : i32
    %c0_i32_1 = arith.constant 0 : i32
    return %arg0, %c0_i32, %c0_i32_0 : i32, i32, i32
  }
}

module attributes {stable_mosaic.version = 11 : i64} {
  func.func @_matmul_kernel(%arg0: i32, %arg1: i32, %arg2: memref<192x384xbf16, #tpu.memory_space<vmem>>, %arg3: memref<384x128xbf16, #tpu.memory_space<vmem>>, %arg4: memref<192x128xf32, #tpu.memory_space<vmem>>, %arg5: memref<192x128xf32, #tpu.memory_space<vmem>>) attributes {dimension_semantics = [#tpu.dimension_semantics<parallel>, #tpu.dimension_semantics<arbitrary>], iteration_bounds = array<i64: 2, 6>, scalar_prefetch = 0 : i64, scratch_operands = 1 : i64, tpu.core_type = #tpu.core_type<tc>, window_params = [{transform_indices = @transform_0, window_bounds = array<i64: 192, 384>}, {transform_indices = @transform_1, window_bounds = array<i64: 384, 128>}, {transform_indices = @transform_2, window_bounds = array<i64: 192, 128>}]} {
    %c0_i32 = arith.constant 0 : i32
    %0 = arith.cmpi eq, %arg1, %c0_i32 : i32
    %1 = arith.extui %0 : i1 to i32
    %c0_i32_0 = arith.constant 0 : i32
    %2 = arith.cmpi ne, %1, %c0_i32_0 : i32
    scf.if %2 {
      %cst_9 = arith.constant 0.000000e+00 : f32
      %12 = vector.broadcast %cst_9 : f32 to vector<192x128xf32>
      %c0_10 = arith.constant 0 : index
      %c0_11 = arith.constant 0 : index
      %13 = vector.load %arg5[%c0_10, %c0_11] : memref<192x128xf32, #tpu.memory_space<vmem>>, vector<192x128xf32>
      tpu.vector_store %arg5[%c0_10, %c0_11], %12 {strides = array<i32>} : memref<192x128xf32, #tpu.memory_space<vmem>>, vector<192x128xf32>,
    } else {
    }
    %c0 = arith.constant 0 : index
    %c0_1 = arith.constant 0 : index
    %3 = vector.load %arg5[%c0, %c0_1] : memref<192x128xf32, #tpu.memory_space<vmem>>, vector<192x128xf32>
    %c0_2 = arith.constant 0 : index
    %c0_3 = arith.constant 0 : index
    %4 = vector.load %arg2[%c0_2, %c0_3] : memref<192x384xbf16, #tpu.memory_space<vmem>>, vector<192x384xbf16>
    %c0_4 = arith.constant 0 : index
    %c0_5 = arith.constant 0 : index
    %5 = vector.load %arg3[%c0_4, %c0_5] : memref<384x128xbf16, #tpu.memory_space<vmem>>, vector<384x128xbf16>
    %cst = arith.constant dense<0.000000e+00> : vector<192x128xf32>
    %6 = tpu.matmul %4, %5, %cst {dimension_numbers = #tpu.dot_dimension_numbers<[1], [0], [0], [1], [0, 0, 1, 1], [], []>} : vector<192x384xbf16>, vector<384x128xbf16>, vector<192x128xf32> -> vector<192x128xf32>
    %7 = arith.addf %3, %6 : vector<192x128xf32>
    %c0_6 = arith.constant 0 : index
    %c0_7 = arith.constant 0 : index
    %8 = vector.load %arg5[%c0_6, %c0_7] : memref<192x128xf32, #tpu.memory_space<vmem>>, vector<192x128xf32>
    tpu.vector_store %arg5[%c0_6, %c0_7], %7 {strides = array<i32>} : memref<192x128xf32, #tpu.memory_space<vmem>>, vector<192x128xf32>,
    %c5_i32 = arith.constant 5 : i32
    %9 = arith.cmpi eq, %arg1, %c5_i32 : i32
    %10 = arith.extui %9 : i1 to i32
    %c0_i32_8 = arith.constant 0 : i32
    %11 = arith.cmpi ne, %10, %c0_i32_8 : i32
    scf.if %11 {
      %c0_9 = arith.constant 0 : index
      %c0_10 = arith.constant 0 : index
      %12 = vector.load %arg5[%c0_9, %c0_10] : memref<192x128xf32, #tpu.memory_space<vmem>>, vector<192x128xf32>
      %c0_11 = arith.constant 0 : index
      %c0_12 = arith.constant 0 : index
      %13 = vector.load %arg4[%c0_11, %c0_12] : memref<192x128xf32, #tpu.memory_space<vmem>>, vector<192x128xf32>
      tpu.vector_store %arg4[%c0_11, %c0_12], %12 {strides = array<i32>} : memref<192x128xf32, #tpu.memory_space<vmem>>, vector<192x128xf32>,
    } else {
    }
    return
  }
  func.func @transform_0(%arg0: i32, %arg1: i32) -> (i32, i32) {
    %c0_i32 = arith.constant 0 : i32
    return %arg0, %arg1 : i32, i32
  }
  func.func @transform_1(%arg0: i32, %arg1: i32) -> (i32, i32) {
    %c0_i32 = arith.constant 0 : i32
    %c0_i32_0 = arith.constant 0 : i32
    return %arg1, %c0_i32 : i32, i32
  }
  func.func @transform_2(%arg0: i32, %arg1: i32) -> (i32, i32) {
    %c0_i32 = arith.constant 0 : i32
    %c0_i32_0 = arith.constant 0 : i32
    return %arg0, %c0_i32 : i32, i32
  }
}

module attributes {stable_mosaic.version = 11 : i64} {
  func.func @_inorm_apply_kernel(%arg0: i32, %arg1: i32, %arg2: memref<1x192x128xf32, #tpu.memory_space<vmem>>, %arg3: memref<1x1x128xf32, #tpu.memory_space<vmem>>, %arg4: memref<1x1x128xf32, #tpu.memory_space<vmem>>, %arg5: memref<1x192x128xf32, #tpu.memory_space<vmem>>) attributes {dimension_semantics = [#tpu.dimension_semantics<parallel>, #tpu.dimension_semantics<parallel>], iteration_bounds = array<i64: 2, 1>, scalar_prefetch = 0 : i64, scratch_operands = 0 : i64, tpu.core_type = #tpu.core_type<tc>, window_params = [{transform_indices = @transform_0, window_bounds = array<i64: 1, 192, 128>}, {transform_indices = @transform_1, window_bounds = array<i64: 1, 1, 128>}, {transform_indices = @transform_2, window_bounds = array<i64: 1, 1, 128>}, {transform_indices = @transform_3, window_bounds = array<i64: 1, 192, 128>}]} {
    %c0 = arith.constant 0 : index
    %c0_0 = arith.constant 0 : index
    %c0_1 = arith.constant 0 : index
    %0 = vector.load %arg2[%c0, %c0_0, %c0_1] : memref<1x192x128xf32, #tpu.memory_space<vmem>>, vector<1x192x128xf32>
    %c0_2 = arith.constant 0 : index
    %c0_3 = arith.constant 0 : index
    %c0_4 = arith.constant 0 : index
    %1 = vector.load %arg3[%c0_2, %c0_3, %c0_4] : memref<1x1x128xf32, #tpu.memory_space<vmem>>, vector<1x1x128xf32>
    %cst = arith.constant 0.00520833349 : f32
    %2 = vector.broadcast %cst : f32 to vector<1x1x128xf32>
    %3 = arith.mulf %1, %2 : vector<1x1x128xf32>
    %c0_5 = arith.constant 0 : index
    %c0_6 = arith.constant 0 : index
    %c0_7 = arith.constant 0 : index
    %4 = vector.load %arg4[%c0_5, %c0_6, %c0_7] : memref<1x1x128xf32, #tpu.memory_space<vmem>>, vector<1x1x128xf32>
    %cst_8 = arith.constant 0.00520833349 : f32
    %5 = vector.broadcast %cst_8 : f32 to vector<1x1x128xf32>
    %6 = arith.mulf %4, %5 : vector<1x1x128xf32>
    %7 = arith.mulf %3, %3 : vector<1x1x128xf32>
    %8 = arith.subf %6, %7 : vector<1x1x128xf32>
    %cst_9 = arith.constant 0.000000e+00 : f32
    %9 = vector.broadcast %cst_9 : f32 to vector<1x1x128xf32>
    %10 = arith.maximumf %8, %9 : vector<1x1x128xf32>
    %11 = vector.broadcast %3 : vector<1x1x128xf32> to vector<1x192x128xf32>
    %12 = arith.subf %0, %11 : vector<1x192x128xf32>
    %cst_10 = arith.constant 9.99999974E-6 : f32
    %13 = vector.broadcast %cst_10 : f32 to vector<1x1x128xf32>
    %14 = arith.addf %10, %13 : vector<1x1x128xf32>
    %15 = math.rsqrt %14 : vector<1x1x128xf32>
    %16 = vector.broadcast %15 : vector<1x1x128xf32> to vector<1x192x128xf32>
    %17 = arith.mulf %12, %16 : vector<1x192x128xf32>
    %cst_11 = arith.constant 0.000000e+00 : f32
    %18 = vector.broadcast %cst_11 : f32 to vector<1x192x128xf32>
    %19 = arith.maximumf %17, %18 : vector<1x192x128xf32>
    %c0_12 = arith.constant 0 : index
    %c0_13 = arith.constant 0 : index
    %c0_14 = arith.constant 0 : index
    %20 = vector.load %arg5[%c0_12, %c0_13, %c0_14] : memref<1x192x128xf32, #tpu.memory_space<vmem>>, vector<1x192x128xf32>
    tpu.vector_store %arg5[%c0_12, %c0_13, %c0_14], %19 {strides = array<i32>} : memref<1x192x128xf32, #tpu.memory_space<vmem>>, vector<1x192x128xf32>,
    return
  }
  func.func @transform_0(%arg0: i32, %arg1: i32) -> (i32, i32, i32) {
    %c0_i32 = arith.constant 0 : i32
    %c0_i32_0 = arith.constant 0 : i32
    return %arg0, %arg1, %c0_i32 : i32, i32, i32
  }
  func.func @transform_1(%arg0: i32, %arg1: i32) -> (i32, i32, i32) {
    %c0_i32 = arith.constant 0 : i32
    %c0_i32_0 = arith.constant 0 : i32
    %c0_i32_1 = arith.constant 0 : i32
    return %arg0, %c0_i32, %c0_i32_0 : i32, i32, i32
  }
  func.func @transform_2(%arg0: i32, %arg1: i32) -> (i32, i32, i32) {
    %c0_i32 = arith.constant 0 : i32
    %c0_i32_0 = arith.constant 0 : i32
    %c0_i32_1 = arith.constant 0 : i32
    return %arg0, %c0_i32, %c0_i32_0 : i32, i32, i32
  }
  func.func @transform_3(%arg0: i32, %arg1: i32) -> (i32, i32, i32) {
    %c0_i32 = arith.constant 0 : i32
    %c0_i32_0 = arith.constant 0 : i32
    return %arg0, %arg1, %c0_i32 : i32, i32, i32
  }
}

module attributes {stable_mosaic.version = 11 : i64} {
  func.func @_matmul_kernel(%arg0: i32, %arg1: i32, %arg2: memref<64x384xbf16, #tpu.memory_space<vmem>>, %arg3: memref<384x256xbf16, #tpu.memory_space<vmem>>, %arg4: memref<64x256xf32, #tpu.memory_space<vmem>>, %arg5: memref<64x256xf32, #tpu.memory_space<vmem>>) attributes {dimension_semantics = [#tpu.dimension_semantics<parallel>, #tpu.dimension_semantics<arbitrary>], iteration_bounds = array<i64: 1, 6>, scalar_prefetch = 0 : i64, scratch_operands = 1 : i64, tpu.core_type = #tpu.core_type<tc>, window_params = [{transform_indices = @transform_0, window_bounds = array<i64: 64, 384>}, {transform_indices = @transform_1, window_bounds = array<i64: 384, 256>}, {transform_indices = @transform_2, window_bounds = array<i64: 64, 256>}]} {
    %c0_i32 = arith.constant 0 : i32
    %0 = arith.cmpi eq, %arg1, %c0_i32 : i32
    %1 = arith.extui %0 : i1 to i32
    %c0_i32_0 = arith.constant 0 : i32
    %2 = arith.cmpi ne, %1, %c0_i32_0 : i32
    scf.if %2 {
      %cst_9 = arith.constant 0.000000e+00 : f32
      %12 = vector.broadcast %cst_9 : f32 to vector<64x256xf32>
      %c0_10 = arith.constant 0 : index
      %c0_11 = arith.constant 0 : index
      %13 = vector.load %arg5[%c0_10, %c0_11] : memref<64x256xf32, #tpu.memory_space<vmem>>, vector<64x256xf32>
      tpu.vector_store %arg5[%c0_10, %c0_11], %12 {strides = array<i32>} : memref<64x256xf32, #tpu.memory_space<vmem>>, vector<64x256xf32>,
    } else {
    }
    %c0 = arith.constant 0 : index
    %c0_1 = arith.constant 0 : index
    %3 = vector.load %arg5[%c0, %c0_1] : memref<64x256xf32, #tpu.memory_space<vmem>>, vector<64x256xf32>
    %c0_2 = arith.constant 0 : index
    %c0_3 = arith.constant 0 : index
    %4 = vector.load %arg2[%c0_2, %c0_3] : memref<64x384xbf16, #tpu.memory_space<vmem>>, vector<64x384xbf16>
    %c0_4 = arith.constant 0 : index
    %c0_5 = arith.constant 0 : index
    %5 = vector.load %arg3[%c0_4, %c0_5] : memref<384x256xbf16, #tpu.memory_space<vmem>>, vector<384x256xbf16>
    %cst = arith.constant dense<0.000000e+00> : vector<64x256xf32>
    %6 = tpu.matmul %4, %5, %cst {dimension_numbers = #tpu.dot_dimension_numbers<[1], [0], [0], [1], [0, 0, 1, 1], [], []>} : vector<64x384xbf16>, vector<384x256xbf16>, vector<64x256xf32> -> vector<64x256xf32>
    %7 = arith.addf %3, %6 : vector<64x256xf32>
    %c0_6 = arith.constant 0 : index
    %c0_7 = arith.constant 0 : index
    %8 = vector.load %arg5[%c0_6, %c0_7] : memref<64x256xf32, #tpu.memory_space<vmem>>, vector<64x256xf32>
    tpu.vector_store %arg5[%c0_6, %c0_7], %7 {strides = array<i32>} : memref<64x256xf32, #tpu.memory_space<vmem>>, vector<64x256xf32>,
    %c5_i32 = arith.constant 5 : i32
    %9 = arith.cmpi eq, %arg1, %c5_i32 : i32
    %10 = arith.extui %9 : i1 to i32
    %c0_i32_8 = arith.constant 0 : i32
    %11 = arith.cmpi ne, %10, %c0_i32_8 : i32
    scf.if %11 {
      %c0_9 = arith.constant 0 : index
      %c0_10 = arith.constant 0 : index
      %12 = vector.load %arg5[%c0_9, %c0_10] : memref<64x256xf32, #tpu.memory_space<vmem>>, vector<64x256xf32>
      %c0_11 = arith.constant 0 : index
      %c0_12 = arith.constant 0 : index
      %13 = vector.load %arg4[%c0_11, %c0_12] : memref<64x256xf32, #tpu.memory_space<vmem>>, vector<64x256xf32>
      tpu.vector_store %arg4[%c0_11, %c0_12], %12 {strides = array<i32>} : memref<64x256xf32, #tpu.memory_space<vmem>>, vector<64x256xf32>,
    } else {
    }
    return
  }
  func.func @transform_0(%arg0: i32, %arg1: i32) -> (i32, i32) {
    %c0_i32 = arith.constant 0 : i32
    return %arg0, %arg1 : i32, i32
  }
  func.func @transform_1(%arg0: i32, %arg1: i32) -> (i32, i32) {
    %c0_i32 = arith.constant 0 : i32
    %c0_i32_0 = arith.constant 0 : i32
    return %arg1, %c0_i32 : i32, i32
  }
  func.func @transform_2(%arg0: i32, %arg1: i32) -> (i32, i32) {
    %c0_i32 = arith.constant 0 : i32
    %c0_i32_0 = arith.constant 0 : i32
    return %arg0, %c0_i32 : i32, i32
  }
}

module attributes {stable_mosaic.version = 11 : i64} {
  func.func @_inorm_stats_kernel(%arg0: i32, %arg1: i32, %arg2: memref<1x32x256xf32, #tpu.memory_space<vmem>>, %arg3: memref<1x1x256xf32, #tpu.memory_space<vmem>>, %arg4: memref<1x1x256xf32, #tpu.memory_space<vmem>>) attributes {dimension_semantics = [#tpu.dimension_semantics<parallel>, #tpu.dimension_semantics<arbitrary>], iteration_bounds = array<i64: 2, 1>, scalar_prefetch = 0 : i64, scratch_operands = 0 : i64, tpu.core_type = #tpu.core_type<tc>, window_params = [{transform_indices = @transform_0, window_bounds = array<i64: 1, 32, 256>}, {transform_indices = @transform_1, window_bounds = array<i64: 1, 1, 256>}, {transform_indices = @transform_2, window_bounds = array<i64: 1, 1, 256>}]} {
    %c0_i32 = arith.constant 0 : i32
    %0 = arith.cmpi eq, %arg1, %c0_i32 : i32
    %1 = arith.extui %0 : i1 to i32
    %c0_i32_0 = arith.constant 0 : i32
    %2 = arith.cmpi ne, %1, %c0_i32_0 : i32
    scf.if %2 {
      %cst_16 = arith.constant 0.000000e+00 : f32
      %15 = vector.broadcast %cst_16 : f32 to vector<1x1x256xf32>
      %c0_17 = arith.constant 0 : index
      %c0_18 = arith.constant 0 : index
      %c0_19 = arith.constant 0 : index
      %16 = vector.load %arg3[%c0_17, %c0_18, %c0_19] : memref<1x1x256xf32, #tpu.memory_space<vmem>>, vector<1x1x256xf32>
      tpu.vector_store %arg3[%c0_17, %c0_18, %c0_19], %15 {strides = array<i32>} : memref<1x1x256xf32, #tpu.memory_space<vmem>>, vector<1x1x256xf32>,
      %cst_20 = arith.constant 0.000000e+00 : f32
      %17 = vector.broadcast %cst_20 : f32 to vector<1x1x256xf32>
      %c0_21 = arith.constant 0 : index
      %c0_22 = arith.constant 0 : index
      %c0_23 = arith.constant 0 : index
      %18 = vector.load %arg4[%c0_21, %c0_22, %c0_23] : memref<1x1x256xf32, #tpu.memory_space<vmem>>, vector<1x1x256xf32>
      tpu.vector_store %arg4[%c0_21, %c0_22, %c0_23], %17 {strides = array<i32>} : memref<1x1x256xf32, #tpu.memory_space<vmem>>, vector<1x1x256xf32>,
    } else {
    }
    %c0 = arith.constant 0 : index
    %c0_1 = arith.constant 0 : index
    %c0_2 = arith.constant 0 : index
    %3 = vector.load %arg2[%c0, %c0_1, %c0_2] : memref<1x32x256xf32, #tpu.memory_space<vmem>>, vector<1x32x256xf32>
    %c0_3 = arith.constant 0 : index
    %c0_4 = arith.constant 0 : index
    %c0_5 = arith.constant 0 : index
    %4 = vector.load %arg3[%c0_3, %c0_4, %c0_5] : memref<1x1x256xf32, #tpu.memory_space<vmem>>, vector<1x1x256xf32>
    %cst = arith.constant dense<0.000000e+00> : vector<1x256xf32>
    %5 = vector.multi_reduction <add>, %3, %cst [1] : vector<1x32x256xf32> to vector<1x256xf32>
    %6 = vector.shape_cast %5 : vector<1x256xf32> to vector<1x1x256xf32>
    %7 = arith.addf %4, %6 : vector<1x1x256xf32>
    %c0_6 = arith.constant 0 : index
    %c0_7 = arith.constant 0 : index
    %c0_8 = arith.constant 0 : index
    %8 = vector.load %arg3[%c0_6, %c0_7, %c0_8] : memref<1x1x256xf32, #tpu.memory_space<vmem>>, vector<1x1x256xf32>
    tpu.vector_store %arg3[%c0_6, %c0_7, %c0_8], %7 {strides = array<i32>} : memref<1x1x256xf32, #tpu.memory_space<vmem>>, vector<1x1x256xf32>,
    %c0_9 = arith.constant 0 : index
    %c0_10 = arith.constant 0 : index
    %c0_11 = arith.constant 0 : index
    %9 = vector.load %arg4[%c0_9, %c0_10, %c0_11] : memref<1x1x256xf32, #tpu.memory_space<vmem>>, vector<1x1x256xf32>
    %10 = arith.mulf %3, %3 : vector<1x32x256xf32>
    %cst_12 = arith.constant dense<0.000000e+00> : vector<1x256xf32>
    %11 = vector.multi_reduction <add>, %10, %cst_12 [1] : vector<1x32x256xf32> to vector<1x256xf32>
    %12 = vector.shape_cast %11 : vector<1x256xf32> to vector<1x1x256xf32>
    %13 = arith.addf %9, %12 : vector<1x1x256xf32>
    %c0_13 = arith.constant 0 : index
    %c0_14 = arith.constant 0 : index
    %c0_15 = arith.constant 0 : index
    %14 = vector.load %arg4[%c0_13, %c0_14, %c0_15] : memref<1x1x256xf32, #tpu.memory_space<vmem>>, vector<1x1x256xf32>
    tpu.vector_store %arg4[%c0_13, %c0_14, %c0_15], %13 {strides = array<i32>} : memref<1x1x256xf32, #tpu.memory_space<vmem>>, vector<1x1x256xf32>,
    return
  }
  func.func @transform_0(%arg0: i32, %arg1: i32) -> (i32, i32, i32) {
    %c0_i32 = arith.constant 0 : i32
    %c0_i32_0 = arith.constant 0 : i32
    return %arg0, %arg1, %c0_i32 : i32, i32, i32
  }
  func.func @transform_1(%arg0: i32, %arg1: i32) -> (i32, i32, i32) {
    %c0_i32 = arith.constant 0 : i32
    %c0_i32_0 = arith.constant 0 : i32
    %c0_i32_1 = arith.constant 0 : i32
    return %arg0, %c0_i32, %c0_i32_0 : i32, i32, i32
  }
  func.func @transform_2(%arg0: i32, %arg1: i32) -> (i32, i32, i32) {
    %c0_i32 = arith.constant 0 : i32
    %c0_i32_0 = arith.constant 0 : i32
    %c0_i32_1 = arith.constant 0 : i32
    return %arg0, %c0_i32, %c0_i32_0 : i32, i32, i32
  }
}

module attributes {stable_mosaic.version = 11 : i64} {
  func.func @_inorm_apply_kernel(%arg0: i32, %arg1: i32, %arg2: memref<1x32x256xf32, #tpu.memory_space<vmem>>, %arg3: memref<1x1x256xf32, #tpu.memory_space<vmem>>, %arg4: memref<1x1x256xf32, #tpu.memory_space<vmem>>, %arg5: memref<1x32x256xf32, #tpu.memory_space<vmem>>) attributes {dimension_semantics = [#tpu.dimension_semantics<parallel>, #tpu.dimension_semantics<parallel>], iteration_bounds = array<i64: 2, 1>, scalar_prefetch = 0 : i64, scratch_operands = 0 : i64, tpu.core_type = #tpu.core_type<tc>, window_params = [{transform_indices = @transform_0, window_bounds = array<i64: 1, 32, 256>}, {transform_indices = @transform_1, window_bounds = array<i64: 1, 1, 256>}, {transform_indices = @transform_2, window_bounds = array<i64: 1, 1, 256>}, {transform_indices = @transform_3, window_bounds = array<i64: 1, 32, 256>}]} {
    %c0 = arith.constant 0 : index
    %c0_0 = arith.constant 0 : index
    %c0_1 = arith.constant 0 : index
    %0 = vector.load %arg2[%c0, %c0_0, %c0_1] : memref<1x32x256xf32, #tpu.memory_space<vmem>>, vector<1x32x256xf32>
    %c0_2 = arith.constant 0 : index
    %c0_3 = arith.constant 0 : index
    %c0_4 = arith.constant 0 : index
    %1 = vector.load %arg3[%c0_2, %c0_3, %c0_4] : memref<1x1x256xf32, #tpu.memory_space<vmem>>, vector<1x1x256xf32>
    %cst = arith.constant 3.125000e-02 : f32
    %2 = vector.broadcast %cst : f32 to vector<1x1x256xf32>
    %3 = arith.mulf %1, %2 : vector<1x1x256xf32>
    %c0_5 = arith.constant 0 : index
    %c0_6 = arith.constant 0 : index
    %c0_7 = arith.constant 0 : index
    %4 = vector.load %arg4[%c0_5, %c0_6, %c0_7] : memref<1x1x256xf32, #tpu.memory_space<vmem>>, vector<1x1x256xf32>
    %cst_8 = arith.constant 3.125000e-02 : f32
    %5 = vector.broadcast %cst_8 : f32 to vector<1x1x256xf32>
    %6 = arith.mulf %4, %5 : vector<1x1x256xf32>
    %7 = arith.mulf %3, %3 : vector<1x1x256xf32>
    %8 = arith.subf %6, %7 : vector<1x1x256xf32>
    %cst_9 = arith.constant 0.000000e+00 : f32
    %9 = vector.broadcast %cst_9 : f32 to vector<1x1x256xf32>
    %10 = arith.maximumf %8, %9 : vector<1x1x256xf32>
    %11 = vector.broadcast %3 : vector<1x1x256xf32> to vector<1x32x256xf32>
    %12 = arith.subf %0, %11 : vector<1x32x256xf32>
    %cst_10 = arith.constant 9.99999974E-6 : f32
    %13 = vector.broadcast %cst_10 : f32 to vector<1x1x256xf32>
    %14 = arith.addf %10, %13 : vector<1x1x256xf32>
    %15 = math.rsqrt %14 : vector<1x1x256xf32>
    %16 = vector.broadcast %15 : vector<1x1x256xf32> to vector<1x32x256xf32>
    %17 = arith.mulf %12, %16 : vector<1x32x256xf32>
    %cst_11 = arith.constant 0.000000e+00 : f32
    %18 = vector.broadcast %cst_11 : f32 to vector<1x32x256xf32>
    %19 = arith.maximumf %17, %18 : vector<1x32x256xf32>
    %c0_12 = arith.constant 0 : index
    %c0_13 = arith.constant 0 : index
    %c0_14 = arith.constant 0 : index
    %20 = vector.load %arg5[%c0_12, %c0_13, %c0_14] : memref<1x32x256xf32, #tpu.memory_space<vmem>>, vector<1x32x256xf32>
    tpu.vector_store %arg5[%c0_12, %c0_13, %c0_14], %19 {strides = array<i32>} : memref<1x32x256xf32, #tpu.memory_space<vmem>>, vector<1x32x256xf32>,
    return
  }
  func.func @transform_0(%arg0: i32, %arg1: i32) -> (i32, i32, i32) {
    %c0_i32 = arith.constant 0 : i32
    %c0_i32_0 = arith.constant 0 : i32
    return %arg0, %arg1, %c0_i32 : i32, i32, i32
  }
  func.func @transform_1(%arg0: i32, %arg1: i32) -> (i32, i32, i32) {
    %c0_i32 = arith.constant 0 : i32
    %c0_i32_0 = arith.constant 0 : i32
    %c0_i32_1 = arith.constant 0 : i32
    return %arg0, %c0_i32, %c0_i32_0 : i32, i32, i32
  }
  func.func @transform_2(%arg0: i32, %arg1: i32) -> (i32, i32, i32) {
    %c0_i32 = arith.constant 0 : i32
    %c0_i32_0 = arith.constant 0 : i32
    %c0_i32_1 = arith.constant 0 : i32
    return %arg0, %c0_i32, %c0_i32_0 : i32, i32, i32
  }
  func.func @transform_3(%arg0: i32, %arg1: i32) -> (i32, i32, i32) {
    %c0_i32 = arith.constant 0 : i32
    %c0_i32_0 = arith.constant 0 : i32
    return %arg0, %arg1, %c0_i32 : i32, i32, i32
  }
}

module attributes {stable_mosaic.version = 11 : i64} {
  func.func @_matmul_kernel(%arg0: i32, %arg1: i32, %arg2: memref<8x512xbf16, #tpu.memory_space<vmem>>, %arg3: memref<512x512xbf16, #tpu.memory_space<vmem>>, %arg4: memref<8x512xf32, #tpu.memory_space<vmem>>, %arg5: memref<8x512xf32, #tpu.memory_space<vmem>>) attributes {dimension_semantics = [#tpu.dimension_semantics<parallel>, #tpu.dimension_semantics<arbitrary>], iteration_bounds = array<i64: 1, 9>, scalar_prefetch = 0 : i64, scratch_operands = 1 : i64, tpu.core_type = #tpu.core_type<tc>, window_params = [{transform_indices = @transform_0, window_bounds = array<i64: 8, 512>}, {transform_indices = @transform_1, window_bounds = array<i64: 512, 512>}, {transform_indices = @transform_2, window_bounds = array<i64: 8, 512>}]} {
    %c0_i32 = arith.constant 0 : i32
    %0 = arith.cmpi eq, %arg1, %c0_i32 : i32
    %1 = arith.extui %0 : i1 to i32
    %c0_i32_0 = arith.constant 0 : i32
    %2 = arith.cmpi ne, %1, %c0_i32_0 : i32
    scf.if %2 {
      %cst_9 = arith.constant 0.000000e+00 : f32
      %12 = vector.broadcast %cst_9 : f32 to vector<8x512xf32>
      %c0_10 = arith.constant 0 : index
      %c0_11 = arith.constant 0 : index
      %13 = vector.load %arg5[%c0_10, %c0_11] : memref<8x512xf32, #tpu.memory_space<vmem>>, vector<8x512xf32>
      tpu.vector_store %arg5[%c0_10, %c0_11], %12 {strides = array<i32>} : memref<8x512xf32, #tpu.memory_space<vmem>>, vector<8x512xf32>,
    } else {
    }
    %c0 = arith.constant 0 : index
    %c0_1 = arith.constant 0 : index
    %3 = vector.load %arg5[%c0, %c0_1] : memref<8x512xf32, #tpu.memory_space<vmem>>, vector<8x512xf32>
    %c0_2 = arith.constant 0 : index
    %c0_3 = arith.constant 0 : index
    %4 = vector.load %arg2[%c0_2, %c0_3] : memref<8x512xbf16, #tpu.memory_space<vmem>>, vector<8x512xbf16>
    %c0_4 = arith.constant 0 : index
    %c0_5 = arith.constant 0 : index
    %5 = vector.load %arg3[%c0_4, %c0_5] : memref<512x512xbf16, #tpu.memory_space<vmem>>, vector<512x512xbf16>
    %cst = arith.constant dense<0.000000e+00> : vector<8x512xf32>
    %6 = tpu.matmul %4, %5, %cst {dimension_numbers = #tpu.dot_dimension_numbers<[1], [0], [0], [1], [0, 0, 1, 1], [], []>} : vector<8x512xbf16>, vector<512x512xbf16>, vector<8x512xf32> -> vector<8x512xf32>
    %7 = arith.addf %3, %6 : vector<8x512xf32>
    %c0_6 = arith.constant 0 : index
    %c0_7 = arith.constant 0 : index
    %8 = vector.load %arg5[%c0_6, %c0_7] : memref<8x512xf32, #tpu.memory_space<vmem>>, vector<8x512xf32>
    tpu.vector_store %arg5[%c0_6, %c0_7], %7 {strides = array<i32>} : memref<8x512xf32, #tpu.memory_space<vmem>>, vector<8x512xf32>,
    %c8_i32 = arith.constant 8 : i32
    %9 = arith.cmpi eq, %arg1, %c8_i32 : i32
    %10 = arith.extui %9 : i1 to i32
    %c0_i32_8 = arith.constant 0 : i32
    %11 = arith.cmpi ne, %10, %c0_i32_8 : i32
    scf.if %11 {
      %c0_9 = arith.constant 0 : index
      %c0_10 = arith.constant 0 : index
      %12 = vector.load %arg5[%c0_9, %c0_10] : memref<8x512xf32, #tpu.memory_space<vmem>>, vector<8x512xf32>
      %c0_11 = arith.constant 0 : index
      %c0_12 = arith.constant 0 : index
      %13 = vector.load %arg4[%c0_11, %c0_12] : memref<8x512xf32, #tpu.memory_space<vmem>>, vector<8x512xf32>
      tpu.vector_store %arg4[%c0_11, %c0_12], %12 {strides = array<i32>} : memref<8x512xf32, #tpu.memory_space<vmem>>, vector<8x512xf32>,
    } else {
    }
    return
  }
  func.func @transform_0(%arg0: i32, %arg1: i32) -> (i32, i32) {
    %c0_i32 = arith.constant 0 : i32
    return %arg0, %arg1 : i32, i32
  }
  func.func @transform_1(%arg0: i32, %arg1: i32) -> (i32, i32) {
    %c0_i32 = arith.constant 0 : i32
    %c0_i32_0 = arith.constant 0 : i32
    return %arg1, %c0_i32 : i32, i32
  }
  func.func @transform_2(%arg0: i32, %arg1: i32) -> (i32, i32) {
    %c0_i32 = arith.constant 0 : i32
    %c0_i32_0 = arith.constant 0 : i32
    return %arg0, %c0_i32 : i32, i32
  }
}

module attributes {stable_mosaic.version = 11 : i64} {
  func.func @_inorm_stats_kernel(%arg0: i32, %arg1: i32, %arg2: memref<1x4x512xf32, #tpu.memory_space<vmem>>, %arg3: memref<1x1x512xf32, #tpu.memory_space<vmem>>, %arg4: memref<1x1x512xf32, #tpu.memory_space<vmem>>) attributes {dimension_semantics = [#tpu.dimension_semantics<parallel>, #tpu.dimension_semantics<arbitrary>], iteration_bounds = array<i64: 2, 1>, scalar_prefetch = 0 : i64, scratch_operands = 0 : i64, tpu.core_type = #tpu.core_type<tc>, window_params = [{transform_indices = @transform_0, window_bounds = array<i64: 1, 4, 512>}, {transform_indices = @transform_1, window_bounds = array<i64: 1, 1, 512>}, {transform_indices = @transform_2, window_bounds = array<i64: 1, 1, 512>}]} {
    %c0_i32 = arith.constant 0 : i32
    %0 = arith.cmpi eq, %arg1, %c0_i32 : i32
    %1 = arith.extui %0 : i1 to i32
    %c0_i32_0 = arith.constant 0 : i32
    %2 = arith.cmpi ne, %1, %c0_i32_0 : i32
    scf.if %2 {
      %cst_16 = arith.constant 0.000000e+00 : f32
      %15 = vector.broadcast %cst_16 : f32 to vector<1x1x512xf32>
      %c0_17 = arith.constant 0 : index
      %c0_18 = arith.constant 0 : index
      %c0_19 = arith.constant 0 : index
      %16 = vector.load %arg3[%c0_17, %c0_18, %c0_19] : memref<1x1x512xf32, #tpu.memory_space<vmem>>, vector<1x1x512xf32>
      tpu.vector_store %arg3[%c0_17, %c0_18, %c0_19], %15 {strides = array<i32>} : memref<1x1x512xf32, #tpu.memory_space<vmem>>, vector<1x1x512xf32>,
      %cst_20 = arith.constant 0.000000e+00 : f32
      %17 = vector.broadcast %cst_20 : f32 to vector<1x1x512xf32>
      %c0_21 = arith.constant 0 : index
      %c0_22 = arith.constant 0 : index
      %c0_23 = arith.constant 0 : index
      %18 = vector.load %arg4[%c0_21, %c0_22, %c0_23] : memref<1x1x512xf32, #tpu.memory_space<vmem>>, vector<1x1x512xf32>
      tpu.vector_store %arg4[%c0_21, %c0_22, %c0_23], %17 {strides = array<i32>} : memref<1x1x512xf32, #tpu.memory_space<vmem>>, vector<1x1x512xf32>,
    } else {
    }
    %c0 = arith.constant 0 : index
    %c0_1 = arith.constant 0 : index
    %c0_2 = arith.constant 0 : index
    %3 = vector.load %arg2[%c0, %c0_1, %c0_2] : memref<1x4x512xf32, #tpu.memory_space<vmem>>, vector<1x4x512xf32>
    %c0_3 = arith.constant 0 : index
    %c0_4 = arith.constant 0 : index
    %c0_5 = arith.constant 0 : index
    %4 = vector.load %arg3[%c0_3, %c0_4, %c0_5] : memref<1x1x512xf32, #tpu.memory_space<vmem>>, vector<1x1x512xf32>
    %cst = arith.constant dense<0.000000e+00> : vector<1x512xf32>
    %5 = vector.multi_reduction <add>, %3, %cst [1] : vector<1x4x512xf32> to vector<1x512xf32>
    %6 = vector.shape_cast %5 : vector<1x512xf32> to vector<1x1x512xf32>
    %7 = arith.addf %4, %6 : vector<1x1x512xf32>
    %c0_6 = arith.constant 0 : index
    %c0_7 = arith.constant 0 : index
    %c0_8 = arith.constant 0 : index
    %8 = vector.load %arg3[%c0_6, %c0_7, %c0_8] : memref<1x1x512xf32, #tpu.memory_space<vmem>>, vector<1x1x512xf32>
    tpu.vector_store %arg3[%c0_6, %c0_7, %c0_8], %7 {strides = array<i32>} : memref<1x1x512xf32, #tpu.memory_space<vmem>>, vector<1x1x512xf32>,
    %c0_9 = arith.constant 0 : index
    %c0_10 = arith.constant 0 : index
    %c0_11 = arith.constant 0 : index
    %9 = vector.load %arg4[%c0_9, %c0_10, %c0_11] : memref<1x1x512xf32, #tpu.memory_space<vmem>>, vector<1x1x512xf32>
    %10 = arith.mulf %3, %3 : vector<1x4x512xf32>
    %cst_12 = arith.constant dense<0.000000e+00> : vector<1x512xf32>
    %11 = vector.multi_reduction <add>, %10, %cst_12 [1] : vector<1x4x512xf32> to vector<1x512xf32>
    %12 = vector.shape_cast %11 : vector<1x512xf32> to vector<1x1x512xf32>
    %13 = arith.addf %9, %12 : vector<1x1x512xf32>
    %c0_13 = arith.constant 0 : index
    %c0_14 = arith.constant 0 : index
    %c0_15 = arith.constant 0 : index
    %14 = vector.load %arg4[%c0_13, %c0_14, %c0_15] : memref<1x1x512xf32, #tpu.memory_space<vmem>>, vector<1x1x512xf32>
    tpu.vector_store %arg4[%c0_13, %c0_14, %c0_15], %13 {strides = array<i32>} : memref<1x1x512xf32, #tpu.memory_space<vmem>>, vector<1x1x512xf32>,
    return
  }
  func.func @transform_0(%arg0: i32, %arg1: i32) -> (i32, i32, i32) {
    %c0_i32 = arith.constant 0 : i32
    %c0_i32_0 = arith.constant 0 : i32
    return %arg0, %arg1, %c0_i32 : i32, i32, i32
  }
  func.func @transform_1(%arg0: i32, %arg1: i32) -> (i32, i32, i32) {
    %c0_i32 = arith.constant 0 : i32
    %c0_i32_0 = arith.constant 0 : i32
    %c0_i32_1 = arith.constant 0 : i32
    return %arg0, %c0_i32, %c0_i32_0 : i32, i32, i32
  }
  func.func @transform_2(%arg0: i32, %arg1: i32) -> (i32, i32, i32) {
    %c0_i32 = arith.constant 0 : i32
    %c0_i32_0 = arith.constant 0 : i32
    %c0_i32_1 = arith.constant 0 : i32
    return %arg0, %c0_i32, %c0_i32_0 : i32, i32, i32
  }
}

module attributes {stable_mosaic.version = 11 : i64} {
  func.func @_inorm_apply_kernel(%arg0: i32, %arg1: i32, %arg2: memref<1x4x512xf32, #tpu.memory_space<vmem>>, %arg3: memref<1x1x512xf32, #tpu.memory_space<vmem>>, %arg4: memref<1x1x512xf32, #tpu.memory_space<vmem>>, %arg5: memref<1x4x512xf32, #tpu.memory_space<vmem>>) attributes {dimension_semantics = [#tpu.dimension_semantics<parallel>, #tpu.dimension_semantics<parallel>], iteration_bounds = array<i64: 2, 1>, scalar_prefetch = 0 : i64, scratch_operands = 0 : i64, tpu.core_type = #tpu.core_type<tc>, window_params = [{transform_indices = @transform_0, window_bounds = array<i64: 1, 4, 512>}, {transform_indices = @transform_1, window_bounds = array<i64: 1, 1, 512>}, {transform_indices = @transform_2, window_bounds = array<i64: 1, 1, 512>}, {transform_indices = @transform_3, window_bounds = array<i64: 1, 4, 512>}]} {
    %c0 = arith.constant 0 : index
    %c0_0 = arith.constant 0 : index
    %c0_1 = arith.constant 0 : index
    %0 = vector.load %arg2[%c0, %c0_0, %c0_1] : memref<1x4x512xf32, #tpu.memory_space<vmem>>, vector<1x4x512xf32>
    %c0_2 = arith.constant 0 : index
    %c0_3 = arith.constant 0 : index
    %c0_4 = arith.constant 0 : index
    %1 = vector.load %arg3[%c0_2, %c0_3, %c0_4] : memref<1x1x512xf32, #tpu.memory_space<vmem>>, vector<1x1x512xf32>
    %cst = arith.constant 2.500000e-01 : f32
    %2 = vector.broadcast %cst : f32 to vector<1x1x512xf32>
    %3 = arith.mulf %1, %2 : vector<1x1x512xf32>
    %c0_5 = arith.constant 0 : index
    %c0_6 = arith.constant 0 : index
    %c0_7 = arith.constant 0 : index
    %4 = vector.load %arg4[%c0_5, %c0_6, %c0_7] : memref<1x1x512xf32, #tpu.memory_space<vmem>>, vector<1x1x512xf32>
    %cst_8 = arith.constant 2.500000e-01 : f32
    %5 = vector.broadcast %cst_8 : f32 to vector<1x1x512xf32>
    %6 = arith.mulf %4, %5 : vector<1x1x512xf32>
    %7 = arith.mulf %3, %3 : vector<1x1x512xf32>
    %8 = arith.subf %6, %7 : vector<1x1x512xf32>
    %cst_9 = arith.constant 0.000000e+00 : f32
    %9 = vector.broadcast %cst_9 : f32 to vector<1x1x512xf32>
    %10 = arith.maximumf %8, %9 : vector<1x1x512xf32>
    %11 = vector.broadcast %3 : vector<1x1x512xf32> to vector<1x4x512xf32>
    %12 = arith.subf %0, %11 : vector<1x4x512xf32>
    %cst_10 = arith.constant 9.99999974E-6 : f32
    %13 = vector.broadcast %cst_10 : f32 to vector<1x1x512xf32>
    %14 = arith.addf %10, %13 : vector<1x1x512xf32>
    %15 = math.rsqrt %14 : vector<1x1x512xf32>
    %16 = vector.broadcast %15 : vector<1x1x512xf32> to vector<1x4x512xf32>
    %17 = arith.mulf %12, %16 : vector<1x4x512xf32>
    %cst_11 = arith.constant 0.000000e+00 : f32
    %18 = vector.broadcast %cst_11 : f32 to vector<1x4x512xf32>
    %19 = arith.maximumf %17, %18 : vector<1x4x512xf32>
    %c0_12 = arith.constant 0 : index
    %c0_13 = arith.constant 0 : index
    %c0_14 = arith.constant 0 : index
    %20 = vector.load %arg5[%c0_12, %c0_13, %c0_14] : memref<1x4x512xf32, #tpu.memory_space<vmem>>, vector<1x4x512xf32>
    tpu.vector_store %arg5[%c0_12, %c0_13, %c0_14], %19 {strides = array<i32>} : memref<1x4x512xf32, #tpu.memory_space<vmem>>, vector<1x4x512xf32>,
    return
  }
  func.func @transform_0(%arg0: i32, %arg1: i32) -> (i32, i32, i32) {
    %c0_i32 = arith.constant 0 : i32
    %c0_i32_0 = arith.constant 0 : i32
    return %arg0, %arg1, %c0_i32 : i32, i32, i32
  }
  func.func @transform_1(%arg0: i32, %arg1: i32) -> (i32, i32, i32) {
    %c0_i32 = arith.constant 0 : i32
    %c0_i32_0 = arith.constant 0 : i32
    %c0_i32_1 = arith.constant 0 : i32
    return %arg0, %c0_i32, %c0_i32_0 : i32, i32, i32
  }
  func.func @transform_2(%arg0: i32, %arg1: i32) -> (i32, i32, i32) {
    %c0_i32 = arith.constant 0 : i32
    %c0_i32_0 = arith.constant 0 : i32
    %c0_i32_1 = arith.constant 0 : i32
    return %arg0, %c0_i32, %c0_i32_0 : i32, i32, i32
  }
  func.func @transform_3(%arg0: i32, %arg1: i32) -> (i32, i32, i32) {
    %c0_i32 = arith.constant 0 : i32
    %c0_i32_0 = arith.constant 0 : i32
    return %arg0, %arg1, %c0_i32 : i32, i32, i32
  }
}

module attributes {stable_mosaic.version = 11 : i64} {
  func.func @_matmul_kernel(%arg0: i32, %arg1: i32, %arg2: memref<2x512xbf16, #tpu.memory_space<vmem>>, %arg3: memref<512x512xbf16, #tpu.memory_space<vmem>>, %arg4: memref<2x512xf32, #tpu.memory_space<vmem>>, %arg5: memref<2x512xf32, #tpu.memory_space<vmem>>) attributes {dimension_semantics = [#tpu.dimension_semantics<parallel>, #tpu.dimension_semantics<arbitrary>], iteration_bounds = array<i64: 1, 27>, scalar_prefetch = 0 : i64, scratch_operands = 1 : i64, tpu.core_type = #tpu.core_type<tc>, window_params = [{transform_indices = @transform_0, window_bounds = array<i64: 2, 512>}, {transform_indices = @transform_1, window_bounds = array<i64: 512, 512>}, {transform_indices = @transform_2, window_bounds = array<i64: 2, 512>}]} {
    %c0_i32 = arith.constant 0 : i32
    %0 = arith.cmpi eq, %arg1, %c0_i32 : i32
    %1 = arith.extui %0 : i1 to i32
    %c0_i32_0 = arith.constant 0 : i32
    %2 = arith.cmpi ne, %1, %c0_i32_0 : i32
    scf.if %2 {
      %cst_9 = arith.constant 0.000000e+00 : f32
      %12 = vector.broadcast %cst_9 : f32 to vector<2x512xf32>
      %c0_10 = arith.constant 0 : index
      %c0_11 = arith.constant 0 : index
      %13 = vector.load %arg5[%c0_10, %c0_11] : memref<2x512xf32, #tpu.memory_space<vmem>>, vector<2x512xf32>
      tpu.vector_store %arg5[%c0_10, %c0_11], %12 {strides = array<i32>} : memref<2x512xf32, #tpu.memory_space<vmem>>, vector<2x512xf32>,
    } else {
    }
    %c0 = arith.constant 0 : index
    %c0_1 = arith.constant 0 : index
    %3 = vector.load %arg5[%c0, %c0_1] : memref<2x512xf32, #tpu.memory_space<vmem>>, vector<2x512xf32>
    %c0_2 = arith.constant 0 : index
    %c0_3 = arith.constant 0 : index
    %4 = vector.load %arg2[%c0_2, %c0_3] : memref<2x512xbf16, #tpu.memory_space<vmem>>, vector<2x512xbf16>
    %c0_4 = arith.constant 0 : index
    %c0_5 = arith.constant 0 : index
    %5 = vector.load %arg3[%c0_4, %c0_5] : memref<512x512xbf16, #tpu.memory_space<vmem>>, vector<512x512xbf16>
    %cst = arith.constant dense<0.000000e+00> : vector<2x512xf32>
    %6 = tpu.matmul %4, %5, %cst {dimension_numbers = #tpu.dot_dimension_numbers<[1], [0], [0], [1], [0, 0, 1, 1], [], []>} : vector<2x512xbf16>, vector<512x512xbf16>, vector<2x512xf32> -> vector<2x512xf32>
    %7 = arith.addf %3, %6 : vector<2x512xf32>
    %c0_6 = arith.constant 0 : index
    %c0_7 = arith.constant 0 : index
    %8 = vector.load %arg5[%c0_6, %c0_7] : memref<2x512xf32, #tpu.memory_space<vmem>>, vector<2x512xf32>
    tpu.vector_store %arg5[%c0_6, %c0_7], %7 {strides = array<i32>} : memref<2x512xf32, #tpu.memory_space<vmem>>, vector<2x512xf32>,
    %c26_i32 = arith.constant 26 : i32
    %9 = arith.cmpi eq, %arg1, %c26_i32 : i32
    %10 = arith.extui %9 : i1 to i32
    %c0_i32_8 = arith.constant 0 : i32
    %11 = arith.cmpi ne, %10, %c0_i32_8 : i32
    scf.if %11 {
      %c0_9 = arith.constant 0 : index
      %c0_10 = arith.constant 0 : index
      %12 = vector.load %arg5[%c0_9, %c0_10] : memref<2x512xf32, #tpu.memory_space<vmem>>, vector<2x512xf32>
      %c0_11 = arith.constant 0 : index
      %c0_12 = arith.constant 0 : index
      %13 = vector.load %arg4[%c0_11, %c0_12] : memref<2x512xf32, #tpu.memory_space<vmem>>, vector<2x512xf32>
      tpu.vector_store %arg4[%c0_11, %c0_12], %12 {strides = array<i32>} : memref<2x512xf32, #tpu.memory_space<vmem>>, vector<2x512xf32>,
    } else {
    }
    return
  }
  func.func @transform_0(%arg0: i32, %arg1: i32) -> (i32, i32) {
    %c0_i32 = arith.constant 0 : i32
    return %arg0, %arg1 : i32, i32
  }
  func.func @transform_1(%arg0: i32, %arg1: i32) -> (i32, i32) {
    %c0_i32 = arith.constant 0 : i32
    %c0_i32_0 = arith.constant 0 : i32
    return %arg1, %c0_i32 : i32, i32
  }
  func.func @transform_2(%arg0: i32, %arg1: i32) -> (i32, i32) {
    %c0_i32 = arith.constant 0 : i32
    %c0_i32_0 = arith.constant 0 : i32
    return %arg0, %c0_i32 : i32, i32
  }
}

module attributes {stable_mosaic.version = 11 : i64} {
  func.func @_inorm_stats_kernel(%arg0: i32, %arg1: i32, %arg2: memref<1x1x512xf32, #tpu.memory_space<vmem>>, %arg3: memref<1x1x512xf32, #tpu.memory_space<vmem>>, %arg4: memref<1x1x512xf32, #tpu.memory_space<vmem>>) attributes {dimension_semantics = [#tpu.dimension_semantics<parallel>, #tpu.dimension_semantics<arbitrary>], iteration_bounds = array<i64: 2, 1>, scalar_prefetch = 0 : i64, scratch_operands = 0 : i64, tpu.core_type = #tpu.core_type<tc>, window_params = [{transform_indices = @transform_0, window_bounds = array<i64: 1, 1, 512>}, {transform_indices = @transform_1, window_bounds = array<i64: 1, 1, 512>}, {transform_indices = @transform_2, window_bounds = array<i64: 1, 1, 512>}]} {
    %c0_i32 = arith.constant 0 : i32
    %0 = arith.cmpi eq, %arg1, %c0_i32 : i32
    %1 = arith.extui %0 : i1 to i32
    %c0_i32_0 = arith.constant 0 : i32
    %2 = arith.cmpi ne, %1, %c0_i32_0 : i32
    scf.if %2 {
      %cst_16 = arith.constant 0.000000e+00 : f32
      %15 = vector.broadcast %cst_16 : f32 to vector<1x1x512xf32>
      %c0_17 = arith.constant 0 : index
      %c0_18 = arith.constant 0 : index
      %c0_19 = arith.constant 0 : index
      %16 = vector.load %arg3[%c0_17, %c0_18, %c0_19] : memref<1x1x512xf32, #tpu.memory_space<vmem>>, vector<1x1x512xf32>
      tpu.vector_store %arg3[%c0_17, %c0_18, %c0_19], %15 {strides = array<i32>} : memref<1x1x512xf32, #tpu.memory_space<vmem>>, vector<1x1x512xf32>,
      %cst_20 = arith.constant 0.000000e+00 : f32
      %17 = vector.broadcast %cst_20 : f32 to vector<1x1x512xf32>
      %c0_21 = arith.constant 0 : index
      %c0_22 = arith.constant 0 : index
      %c0_23 = arith.constant 0 : index
      %18 = vector.load %arg4[%c0_21, %c0_22, %c0_23] : memref<1x1x512xf32, #tpu.memory_space<vmem>>, vector<1x1x512xf32>
      tpu.vector_store %arg4[%c0_21, %c0_22, %c0_23], %17 {strides = array<i32>} : memref<1x1x512xf32, #tpu.memory_space<vmem>>, vector<1x1x512xf32>,
    } else {
    }
    %c0 = arith.constant 0 : index
    %c0_1 = arith.constant 0 : index
    %c0_2 = arith.constant 0 : index
    %3 = vector.load %arg2[%c0, %c0_1, %c0_2] : memref<1x1x512xf32, #tpu.memory_space<vmem>>, vector<1x1x512xf32>
    %c0_3 = arith.constant 0 : index
    %c0_4 = arith.constant 0 : index
    %c0_5 = arith.constant 0 : index
    %4 = vector.load %arg3[%c0_3, %c0_4, %c0_5] : memref<1x1x512xf32, #tpu.memory_space<vmem>>, vector<1x1x512xf32>
    %cst = arith.constant dense<0.000000e+00> : vector<1x512xf32>
    %5 = vector.multi_reduction <add>, %3, %cst [1] : vector<1x1x512xf32> to vector<1x512xf32>
    %6 = vector.shape_cast %5 : vector<1x512xf32> to vector<1x1x512xf32>
    %7 = arith.addf %4, %6 : vector<1x1x512xf32>
    %c0_6 = arith.constant 0 : index
    %c0_7 = arith.constant 0 : index
    %c0_8 = arith.constant 0 : index
    %8 = vector.load %arg3[%c0_6, %c0_7, %c0_8] : memref<1x1x512xf32, #tpu.memory_space<vmem>>, vector<1x1x512xf32>
    tpu.vector_store %arg3[%c0_6, %c0_7, %c0_8], %7 {strides = array<i32>} : memref<1x1x512xf32, #tpu.memory_space<vmem>>, vector<1x1x512xf32>,
    %c0_9 = arith.constant 0 : index
    %c0_10 = arith.constant 0 : index
    %c0_11 = arith.constant 0 : index
    %9 = vector.load %arg4[%c0_9, %c0_10, %c0_11] : memref<1x1x512xf32, #tpu.memory_space<vmem>>, vector<1x1x512xf32>
    %10 = arith.mulf %3, %3 : vector<1x1x512xf32>
    %cst_12 = arith.constant dense<0.000000e+00> : vector<1x512xf32>
    %11 = vector.multi_reduction <add>, %10, %cst_12 [1] : vector<1x1x512xf32> to vector<1x512xf32>
    %12 = vector.shape_cast %11 : vector<1x512xf32> to vector<1x1x512xf32>
    %13 = arith.addf %9, %12 : vector<1x1x512xf32>
    %c0_13 = arith.constant 0 : index
    %c0_14 = arith.constant 0 : index
    %c0_15 = arith.constant 0 : index
    %14 = vector.load %arg4[%c0_13, %c0_14, %c0_15] : memref<1x1x512xf32, #tpu.memory_space<vmem>>, vector<1x1x512xf32>
    tpu.vector_store %arg4[%c0_13, %c0_14, %c0_15], %13 {strides = array<i32>} : memref<1x1x512xf32, #tpu.memory_space<vmem>>, vector<1x1x512xf32>,
    return
  }
  func.func @transform_0(%arg0: i32, %arg1: i32) -> (i32, i32, i32) {
    %c0_i32 = arith.constant 0 : i32
    %c0_i32_0 = arith.constant 0 : i32
    return %arg0, %arg1, %c0_i32 : i32, i32, i32
  }
  func.func @transform_1(%arg0: i32, %arg1: i32) -> (i32, i32, i32) {
    %c0_i32 = arith.constant 0 : i32
    %c0_i32_0 = arith.constant 0 : i32
    %c0_i32_1 = arith.constant 0 : i32
    return %arg0, %c0_i32, %c0_i32_0 : i32, i32, i32
  }
  func.func @transform_2(%arg0: i32, %arg1: i32) -> (i32, i32, i32) {
    %c0_i32 = arith.constant 0 : i32
    %c0_i32_0 = arith.constant 0 : i32
    %c0_i32_1 = arith.constant 0 : i32
    return %arg0, %c0_i32, %c0_i32_0 : i32, i32, i32
  }
}

module attributes {stable_mosaic.version = 11 : i64} {
  func.func @_inorm_apply_kernel(%arg0: i32, %arg1: i32, %arg2: memref<1x1x512xf32, #tpu.memory_space<vmem>>, %arg3: memref<1x1x512xf32, #tpu.memory_space<vmem>>, %arg4: memref<1x1x512xf32, #tpu.memory_space<vmem>>, %arg5: memref<1x1x512xf32, #tpu.memory_space<vmem>>) attributes {dimension_semantics = [#tpu.dimension_semantics<parallel>, #tpu.dimension_semantics<parallel>], iteration_bounds = array<i64: 2, 1>, scalar_prefetch = 0 : i64, scratch_operands = 0 : i64, tpu.core_type = #tpu.core_type<tc>, window_params = [{transform_indices = @transform_0, window_bounds = array<i64: 1, 1, 512>}, {transform_indices = @transform_1, window_bounds = array<i64: 1, 1, 512>}, {transform_indices = @transform_2, window_bounds = array<i64: 1, 1, 512>}, {transform_indices = @transform_3, window_bounds = array<i64: 1, 1, 512>}]} {
    %c0 = arith.constant 0 : index
    %c0_0 = arith.constant 0 : index
    %c0_1 = arith.constant 0 : index
    %0 = vector.load %arg2[%c0, %c0_0, %c0_1] : memref<1x1x512xf32, #tpu.memory_space<vmem>>, vector<1x1x512xf32>
    %c0_2 = arith.constant 0 : index
    %c0_3 = arith.constant 0 : index
    %c0_4 = arith.constant 0 : index
    %1 = vector.load %arg3[%c0_2, %c0_3, %c0_4] : memref<1x1x512xf32, #tpu.memory_space<vmem>>, vector<1x1x512xf32>
    %cst = arith.constant 1.000000e+00 : f32
    %2 = vector.broadcast %cst : f32 to vector<1x1x512xf32>
    %3 = arith.mulf %1, %2 : vector<1x1x512xf32>
    %c0_5 = arith.constant 0 : index
    %c0_6 = arith.constant 0 : index
    %c0_7 = arith.constant 0 : index
    %4 = vector.load %arg4[%c0_5, %c0_6, %c0_7] : memref<1x1x512xf32, #tpu.memory_space<vmem>>, vector<1x1x512xf32>
    %cst_8 = arith.constant 1.000000e+00 : f32
    %5 = vector.broadcast %cst_8 : f32 to vector<1x1x512xf32>
    %6 = arith.mulf %4, %5 : vector<1x1x512xf32>
    %7 = arith.mulf %3, %3 : vector<1x1x512xf32>
    %8 = arith.subf %6, %7 : vector<1x1x512xf32>
    %cst_9 = arith.constant 0.000000e+00 : f32
    %9 = vector.broadcast %cst_9 : f32 to vector<1x1x512xf32>
    %10 = arith.maximumf %8, %9 : vector<1x1x512xf32>
    %11 = arith.subf %0, %3 : vector<1x1x512xf32>
    %cst_10 = arith.constant 9.99999974E-6 : f32
    %12 = vector.broadcast %cst_10 : f32 to vector<1x1x512xf32>
    %13 = arith.addf %10, %12 : vector<1x1x512xf32>
    %14 = math.rsqrt %13 : vector<1x1x512xf32>
    %15 = arith.mulf %11, %14 : vector<1x1x512xf32>
    %cst_11 = arith.constant 0.000000e+00 : f32
    %16 = vector.broadcast %cst_11 : f32 to vector<1x1x512xf32>
    %17 = arith.maximumf %15, %16 : vector<1x1x512xf32>
    %c0_12 = arith.constant 0 : index
    %c0_13 = arith.constant 0 : index
    %c0_14 = arith.constant 0 : index
    %18 = vector.load %arg5[%c0_12, %c0_13, %c0_14] : memref<1x1x512xf32, #tpu.memory_space<vmem>>, vector<1x1x512xf32>
    tpu.vector_store %arg5[%c0_12, %c0_13, %c0_14], %17 {strides = array<i32>} : memref<1x1x512xf32, #tpu.memory_space<vmem>>, vector<1x1x512xf32>,
    return
  }
  func.func @transform_0(%arg0: i32, %arg1: i32) -> (i32, i32, i32) {
    %c0_i32 = arith.constant 0 : i32
    %c0_i32_0 = arith.constant 0 : i32
    return %arg0, %arg1, %c0_i32 : i32, i32, i32
  }
  func.func @transform_1(%arg0: i32, %arg1: i32) -> (i32, i32, i32) {
    %c0_i32 = arith.constant 0 : i32
    %c0_i32_0 = arith.constant 0 : i32
    %c0_i32_1 = arith.constant 0 : i32
    return %arg0, %c0_i32, %c0_i32_0 : i32, i32, i32
  }
  func.func @transform_2(%arg0: i32, %arg1: i32) -> (i32, i32, i32) {
    %c0_i32 = arith.constant 0 : i32
    %c0_i32_0 = arith.constant 0 : i32
    %c0_i32_1 = arith.constant 0 : i32
    return %arg0, %c0_i32, %c0_i32_0 : i32, i32, i32
  }
  func.func @transform_3(%arg0: i32, %arg1: i32) -> (i32, i32, i32) {
    %c0_i32 = arith.constant 0 : i32
    %c0_i32_0 = arith.constant 0 : i32
    return %arg0, %arg1, %c0_i32 : i32, i32, i32
  }
}

</mosaic_0001>

<llo_original>
// kernel: feature_net.15
$region0: #{feature_net.15}
  #allocation0 [shape = 'u32[]', space=smem, size = 0x4, offset = 0x4, fixed_abs, tag = 'smem constant byte address 0x4 - core index']
  #allocation1 [shape = 'u32[144,128]{1,0:T(1,128)}', space=vmem, size = 0x12000, scoped, tag = 'internal scratch']
  #allocation2 [shape = 'f32[256,128]{1,0:T(8,128)}', space=vmem, size = 0x20000, scoped, tag = 'scratch operand']
  %s0 = inlined_call_operand.vmem [shape: bf16[2048,81], index: 0, kind: input, shape index: {}]
  %s1 = inlined_call_operand.vmem [shape: bf16[81,128], index: 1, kind: input, shape index: {}]
  %s2 = inlined_call_operand.vmem [shape: f32[2048,128], index: 2, kind: output, shape index: {}]
  %s3 = sld [smem:[#allocation0]]
  $region49: #{feature_net.15} parent=0
    _
  %s5 = ssub.s32 1, %s3
  %s6 = scalar_select 0, %s5, %s3
  loop: start=0, step=1, limit=10
  $region2: #{feature_net.15} parent=0 // loop_pre_header
    _
  $region3: #{feature_net.15} parent=0 // loop_header
    %s8 = sphi 0, %s12
    %p9 = scmp.ge.s32.totalorder %s8, 10
    %s15 = sphi 0, %s27
    %s16 = sphi 0, %s23
    %s17 = sphi 0, %s15
    %s18 = sphi 0, %s16
    %s19 = sphi 0, %s17
    %s20 = sphi 0, %s18
    %s32 = sphi 0, %s34
    %s35 = sphi 0, %s32
    %s36 = sphi 0, %s35
    %s52 = sphi 0, %s36
    %s58 = sphi 0, %s60
    %s61 = sphi 0, %s58
    %s62 = sphi 0, %s61
    %s78 = sphi 0, %s62
    %s84 = sphi 0, %s86
    %s87 = sphi 0, %s84
    %s88 = sphi 0, %s87
    %s104 = sphi 0, %s88
  $region4: #{feature_net.15} parent=0 // loop_header_branch
    %11 = sbr.rel (%p9) target = $region8
  $region5: #{feature_net.15} parent=0 // loop_body
    %s13 = ssub.s32 %s8, 1
    %s14 = ssub.s32 %s8, 2
    %s21 = sadd.s32 1, %s16
    %p22 = scmp.ge.s32.totalorder %s21, 1
    %s23 = scalar_select %p22, 0, %s21
    %s24 = sadd.s32 1, %s15
    %s25 = scalar_select %p22, %s24, %s15
    %p26 = scmp.ge.s32.totalorder %s25, 8
    %s27 = scalar_select %p26, 0, %s25
    %s28 = ssub.s32 %s15, %s27
    %s29 = ssub.s32 %s16, %s23
    %s30 = sor.u32 %s28, %s29
    %p31 = scmp.eq.s32.totalorder %s30, 0
    %s33 = sadd.s32 %s32, 1
    %s34 = scalar_select %p31, %s32, %s33
    %p37 = pneg %p31
    %p38 = scmp.eq.s32.totalorder %s8, 7
    %p39 = por %p37, %p38
    %p40 = scmp.ne.s32.totalorder %s32, %s35
    %p41 = scmp.eq.s32.totalorder %s8, 0
    %p42 = por %p40, %p41
    %p43 = scmp.ne.s32.totalorder %s32, %s35
    %p44 = scmp.eq.s32.totalorder %s13, 7
    %p45 = por %p43, %p44
    %p46 = scmp.ne.s32.totalorder %s35, %s36
    %p47 = scmp.eq.s32.totalorder %s13, 0
    %p48 = por %p46, %p47
    %p49 = scmp.ne.s32.totalorder %s35, %s36
    %p50 = scmp.eq.s32.totalorder %s14, 7
    %p51 = por %p49, %p50
    %p53 = scmp.ne.s32.totalorder %s36, %s52
    %p54 = scmp.eq.s32.totalorder %s14, 0
    %p55 = por %p53, %p54
    %s56 = ssub.s32 %s16, %s23
    %p57 = scmp.eq.s32.totalorder %s56, 0
    %s59 = sadd.s32 %s58, 1
    %s60 = scalar_select %p57, %s58, %s59
    %p63 = pneg %p57
    %p64 = scmp.eq.s32.totalorder %s8, 7
    %p65 = por %p63, %p64
    %p66 = scmp.ne.s32.totalorder %s58, %s61
    %p67 = scmp.eq.s32.totalorder %s8, 0
    %p68 = por %p66, %p67
    %p69 = scmp.ne.s32.totalorder %s58, %s61
    %p70 = scmp.eq.s32.totalorder %s13, 7
    %p71 = por %p69, %p70
    %p72 = scmp.ne.s32.totalorder %s61, %s62
    %p73 = scmp.eq.s32.totalorder %s13, 0
    %p74 = por %p72, %p73
    %p75 = scmp.ne.s32.totalorder %s61, %s62
    %p76 = scmp.eq.s32.totalorder %s14, 7
    %p77 = por %p75, %p76
    %p79 = scmp.ne.s32.totalorder %s62, %s78
    %p80 = scmp.eq.s32.totalorder %s14, 0
    %p81 = por %p79, %p80
    %s82 = ssub.s32 %s15, %s27
    %p83 = scmp.eq.s32.totalorder %s82, 0
    %s85 = sadd.s32 %s84, 1
    %s86 = scalar_select %p83, %s84, %s85
    %p89 = pneg %p83
    %p90 = scmp.eq.s32.totalorder %s8, 7
    %p91 = por %p89, %p90
    %p92 = scmp.ne.s32.totalorder %s84, %s87
    %p93 = scmp.eq.s32.totalorder %s8, 0
    %p94 = por %p92, %p93
    %p95 = scmp.ne.s32.totalorder %s84, %s87
    %p96 = scmp.eq.s32.totalorder %s13, 7
    %p97 = por %p95, %p96
    %p98 = scmp.ne.s32.totalorder %s87, %s88
    %p99 = scmp.eq.s32.totalorder %s13, 0
    %p100 = por %p98, %p99
    %p101 = scmp.ne.s32.totalorder %s87, %s88
    %p102 = scmp.eq.s32.totalorder %s14, 7
    %p103 = por %p101, %p102
    %p105 = scmp.ne.s32.totalorder %s88, %s104
    %p106 = scmp.eq.s32.totalorder %s14, 0
    %p107 = por %p105, %p106
    %p108 = scmp.le.s32.totalorder 1, %s8
    %p109 = scmp.lt.s32.totalorder %s8, 9
    %p110 = pnand %p108, %p109
    %p111 = pneg %p110
    // Predicated region
    $region9: #{feature_net.15} parent=5 // pred_check
      _
    $region10: #{feature_net.15} parent=5 // pred_check_branch
      %113 = sbr.rel (%p110) target = $region12
    $region11: #{feature_net.15} parent=5 // pred_region
      %s114 = ssub.s32 %s8, 1
      // Predicated region
      $region13: #{feature_net.15} parent=11 // pred_check
        %p115 = pneg %p74
      $region14: #{feature_net.15} parent=11 // pred_check_branch
        %117 = sbr.rel (%p115) target = $region16
      $region15: #{feature_net.15} parent=11 // pred_region
        %s118 = smul.u32 11, %s18
        %p119 = scmp.lt.s32.totalorder %s118, 10
        %s120 = scalar_select %p119, %s118, 10
        %s121 = smul.addr %s120, 4
        %s122 = scalar_lea.vmem %s1, %s121
        %s123 = smul.u32 11, %s18
      $region16: #{feature_net.15} parent=11 // pred_fallthru
        _
    $region12: #{feature_net.15} parent=5 // pred_fallthru
      _
    %p124 = scmp.lt.s32.totalorder %s8, 8
    // Predicated region
    $region17: #{feature_net.15} parent=5 // pred_check
      %p125 = pneg %p124
    $region18: #{feature_net.15} parent=5 // pred_check_branch
      %127 = sbr.rel (%p125) target = $region20
    $region19: #{feature_net.15} parent=5 // pred_region
      // Predicated region
      $region21: #{feature_net.15} parent=19 // pred_check
        %p128 = pneg %p42
      $region22: #{feature_net.15} parent=19 // pred_check_branch
        %130 = sbr.rel (%p128) target = $region24
      $region23: #{feature_net.15} parent=19 // pred_region
        %s131 = smul.u32 32, %s15
        %p132 = scmp.lt.s32.totalorder %s131, 255
        %s133 = scalar_select %p132, %s131, 255
        %p134 = scmp.lt.s32.totalorder %s16, 0
        %s135 = scalar_select %p134, %s16, 0
        %s136 = sadd.s32 %s135, %s133
        %s137 = smul.addr %s136, 4
        %s138 = scalar_lea.vmem %s0, %s137
        %s139 = smul.u32 32, %s15
      $region24: #{feature_net.15} parent=19 // pred_fallthru
        _
    $region20: #{feature_net.15} parent=5 // pred_fallthru
      _
    %p140 = scmp.le.s32.totalorder 1, %s8
    %p141 = scmp.lt.s32.totalorder %s8, 9
    %p142 = pnand %p140, %p141
    %p143 = pneg %p142
    // Predicated region
    $region25: #{feature_net.15} parent=5 // pred_check
      _
    $region26: #{feature_net.15} parent=5 // pred_check_branch
      %145 = sbr.rel (%p142) target = $region28
    $region27: #{feature_net.15} parent=5 // pred_region
      %s146 = ssub.s32 %s8, 1
      %s147 = smul.u32 32, %s17
      %p148 = scmp.lt.s32.totalorder %s147, 255
      %s149 = scalar_select %p148, %s147, 255
      %p150 = scmp.lt.s32.totalorder %s18, 0
      %s151 = scalar_select %p150, %s18, 0
      %s152 = sadd.s32 %s151, %s149
      %s153 = smul.addr %s152, 4
      %s154 = scalar_lea.vmem %s0, %s153
      %p155 = pneg %p48
      %p156 = pneg %p45
      %s157 = smul.u32 11, %s18
      %p158 = scmp.lt.s32.totalorder %s157, 10
      %s159 = scalar_select %p158, %s157, 10
      %s160 = smul.addr %s159, 4
      %s161 = scalar_lea.vmem %s1, %s160
      %p162 = pneg %p74
      %p163 = pneg %p71
      %p164 = pneg %p100
      %p165 = pneg %p97
      %s166 = smul.u32 32, %s17
      %p167 = scmp.lt.s32.totalorder %s166, 255
      %s168 = scalar_select %p167, %s166, 255
      %s169 = smul.addr %s168, 8
      %s170 = scalar_lea.vmem %s2, %s169
      %s171 = smul.u32 32, %s17
      %p172 = scmp.lt.s32.totalorder %s171, 255
      %s173 = scalar_select %p172, %s171, 255
      %p174 = scmp.lt.s32.totalorder %s18, 0
      %s175 = scalar_select %p174, %s18, 0
      %s176 = sadd.s32 %s175, %s173
      %s177 = smul.addr %s176, 4
      %s178 = scalar_lea.vmem %s0, %s177
      %s179 = smul.u32 32, %s17
      %s180 = smul.u32 11, %s18
      %p181 = scmp.lt.s32.totalorder %s180, 10
      %s182 = scalar_select %p181, %s180, 10
      %s183 = smul.addr %s182, 4
      %s184 = scalar_lea.vmem %s1, %s183
      %s185 = smul.u32 11, %s18
      %s186 = smul.u32 32, %s17
      %p187 = scmp.lt.s32.totalorder %s186, 255
      %s188 = scalar_select %p187, %s186, 255
      %s189 = smul.addr %s188, 8
      %s190 = scalar_lea.vmem %s2, %s189
      %s191 = smul.u32 32, %s17
      %p193 = scmp.eq.s32.totalorder %s18, 0
      // Predicated region
      $region29: #{feature_net.15} parent=27 // pred_check
        %p194 = pneg %p193
      $region30: #{feature_net.15} parent=27 // pred_check_branch
        %196 = sbr.rel (%p194) target = $region32
      $region31: #{feature_net.15} parent=27 // pred_region
        %197 = vst [vmem:[#allocation2] sm:$0xff] 0.0
        %198 = vst [vmem:[#allocation2 + $0x8] sm:$0xff] 0.0
        %199 = vst [vmem:[#allocation2 + $0x10] sm:$0xff] 0.0
        %200 = vst [vmem:[#allocation2 + $0x18] sm:$0xff] 0.0
        %201 = vst [vmem:[#allocation2 + $0x20] sm:$0xff] 0.0
        %202 = vst [vmem:[#allocation2 + $0x28] sm:$0xff] 0.0
        %203 = vst [vmem:[#allocation2 + $0x30] sm:$0xff] 0.0
        %204 = vst [vmem:[#allocation2 + $0x38] sm:$0xff] 0.0
        %205 = vst [vmem:[#allocation2 + $0x40] sm:$0xff] 0.0
        %206 = vst [vmem:[#allocation2 + $0x48] sm:$0xff] 0.0
        %207 = vst [vmem:[#allocation2 + $0x50] sm:$0xff] 0.0
        %208 = vst [vmem:[#allocation2 + $0x58] sm:$0xff] 0.0
        %209 = vst [vmem:[#allocation2 + $0x60] sm:$0xff] 0.0
        %210 = vst [vmem:[#allocation2 + $0x68] sm:$0xff] 0.0
        %211 = vst [vmem:[#allocation2 + $0x70] sm:$0xff] 0.0
        %212 = vst [vmem:[#allocation2 + $0x78] sm:$0xff] 0.0
        %213 = vst [vmem:[#allocation2 + $0x80] sm:$0xff] 0.0
        %214 = vst [vmem:[#allocation2 + $0x88] sm:$0xff] 0.0
        %215 = vst [vmem:[#allocation2 + $0x90] sm:$0xff] 0.0
        %216 = vst [vmem:[#allocation2 + $0x98] sm:$0xff] 0.0
        %217 = vst [vmem:[#allocation2 + $0xa0] sm:$0xff] 0.0
        %218 = vst [vmem:[#allocation2 + $0xa8] sm:$0xff] 0.0
        %219 = vst [vmem:[#allocation2 + $0xb0] sm:$0xff] 0.0
        %220 = vst [vmem:[#allocation2 + $0xb8] sm:$0xff] 0.0
        %221 = vst [vmem:[#allocation2 + $0xc0] sm:$0xff] 0.0
        %222 = vst [vmem:[#allocation2 + $0xc8] sm:$0xff] 0.0
        %223 = vst [vmem:[#allocation2 + $0xd0] sm:$0xff] 0.0
        %224 = vst [vmem:[#allocation2 + $0xd8] sm:$0xff] 0.0
        %225 = vst [vmem:[#allocation2 + $0xe0] sm:$0xff] 0.0
        %226 = vst [vmem:[#allocation2 + $0xe8] sm:$0xff] 0.0
        %227 = vst [vmem:[#allocation2 + $0xf0] sm:$0xff] 0.0
        %228 = vst [vmem:[#allocation2 + $0xf8] sm:$0xff] 0.0
      $region32: #{feature_net.15} parent=27 // pred_fallthru
        _
      %v229 = vld [vmem:[#allocation2] sm:$0xff]
      %v230 = vld [vmem:[#allocation2 + $0x8] sm:$0xff]
      %v231 = vld [vmem:[#allocation2 + $0x10] sm:$0xff]
      %v232 = vld [vmem:[#allocation2 + $0x18] sm:$0xff]
      %v233 = vld [vmem:[#allocation2 + $0x20] sm:$0xff]
      %v234 = vld [vmem:[#allocation2 + $0x28] sm:$0xff]
      %v235 = vld [vmem:[#allocation2 + $0x30] sm:$0xff]
      %v236 = vld [vmem:[#allocation2 + $0x38] sm:$0xff]
      %v237 = vld [vmem:[#allocation2 + $0x40] sm:$0xff]
      %v238 = vld [vmem:[#allocation2 + $0x48] sm:$0xff]
      %v239 = vld [vmem:[#allocation2 + $0x50] sm:$0xff]
      %v240 = vld [vmem:[#allocation2 + $0x58] sm:$0xff]
      %v241 = vld [vmem:[#allocation2 + $0x60] sm:$0xff]
      %v242 = vld [vmem:[#allocation2 + $0x68] sm:$0xff]
      %v243 = vld [vmem:[#allocation2 + $0x70] sm:$0xff]
      %v244 = vld [vmem:[#allocation2 + $0x78] sm:$0xff]
      %v245 = vld [vmem:[#allocation2 + $0x80] sm:$0xff]
      %v246 = vld [vmem:[#allocation2 + $0x88] sm:$0xff]
      %v247 = vld [vmem:[#allocation2 + $0x90] sm:$0xff]
      %v248 = vld [vmem:[#allocation2 + $0x98] sm:$0xff]
      %v249 = vld [vmem:[#allocation2 + $0xa0] sm:$0xff]
      %v250 = vld [vmem:[#allocation2 + $0xa8] sm:$0xff]
      %v251 = vld [vmem:[#allocation2 + $0xb0] sm:$0xff]
      %v252 = vld [vmem:[#allocation2 + $0xb8] sm:$0xff]
      %v253 = vld [vmem:[#allocation2 + $0xc0] sm:$0xff]
      %v254 = vld [vmem:[#allocation2 + $0xc8] sm:$0xff]
      %v255 = vld [vmem:[#allocation2 + $0xd0] sm:$0xff]
      %v256 = vld [vmem:[#allocation2 + $0xd8] sm:$0xff]
      %v257 = vld [vmem:[#allocation2 + $0xe0] sm:$0xff]
      %v258 = vld [vmem:[#allocation2 + $0xe8] sm:$0xff]
      %v259 = vld [vmem:[#allocation2 + $0xf0] sm:$0xff]
      %v260 = vld [vmem:[#allocation2 + $0xf8] sm:$0xff]
      %v261 = vld [vmem:[%s178] sm:$0xf]
      %v262 = vld [vmem:[%s178 + $0x4] sm:$0xf]
      %v263 = vld [vmem:[%s178 + $0x8] sm:$0xf]
      %v264 = vld [vmem:[%s178 + $0xc] sm:$0xf]
      %v265 = vld [vmem:[%s178 + $0x10] sm:$0xf]
      %v266 = vld [vmem:[%s178 + $0x14] sm:$0xf]
      %v267 = vld [vmem:[%s178 + $0x18] sm:$0xf]
      %v268 = vld [vmem:[%s178 + $0x1c] sm:$0xf]
      %v269 = vld [vmem:[%s178 + $0x20] sm:$0xf]
      %v270 = vld [vmem:[%s178 + $0x24] sm:$0xf]
      %v271 = vld [vmem:[%s178 + $0x28] sm:$0xf]
      %v272 = vld [vmem:[%s178 + $0x2c] sm:$0xf]
      %v273 = vld [vmem:[%s178 + $0x30] sm:$0xf]
      %v274 = vld [vmem:[%s178 + $0x34] sm:$0xf]
      %v275 = vld [vmem:[%s178 + $0x38] sm:$0xf]
      %v276 = vld [vmem:[%s178 + $0x3c] sm:$0xf]
      %v277 = vld [vmem:[%s178 + $0x40] sm:$0xf]
      %v278 = vld [vmem:[%s178 + $0x44] sm:$0xf]
      %v279 = vld [vmem:[%s178 + $0x48] sm:$0xf]
      %v280 = vld [vmem:[%s178 + $0x4c] sm:$0xf]
      %v281 = vld [vmem:[%s178 + $0x50] sm:$0xf]
      %v282 = vld [vmem:[%s178 + $0x54] sm:$0xf]
      %v283 = vld [vmem:[%s178 + $0x58] sm:$0xf]
      %v284 = vld [vmem:[%s178 + $0x5c] sm:$0xf]
      %v285 = vld [vmem:[%s178 + $0x60] sm:$0xf]
      %v286 = vld [vmem:[%s178 + $0x64] sm:$0xf]
      %v287 = vld [vmem:[%s178 + $0x68] sm:$0xf]
      %v288 = vld [vmem:[%s178 + $0x6c] sm:$0xf]
      %v289 = vld [vmem:[%s178 + $0x70] sm:$0xf]
      %v290 = vld [vmem:[%s178 + $0x74] sm:$0xf]
      %v291 = vld [vmem:[%s178 + $0x78] sm:$0xf]
      %v292 = vld [vmem:[%s178 + $0x7c] sm:$0xf]
      %v293 = vld [vmem:[%s184] sm:$0xf]
      %v294 = vld [vmem:[%s184 + $0x4] sm:$0xf]
      %v295 = vld [vmem:[%s184 + $0x8] sm:$0xf]
      %v296 = vld [vmem:[%s184 + $0xc] sm:$0xf]
      %v297 = vld [vmem:[%s184 + $0x10] sm:$0xf]
      %v298 = vld [vmem:[%s184 + $0x14] sm:$0xf]
      %v299 = vld [vmem:[%s184 + $0x18] sm:$0xf]
      %v300 = vld [vmem:[%s184 + $0x1c] sm:$0xf]
      %v301 = vld [vmem:[%s184 + $0x20] sm:$0xf]
      %v302 = vld [vmem:[%s184 + $0x24] sm:$0xf]
      %v303 = vld [vmem:[%s184 + $0x28] sm:$0x1]
      %v336 = vunpack.c.l.b16 %v261
      %v337 = vunpack.c.l.b16 %v262
      %v338 = vunpack.c.l.b16 %v263
      %v339 = vunpack.c.l.b16 %v264
      %v340 = vunpack.c.l.b16 %v265
      %v341 = vunpack.c.l.b16 %v266
      %v342 = vunpack.c.l.b16 %v267
      %v343 = vunpack.c.l.b16 %v268
      %v344 = vunpack.c.l.b16 %v269
      %v345 = vunpack.c.l.b16 %v270
      %v346 = vunpack.c.l.b16 %v271
      %v347 = vunpack.c.l.b16 %v272
      %v348 = vunpack.c.l.b16 %v273
      %v349 = vunpack.c.l.b16 %v274
      %v350 = vunpack.c.l.b16 %v275
      %v351 = vunpack.c.l.b16 %v276
      %v352 = vunpack.c.l.b16 %v277
      %v353 = vunpack.c.l.b16 %v278
      %v354 = vunpack.c.l.b16 %v279
      %v355 = vunpack.c.l.b16 %v280
      %v356 = vunpack.c.l.b16 %v281
      %v357 = vunpack.c.l.b16 %v282
      %v358 = vunpack.c.l.b16 %v283
      %v359 = vunpack.c.l.b16 %v284
      %v360 = vunpack.c.l.b16 %v285
      %v361 = vunpack.c.l.b16 %v286
      %v362 = vunpack.c.l.b16 %v287
      %v363 = vunpack.c.l.b16 %v288
      %v364 = vunpack.c.l.b16 %v289
      %v365 = vunpack.c.l.b16 %v290
      %v366 = vunpack.c.l.b16 %v291
      %v367 = vunpack.c.l.b16 %v292
      %v368 = vpack.c.b16 %v337, %v336
      %v369 = vpack.c.b16 %v339, %v338
      %v370 = vpack.c.b16 %v341, %v340
      %v371 = vpack.c.b16 %v343, %v342
      %v372 = vpack.c.b16 %v345, %v344
      %v373 = vpack.c.b16 %v347, %v346
      %v374 = vpack.c.b16 %v349, %v348
      %v375 = vpack.c.b16 %v351, %v350
      %v376 = vpack.c.b16 %v353, %v352
      %v377 = vpack.c.b16 %v355, %v354
      %v378 = vpack.c.b16 %v357, %v356
      %v379 = vpack.c.b16 %v359, %v358
      %v380 = vpack.c.b16 %v361, %v360
      %v381 = vpack.c.b16 %v363, %v362
      %v382 = vpack.c.b16 %v365, %v364
      %v383 = vpack.c.b16 %v367, %v366
      %v395 = vunpack.c.l.b16 %v293
      %v396 = vunpack.c.l.b16 %v294
      %v397 = vunpack.c.l.b16 %v295
      %v398 = vunpack.c.l.b16 %v296
      %v399 = vunpack.c.l.b16 %v297
      %v400 = vunpack.c.l.b16 %v298
      %v401 = vunpack.c.l.b16 %v299
      %v402 = vunpack.c.l.b16 %v300
      %v403 = vunpack.c.l.b16 %v301
      %v404 = vunpack.c.l.b16 %v302
      %v405 = vunpack.c.l.b16 %v303
      %v406 = vpack.c.b16 %v396, %v395
      %v407 = vpack.c.b16 %v398, %v397
      %v408 = vpack.c.b16 %v400, %v399
      %v409 = vpack.c.b16 %v402, %v401
      %v410 = vpack.c.b16 %v404, %v403
      %v411 = vpack.c.b16 %v405, %v405
      %vm417 = vcmask 662528
      %v419 = vsel %vm417, %v368, 0
      %v422 = vsel %vm417, %v369, 0
      %v425 = vsel %vm417, %v370, 0
      %v428 = vsel %vm417, %v371, 0
      %v431 = vsel %vm417, %v372, 0
      %v434 = vsel %vm417, %v373, 0
      %v437 = vsel %vm417, %v374, 0
      %v440 = vsel %vm417, %v375, 0
      %v443 = vsel %vm417, %v376, 0
      %v446 = vsel %vm417, %v377, 0
      %v449 = vsel %vm417, %v378, 0
      %v452 = vsel %vm417, %v379, 0
      %v455 = vsel %vm417, %v380, 0
      %v458 = vsel %vm417, %v381, 0
      %v461 = vsel %vm417, %v382, 0
      %v464 = vsel %vm417, %v383, 0
      %vm466 = vcmask 1040384
      %v467 = vsel 0, 4294967295, 65535
      %v468 = vsel %vm466, %v467, 0
      %v470 = vand.u32 %v411, %v468
      %472 = vmatprep.subr.bf16.mxu0 0
      %473 = vmatpush1.bf16.msra.mxu0 %v406
      %474 = vmatprep.subr.bf16.mxu0 0
      %475 = vmatpush1.bf16.msra.mxu0 %v407
      %476 = vmatprep.subr.bf16.mxu0 0
      %477 = vmatpush1.bf16.msra.mxu0 %v408
      %478 = vmatprep.subr.bf16.mxu0 0
      %479 = vmatpush1.bf16.msra.mxu0 %v409
      %480 = vmatprep.subr.bf16.mxu0 0
      %481 = vmatpush1.bf16.msra.mxu0 %v410
      %482 = vmatprep.subr.bf16.mxu0 0
      %483 = vmatpush1.bf16.msra.mxu0 %v470
      %484 = vmatprep.subr.bf16.mxu0 0
      %485 = vmatpush1.bf16.msra.mxu0 0
      %486 = vmatprep.subr.bf16.mxu0 0
      %487 = vmatpush1.bf16.msra.mxu0 0
      %488 = vmatprep.subr.bf16.mxu0 0
      %489 = vmatpush1.bf16.msra.mxu0 0
      %490 = vmatprep.subr.bf16.mxu0 0
      %491 = vmatpush1.bf16.msra.mxu0 0
      %492 = vmatprep.subr.bf16.mxu0 0
      %493 = vmatpush1.bf16.msra.mxu0 0
      %494 = vmatprep.subr.bf16.mxu0 0
      %495 = vmatpush1.bf16.msra.mxu0 0
      %496 = vmatprep.subr.bf16.mxu0 0
      %497 = vmatpush1.bf16.msra.mxu0 0
      %498 = vmatprep.subr.bf16.mxu0 0
      %499 = vmatpush1.bf16.msra.mxu0 0
      %500 = vmatprep.subr.bf16.mxu0 0
      %501 = vmatpush1.bf16.msra.mxu0 0
      %502 = vmatprep.subr.bf16.mxu0 0
      %503 = vmatpush1.bf16.msra.mxu0 0
      %504 = vmatprep.mubr.bf16.mxu0 0
      %505 = vmatmul.mubr.bf16.gmra.mrb[0].mxu0 %v419
      %v506 = vpop.f32.mrb[0].mxu0
      %v507 = vadd.f32 0.0, %v506
      %v508 = vpop.f32.mrb[0].mxu0
      %v509 = vpop.f32.mrb[0].mxu0
      %v510 = vadd.f32 0.0, %v509
      %v511 = vpop.f32.mrb[0].mxu0
      %512 = vmatprep.mubr.bf16.mxu0 0
      %513 = vmatmul.mubr.bf16.gmra.mrb[0].mxu0 %v422
      %v514 = vpop.f32.mrb[0].mxu0
      %v515 = vadd.f32 0.0, %v514
      %v516 = vpop.f32.mrb[0].mxu0
      %v517 = vpop.f32.mrb[0].mxu0
      %v518 = vadd.f32 0.0, %v517
      %v519 = vpop.f32.mrb[0].mxu0
      %520 = vmatprep.mubr.bf16.mxu0 0
      %521 = vmatmul.mubr.bf16.gmra.mrb[0].mxu0 %v425
      %v522 = vpop.f32.mrb[0].mxu0
      %v523 = vadd.f32 0.0, %v522
      %v524 = vpop.f32.mrb[0].mxu0
      %v525 = vpop.f32.mrb[0].mxu0
      %v526 = vadd.f32 0.0, %v525
      %v527 = vpop.f32.mrb[0].mxu0
      %528 = vmatprep.mubr.bf16.mxu0 0
      %529 = vmatmul.mubr.bf16.gmra.mrb[0].mxu0 %v428
      %v530 = vpop.f32.mrb[0].mxu0
      %v531 = vadd.f32 0.0, %v530
      %v532 = vpop.f32.mrb[0].mxu0
      %v533 = vpop.f32.mrb[0].mxu0
      %v534 = vadd.f32 0.0, %v533
      %v535 = vpop.f32.mrb[0].mxu0
      %536 = vmatprep.mubr.bf16.mxu0 0
      %537 = vmatmul.mubr.bf16.gmra.mrb[0].mxu0 %v431
      %v538 = vpop.f32.mrb[0].mxu0
      %v539 = vadd.f32 0.0, %v538
      %v540 = vpop.f32.mrb[0].mxu0
      %v541 = vpop.f32.mrb[0].mxu0
      %v542 = vadd.f32 0.0, %v541
      %v543 = vpop.f32.mrb[0].mxu0
      %544 = vmatprep.mubr.bf16.mxu0 0
      %545 = vmatmul.mubr.bf16.gmra.mrb[0].mxu0 %v434
      %v546 = vpop.f32.mrb[0].mxu0
      %v547 = vadd.f32 0.0, %v546
      %v548 = vpop.f32.mrb[0].mxu0
      %v549 = vpop.f32.mrb[0].mxu0
      %v550 = vadd.f32 0.0, %v549
      %v551 = vpop.f32.mrb[0].mxu0
      %552 = vmatprep.mubr.bf16.mxu0 0
      %553 = vmatmul.mubr.bf16.gmra.mrb[0].mxu0 %v437
      %v554 = vpop.f32.mrb[0].mxu0
      %v555 = vadd.f32 0.0, %v554
      %v556 = vpop.f32.mrb[0].mxu0
      %v557 = vpop.f32.mrb[0].mxu0
      %v558 = vadd.f32 0.0, %v557
      %v559 = vpop.f32.mrb[0].mxu0
      %560 = vmatprep.mubr.bf16.mxu0 0
      %561 = vmatmul.mubr.bf16.gmra.mrb[0].mxu0 %v440
      %v562 = vpop.f32.mrb[0].mxu0
      %v563 = vadd.f32 0.0, %v562
      %v564 = vpop.f32.mrb[0].mxu0
      %v565 = vpop.f32.mrb[0].mxu0
      %v566 = vadd.f32 0.0, %v565
      %v567 = vpop.f32.mrb[0].mxu0
      %568 = vmatprep.mubr.bf16.mxu0 0
      %569 = vmatmul.mubr.bf16.gmra.mrb[0].mxu0 %v443
      %v570 = vpop.f32.mrb[0].mxu0
      %v571 = vadd.f32 0.0, %v570
      %v572 = vpop.f32.mrb[0].mxu0
      %v573 = vpop.f32.mrb[0].mxu0
      %v574 = vadd.f32 0.0, %v573
      %v575 = vpop.f32.mrb[0].mxu0
      %576 = vmatprep.mubr.bf16.mxu0 0
      %577 = vmatmul.mubr.bf16.gmra.mrb[0].mxu0 %v446
      %v578 = vpop.f32.mrb[0].mxu0
      %v579 = vadd.f32 0.0, %v578
      %v580 = vpop.f32.mrb[0].mxu0
      %v581 = vpop.f32.mrb[0].mxu0
      %v582 = vadd.f32 0.0, %v581
      %v583 = vpop.f32.mrb[0].mxu0
      %584 = vmatprep.mubr.bf16.mxu0 0
      %585 = vmatmul.mubr.bf16.gmra.mrb[0].mxu0 %v449
      %v586 = vpop.f32.mrb[0].mxu0
      %v587 = vadd.f32 0.0, %v586
      %v588 = vpop.f32.mrb[0].mxu0
      %v589 = vpop.f32.mrb[0].mxu0
      %v590 = vadd.f32 0.0, %v589
      %v591 = vpop.f32.mrb[0].mxu0
      %592 = vmatprep.mubr.bf16.mxu0 0
      %593 = vmatmul.mubr.bf16.gmra.mrb[0].mxu0 %v452
      %v594 = vpop.f32.mrb[0].mxu0
      %v595 = vadd.f32 0.0, %v594
      %v596 = vpop.f32.mrb[0].mxu0
      %v597 = vpop.f32.mrb[0].mxu0
      %v598 = vadd.f32 0.0, %v597
      %v599 = vpop.f32.mrb[0].mxu0
      %600 = vmatprep.mubr.bf16.mxu0 0
      %601 = vmatmul.mubr.bf16.gmra.mrb[0].mxu0 %v455
      %v602 = vpop.f32.mrb[0].mxu0
      %v603 = vadd.f32 0.0, %v602
      %v604 = vpop.f32.mrb[0].mxu0
      %v605 = vpop.f32.mrb[0].mxu0
      %v606 = vadd.f32 0.0, %v605
      %v607 = vpop.f32.mrb[0].mxu0
      %608 = vmatprep.mubr.bf16.mxu0 0
      %609 = vmatmul.mubr.bf16.gmra.mrb[0].mxu0 %v458
      %v610 = vpop.f32.mrb[0].mxu0
      %v611 = vadd.f32 0.0, %v610
      %v612 = vpop.f32.mrb[0].mxu0
      %v613 = vpop.f32.mrb[0].mxu0
      %v614 = vadd.f32 0.0, %v613
      %v615 = vpop.f32.mrb[0].mxu0
      %616 = vmatprep.mubr.bf16.mxu0 0
      %617 = vmatmul.mubr.bf16.gmra.mrb[0].mxu0 %v461
      %v618 = vpop.f32.mrb[0].mxu0
      %v619 = vadd.f32 0.0, %v618
      %v620 = vpop.f32.mrb[0].mxu0
      %v621 = vpop.f32.mrb[0].mxu0
      %v622 = vadd.f32 0.0, %v621
      %v623 = vpop.f32.mrb[0].mxu0
      %624 = vmatprep.mubr.bf16.mxu0 0
      %625 = vmatmul.mubr.bf16.gmra.mrb[0].mxu0 %v464
      %v626 = vpop.f32.mrb[0].mxu0
      %v627 = vadd.f32 0.0, %v626
      %v628 = vpop.f32.mrb[0].mxu0
      %v629 = vpop.f32.mrb[0].mxu0
      %v630 = vadd.f32 0.0, %v629
      %v631 = vpop.f32.mrb[0].mxu0
      %632 = vdwg.mxu0
      %v633 = vadd.f32 %v229, %v507
      %v634 = vadd.f32 %v230, %v510
      %v635 = vadd.f32 %v231, %v515
      %v636 = vadd.f32 %v232, %v518
      %v637 = vadd.f32 %v233, %v523
      %v638 = vadd.f32 %v234, %v526
      %v639 = vadd.f32 %v235, %v531
      %v640 = vadd.f32 %v236, %v534
      %v641 = vadd.f32 %v237, %v539
      %v642 = vadd.f32 %v238, %v542
      %v643 = vadd.f32 %v239, %v547
      %v644 = vadd.f32 %v240, %v550
      %v645 = vadd.f32 %v241, %v555
      %v646 = vadd.f32 %v242, %v558
      %v647 = vadd.f32 %v243, %v563
      %v648 = vadd.f32 %v244, %v566
      %v649 = vadd.f32 %v245, %v571
      %v650 = vadd.f32 %v246, %v574
      %v651 = vadd.f32 %v247, %v579
      %v652 = vadd.f32 %v248, %v582
      %v653 = vadd.f32 %v249, %v587
      %v654 = vadd.f32 %v250, %v590
      %v655 = vadd.f32 %v251, %v595
      %v656 = vadd.f32 %v252, %v598
      %v657 = vadd.f32 %v253, %v603
      %v658 = vadd.f32 %v254, %v606
      %v659 = vadd.f32 %v255, %v611
      %v660 = vadd.f32 %v256, %v614
      %v661 = vadd.f32 %v257, %v619
      %v662 = vadd.f32 %v258, %v622
      %v663 = vadd.f32 %v259, %v627
      %v664 = vadd.f32 %v260, %v630
      %665 = vst [vmem:[#allocation2] sm:$0xff] %v633
      %666 = vst [vmem:[#allocation2 + $0x8] sm:$0xff] %v634
      %667 = vst [vmem:[#allocation2 + $0x10] sm:$0xff] %v635
      %668 = vst [vmem:[#allocation2 + $0x18] sm:$0xff] %v636
      %669 = vst [vmem:[#allocation2 + $0x20] sm:$0xff] %v637
      %670 = vst [vmem:[#allocation2 + $0x28] sm:$0xff] %v638
      %671 = vst [vmem:[#allocation2 + $0x30] sm:$0xff] %v639
      %672 = vst [vmem:[#allocation2 + $0x38] sm:$0xff] %v640
      %673 = vst [vmem:[#allocation2 + $0x40] sm:$0xff] %v641
      %674 = vst [vmem:[#allocation2 + $0x48] sm:$0xff] %v642
      %675 = vst [vmem:[#allocation2 + $0x50] sm:$0xff] %v643
      %676 = vst [vmem:[#allocation2 + $0x58] sm:$0xff] %v644
      %677 = vst [vmem:[#allocation2 + $0x60] sm:$0xff] %v645
      %678 = vst [vmem:[#allocation2 + $0x68] sm:$0xff] %v646
      %679 = vst [vmem:[#allocation2 + $0x70] sm:$0xff] %v647
      %680 = vst [vmem:[#allocation2 + $0x78] sm:$0xff] %v648
      %681 = vst [vmem:[#allocation2 + $0x80] sm:$0xff] %v649
      %682 = vst [vmem:[#allocation2 + $0x88] sm:$0xff] %v650
      %683 = vst [vmem:[#allocation2 + $0x90] sm:$0xff] %v651
      %684 = vst [vmem:[#allocation2 + $0x98] sm:$0xff] %v652
      %685 = vst [vmem:[#allocation2 + $0xa0] sm:$0xff] %v653
      %686 = vst [vmem:[#allocation2 + $0xa8] sm:$0xff] %v654
      %687 = vst [vmem:[#allocation2 + $0xb0] sm:$0xff] %v655
      %688 = vst [vmem:[#allocation2 + $0xb8] sm:$0xff] %v656
      %689 = vst [vmem:[#allocation2 + $0xc0] sm:$0xff] %v657
      %690 = vst [vmem:[#allocation2 + $0xc8] sm:$0xff] %v658
      %691 = vst [vmem:[#allocation2 + $0xd0] sm:$0xff] %v659
      %692 = vst [vmem:[#allocation2 + $0xd8] sm:$0xff] %v660
      %693 = vst [vmem:[#allocation2 + $0xe0] sm:$0xff] %v661
      %694 = vst [vmem:[#allocation2 + $0xe8] sm:$0xff] %v662
      %695 = vst [vmem:[#allocation2 + $0xf0] sm:$0xff] %v663
      %696 = vst [vmem:[#allocation2 + $0xf8] sm:$0xff] %v664
      // Predicated region
      $region33: #{feature_net.15} parent=27 // pred_check
        %p697 = pneg %p193
      $region34: #{feature_net.15} parent=27 // pred_check_branch
        %699 = sbr.rel (%p697) target = $region36
      $region35: #{feature_net.15} parent=27 // pred_region
        %v700 = vld [vmem:[#allocation2] sm:$0xff]
        %v701 = vld [vmem:[#allocation2 + $0x8] sm:$0xff]
        %v702 = vld [vmem:[#allocation2 + $0x10] sm:$0xff]
        %v703 = vld [vmem:[#allocation2 + $0x18] sm:$0xff]
        %v704 = vld [vmem:[#allocation2 + $0x20] sm:$0xff]
        %v705 = vld [vmem:[#allocation2 + $0x28] sm:$0xff]
        %v706 = vld [vmem:[#allocation2 + $0x30] sm:$0xff]
        %v707 = vld [vmem:[#allocation2 + $0x38] sm:$0xff]
        %v708 = vld [vmem:[#allocation2 + $0x40] sm:$0xff]
        %v709 = vld [vmem:[#allocation2 + $0x48] sm:$0xff]
        %v710 = vld [vmem:[#allocation2 + $0x50] sm:$0xff]
        %v711 = vld [vmem:[#allocation2 + $0x58] sm:$0xff]
        %v712 = vld [vmem:[#allocation2 + $0x60] sm:$0xff]
        %v713 = vld [vmem:[#allocation2 + $0x68] sm:$0xff]
        %v714 = vld [vmem:[#allocation2 + $0x70] sm:$0xff]
        %v715 = vld [vmem:[#allocation2 + $0x78] sm:$0xff]
        %v716 = vld [vmem:[#allocation2 + $0x80] sm:$0xff]
        %v717 = vld [vmem:[#allocation2 + $0x88] sm:$0xff]
        %v718 = vld [vmem:[#allocation2 + $0x90] sm:$0xff]
        %v719 = vld [vmem:[#allocation2 + $0x98] sm:$0xff]
        %v720 = vld [vmem:[#allocation2 + $0xa0] sm:$0xff]
        %v721 = vld [vmem:[#allocation2 + $0xa8] sm:$0xff]
        %v722 = vld [vmem:[#allocation2 + $0xb0] sm:$0xff]
        %v723 = vld [vmem:[#allocation2 + $0xb8] sm:$0xff]
        %v724 = vld [vmem:[#allocation2 + $0xc0] sm:$0xff]
        %v725 = vld [vmem:[#allocation2 + $0xc8] sm:$0xff]
        %v726 = vld [vmem:[#allocation2 + $0xd0] sm:$0xff]
        %v727 = vld [vmem:[#allocation2 + $0xd8] sm:$0xff]
        %v728 = vld [vmem:[#allocation2 + $0xe0] sm:$0xff]
        %v729 = vld [vmem:[#allocation2 + $0xe8] sm:$0xff]
        %v730 = vld [vmem:[#allocation2 + $0xf0] sm:$0xff]
        %v731 = vld [vmem:[#allocation2 + $0xf8] sm:$0xff]
        %732 = vst [vmem:[%s190] sm:$0xff] %v700
        %733 = vst [vmem:[%s190 + $0x8] sm:$0xff] %v701
        %734 = vst [vmem:[%s190 + $0x10] sm:$0xff] %v702
        %735 = vst [vmem:[%s190 + $0x18] sm:$0xff] %v703
        %736 = vst [vmem:[%s190 + $0x20] sm:$0xff] %v704
        %737 = vst [vmem:[%s190 + $0x28] sm:$0xff] %v705
        %738 = vst [vmem:[%s190 + $0x30] sm:$0xff] %v706
        %739 = vst [vmem:[%s190 + $0x38] sm:$0xff] %v707
        %740 = vst [vmem:[%s190 + $0x40] sm:$0xff] %v708
        %741 = vst [vmem:[%s190 + $0x48] sm:$0xff] %v709
        %742 = vst [vmem:[%s190 + $0x50] sm:$0xff] %v710
        %743 = vst [vmem:[%s190 + $0x58] sm:$0xff] %v711
        %744 = vst [vmem:[%s190 + $0x60] sm:$0xff] %v712
        %745 = vst [vmem:[%s190 + $0x68] sm:$0xff] %v713
        %746 = vst [vmem:[%s190 + $0x70] sm:$0xff] %v714
        %747 = vst [vmem:[%s190 + $0x78] sm:$0xff] %v715
        %748 = vst [vmem:[%s190 + $0x80] sm:$0xff] %v716
        %749 = vst [vmem:[%s190 + $0x88] sm:$0xff] %v717
        %750 = vst [vmem:[%s190 + $0x90] sm:$0xff] %v718
        %751 = vst [vmem:[%s190 + $0x98] sm:$0xff] %v719
        %752 = vst [vmem:[%s190 + $0xa0] sm:$0xff] %v720
        %753 = vst [vmem:[%s190 + $0xa8] sm:$0xff] %v721
        %754 = vst [vmem:[%s190 + $0xb0] sm:$0xff] %v722
        %755 = vst [vmem:[%s190 + $0xb8] sm:$0xff] %v723
        %756 = vst [vmem:[%s190 + $0xc0] sm:$0xff] %v724
        %757 = vst [vmem:[%s190 + $0xc8] sm:$0xff] %v725
        %758 = vst [vmem:[%s190 + $0xd0] sm:$0xff] %v726
        %759 = vst [vmem:[%s190 + $0xd8] sm:$0xff] %v727
        %760 = vst [vmem:[%s190 + $0xe0] sm:$0xff] %v728
        %761 = vst [vmem:[%s190 + $0xe8] sm:$0xff] %v729
        %762 = vst [vmem:[%s190 + $0xf0] sm:$0xff] %v730
        %763 = vst [vmem:[%s190 + $0xf8] sm:$0xff] %v731
      $region36: #{feature_net.15} parent=27 // pred_fallthru
        _
      %s764 = smul.u32 32, %s17
      %p765 = scmp.lt.s32.totalorder %s764, 255
      %s766 = scalar_select %p765, %s764, 255
      %s767 = smul.addr %s766, 8
      %s768 = scalar_lea.vmem %s2, %s767
      // Predicated region
      $region37: #{feature_net.15} parent=27 // pred_check
        %p769 = pneg %p97
      $region38: #{feature_net.15} parent=27 // pred_check_branch
        %771 = sbr.rel (%p769) target = $region40
      $region39: #{feature_net.15} parent=27 // pred_region
        %s772 = smul.u32 32, %s17
      $region40: #{feature_net.15} parent=27 // pred_fallthru
        _
    $region28: #{feature_net.15} parent=5 // pred_fallthru
      _
    %p773 = scmp.le.s32.totalorder 2, %s8
    // Predicated region
    $region41: #{feature_net.15} parent=5 // pred_check
      %p774 = pneg %p773
    $region42: #{feature_net.15} parent=5 // pred_check_branch
      %776 = sbr.rel (%p774) target = $region44
    $region43: #{feature_net.15} parent=5 // pred_region
      %s777 = ssub.s32 %s8, 2
      // Predicated region
      $region45: #{feature_net.15} parent=43 // pred_check
        %p778 = pneg %p103
      $region46: #{feature_net.15} parent=43 // pred_check_branch
        %780 = sbr.rel (%p778) target = $region48
      $region47: #{feature_net.15} parent=43 // pred_region
        %s781 = smul.u32 32, %s19
        %p782 = scmp.lt.s32.totalorder %s781, 255
        %s783 = scalar_select %p782, %s781, 255
        %s784 = smul.addr %s783, 8
        %s785 = scalar_lea.vmem %s2, %s784
      $region48: #{feature_net.15} parent=43 // pred_fallthru
        _
    $region44: #{feature_net.15} parent=5 // pred_fallthru
      _
  $region6: #{feature_net.15} parent=0 // loop_footer
    %s12 = sadd.s32 1, %s8
  $region7: #{feature_net.15} parent=0 // loop_footer_branch
    %7 = sbr.rel target = $region3
  $region8: #{feature_net.15} parent=0 // loop_exit
    _

// kernel: feature_net.16
$region0: #{feature_net.16}
  #allocation0 [shape = 'u32[]', space=smem, size = 0x4, offset = 0x4, fixed_abs, tag = 'smem constant byte address 0x4 - core index']
  #allocation1 [shape = 'u32[144,128]{1,0:T(1,128)}', space=vmem, size = 0x12000, scoped, tag = 'internal scratch']
  %s0 = inlined_call_operand.vmem [shape: f32[2,1024,128], index: 0, kind: input, shape index: {}]
  %s1 = inlined_call_operand.vmem [shape: f32[2,1,128], index: 1, kind: output, shape index: {0}]
  %s2 = inlined_call_operand.vmem [shape: f32[2,1,128], index: 2, kind: output, shape index: {1}]
  %3 = xla_tuple %s1, %s2
  %s4 = sld [smem:[#allocation0]]
  $region49: #{feature_net.16} parent=0
    _
  %s6 = ssub.s32 1, %s4
  %s7 = scalar_select 0, %s6, %s4
  loop: start=0, step=1, limit=6
  $region2: #{feature_net.16} parent=0 // loop_pre_header
    _
  $region3: #{feature_net.16} parent=0 // loop_header
    %s9 = sphi 0, %s13
    %p10 = scmp.ge.s32.totalorder %s9, 6
    %s16 = sphi 0, %s28
    %s17 = sphi 0, %s24
    %s18 = sphi 0, %s16
    %s19 = sphi 0, %s17
    %s20 = sphi 0, %s18
    %s21 = sphi 0, %s19
    %s33 = sphi 0, %s35
    %s36 = sphi 0, %s33
    %s37 = sphi 0, %s36
    %s53 = sphi 0, %s37
    %s59 = sphi 0, %s61
    %s62 = sphi 0, %s59
    %s63 = sphi 0, %s62
    %s79 = sphi 0, %s63
    %s85 = sphi 0, %s87
    %s88 = sphi 0, %s85
    %s89 = sphi 0, %s88
    %s105 = sphi 0, %s89
  $region4: #{feature_net.16} parent=0 // loop_header_branch
    %12 = sbr.rel (%p10) target = $region8
  $region5: #{feature_net.16} parent=0 // loop_body
    %s14 = ssub.s32 %s9, 1
    %s15 = ssub.s32 %s9, 2
    %s22 = sadd.s32 1, %s17
    %p23 = scmp.ge.s32.totalorder %s22, 2
    %s24 = scalar_select %p23, 0, %s22
    %s25 = sadd.s32 1, %s16
    %s26 = scalar_select %p23, %s25, %s16
    %p27 = scmp.ge.s32.totalorder %s26, 2
    %s28 = scalar_select %p27, 0, %s26
    %s29 = ssub.s32 %s16, %s28
    %s30 = ssub.s32 %s17, %s24
    %s31 = sor.u32 %s29, %s30
    %p32 = scmp.eq.s32.totalorder %s31, 0
    %s34 = sadd.s32 %s33, 1
    %s35 = scalar_select %p32, %s33, %s34
    %p38 = pneg %p32
    %p39 = scmp.eq.s32.totalorder %s9, 3
    %p40 = por %p38, %p39
    %p41 = scmp.ne.s32.totalorder %s33, %s36
    %p42 = scmp.eq.s32.totalorder %s9, 0
    %p43 = por %p41, %p42
    %p44 = scmp.ne.s32.totalorder %s33, %s36
    %p45 = scmp.eq.s32.totalorder %s14, 3
    %p46 = por %p44, %p45
    %p47 = scmp.ne.s32.totalorder %s36, %s37
    %p48 = scmp.eq.s32.totalorder %s14, 0
    %p49 = por %p47, %p48
    %p50 = scmp.ne.s32.totalorder %s36, %s37
    %p51 = scmp.eq.s32.totalorder %s15, 3
    %p52 = por %p50, %p51
    %p54 = scmp.ne.s32.totalorder %s37, %s53
    %p55 = scmp.eq.s32.totalorder %s15, 0
    %p56 = por %p54, %p55
    %s57 = ssub.s32 %s16, %s28
    %p58 = scmp.eq.s32.totalorder %s57, 0
    %s60 = sadd.s32 %s59, 1
    %s61 = scalar_select %p58, %s59, %s60
    %p64 = pneg %p58
    %p65 = scmp.eq.s32.totalorder %s9, 3
    %p66 = por %p64, %p65
    %p67 = scmp.ne.s32.totalorder %s59, %s62
    %p68 = scmp.eq.s32.totalorder %s9, 0
    %p69 = por %p67, %p68
    %p70 = scmp.ne.s32.totalorder %s59, %s62
    %p71 = scmp.eq.s32.totalorder %s14, 3
    %p72 = por %p70, %p71
    %p73 = scmp.ne.s32.totalorder %s62, %s63
    %p74 = scmp.eq.s32.totalorder %s14, 0
    %p75 = por %p73, %p74
    %p76 = scmp.ne.s32.totalorder %s62, %s63
    %p77 = scmp.eq.s32.totalorder %s15, 3
    %p78 = por %p76, %p77
    %p80 = scmp.ne.s32.totalorder %s63, %s79
    %p81 = scmp.eq.s32.totalorder %s15, 0
    %p82 = por %p80, %p81
    %s83 = ssub.s32 %s16, %s28
    %p84 = scmp.eq.s32.totalorder %s83, 0
    %s86 = sadd.s32 %s85, 1
    %s87 = scalar_select %p84, %s85, %s86
    %p90 = pneg %p84
    %p91 = scmp.eq.s32.totalorder %s9, 3
    %p92 = por %p90, %p91
    %p93 = scmp.ne.s32.totalorder %s85, %s88
    %p94 = scmp.eq.s32.totalorder %s9, 0
    %p95 = por %p93, %p94
    %p96 = scmp.ne.s32.totalorder %s85, %s88
    %p97 = scmp.eq.s32.totalorder %s14, 3
    %p98 = por %p96, %p97
    %p99 = scmp.ne.s32.totalorder %s88, %s89
    %p100 = scmp.eq.s32.totalorder %s14, 0
    %p101 = por %p99, %p100
    %p102 = scmp.ne.s32.totalorder %s88, %s89
    %p103 = scmp.eq.s32.totalorder %s15, 3
    %p104 = por %p102, %p103
    %p106 = scmp.ne.s32.totalorder %s89, %s105
    %p107 = scmp.eq.s32.totalorder %s15, 0
    %p108 = por %p106, %p107
    %p109 = scmp.le.s32.totalorder 1, %s9
    %p110 = scmp.lt.s32.totalorder %s9, 5
    %p111 = pnand %p109, %p110
    %p112 = pneg %p111
    // Predicated region
    $region9: #{feature_net.16} parent=5 // pred_check
      _
    $region10: #{feature_net.16} parent=5 // pred_check_branch
      %114 = sbr.rel (%p111) target = $region12
    $region11: #{feature_net.16} parent=5 // pred_region
      %s115 = ssub.s32 %s9, 1
    $region12: #{feature_net.16} parent=5 // pred_fallthru
      _
    %p116 = scmp.lt.s32.totalorder %s9, 4
    // Predicated region
    $region13: #{feature_net.16} parent=5 // pred_check
      %p117 = pneg %p116
    $region14: #{feature_net.16} parent=5 // pred_check_branch
      %119 = sbr.rel (%p117) target = $region16
    $region15: #{feature_net.16} parent=5 // pred_region
      // Predicated region
      $region17: #{feature_net.16} parent=15 // pred_check
        %p120 = pneg %p43
      $region18: #{feature_net.16} parent=15 // pred_check_branch
        %122 = sbr.rel (%p120) target = $region20
      $region19: #{feature_net.16} parent=15 // pred_region
        %s123 = smul.u32 64, %s17
        %p124 = scmp.lt.s32.totalorder %s16, 1
        %s125 = scalar_select %p124, %s16, 1
        %p126 = scmp.lt.s32.totalorder %s123, 127
        %s127 = scalar_select %p126, %s123, 127
        %s128 = smul.addr %s125, 128
        %s129 = sadd.s32 %s127, %s128
        %s130 = smul.addr %s129, 8
        %s131 = scalar_lea.vmem %s0, %s130
        %s132 = smul.u32 64, %s17
      $region20: #{feature_net.16} parent=15 // pred_fallthru
        _
    $region16: #{feature_net.16} parent=5 // pred_fallthru
      _
    %p133 = scmp.le.s32.totalorder 1, %s9
    %p134 = scmp.lt.s32.totalorder %s9, 5
    %p135 = pnand %p133, %p134
    %p136 = pneg %p135
    // Predicated region
    $region21: #{feature_net.16} parent=5 // pred_check
      _
    $region22: #{feature_net.16} parent=5 // pred_check_branch
      %138 = sbr.rel (%p135) target = $region24
    $region23: #{feature_net.16} parent=5 // pred_region
      %s139 = ssub.s32 %s9, 1
      %s140 = smul.u32 64, %s19
      %p141 = scmp.lt.s32.totalorder %s18, 1
      %s142 = scalar_select %p141, %s18, 1
      %p143 = scmp.lt.s32.totalorder %s140, 127
      %s144 = scalar_select %p143, %s140, 127
      %s145 = smul.addr %s142, 128
      %s146 = sadd.s32 %s144, %s145
      %s147 = smul.addr %s146, 8
      %s148 = scalar_lea.vmem %s0, %s147
      %p149 = pneg %p49
      %p150 = pneg %p46
      %p151 = pneg %p75
      %p152 = pneg %p72
      %p153 = scmp.lt.s32.totalorder %s18, 1
      %s154 = scalar_select %p153, %s18, 1
      %s155 = scalar_lea.vmem %s1, %s154
      %p156 = pneg %p101
      %p157 = pneg %p98
      %p158 = scmp.lt.s32.totalorder %s18, 1
      %s159 = scalar_select %p158, %s18, 1
      %s160 = scalar_lea.vmem %s2, %s159
      %s161 = smul.u32 64, %s19
      %p162 = scmp.lt.s32.totalorder %s18, 1
      %s163 = scalar_select %p162, %s18, 1
      %p164 = scmp.lt.s32.totalorder %s161, 127
      %s165 = scalar_select %p164, %s161, 127
      %s166 = smul.addr %s163, 128
      %s167 = sadd.s32 %s165, %s166
      %s168 = smul.addr %s167, 8
      %s169 = scalar_lea.vmem %s0, %s168
      %s170 = smul.u32 64, %s19
      %p171 = scmp.lt.s32.totalorder %s18, 1
      %s172 = scalar_select %p171, %s18, 1
      %s173 = scalar_lea.vmem %s1, %s172
      %p174 = scmp.lt.s32.totalorder %s18, 1
      %s175 = scalar_select %p174, %s18, 1
      %s176 = scalar_lea.vmem %s2, %s175
      %p177 = scmp.eq.s32.totalorder %s19, 0
      // Predicated region
      $region25: #{feature_net.16} parent=23 // pred_check
        %p178 = pneg %p177
      $region26: #{feature_net.16} parent=23 // pred_check_branch
        %180 = sbr.rel (%p178) target = $region28
      $region27: #{feature_net.16} parent=23 // pred_region
        %181 = vst [vmem:[%s173] sm:$0x1] 0.0
        %182 = vst [vmem:[%s176] sm:$0x1] 0.0
      $region28: #{feature_net.16} parent=23 // pred_fallthru
        _
      %v183 = vld [vmem:[%s169] sm:$0xff]
      %v184 = vld [vmem:[%s169 + $0x8] sm:$0xff]
      %v185 = vld [vmem:[%s169 + $0x10] sm:$0xff]
      %v186 = vld [vmem:[%s169 + $0x18] sm:$0xff]
      %v187 = vld [vmem:[%s169 + $0x20] sm:$0xff]
      %v188 = vld [vmem:[%s169 + $0x28] sm:$0xff]
      %v189 = vld [vmem:[%s169 + $0x30] sm:$0xff]
      %v190 = vld [vmem:[%s169 + $0x38] sm:$0xff]
      %v191 = vld [vmem:[%s169 + $0x40] sm:$0xff]
      %v192 = vld [vmem:[%s169 + $0x48] sm:$0xff]
      %v193 = vld [vmem:[%s169 + $0x50] sm:$0xff]
      %v194 = vld [vmem:[%s169 + $0x58] sm:$0xff]
      %v195 = vld [vmem:[%s169 + $0x60] sm:$0xff]
      %v196 = vld [vmem:[%s169 + $0x68] sm:$0xff]
      %v197 = vld [vmem:[%s169 + $0x70] sm:$0xff]
      %v198 = vld [vmem:[%s169 + $0x78] sm:$0xff]
      %v199 = vld [vmem:[%s169 + $0x80] sm:$0xff]
      %v200 = vld [vmem:[%s169 + $0x88] sm:$0xff]
      %v201 = vld [vmem:[%s169 + $0x90] sm:$0xff]
      %v202 = vld [vmem:[%s169 + $0x98] sm:$0xff]
      %v203 = vld [vmem:[%s169 + $0xa0] sm:$0xff]
      %v204 = vld [vmem:[%s169 + $0xa8] sm:$0xff]
      %v205 = vld [vmem:[%s169 + $0xb0] sm:$0xff]
      %v206 = vld [vmem:[%s169 + $0xb8] sm:$0xff]
      %v207 = vld [vmem:[%s169 + $0xc0] sm:$0xff]
      %v208 = vld [vmem:[%s169 + $0xc8] sm:$0xff]
      %v209 = vld [vmem:[%s169 + $0xd0] sm:$0xff]
      %v210 = vld [vmem:[%s169 + $0xd8] sm:$0xff]
      %v211 = vld [vmem:[%s169 + $0xe0] sm:$0xff]
      %v212 = vld [vmem:[%s169 + $0xe8] sm:$0xff]
      %v213 = vld [vmem:[%s169 + $0xf0] sm:$0xff]
      %v214 = vld [vmem:[%s169 + $0xf8] sm:$0xff]
      %v215 = vld [vmem:[%s169 + $0x100] sm:$0xff]
      %v216 = vld [vmem:[%s169 + $0x108] sm:$0xff]
      %v217 = vld [vmem:[%s169 + $0x110] sm:$0xff]
      %v218 = vld [vmem:[%s169 + $0x118] sm:$0xff]
      %v219 = vld [vmem:[%s169 + $0x120] sm:$0xff]
      %v220 = vld [vmem:[%s169 + $0x128] sm:$0xff]
      %v221 = vld [vmem:[%s169 + $0x130] sm:$0xff]
      %v222 = vld [vmem:[%s169 + $0x138] sm:$0xff]
      %v223 = vld [vmem:[%s169 + $0x140] sm:$0xff]
      %v224 = vld [vmem:[%s169 + $0x148] sm:$0xff]
      %v225 = vld [vmem:[%s169 + $0x150] sm:$0xff]
      %v226 = vld [vmem:[%s169 + $0x158] sm:$0xff]
      %v227 = vld [vmem:[%s169 + $0x160] sm:$0xff]
      %v228 = vld [vmem:[%s169 + $0x168] sm:$0xff]
      %v229 = vld [vmem:[%s169 + $0x170] sm:$0xff]
      %v230 = vld [vmem:[%s169 + $0x178] sm:$0xff]
      %v231 = vld [vmem:[%s169 + $0x180] sm:$0xff]
      %v232 = vld [vmem:[%s169 + $0x188] sm:$0xff]
      %v233 = vld [vmem:[%s169 + $0x190] sm:$0xff]
      %v234 = vld [vmem:[%s169 + $0x198] sm:$0xff]
      %v235 = vld [vmem:[%s169 + $0x1a0] sm:$0xff]
      %v236 = vld [vmem:[%s169 + $0x1a8] sm:$0xff]
      %v237 = vld [vmem:[%s169 + $0x1b0] sm:$0xff]
      %v238 = vld [vmem:[%s169 + $0x1b8] sm:$0xff]
      %v239 = vld [vmem:[%s169 + $0x1c0] sm:$0xff]
      %v240 = vld [vmem:[%s169 + $0x1c8] sm:$0xff]
      %v241 = vld [vmem:[%s169 + $0x1d0] sm:$0xff]
      %v242 = vld [vmem:[%s169 + $0x1d8] sm:$0xff]
      %v243 = vld [vmem:[%s169 + $0x1e0] sm:$0xff]
      %v244 = vld [vmem:[%s169 + $0x1e8] sm:$0xff]
      %v245 = vld [vmem:[%s169 + $0x1f0] sm:$0xff]
      %v246 = vld [vmem:[%s169 + $0x1f8] sm:$0xff]
      %v247 = vld [vmem:[%s173] sm:$0x1]
      %v248 = vadd.f32 %v183, %v184
      %v249 = vadd.f32 %v248, %v185
      %v250 = vadd.f32 %v249, %v186
      %v251 = vadd.f32 %v250, %v187
      %v252 = vadd.f32 %v251, %v188
      %v253 = vadd.f32 %v252, %v189
      %v254 = vadd.f32 %v253, %v190
      %v255 = vadd.f32 %v254, %v191
      %v256 = vadd.f32 %v255, %v192
      %v257 = vadd.f32 %v256, %v193
      %v258 = vadd.f32 %v257, %v194
      %v259 = vadd.f32 %v258, %v195
      %v260 = vadd.f32 %v259, %v196
      %v261 = vadd.f32 %v260, %v197
      %v262 = vadd.f32 %v261, %v198
      %v263 = vadd.f32 %v262, %v199
      %v264 = vadd.f32 %v263, %v200
      %v265 = vadd.f32 %v264, %v201
      %v266 = vadd.f32 %v265, %v202
      %v267 = vadd.f32 %v266, %v203
      %v268 = vadd.f32 %v267, %v204
      %v269 = vadd.f32 %v268, %v205
      %v270 = vadd.f32 %v269, %v206
      %v271 = vadd.f32 %v270, %v207
      %v272 = vadd.f32 %v271, %v208
      %v273 = vadd.f32 %v272, %v209
      %v274 = vadd.f32 %v273, %v210
      %v275 = vadd.f32 %v274, %v211
      %v276 = vadd.f32 %v275, %v212
      %v277 = vadd.f32 %v276, %v213
      %v278 = vadd.f32 %v277, %v214
      %v279 = vadd.f32 %v278, %v215
      %v280 = vadd.f32 %v279, %v216
      %v281 = vadd.f32 %v280, %v217
      %v282 = vadd.f32 %v281, %v218
      %v283 = vadd.f32 %v282, %v219
      %v284 = vadd.f32 %v283, %v220
      %v285 = vadd.f32 %v284, %v221
      %v286 = vadd.f32 %v285, %v222
      %v287 = vadd.f32 %v286, %v223
      %v288 = vadd.f32 %v287, %v224
      %v289 = vadd.f32 %v288, %v225
      %v290 = vadd.f32 %v289, %v226
      %v291 = vadd.f32 %v290, %v227
      %v292 = vadd.f32 %v291, %v228
      %v293 = vadd.f32 %v292, %v229
      %v294 = vadd.f32 %v293, %v230
      %v295 = vadd.f32 %v294, %v231
      %v296 = vadd.f32 %v295, %v232
      %v297 = vadd.f32 %v296, %v233
      %v298 = vadd.f32 %v297, %v234
      %v299 = vadd.f32 %v298, %v235
      %v300 = vadd.f32 %v299, %v236
      %v301 = vadd.f32 %v300, %v237
      %v302 = vadd.f32 %v301, %v238
      %v303 = vadd.f32 %v302, %v239
      %v304 = vadd.f32 %v303, %v240
      %v305 = vadd.f32 %v304, %v241
      %v306 = vadd.f32 %v305, %v242
      %v307 = vadd.f32 %v306, %v243
      %v308 = vadd.f32 %v307, %v244
      %v309 = vadd.f32 %v308, %v245
      %v310 = vadd.f32 %v309, %v246
      %v311 = vrot.slane %v310, 4
      %v312 = vadd.f32 %v310, %v311
      %v313 = vrot.slane %v312, 2
      %v314 = vadd.f32 %v312, %v313
      %v315 = vrot.slane %v314, 1
      %v316 = vadd.f32 %v314, %v315
      %v317 = vadd.f32 %v247, %v316
      %318 = vst [vmem:[%s173] sm:$0x1] %v317
      %v319 = vld [vmem:[%s176] sm:$0x1]
      %v320 = vmul.f32 %v183, %v183
      %v321 = vmul.f32 %v184, %v184
      %v322 = vmul.f32 %v185, %v185
      %v323 = vmul.f32 %v186, %v186
      %v324 = vmul.f32 %v187, %v187
      %v325 = vmul.f32 %v188, %v188
      %v326 = vmul.f32 %v189, %v189
      %v327 = vmul.f32 %v190, %v190
      %v328 = vmul.f32 %v191, %v191
      %v329 = vmul.f32 %v192, %v192
      %v330 = vmul.f32 %v193, %v193
      %v331 = vmul.f32 %v194, %v194
      %v332 = vmul.f32 %v195, %v195
      %v333 = vmul.f32 %v196, %v196
      %v334 = vmul.f32 %v197, %v197
      %v335 = vmul.f32 %v198, %v198
      %v336 = vmul.f32 %v199, %v199
      %v337 = vmul.f32 %v200, %v200
      %v338 = vmul.f32 %v201, %v201
      %v339 = vmul.f32 %v202, %v202
      %v340 = vmul.f32 %v203, %v203
      %v341 = vmul.f32 %v204, %v204
      %v342 = vmul.f32 %v205, %v205
      %v343 = vmul.f32 %v206, %v206
      %v344 = vmul.f32 %v207, %v207
      %v345 = vmul.f32 %v208, %v208
      %v346 = vmul.f32 %v209, %v209
      %v347 = vmul.f32 %v210, %v210
      %v348 = vmul.f32 %v211, %v211
      %v349 = vmul.f32 %v212, %v212
      %v350 = vmul.f32 %v213, %v213
      %v351 = vmul.f32 %v214, %v214
      %v352 = vmul.f32 %v215, %v215
      %v353 = vmul.f32 %v216, %v216
      %v354 = vmul.f32 %v217, %v217
      %v355 = vmul.f32 %v218, %v218
      %v356 = vmul.f32 %v219, %v219
      %v357 = vmul.f32 %v220, %v220
      %v358 = vmul.f32 %v221, %v221
      %v359 = vmul.f32 %v222, %v222
      %v360 = vmul.f32 %v223, %v223
      %v361 = vmul.f32 %v224, %v224
      %v362 = vmul.f32 %v225, %v225
      %v363 = vmul.f32 %v226, %v226
      %v364 = vmul.f32 %v227, %v227
      %v365 = vmul.f32 %v228, %v228
      %v366 = vmul.f32 %v229, %v229
      %v367 = vmul.f32 %v230, %v230
      %v368 = vmul.f32 %v231, %v231
      %v369 = vmul.f32 %v232, %v232
      %v370 = vmul.f32 %v233, %v233
      %v371 = vmul.f32 %v234, %v234
      %v372 = vmul.f32 %v235, %v235
      %v373 = vmul.f32 %v236, %v236
      %v374 = vmul.f32 %v237, %v237
      %v375 = vmul.f32 %v238, %v238
      %v376 = vmul.f32 %v239, %v239
      %v377 = vmul.f32 %v240, %v240
      %v378 = vmul.f32 %v241, %v241
      %v379 = vmul.f32 %v242, %v242
      %v380 = vmul.f32 %v243, %v243
      %v381 = vmul.f32 %v244, %v244
      %v382 = vmul.f32 %v245, %v245
      %v383 = vmul.f32 %v246, %v246
      %v384 = vadd.f32 %v320, %v321
      %v385 = vadd.f32 %v384, %v322
      %v386 = vadd.f32 %v385, %v323
      %v387 = vadd.f32 %v386, %v324
      %v388 = vadd.f32 %v387, %v325
      %v389 = vadd.f32 %v388, %v326
      %v390 = vadd.f32 %v389, %v327
      %v391 = vadd.f32 %v390, %v328
      %v392 = vadd.f32 %v391, %v329
      %v393 = vadd.f32 %v392, %v330
      %v394 = vadd.f32 %v393, %v331
      %v395 = vadd.f32 %v394, %v332
      %v396 = vadd.f32 %v395, %v333
      %v397 = vadd.f32 %v396, %v334
      %v398 = vadd.f32 %v397, %v335
      %v399 = vadd.f32 %v398, %v336
      %v400 = vadd.f32 %v399, %v337
      %v401 = vadd.f32 %v400, %v338
      %v402 = vadd.f32 %v401, %v339
      %v403 = vadd.f32 %v402, %v340
      %v404 = vadd.f32 %v403, %v341
      %v405 = vadd.f32 %v404, %v342
      %v406 = vadd.f32 %v405, %v343
      %v407 = vadd.f32 %v406, %v344
      %v408 = vadd.f32 %v407, %v345
      %v409 = vadd.f32 %v408, %v346
      %v410 = vadd.f32 %v409, %v347
      %v411 = vadd.f32 %v410, %v348
      %v412 = vadd.f32 %v411, %v349
      %v413 = vadd.f32 %v412, %v350
      %v414 = vadd.f32 %v413, %v351
      %v415 = vadd.f32 %v414, %v352
      %v416 = vadd.f32 %v415, %v353
      %v417 = vadd.f32 %v416, %v354
      %v418 = vadd.f32 %v417, %v355
      %v419 = vadd.f32 %v418, %v356
      %v420 = vadd.f32 %v419, %v357
      %v421 = vadd.f32 %v420, %v358
      %v422 = vadd.f32 %v421, %v359
      %v423 = vadd.f32 %v422, %v360
      %v424 = vadd.f32 %v423, %v361
      %v425 = vadd.f32 %v424, %v362
      %v426 = vadd.f32 %v425, %v363
      %v427 = vadd.f32 %v426, %v364
      %v428 = vadd.f32 %v427, %v365
      %v429 = vadd.f32 %v428, %v366
      %v430 = vadd.f32 %v429, %v367
      %v431 = vadd.f32 %v430, %v368
      %v432 = vadd.f32 %v431, %v369
      %v433 = vadd.f32 %v432, %v370
      %v434 = vadd.f32 %v433, %v371
      %v435 = vadd.f32 %v434, %v372
      %v436 = vadd.f32 %v435, %v373
      %v437 = vadd.f32 %v436, %v374
      %v438 = vadd.f32 %v437, %v375
      %v439 = vadd.f32 %v438, %v376
      %v440 = vadd.f32 %v439, %v377
      %v441 = vadd.f32 %v440, %v378
      %v442 = vadd.f32 %v441, %v379
      %v443 = vadd.f32 %v442, %v380
      %v444 = vadd.f32 %v443, %v381
      %v445 = vadd.f32 %v444, %v382
      %v446 = vadd.f32 %v445, %v383
      %v447 = vrot.slane %v446, 4
      %v448 = vadd.f32 %v446, %v447
      %v449 = vrot.slane %v448, 2
      %v450 = vadd.f32 %v448, %v449
      %v451 = vrot.slane %v450, 1
      %v452 = vadd.f32 %v450, %v451
      %v453 = vadd.f32 %v319, %v452
      %454 = vst [vmem:[%s176] sm:$0x1] %v453
      %p455 = scmp.lt.s32.totalorder %s18, 1
      %s456 = scalar_select %p455, %s18, 1
      %s457 = scalar_lea.vmem %s1, %s456
      %p458 = scmp.lt.s32.totalorder %s18, 1
      %s459 = scalar_select %p458, %s18, 1
      %s460 = scalar_lea.vmem %s2, %s459
      // Predicated region
      $region29: #{feature_net.16} parent=23 // pred_check
        %p461 = pneg %p72
      $region30: #{feature_net.16} parent=23 // pred_check_branch
        %463 = sbr.rel (%p461) target = $region32
      $region31: #{feature_net.16} parent=23 // pred_region
        _
      $region32: #{feature_net.16} parent=23 // pred_fallthru
        _
      // Predicated region
      $region33: #{feature_net.16} parent=23 // pred_check
        %p464 = pneg %p98
      $region34: #{feature_net.16} parent=23 // pred_check_branch
        %466 = sbr.rel (%p464) target = $region36
      $region35: #{feature_net.16} parent=23 // pred_region
        _
      $region36: #{feature_net.16} parent=23 // pred_fallthru
        _
    $region24: #{feature_net.16} parent=5 // pred_fallthru
      _
    %p467 = scmp.le.s32.totalorder 2, %s9
    // Predicated region
    $region37: #{feature_net.16} parent=5 // pred_check
      %p468 = pneg %p467
    $region38: #{feature_net.16} parent=5 // pred_check_branch
      %470 = sbr.rel (%p468) target = $region40
    $region39: #{feature_net.16} parent=5 // pred_region
      %s471 = ssub.s32 %s9, 2
      // Predicated region
      $region41: #{feature_net.16} parent=39 // pred_check
        %p472 = pneg %p78
      $region42: #{feature_net.16} parent=39 // pred_check_branch
        %474 = sbr.rel (%p472) target = $region44
      $region43: #{feature_net.16} parent=39 // pred_region
        %p475 = scmp.lt.s32.totalorder %s20, 1
        %s476 = scalar_select %p475, %s20, 1
        %s477 = scalar_lea.vmem %s1, %s476
      $region44: #{feature_net.16} parent=39 // pred_fallthru
        _
      // Predicated region
      $region45: #{feature_net.16} parent=39 // pred_check
        %p478 = pneg %p104
      $region46: #{feature_net.16} parent=39 // pred_check_branch
        %480 = sbr.rel (%p478) target = $region48
      $region47: #{feature_net.16} parent=39 // pred_region
        %p481 = scmp.lt.s32.totalorder %s20, 1
        %s482 = scalar_select %p481, %s20, 1
        %s483 = scalar_lea.vmem %s2, %s482
      $region48: #{feature_net.16} parent=39 // pred_fallthru
        _
    $region40: #{feature_net.16} parent=5 // pred_fallthru
      _
  $region6: #{feature_net.16} parent=0 // loop_footer
    %s13 = sadd.s32 1, %s9
  $region7: #{feature_net.16} parent=0 // loop_footer_branch
    %8 = sbr.rel target = $region3
  $region8: #{feature_net.16} parent=0 // loop_exit
    _

// kernel: feature_net.17
$region0: #{feature_net.17}
  #allocation0 [shape = 'u32[]', space=smem, size = 0x4, offset = 0x4, fixed_abs, tag = 'smem constant byte address 0x4 - core index']
  #allocation1 [shape = 'u32[144,128]{1,0:T(1,128)}', space=vmem, size = 0x12000, scoped, tag = 'internal scratch']
  %s0 = inlined_call_operand.vmem [shape: f32[2,1024,128], index: 0, kind: input, shape index: {}]
  %s1 = inlined_call_operand.vmem [shape: f32[2,1,128], index: 1, kind: input, shape index: {}]
  %s2 = inlined_call_operand.vmem [shape: f32[2,1,128], index: 2, kind: input, shape index: {}]
  %s3 = inlined_call_operand.vmem [shape: f32[2,1024,128], index: 3, kind: output, shape index: {}]
  %s4 = sld [smem:[#allocation0]]
  $region45: #{feature_net.17} parent=0
    _
  %s6 = ssub.s32 1, %s4
  %s7 = scalar_select 0, %s6, %s4
  loop: start=0, step=1, limit=6
  $region2: #{feature_net.17} parent=0 // loop_pre_header
    _
  $region3: #{feature_net.17} parent=0 // loop_header
    %s9 = sphi 0, %s13
    %p10 = scmp.ge.s32.totalorder %s9, 6
    %s16 = sphi 0, %s28
    %s17 = sphi 0, %s24
    %s18 = sphi 0, %s16
    %s19 = sphi 0, %s17
    %s20 = sphi 0, %s18
    %s21 = sphi 0, %s19
    %s33 = sphi 0, %s35
    %s36 = sphi 0, %s33
    %s37 = sphi 0, %s36
    %s53 = sphi 0, %s37
    %s59 = sphi 0, %s61
    %s62 = sphi 0, %s59
    %s63 = sphi 0, %s62
    %s79 = sphi 0, %s63
    %s85 = sphi 0, %s87
    %s88 = sphi 0, %s85
    %s89 = sphi 0, %s88
    %s105 = sphi 0, %s89
    %s113 = sphi 0, %s115
    %s116 = sphi 0, %s113
    %s117 = sphi 0, %s116
    %s133 = sphi 0, %s117
  $region4: #{feature_net.17} parent=0 // loop_header_branch
    %12 = sbr.rel (%p10) target = $region8
  $region5: #{feature_net.17} parent=0 // loop_body
    %s14 = ssub.s32 %s9, 1
    %s15 = ssub.s32 %s9, 2
    %s22 = sadd.s32 1, %s17
    %p23 = scmp.ge.s32.totalorder %s22, 2
    %s24 = scalar_select %p23, 0, %s22
    %s25 = sadd.s32 1, %s16
    %s26 = scalar_select %p23, %s25, %s16
    %p27 = scmp.ge.s32.totalorder %s26, 2
    %s28 = scalar_select %p27, 0, %s26
    %s29 = ssub.s32 %s16, %s28
    %s30 = ssub.s32 %s17, %s24
    %s31 = sor.u32 %s29, %s30
    %p32 = scmp.eq.s32.totalorder %s31, 0
    %s34 = sadd.s32 %s33, 1
    %s35 = scalar_select %p32, %s33, %s34
    %p38 = pneg %p32
    %p39 = scmp.eq.s32.totalorder %s9, 3
    %p40 = por %p38, %p39
    %p41 = scmp.ne.s32.totalorder %s33, %s36
    %p42 = scmp.eq.s32.totalorder %s9, 0
    %p43 = por %p41, %p42
    %p44 = scmp.ne.s32.totalorder %s33, %s36
    %p45 = scmp.eq.s32.totalorder %s14, 3
    %p46 = por %p44, %p45
    %p47 = scmp.ne.s32.totalorder %s36, %s37
    %p48 = scmp.eq.s32.totalorder %s14, 0
    %p49 = por %p47, %p48
    %p50 = scmp.ne.s32.totalorder %s36, %s37
    %p51 = scmp.eq.s32.totalorder %s15, 3
    %p52 = por %p50, %p51
    %p54 = scmp.ne.s32.totalorder %s37, %s53
    %p55 = scmp.eq.s32.totalorder %s15, 0
    %p56 = por %p54, %p55
    %s57 = ssub.s32 %s16, %s28
    %p58 = scmp.eq.s32.totalorder %s57, 0
    %s60 = sadd.s32 %s59, 1
    %s61 = scalar_select %p58, %s59, %s60
    %p64 = pneg %p58
    %p65 = scmp.eq.s32.totalorder %s9, 3
    %p66 = por %p64, %p65
    %p67 = scmp.ne.s32.totalorder %s59, %s62
    %p68 = scmp.eq.s32.totalorder %s9, 0
    %p69 = por %p67, %p68
    %p70 = scmp.ne.s32.totalorder %s59, %s62
    %p71 = scmp.eq.s32.totalorder %s14, 3
    %p72 = por %p70, %p71
    %p73 = scmp.ne.s32.totalorder %s62, %s63
    %p74 = scmp.eq.s32.totalorder %s14, 0
    %p75 = por %p73, %p74
    %p76 = scmp.ne.s32.totalorder %s62, %s63
    %p77 = scmp.eq.s32.totalorder %s15, 3
    %p78 = por %p76, %p77
    %p80 = scmp.ne.s32.totalorder %s63, %s79
    %p81 = scmp.eq.s32.totalorder %s15, 0
    %p82 = por %p80, %p81
    %s83 = ssub.s32 %s16, %s28
    %p84 = scmp.eq.s32.totalorder %s83, 0
    %s86 = sadd.s32 %s85, 1
    %s87 = scalar_select %p84, %s85, %s86
    %p90 = pneg %p84
    %p91 = scmp.eq.s32.totalorder %s9, 3
    %p92 = por %p90, %p91
    %p93 = scmp.ne.s32.totalorder %s85, %s88
    %p94 = scmp.eq.s32.totalorder %s9, 0
    %p95 = por %p93, %p94
    %p96 = scmp.ne.s32.totalorder %s85, %s88
    %p97 = scmp.eq.s32.totalorder %s14, 3
    %p98 = por %p96, %p97
    %p99 = scmp.ne.s32.totalorder %s88, %s89
    %p100 = scmp.eq.s32.totalorder %s14, 0
    %p101 = por %p99, %p100
    %p102 = scmp.ne.s32.totalorder %s88, %s89
    %p103 = scmp.eq.s32.totalorder %s15, 3
    %p104 = por %p102, %p103
    %p106 = scmp.ne.s32.totalorder %s89, %s105
    %p107 = scmp.eq.s32.totalorder %s15, 0
    %p108 = por %p106, %p107
    %s109 = ssub.s32 %s16, %s28
    %s110 = ssub.s32 %s17, %s24
    %s111 = sor.u32 %s109, %s110
    %p112 = scmp.eq.s32.totalorder %s111, 0
    %s114 = sadd.s32 %s113, 1
    %s115 = scalar_select %p112, %s113, %s114
    %p118 = pneg %p112
    %p119 = scmp.eq.s32.totalorder %s9, 3
    %p120 = por %p118, %p119
    %p121 = scmp.ne.s32.totalorder %s113, %s116
    %p122 = scmp.eq.s32.totalorder %s9, 0
    %p123 = por %p121, %p122
    %p124 = scmp.ne.s32.totalorder %s113, %s116
    %p125 = scmp.eq.s32.totalorder %s14, 3
    %p126 = por %p124, %p125
    %p127 = scmp.ne.s32.totalorder %s116, %s117
    %p128 = scmp.eq.s32.totalorder %s14, 0
    %p129 = por %p127, %p128
    %p130 = scmp.ne.s32.totalorder %s116, %s117
    %p131 = scmp.eq.s32.totalorder %s15, 3
    %p132 = por %p130, %p131
    %p134 = scmp.ne.s32.totalorder %s117, %s133
    %p135 = scmp.eq.s32.totalorder %s15, 0
    %p136 = por %p134, %p135
    %p137 = scmp.le.s32.totalorder 1, %s9
    %p138 = scmp.lt.s32.totalorder %s9, 5
    %p139 = pnand %p137, %p138
    %p140 = pneg %p139
    // Predicated region
    $region9: #{feature_net.17} parent=5 // pred_check
      _
    $region10: #{feature_net.17} parent=5 // pred_check_branch
      %142 = sbr.rel (%p139) target = $region12
    $region11: #{feature_net.17} parent=5 // pred_region
      %s143 = ssub.s32 %s9, 1
    $region12: #{feature_net.17} parent=5 // pred_fallthru
      _
    %p144 = scmp.lt.s32.totalorder %s9, 4
    // Predicated region
    $region13: #{feature_net.17} parent=5 // pred_check
      %p145 = pneg %p144
    $region14: #{feature_net.17} parent=5 // pred_check_branch
      %147 = sbr.rel (%p145) target = $region16
    $region15: #{feature_net.17} parent=5 // pred_region
      // Predicated region
      $region17: #{feature_net.17} parent=15 // pred_check
        %p148 = pneg %p43
      $region18: #{feature_net.17} parent=15 // pred_check_branch
        %150 = sbr.rel (%p148) target = $region20
      $region19: #{feature_net.17} parent=15 // pred_region
        %s151 = smul.u32 64, %s17
        %p152 = scmp.lt.s32.totalorder %s16, 1
        %s153 = scalar_select %p152, %s16, 1
        %p154 = scmp.lt.s32.totalorder %s151, 127
        %s155 = scalar_select %p154, %s151, 127
        %s156 = smul.addr %s153, 128
        %s157 = sadd.s32 %s155, %s156
        %s158 = smul.addr %s157, 8
        %s159 = scalar_lea.vmem %s0, %s158
        %s160 = smul.u32 64, %s17
      $region20: #{feature_net.17} parent=15 // pred_fallthru
        _
      // Predicated region
      $region21: #{feature_net.17} parent=15 // pred_check
        %p161 = pneg %p69
      $region22: #{feature_net.17} parent=15 // pred_check_branch
        %163 = sbr.rel (%p161) target = $region24
      $region23: #{feature_net.17} parent=15 // pred_region
        %p164 = scmp.lt.s32.totalorder %s16, 1
        %s165 = scalar_select %p164, %s16, 1
        %s166 = scalar_lea.vmem %s1, %s165
      $region24: #{feature_net.17} parent=15 // pred_fallthru
        _
      // Predicated region
      $region25: #{feature_net.17} parent=15 // pred_check
        %p167 = pneg %p95
      $region26: #{feature_net.17} parent=15 // pred_check_branch
        %169 = sbr.rel (%p167) target = $region28
      $region27: #{feature_net.17} parent=15 // pred_region
        %p170 = scmp.lt.s32.totalorder %s16, 1
        %s171 = scalar_select %p170, %s16, 1
        %s172 = scalar_lea.vmem %s2, %s171
      $region28: #{feature_net.17} parent=15 // pred_fallthru
        _
    $region16: #{feature_net.17} parent=5 // pred_fallthru
      _
    %p173 = scmp.le.s32.totalorder 1, %s9
    %p174 = scmp.lt.s32.totalorder %s9, 5
    %p175 = pnand %p173, %p174
    %p176 = pneg %p175
    // Predicated region
    $region29: #{feature_net.17} parent=5 // pred_check
      _
    $region30: #{feature_net.17} parent=5 // pred_check_branch
      %178 = sbr.rel (%p175) target = $region32
    $region31: #{feature_net.17} parent=5 // pred_region
      %s179 = ssub.s32 %s9, 1
      %s180 = smul.u32 64, %s19
      %p181 = scmp.lt.s32.totalorder %s18, 1
      %s182 = scalar_select %p181, %s18, 1
      %p183 = scmp.lt.s32.totalorder %s180, 127
      %s184 = scalar_select %p183, %s180, 127
      %s185 = smul.addr %s182, 128
      %s186 = sadd.s32 %s184, %s185
      %s187 = smul.addr %s186, 8
      %s188 = scalar_lea.vmem %s0, %s187
      %p189 = pneg %p49
      %p190 = pneg %p46
      %p191 = scmp.lt.s32.totalorder %s18, 1
      %s192 = scalar_select %p191, %s18, 1
      %s193 = scalar_lea.vmem %s1, %s192
      %p194 = pneg %p75
      %p195 = pneg %p72
      %p196 = scmp.lt.s32.totalorder %s18, 1
      %s197 = scalar_select %p196, %s18, 1
      %s198 = scalar_lea.vmem %s2, %s197
      %p199 = pneg %p101
      %p200 = pneg %p98
      %p201 = pneg %p129
      %p202 = pneg %p126
      %s203 = smul.u32 64, %s19
      %p204 = scmp.lt.s32.totalorder %s18, 1
      %s205 = scalar_select %p204, %s18, 1
      %p206 = scmp.lt.s32.totalorder %s203, 127
      %s207 = scalar_select %p206, %s203, 127
      %s208 = smul.addr %s205, 128
      %s209 = sadd.s32 %s207, %s208
      %s210 = smul.addr %s209, 8
      %s211 = scalar_lea.vmem %s3, %s210
      %s212 = smul.u32 64, %s19
      %p213 = scmp.lt.s32.totalorder %s18, 1
      %s214 = scalar_select %p213, %s18, 1
      %p215 = scmp.lt.s32.totalorder %s212, 127
      %s216 = scalar_select %p215, %s212, 127
      %s217 = smul.addr %s214, 128
      %s218 = sadd.s32 %s216, %s217
      %s219 = smul.addr %s218, 8
      %s220 = scalar_lea.vmem %s0, %s219
      %s221 = smul.u32 64, %s19
      %p222 = scmp.lt.s32.totalorder %s18, 1
      %s223 = scalar_select %p222, %s18, 1
      %s224 = scalar_lea.vmem %s1, %s223
      %p225 = scmp.lt.s32.totalorder %s18, 1
      %s226 = scalar_select %p225, %s18, 1
      %s227 = scalar_lea.vmem %s2, %s226
      %s228 = smul.u32 64, %s19
      %p229 = scmp.lt.s32.totalorder %s18, 1
      %s230 = scalar_select %p229, %s18, 1
      %p231 = scmp.lt.s32.totalorder %s228, 127
      %s232 = scalar_select %p231, %s228, 127
      %s233 = smul.addr %s230, 128
      %s234 = sadd.s32 %s232, %s233
      %s235 = smul.addr %s234, 8
      %s236 = scalar_lea.vmem %s3, %s235
      %s237 = smul.u32 64, %s19
      %v238 = vld [vmem:[%s220] sm:$0xff]
      %v239 = vld [vmem:[%s220 + $0x8] sm:$0xff]
      %v240 = vld [vmem:[%s220 + $0x10] sm:$0xff]
      %v241 = vld [vmem:[%s220 + $0x18] sm:$0xff]
      %v242 = vld [vmem:[%s220 + $0x20] sm:$0xff]
      %v243 = vld [vmem:[%s220 + $0x28] sm:$0xff]
      %v244 = vld [vmem:[%s220 + $0x30] sm:$0xff]
      %v245 = vld [vmem:[%s220 + $0x38] sm:$0xff]
      %v246 = vld [vmem:[%s220 + $0x40] sm:$0xff]
      %v247 = vld [vmem:[%s220 + $0x48] sm:$0xff]
      %v248 = vld [vmem:[%s220 + $0x50] sm:$0xff]
      %v249 = vld [vmem:[%s220 + $0x58] sm:$0xff]
      %v250 = vld [vmem:[%s220 + $0x60] sm:$0xff]
      %v251 = vld [vmem:[%s220 + $0x68] sm:$0xff]
      %v252 = vld [vmem:[%s220 + $0x70] sm:$0xff]
      %v253 = vld [vmem:[%s220 + $0x78] sm:$0xff]
      %v254 = vld [vmem:[%s220 + $0x80] sm:$0xff]
      %v255 = vld [vmem:[%s220 + $0x88] sm:$0xff]
      %v256 = vld [vmem:[%s220 + $0x90] sm:$0xff]
      %v257 = vld [vmem:[%s220 + $0x98] sm:$0xff]
      %v258 = vld [vmem:[%s220 + $0xa0] sm:$0xff]
      %v259 = vld [vmem:[%s220 + $0xa8] sm:$0xff]
      %v260 = vld [vmem:[%s220 + $0xb0] sm:$0xff]
      %v261 = vld [vmem:[%s220 + $0xb8] sm:$0xff]
      %v262 = vld [vmem:[%s220 + $0xc0] sm:$0xff]
      %v263 = vld [vmem:[%s220 + $0xc8] sm:$0xff]
      %v264 = vld [vmem:[%s220 + $0xd0] sm:$0xff]
      %v265 = vld [vmem:[%s220 + $0xd8] sm:$0xff]
      %v266 = vld [vmem:[%s220 + $0xe0] sm:$0xff]
      %v267 = vld [vmem:[%s220 + $0xe8] sm:$0xff]
      %v268 = vld [vmem:[%s220 + $0xf0] sm:$0xff]
      %v269 = vld [vmem:[%s220 + $0xf8] sm:$0xff]
      %v270 = vld [vmem:[%s220 + $0x100] sm:$0xff]
      %v271 = vld [vmem:[%s220 + $0x108] sm:$0xff]
      %v272 = vld [vmem:[%s220 + $0x110] sm:$0xff]
      %v273 = vld [vmem:[%s220 + $0x118] sm:$0xff]
      %v274 = vld [vmem:[%s220 + $0x120] sm:$0xff]
      %v275 = vld [vmem:[%s220 + $0x128] sm:$0xff]
      %v276 = vld [vmem:[%s220 + $0x130] sm:$0xff]
      %v277 = vld [vmem:[%s220 + $0x138] sm:$0xff]
      %v278 = vld [vmem:[%s220 + $0x140] sm:$0xff]
      %v279 = vld [vmem:[%s220 + $0x148] sm:$0xff]
      %v280 = vld [vmem:[%s220 + $0x150] sm:$0xff]
      %v281 = vld [vmem:[%s220 + $0x158] sm:$0xff]
      %v282 = vld [vmem:[%s220 + $0x160] sm:$0xff]
      %v283 = vld [vmem:[%s220 + $0x168] sm:$0xff]
      %v284 = vld [vmem:[%s220 + $0x170] sm:$0xff]
      %v285 = vld [vmem:[%s220 + $0x178] sm:$0xff]
      %v286 = vld [vmem:[%s220 + $0x180] sm:$0xff]
      %v287 = vld [vmem:[%s220 + $0x188] sm:$0xff]
      %v288 = vld [vmem:[%s220 + $0x190] sm:$0xff]
      %v289 = vld [vmem:[%s220 + $0x198] sm:$0xff]
      %v290 = vld [vmem:[%s220 + $0x1a0] sm:$0xff]
      %v291 = vld [vmem:[%s220 + $0x1a8] sm:$0xff]
      %v292 = vld [vmem:[%s220 + $0x1b0] sm:$0xff]
      %v293 = vld [vmem:[%s220 + $0x1b8] sm:$0xff]
      %v294 = vld [vmem:[%s220 + $0x1c0] sm:$0xff]
      %v295 = vld [vmem:[%s220 + $0x1c8] sm:$0xff]
      %v296 = vld [vmem:[%s220 + $0x1d0] sm:$0xff]
      %v297 = vld [vmem:[%s220 + $0x1d8] sm:$0xff]
      %v298 = vld [vmem:[%s220 + $0x1e0] sm:$0xff]
      %v299 = vld [vmem:[%s220 + $0x1e8] sm:$0xff]
      %v300 = vld [vmem:[%s220 + $0x1f0] sm:$0xff]
      %v301 = vld [vmem:[%s220 + $0x1f8] sm:$0xff]
      %v302 = vld [vmem:[%s224] sm:$0x1]
      %v303 = vmul.f32 %v302, 0.0009765625
      %v304 = vld [vmem:[%s227] sm:$0x1]
      %v305 = vmul.f32 %v304, 0.0009765625
      %v306 = vmul.f32 %v303, %v303
      %v307 = vsub.f32 %v305, %v306
      %v308 = vmax.f32 %v307, 0.0
      %v310 = vlaneseq
      %v311 = vshrl.u32 %v310, 7
      %v312 = vsub.s32 0, %v311
      %v313 = vrot.slane %v303, %v312
      %v315 = vsub.f32 %v238, %v313
      %v316 = vsub.f32 %v239, %v313
      %v317 = vsub.f32 %v240, %v313
      %v318 = vsub.f32 %v241, %v313
      %v319 = vsub.f32 %v242, %v313
      %v320 = vsub.f32 %v243, %v313
      %v321 = vsub.f32 %v244, %v313
      %v322 = vsub.f32 %v245, %v313
      %v323 = vsub.f32 %v246, %v313
      %v324 = vsub.f32 %v247, %v313
      %v325 = vsub.f32 %v248, %v313
      %v326 = vsub.f32 %v249, %v313
      %v327 = vsub.f32 %v250, %v313
      %v328 = vsub.f32 %v251, %v313
      %v329 = vsub.f32 %v252, %v313
      %v330 = vsub.f32 %v253, %v313
      %v331 = vsub.f32 %v254, %v313
      %v332 = vsub.f32 %v255, %v313
      %v333 = vsub.f32 %v256, %v313
      %v334 = vsub.f32 %v257, %v313
      %v335 = vsub.f32 %v258, %v313
      %v336 = vsub.f32 %v259, %v313
      %v337 = vsub.f32 %v260, %v313
      %v338 = vsub.f32 %v261, %v313
      %v339 = vsub.f32 %v262, %v313
      %v340 = vsub.f32 %v263, %v313
      %v341 = vsub.f32 %v264, %v313
      %v342 = vsub.f32 %v265, %v313
      %v343 = vsub.f32 %v266, %v313
      %v344 = vsub.f32 %v267, %v313
      %v345 = vsub.f32 %v268, %v313
      %v346 = vsub.f32 %v269, %v313
      %v347 = vsub.f32 %v270, %v313
      %v348 = vsub.f32 %v271, %v313
      %v349 = vsub.f32 %v272, %v313
      %v350 = vsub.f32 %v273, %v313
      %v351 = vsub.f32 %v274, %v313
      %v352 = vsub.f32 %v275, %v313
      %v353 = vsub.f32 %v276, %v313
      %v354 = vsub.f32 %v277, %v313
      %v355 = vsub.f32 %v278, %v313
      %v356 = vsub.f32 %v279, %v313
      %v357 = vsub.f32 %v280, %v313
      %v358 = vsub.f32 %v281, %v313
      %v359 = vsub.f32 %v282, %v313
      %v360 = vsub.f32 %v283, %v313
      %v361 = vsub.f32 %v284, %v313
      %v362 = vsub.f32 %v285, %v313
      %v363 = vsub.f32 %v286, %v313
      %v364 = vsub.f32 %v287, %v313
      %v365 = vsub.f32 %v288, %v313
      %v366 = vsub.f32 %v289, %v313
      %v367 = vsub.f32 %v290, %v313
      %v368 = vsub.f32 %v291, %v313
      %v369 = vsub.f32 %v292, %v313
      %v370 = vsub.f32 %v293, %v313
      %v371 = vsub.f32 %v294, %v313
      %v372 = vsub.f32 %v295, %v313
      %v373 = vsub.f32 %v296, %v313
      %v374 = vsub.f32 %v297, %v313
      %v375 = vsub.f32 %v298, %v313
      %v376 = vsub.f32 %v299, %v313
      %v377 = vsub.f32 %v300, %v313
      %v378 = vsub.f32 %v301, %v313
      %v379 = vadd.f32 %v308, 1e-05
      %v380 = vrsqrt.pop %v379
      %v382 = vlaneseq
      %v383 = vshrl.u32 %v382, 7
      %v384 = vsub.s32 0, %v383
      %v385 = vrot.slane %v380, %v384
      %v387 = vmul.f32 %v315, %v385
      %v388 = vmul.f32 %v316, %v385
      %v389 = vmul.f32 %v317, %v385
      %v390 = vmul.f32 %v318, %v385
      %v391 = vmul.f32 %v319, %v385
      %v392 = vmul.f32 %v320, %v385
      %v393 = vmul.f32 %v321, %v385
      %v394 = vmul.f32 %v322, %v385
      %v395 = vmul.f32 %v323, %v385
      %v396 = vmul.f32 %v324, %v385
      %v397 = vmul.f32 %v325, %v385
      %v398 = vmul.f32 %v326, %v385
      %v399 = vmul.f32 %v327, %v385
      %v400 = vmul.f32 %v328, %v385
      %v401 = vmul.f32 %v329, %v385
      %v402 = vmul.f32 %v330, %v385
      %v403 = vmul.f32 %v331, %v385
      %v404 = vmul.f32 %v332, %v385
      %v405 = vmul.f32 %v333, %v385
      %v406 = vmul.f32 %v334, %v385
      %v407 = vmul.f32 %v335, %v385
      %v408 = vmul.f32 %v336, %v385
      %v409 = vmul.f32 %v337, %v385
      %v410 = vmul.f32 %v338, %v385
      %v411 = vmul.f32 %v339, %v385
      %v412 = vmul.f32 %v340, %v385
      %v413 = vmul.f32 %v341, %v385
      %v414 = vmul.f32 %v342, %v385
      %v415 = vmul.f32 %v343, %v385
      %v416 = vmul.f32 %v344, %v385
      %v417 = vmul.f32 %v345, %v385
      %v418 = vmul.f32 %v346, %v385
      %v419 = vmul.f32 %v347, %v385
      %v420 = vmul.f32 %v348, %v385
      %v421 = vmul.f32 %v349, %v385
      %v422 = vmul.f32 %v350, %v385
      %v423 = vmul.f32 %v351, %v385
      %v424 = vmul.f32 %v352, %v385
      %v425 = vmul.f32 %v353, %v385
      %v426 = vmul.f32 %v354, %v385
      %v427 = vmul.f32 %v355, %v385
      %v428 = vmul.f32 %v356, %v385
      %v429 = vmul.f32 %v357, %v385
      %v430 = vmul.f32 %v358, %v385
      %v431 = vmul.f32 %v359, %v385
      %v432 = vmul.f32 %v360, %v385
      %v433 = vmul.f32 %v361, %v385
      %v434 = vmul.f32 %v362, %v385
      %v435 = vmul.f32 %v363, %v385
      %v436 = vmul.f32 %v364, %v385
      %v437 = vmul.f32 %v365, %v385
      %v438 = vmul.f32 %v366, %v385
      %v439 = vmul.f32 %v367, %v385
      %v440 = vmul.f32 %v368, %v385
      %v441 = vmul.f32 %v369, %v385
      %v442 = vmul.f32 %v370, %v385
      %v443 = vmul.f32 %v371, %v385
      %v444 = vmul.f32 %v372, %v385
      %v445 = vmul.f32 %v373, %v385
      %v446 = vmul.f32 %v374, %v385
      %v447 = vmul.f32 %v375, %v385
      %v448 = vmul.f32 %v376, %v385
      %v449 = vmul.f32 %v377, %v385
      %v450 = vmul.f32 %v378, %v385
      %v451 = vmax.f32 %v387, 0.0
      %v452 = vmax.f32 %v388, 0.0
      %v453 = vmax.f32 %v389, 0.0
      %v454 = vmax.f32 %v390, 0.0
      %v455 = vmax.f32 %v391, 0.0
      %v456 = vmax.f32 %v392, 0.0
      %v457 = vmax.f32 %v393, 0.0
      %v458 = vmax.f32 %v394, 0.0
      %v459 = vmax.f32 %v395, 0.0
      %v460 = vmax.f32 %v396, 0.0
      %v461 = vmax.f32 %v397, 0.0
      %v462 = vmax.f32 %v398, 0.0
      %v463 = vmax.f32 %v399, 0.0
      %v464 = vmax.f32 %v400, 0.0
      %v465 = vmax.f32 %v401, 0.0
      %v466 = vmax.f32 %v402, 0.0
      %v467 = vmax.f32 %v403, 0.0
      %v468 = vmax.f32 %v404, 0.0
      %v469 = vmax.f32 %v405, 0.0
      %v470 = vmax.f32 %v406, 0.0
      %v471 = vmax.f32 %v407, 0.0
      %v472 = vmax.f32 %v408, 0.0
      %v473 = vmax.f32 %v409, 0.0
      %v474 = vmax.f32 %v410, 0.0
      %v475 = vmax.f32 %v411, 0.0
      %v476 = vmax.f32 %v412, 0.0
      %v477 = vmax.f32 %v413, 0.0
      %v478 = vmax.f32 %v414, 0.0
      %v479 = vmax.f32 %v415, 0.0
      %v480 = vmax.f32 %v416, 0.0
      %v481 = vmax.f32 %v417, 0.0
      %v482 = vmax.f32 %v418, 0.0
      %v483 = vmax.f32 %v419, 0.0
      %v484 = vmax.f32 %v420, 0.0
      %v485 = vmax.f32 %v421, 0.0
      %v486 = vmax.f32 %v422, 0.0
      %v487 = vmax.f32 %v423, 0.0
      %v488 = vmax.f32 %v424, 0.0
      %v489 = vmax.f32 %v425, 0.0
      %v490 = vmax.f32 %v426, 0.0
      %v491 = vmax.f32 %v427, 0.0
      %v492 = vmax.f32 %v428, 0.0
      %v493 = vmax.f32 %v429, 0.0
      %v494 = vmax.f32 %v430, 0.0
      %v495 = vmax.f32 %v431, 0.0
      %v496 = vmax.f32 %v432, 0.0
      %v497 = vmax.f32 %v433, 0.0
      %v498 = vmax.f32 %v434, 0.0
      %v499 = vmax.f32 %v435, 0.0
      %v500 = vmax.f32 %v436, 0.0
      %v501 = vmax.f32 %v437, 0.0
      %v502 = vmax.f32 %v438, 0.0
      %v503 = vmax.f32 %v439, 0.0
      %v504 = vmax.f32 %v440, 0.0
      %v505 = vmax.f32 %v441, 0.0
      %v506 = vmax.f32 %v442, 0.0
      %v507 = vmax.f32 %v443, 0.0
      %v508 = vmax.f32 %v444, 0.0
      %v509 = vmax.f32 %v445, 0.0
      %v510 = vmax.f32 %v446, 0.0
      %v511 = vmax.f32 %v447, 0.0
      %v512 = vmax.f32 %v448, 0.0
      %v513 = vmax.f32 %v449, 0.0
      %v514 = vmax.f32 %v450, 0.0
      %515 = vst [vmem:[%s236] sm:$0xff] %v451
      %516 = vst [vmem:[%s236 + $0x8] sm:$0xff] %v452
      %517 = vst [vmem:[%s236 + $0x10] sm:$0xff] %v453
      %518 = vst [vmem:[%s236 + $0x18] sm:$0xff] %v454
      %519 = vst [vmem:[%s236 + $0x20] sm:$0xff] %v455
      %520 = vst [vmem:[%s236 + $0x28] sm:$0xff] %v456
      %521 = vst [vmem:[%s236 + $0x30] sm:$0xff] %v457
      %522 = vst [vmem:[%s236 + $0x38] sm:$0xff] %v458
      %523 = vst [vmem:[%s236 + $0x40] sm:$0xff] %v459
      %524 = vst [vmem:[%s236 + $0x48] sm:$0xff] %v460
      %525 = vst [vmem:[%s236 + $0x50] sm:$0xff] %v461
      %526 = vst [vmem:[%s236 + $0x58] sm:$0xff] %v462
      %527 = vst [vmem:[%s236 + $0x60] sm:$0xff] %v463
      %528 = vst [vmem:[%s236 + $0x68] sm:$0xff] %v464
      %529 = vst [vmem:[%s236 + $0x70] sm:$0xff] %v465
      %530 = vst [vmem:[%s236 + $0x78] sm:$0xff] %v466
      %531 = vst [vmem:[%s236 + $0x80] sm:$0xff] %v467
      %532 = vst [vmem:[%s236 + $0x88] sm:$0xff] %v468
      %533 = vst [vmem:[%s236 + $0x90] sm:$0xff] %v469
      %534 = vst [vmem:[%s236 + $0x98] sm:$0xff] %v470
      %535 = vst [vmem:[%s236 + $0xa0] sm:$0xff] %v471
      %536 = vst [vmem:[%s236 + $0xa8] sm:$0xff] %v472
      %537 = vst [vmem:[%s236 + $0xb0] sm:$0xff] %v473
      %538 = vst [vmem:[%s236 + $0xb8] sm:$0xff] %v474
      %539 = vst [vmem:[%s236 + $0xc0] sm:$0xff] %v475
      %540 = vst [vmem:[%s236 + $0xc8] sm:$0xff] %v476
      %541 = vst [vmem:[%s236 + $0xd0] sm:$0xff] %v477
      %542 = vst [vmem:[%s236 + $0xd8] sm:$0xff] %v478
      %543 = vst [vmem:[%s236 + $0xe0] sm:$0xff] %v479
      %544 = vst [vmem:[%s236 + $0xe8] sm:$0xff] %v480
      %545 = vst [vmem:[%s236 + $0xf0] sm:$0xff] %v481
      %546 = vst [vmem:[%s236 + $0xf8] sm:$0xff] %v482
      %547 = vst [vmem:[%s236 + $0x100] sm:$0xff] %v483
      %548 = vst [vmem:[%s236 + $0x108] sm:$0xff] %v484
      %549 = vst [vmem:[%s236 + $0x110] sm:$0xff] %v485
      %550 = vst [vmem:[%s236 + $0x118] sm:$0xff] %v486
      %551 = vst [vmem:[%s236 + $0x120] sm:$0xff] %v487
      %552 = vst [vmem:[%s236 + $0x128] sm:$0xff] %v488
      %553 = vst [vmem:[%s236 + $0x130] sm:$0xff] %v489
      %554 = vst [vmem:[%s236 + $0x138] sm:$0xff] %v490
      %555 = vst [vmem:[%s236 + $0x140] sm:$0xff] %v491
      %556 = vst [vmem:[%s236 + $0x148] sm:$0xff] %v492
      %557 = vst [vmem:[%s236 + $0x150] sm:$0xff] %v493
      %558 = vst [vmem:[%s236 + $0x158] sm:$0xff] %v494
      %559 = vst [vmem:[%s236 + $0x160] sm:$0xff] %v495
      %560 = vst [vmem:[%s236 + $0x168] sm:$0xff] %v496
      %561 = vst [vmem:[%s236 + $0x170] sm:$0xff] %v497
      %562 = vst [vmem:[%s236 + $0x178] sm:$0xff] %v498
      %563 = vst [vmem:[%s236 + $0x180] sm:$0xff] %v499
      %564 = vst [vmem:[%s236 + $0x188] sm:$0xff] %v500
      %565 = vst [vmem:[%s236 + $0x190] sm:$0xff] %v501
      %566 = vst [vmem:[%s236 + $0x198] sm:$0xff] %v502
      %567 = vst [vmem:[%s236 + $0x1a0] sm:$0xff] %v503
      %568 = vst [vmem:[%s236 + $0x1a8] sm:$0xff] %v504
      %569 = vst [vmem:[%s236 + $0x1b0] sm:$0xff] %v505
      %570 = vst [vmem:[%s236 + $0x1b8] sm:$0xff] %v506
      %571 = vst [vmem:[%s236 + $0x1c0] sm:$0xff] %v507
      %572 = vst [vmem:[%s236 + $0x1c8] sm:$0xff] %v508
      %573 = vst [vmem:[%s236 + $0x1d0] sm:$0xff] %v509
      %574 = vst [vmem:[%s236 + $0x1d8] sm:$0xff] %v510
      %575 = vst [vmem:[%s236 + $0x1e0] sm:$0xff] %v511
      %576 = vst [vmem:[%s236 + $0x1e8] sm:$0xff] %v512
      %577 = vst [vmem:[%s236 + $0x1f0] sm:$0xff] %v513
      %578 = vst [vmem:[%s236 + $0x1f8] sm:$0xff] %v514
      %s579 = smul.u32 64, %s19
      %p580 = scmp.lt.s32.totalorder %s18, 1
      %s581 = scalar_select %p580, %s18, 1
      %p582 = scmp.lt.s32.totalorder %s579, 127
      %s583 = scalar_select %p582, %s579, 127
      %s584 = smul.addr %s581, 128
      %s585 = sadd.s32 %s583, %s584
      %s586 = smul.addr %s585, 8
      %s587 = scalar_lea.vmem %s3, %s586
      // Predicated region
      $region33: #{feature_net.17} parent=31 // pred_check
        %p588 = pneg %p126
      $region34: #{feature_net.17} parent=31 // pred_check_branch
        %590 = sbr.rel (%p588) target = $region36
      $region35: #{feature_net.17} parent=31 // pred_region
        %s591 = smul.u32 64, %s19
      $region36: #{feature_net.17} parent=31 // pred_fallthru
        _
    $region32: #{feature_net.17} parent=5 // pred_fallthru
      _
    %p592 = scmp.le.s32.totalorder 2, %s9
    // Predicated region
    $region37: #{feature_net.17} parent=5 // pred_check
      %p593 = pneg %p592
    $region38: #{feature_net.17} parent=5 // pred_check_branch
      %595 = sbr.rel (%p593) target = $region40
    $region39: #{feature_net.17} parent=5 // pred_region
      %s596 = ssub.s32 %s9, 2
      // Predicated region
      $region41: #{feature_net.17} parent=39 // pred_check
        %p597 = pneg %p132
      $region42: #{feature_net.17} parent=39 // pred_check_branch
        %599 = sbr.rel (%p597) target = $region44
      $region43: #{feature_net.17} parent=39 // pred_region
        %s600 = smul.u32 64, %s21
        %p601 = scmp.lt.s32.totalorder %s20, 1
        %s602 = scalar_select %p601, %s20, 1
        %p603 = scmp.lt.s32.totalorder %s600, 127
        %s604 = scalar_select %p603, %s600, 127
        %s605 = smul.addr %s602, 128
        %s606 = sadd.s32 %s604, %s605
        %s607 = smul.addr %s606, 8
        %s608 = scalar_lea.vmem %s3, %s607
      $region44: #{feature_net.17} parent=39 // pred_fallthru
        _
    $region40: #{feature_net.17} parent=5 // pred_fallthru
      _
  $region6: #{feature_net.17} parent=0 // loop_footer
    %s13 = sadd.s32 1, %s9
  $region7: #{feature_net.17} parent=0 // loop_footer_branch
    %8 = sbr.rel target = $region3
  $region8: #{feature_net.17} parent=0 // loop_exit
    _

// kernel: feature_net.19
$region0: #{feature_net.19}
  #allocation0 [shape = 'u32[]', space=smem, size = 0x4, offset = 0x4, fixed_abs, tag = 'smem constant byte address 0x4 - core index']
  #allocation1 [shape = 'u32[144,128]{1,0:T(1,128)}', space=vmem, size = 0x12000, scoped, tag = 'internal scratch']
  %s0 = inlined_call_operand.vmem [shape: f32[2,192,128], index: 0, kind: input, shape index: {}]
  %s1 = inlined_call_operand.vmem [shape: f32[2,1,128], index: 1, kind: output, shape index: {0}]
  %s2 = inlined_call_operand.vmem [shape: f32[2,1,128], index: 2, kind: output, shape index: {1}]
  %3 = xla_tuple %s1, %s2
  %s4 = sld [smem:[#allocation0]]
  $region49: #{feature_net.19} parent=0
    _
  %s6 = ssub.s32 1, %s4
  %s7 = scalar_select 0, %s6, %s4
  loop: start=0, step=1, limit=4
  $region2: #{feature_net.19} parent=0 // loop_pre_header
    _
  $region3: #{feature_net.19} parent=0 // loop_header
    %s9 = sphi 0, %s13
    %p10 = scmp.ge.s32.totalorder %s9, 4
    %s16 = sphi 0, %s28
    %s17 = sphi 0, %s24
    %s18 = sphi 0, %s16
    %s19 = sphi 0, %s17
    %s20 = sphi 0, %s18
    %s21 = sphi 0, %s19
    %s33 = sphi 0, %s35
    %s36 = sphi 0, %s33
    %s37 = sphi 0, %s36
    %s53 = sphi 0, %s37
    %s59 = sphi 0, %s61
    %s62 = sphi 0, %s59
    %s63 = sphi 0, %s62
    %s79 = sphi 0, %s63
    %s85 = sphi 0, %s87
    %s88 = sphi 0, %s85
    %s89 = sphi 0, %s88
    %s105 = sphi 0, %s89
  $region4: #{feature_net.19} parent=0 // loop_header_branch
    %12 = sbr.rel (%p10) target = $region8
  $region5: #{feature_net.19} parent=0 // loop_body
    %s14 = ssub.s32 %s9, 1
    %s15 = ssub.s32 %s9, 2
    %s22 = sadd.s32 1, %s17
    %p23 = scmp.ge.s32.totalorder %s22, 1
    %s24 = scalar_select %p23, 0, %s22
    %s25 = sadd.s32 1, %s16
    %s26 = scalar_select %p23, %s25, %s16
    %p27 = scmp.ge.s32.totalorder %s26, 2
    %s28 = scalar_select %p27, 0, %s26
    %s29 = ssub.s32 %s16, %s28
    %s30 = ssub.s32 %s17, %s24
    %s31 = sor.u32 %s29, %s30
    %p32 = scmp.eq.s32.totalorder %s31, 0
    %s34 = sadd.s32 %s33, 1
    %s35 = scalar_select %p32, %s33, %s34
    %p38 = pneg %p32
    %p39 = scmp.eq.s32.totalorder %s9, 1
    %p40 = por %p38, %p39
    %p41 = scmp.ne.s32.totalorder %s33, %s36
    %p42 = scmp.eq.s32.totalorder %s9, 0
    %p43 = por %p41, %p42
    %p44 = scmp.ne.s32.totalorder %s33, %s36
    %p45 = scmp.eq.s32.totalorder %s14, 1
    %p46 = por %p44, %p45
    %p47 = scmp.ne.s32.totalorder %s36, %s37
    %p48 = scmp.eq.s32.totalorder %s14, 0
    %p49 = por %p47, %p48
    %p50 = scmp.ne.s32.totalorder %s36, %s37
    %p51 = scmp.eq.s32.totalorder %s15, 1
    %p52 = por %p50, %p51
    %p54 = scmp.ne.s32.totalorder %s37, %s53
    %p55 = scmp.eq.s32.totalorder %s15, 0
    %p56 = por %p54, %p55
    %s57 = ssub.s32 %s16, %s28
    %p58 = scmp.eq.s32.totalorder %s57, 0
    %s60 = sadd.s32 %s59, 1
    %s61 = scalar_select %p58, %s59, %s60
    %p64 = pneg %p58
    %p65 = scmp.eq.s32.totalorder %s9, 1
    %p66 = por %p64, %p65
    %p67 = scmp.ne.s32.totalorder %s59, %s62
    %p68 = scmp.eq.s32.totalorder %s9, 0
    %p69 = por %p67, %p68
    %p70 = scmp.ne.s32.totalorder %s59, %s62
    %p71 = scmp.eq.s32.totalorder %s14, 1
    %p72 = por %p70, %p71
    %p73 = scmp.ne.s32.totalorder %s62, %s63
    %p74 = scmp.eq.s32.totalorder %s14, 0
    %p75 = por %p73, %p74
    %p76 = scmp.ne.s32.totalorder %s62, %s63
    %p77 = scmp.eq.s32.totalorder %s15, 1
    %p78 = por %p76, %p77
    %p80 = scmp.ne.s32.totalorder %s63, %s79
    %p81 = scmp.eq.s32.totalorder %s15, 0
    %p82 = por %p80, %p81
    %s83 = ssub.s32 %s16, %s28
    %p84 = scmp.eq.s32.totalorder %s83, 0
    %s86 = sadd.s32 %s85, 1
    %s87 = scalar_select %p84, %s85, %s86
    %p90 = pneg %p84
    %p91 = scmp.eq.s32.totalorder %s9, 1
    %p92 = por %p90, %p91
    %p93 = scmp.ne.s32.totalorder %s85, %s88
    %p94 = scmp.eq.s32.totalorder %s9, 0
    %p95 = por %p93, %p94
    %p96 = scmp.ne.s32.totalorder %s85, %s88
    %p97 = scmp.eq.s32.totalorder %s14, 1
    %p98 = por %p96, %p97
    %p99 = scmp.ne.s32.totalorder %s88, %s89
    %p100 = scmp.eq.s32.totalorder %s14, 0
    %p101 = por %p99, %p100
    %p102 = scmp.ne.s32.totalorder %s88, %s89
    %p103 = scmp.eq.s32.totalorder %s15, 1
    %p104 = por %p102, %p103
    %p106 = scmp.ne.s32.totalorder %s89, %s105
    %p107 = scmp.eq.s32.totalorder %s15, 0
    %p108 = por %p106, %p107
    %p109 = scmp.le.s32.totalorder 1, %s9
    %p110 = scmp.lt.s32.totalorder %s9, 3
    %p111 = pnand %p109, %p110
    %p112 = pneg %p111
    // Predicated region
    $region9: #{feature_net.19} parent=5 // pred_check
      _
    $region10: #{feature_net.19} parent=5 // pred_check_branch
      %114 = sbr.rel (%p111) target = $region12
    $region11: #{feature_net.19} parent=5 // pred_region
      %s115 = ssub.s32 %s9, 1
    $region12: #{feature_net.19} parent=5 // pred_fallthru
      _
    %p116 = scmp.lt.s32.totalorder %s9, 2
    // Predicated region
    $region13: #{feature_net.19} parent=5 // pred_check
      %p117 = pneg %p116
    $region14: #{feature_net.19} parent=5 // pred_check_branch
      %119 = sbr.rel (%p117) target = $region16
    $region15: #{feature_net.19} parent=5 // pred_region
      // Predicated region
      $region17: #{feature_net.19} parent=15 // pred_check
        %p120 = pneg %p43
      $region18: #{feature_net.19} parent=15 // pred_check_branch
        %122 = sbr.rel (%p120) target = $region20
      $region19: #{feature_net.19} parent=15 // pred_region
        %s123 = smul.u32 24, %s17
        %p124 = scmp.lt.s32.totalorder %s16, 1
        %s125 = scalar_select %p124, %s16, 1
        %p126 = scmp.lt.s32.totalorder %s123, 23
        %s127 = scalar_select %p126, %s123, 23
        %s128 = smul.addr %s125, 24
        %s129 = sadd.s32 %s127, %s128
        %s130 = smul.addr %s129, 8
        %s131 = scalar_lea.vmem %s0, %s130
        %s132 = smul.u32 24, %s17
      $region20: #{feature_net.19} parent=15 // pred_fallthru
        _
    $region16: #{feature_net.19} parent=5 // pred_fallthru
      _
    %p133 = scmp.le.s32.totalorder 1, %s9
    %p134 = scmp.lt.s32.totalorder %s9, 3
    %p135 = pnand %p133, %p134
    %p136 = pneg %p135
    // Predicated region
    $region21: #{feature_net.19} parent=5 // pred_check
      _
    $region22: #{feature_net.19} parent=5 // pred_check_branch
      %138 = sbr.rel (%p135) target = $region24
    $region23: #{feature_net.19} parent=5 // pred_region
      %s139 = ssub.s32 %s9, 1
      %s140 = smul.u32 24, %s19
      %p141 = scmp.lt.s32.totalorder %s18, 1
      %s142 = scalar_select %p141, %s18, 1
      %p143 = scmp.lt.s32.totalorder %s140, 23
      %s144 = scalar_select %p143, %s140, 23
      %s145 = smul.addr %s142, 24
      %s146 = sadd.s32 %s144, %s145
      %s147 = smul.addr %s146, 8
      %s148 = scalar_lea.vmem %s0, %s147
      %p149 = pneg %p49
      %p150 = pneg %p46
      %p151 = pneg %p75
      %p152 = pneg %p72
      %p153 = scmp.lt.s32.totalorder %s18, 1
      %s154 = scalar_select %p153, %s18, 1
      %s155 = scalar_lea.vmem %s1, %s154
      %p156 = pneg %p101
      %p157 = pneg %p98
      %p158 = scmp.lt.s32.totalorder %s18, 1
      %s159 = scalar_select %p158, %s18, 1
      %s160 = scalar_lea.vmem %s2, %s159
      %s161 = smul.u32 24, %s19
      %p162 = scmp.lt.s32.totalorder %s18, 1
      %s163 = scalar_select %p162, %s18, 1
      %p164 = scmp.lt.s32.totalorder %s161, 23
      %s165 = scalar_select %p164, %s161, 23
      %s166 = smul.addr %s163, 24
      %s167 = sadd.s32 %s165, %s166
      %s168 = smul.addr %s167, 8
      %s169 = scalar_lea.vmem %s0, %s168
      %s170 = smul.u32 24, %s19
      %p171 = scmp.lt.s32.totalorder %s18, 1
      %s172 = scalar_select %p171, %s18, 1
      %s173 = scalar_lea.vmem %s1, %s172
      %p174 = scmp.lt.s32.totalorder %s18, 1
      %s175 = scalar_select %p174, %s18, 1
      %s176 = scalar_lea.vmem %s2, %s175
      %p177 = scmp.eq.s32.totalorder %s19, 0
      // Predicated region
      $region25: #{feature_net.19} parent=23 // pred_check
        %p178 = pneg %p177
      $region26: #{feature_net.19} parent=23 // pred_check_branch
        %180 = sbr.rel (%p178) target = $region28
      $region27: #{feature_net.19} parent=23 // pred_region
        %181 = vst [vmem:[%s173] sm:$0x1] 0.0
        %182 = vst [vmem:[%s176] sm:$0x1] 0.0
      $region28: #{feature_net.19} parent=23 // pred_fallthru
        _
      %v183 = vld [vmem:[%s169] sm:$0xff]
      %v184 = vld [vmem:[%s169 + $0x8] sm:$0xff]
      %v185 = vld [vmem:[%s169 + $0x10] sm:$0xff]
      %v186 = vld [vmem:[%s169 + $0x18] sm:$0xff]
      %v187 = vld [vmem:[%s169 + $0x20] sm:$0xff]
      %v188 = vld [vmem:[%s169 + $0x28] sm:$0xff]
      %v189 = vld [vmem:[%s169 + $0x30] sm:$0xff]
      %v190 = vld [vmem:[%s169 + $0x38] sm:$0xff]
      %v191 = vld [vmem:[%s169 + $0x40] sm:$0xff]
      %v192 = vld [vmem:[%s169 + $0x48] sm:$0xff]
      %v193 = vld [vmem:[%s169 + $0x50] sm:$0xff]
      %v194 = vld [vmem:[%s169 + $0x58] sm:$0xff]
      %v195 = vld [vmem:[%s169 + $0x60] sm:$0xff]
      %v196 = vld [vmem:[%s169 + $0x68] sm:$0xff]
      %v197 = vld [vmem:[%s169 + $0x70] sm:$0xff]
      %v198 = vld [vmem:[%s169 + $0x78] sm:$0xff]
      %v199 = vld [vmem:[%s169 + $0x80] sm:$0xff]
      %v200 = vld [vmem:[%s169 + $0x88] sm:$0xff]
      %v201 = vld [vmem:[%s169 + $0x90] sm:$0xff]
      %v202 = vld [vmem:[%s169 + $0x98] sm:$0xff]
      %v203 = vld [vmem:[%s169 + $0xa0] sm:$0xff]
      %v204 = vld [vmem:[%s169 + $0xa8] sm:$0xff]
      %v205 = vld [vmem:[%s169 + $0xb0] sm:$0xff]
      %v206 = vld [vmem:[%s169 + $0xb8] sm:$0xff]
      %v207 = vld [vmem:[%s173] sm:$0x1]
      %v208 = vadd.f32 %v183, %v184
      %v209 = vadd.f32 %v208, %v185
      %v210 = vadd.f32 %v209, %v186
      %v211 = vadd.f32 %v210, %v187
      %v212 = vadd.f32 %v211, %v188
      %v213 = vadd.f32 %v212, %v189
      %v214 = vadd.f32 %v213, %v190
      %v215 = vadd.f32 %v214, %v191
      %v216 = vadd.f32 %v215, %v192
      %v217 = vadd.f32 %v216, %v193
      %v218 = vadd.f32 %v217, %v194
      %v219 = vadd.f32 %v218, %v195
      %v220 = vadd.f32 %v219, %v196
      %v221 = vadd.f32 %v220, %v197
      %v222 = vadd.f32 %v221, %v198
      %v223 = vadd.f32 %v222, %v199
      %v224 = vadd.f32 %v223, %v200
      %v225 = vadd.f32 %v224, %v201
      %v226 = vadd.f32 %v225, %v202
      %v227 = vadd.f32 %v226, %v203
      %v228 = vadd.f32 %v227, %v204
      %v229 = vadd.f32 %v228, %v205
      %v230 = vadd.f32 %v229, %v206
      %v231 = vrot.slane %v230, 4
      %v232 = vadd.f32 %v230, %v231
      %v233 = vrot.slane %v232, 2
      %v234 = vadd.f32 %v232, %v233
      %v235 = vrot.slane %v234, 1
      %v236 = vadd.f32 %v234, %v235
      %v237 = vadd.f32 %v207, %v236
      %238 = vst [vmem:[%s173] sm:$0x1] %v237
      %v239 = vld [vmem:[%s176] sm:$0x1]
      %v240 = vmul.f32 %v183, %v183
      %v241 = vmul.f32 %v184, %v184
      %v242 = vmul.f32 %v185, %v185
      %v243 = vmul.f32 %v186, %v186
      %v244 = vmul.f32 %v187, %v187
      %v245 = vmul.f32 %v188, %v188
      %v246 = vmul.f32 %v189, %v189
      %v247 = vmul.f32 %v190, %v190
      %v248 = vmul.f32 %v191, %v191
      %v249 = vmul.f32 %v192, %v192
      %v250 = vmul.f32 %v193, %v193
      %v251 = vmul.f32 %v194, %v194
      %v252 = vmul.f32 %v195, %v195
      %v253 = vmul.f32 %v196, %v196
      %v254 = vmul.f32 %v197, %v197
      %v255 = vmul.f32 %v198, %v198
      %v256 = vmul.f32 %v199, %v199
      %v257 = vmul.f32 %v200, %v200
      %v258 = vmul.f32 %v201, %v201
      %v259 = vmul.f32 %v202, %v202
      %v260 = vmul.f32 %v203, %v203
      %v261 = vmul.f32 %v204, %v204
      %v262 = vmul.f32 %v205, %v205
      %v263 = vmul.f32 %v206, %v206
      %v264 = vadd.f32 %v240, %v241
      %v265 = vadd.f32 %v264, %v242
      %v266 = vadd.f32 %v265, %v243
      %v267 = vadd.f32 %v266, %v244
      %v268 = vadd.f32 %v267, %v245
      %v269 = vadd.f32 %v268, %v246
      %v270 = vadd.f32 %v269, %v247
      %v271 = vadd.f32 %v270, %v248
      %v272 = vadd.f32 %v271, %v249
      %v273 = vadd.f32 %v272, %v250
      %v274 = vadd.f32 %v273, %v251
      %v275 = vadd.f32 %v274, %v252
      %v276 = vadd.f32 %v275, %v253
      %v277 = vadd.f32 %v276, %v254
      %v278 = vadd.f32 %v277, %v255
      %v279 = vadd.f32 %v278, %v256
      %v280 = vadd.f32 %v279, %v257
      %v281 = vadd.f32 %v280, %v258
      %v282 = vadd.f32 %v281, %v259
      %v283 = vadd.f32 %v282, %v260
      %v284 = vadd.f32 %v283, %v261
      %v285 = vadd.f32 %v284, %v262
      %v286 = vadd.f32 %v285, %v263
      %v287 = vrot.slane %v286, 4
      %v288 = vadd.f32 %v286, %v287
      %v289 = vrot.slane %v288, 2
      %v290 = vadd.f32 %v288, %v289
      %v291 = vrot.slane %v290, 1
      %v292 = vadd.f32 %v290, %v291
      %v293 = vadd.f32 %v239, %v292
      %294 = vst [vmem:[%s176] sm:$0x1] %v293
      %p295 = scmp.lt.s32.totalorder %s18, 1
      %s296 = scalar_select %p295, %s18, 1
      %s297 = scalar_lea.vmem %s1, %s296
      %p298 = scmp.lt.s32.totalorder %s18, 1
      %s299 = scalar_select %p298, %s18, 1
      %s300 = scalar_lea.vmem %s2, %s299
      // Predicated region
      $region29: #{feature_net.19} parent=23 // pred_check
        %p301 = pneg %p72
      $region30: #{feature_net.19} parent=23 // pred_check_branch
        %303 = sbr.rel (%p301) target = $region32
      $region31: #{feature_net.19} parent=23 // pred_region
        _
      $region32: #{feature_net.19} parent=23 // pred_fallthru
        _
      // Predicated region
      $region33: #{feature_net.19} parent=23 // pred_check
        %p304 = pneg %p98
      $region34: #{feature_net.19} parent=23 // pred_check_branch
        %306 = sbr.rel (%p304) target = $region36
      $region35: #{feature_net.19} parent=23 // pred_region
        _
      $region36: #{feature_net.19} parent=23 // pred_fallthru
        _
    $region24: #{feature_net.19} parent=5 // pred_fallthru
      _
    %p307 = scmp.le.s32.totalorder 2, %s9
    // Predicated region
    $region37: #{feature_net.19} parent=5 // pred_check
      %p308 = pneg %p307
    $region38: #{feature_net.19} parent=5 // pred_check_branch
      %310 = sbr.rel (%p308) target = $region40
    $region39: #{feature_net.19} parent=5 // pred_region
      %s311 = ssub.s32 %s9, 2
      // Predicated region
      $region41: #{feature_net.19} parent=39 // pred_check
        %p312 = pneg %p78
      $region42: #{feature_net.19} parent=39 // pred_check_branch
        %314 = sbr.rel (%p312) target = $region44
      $region43: #{feature_net.19} parent=39 // pred_region
        %p315 = scmp.lt.s32.totalorder %s20, 1
        %s316 = scalar_select %p315, %s20, 1
        %s317 = scalar_lea.vmem %s1, %s316
      $region44: #{feature_net.19} parent=39 // pred_fallthru
        _
      // Predicated region
      $region45: #{feature_net.19} parent=39 // pred_check
        %p318 = pneg %p104
      $region46: #{feature_net.19} parent=39 // pred_check_branch
        %320 = sbr.rel (%p318) target = $region48
      $region47: #{feature_net.19} parent=39 // pred_region
        %p321 = scmp.lt.s32.totalorder %s20, 1
        %s322 = scalar_select %p321, %s20, 1
        %s323 = scalar_lea.vmem %s2, %s322
      $region48: #{feature_net.19} parent=39 // pred_fallthru
        _
    $region40: #{feature_net.19} parent=5 // pred_fallthru
      _
  $region6: #{feature_net.19} parent=0 // loop_footer
    %s13 = sadd.s32 1, %s9
  $region7: #{feature_net.19} parent=0 // loop_footer_branch
    %8 = sbr.rel target = $region3
  $region8: #{feature_net.19} parent=0 // loop_exit
    _

// kernel: feature_net.20
$region0: #{feature_net.20}
  #allocation0 [shape = 'u32[]', space=smem, size = 0x4, offset = 0x4, fixed_abs, tag = 'smem constant byte address 0x4 - core index']
  #allocation1 [shape = 'u32[144,128]{1,0:T(1,128)}', space=vmem, size = 0x12000, scoped, tag = 'internal scratch']
  %s0 = inlined_call_operand.vmem [shape: f32[2,192,128], index: 0, kind: input, shape index: {}]
  %s1 = inlined_call_operand.vmem [shape: f32[2,1,128], index: 1, kind: input, shape index: {}]
  %s2 = inlined_call_operand.vmem [shape: f32[2,1,128], index: 2, kind: input, shape index: {}]
  %s3 = inlined_call_operand.vmem [shape: f32[2,192,128], index: 3, kind: output, shape index: {}]
  %s4 = sld [smem:[#allocation0]]
  $region45: #{feature_net.20} parent=0
    _
  %s6 = ssub.s32 1, %s4
  %s7 = scalar_select 0, %s6, %s4
  loop: start=0, step=1, limit=4
  $region2: #{feature_net.20} parent=0 // loop_pre_header
    _
  $region3: #{feature_net.20} parent=0 // loop_header
    %s9 = sphi 0, %s13
    %p10 = scmp.ge.s32.totalorder %s9, 4
    %s16 = sphi 0, %s28
    %s17 = sphi 0, %s24
    %s18 = sphi 0, %s16
    %s19 = sphi 0, %s17
    %s20 = sphi 0, %s18
    %s21 = sphi 0, %s19
    %s33 = sphi 0, %s35
    %s36 = sphi 0, %s33
    %s37 = sphi 0, %s36
    %s53 = sphi 0, %s37
    %s59 = sphi 0, %s61
    %s62 = sphi 0, %s59
    %s63 = sphi 0, %s62
    %s79 = sphi 0, %s63
    %s85 = sphi 0, %s87
    %s88 = sphi 0, %s85
    %s89 = sphi 0, %s88
    %s105 = sphi 0, %s89
    %s113 = sphi 0, %s115
    %s116 = sphi 0, %s113
    %s117 = sphi 0, %s116
    %s133 = sphi 0, %s117
  $region4: #{feature_net.20} parent=0 // loop_header_branch
    %12 = sbr.rel (%p10) target = $region8
  $region5: #{feature_net.20} parent=0 // loop_body
    %s14 = ssub.s32 %s9, 1
    %s15 = ssub.s32 %s9, 2
    %s22 = sadd.s32 1, %s17
    %p23 = scmp.ge.s32.totalorder %s22, 1
    %s24 = scalar_select %p23, 0, %s22
    %s25 = sadd.s32 1, %s16
    %s26 = scalar_select %p23, %s25, %s16
    %p27 = scmp.ge.s32.totalorder %s26, 2
    %s28 = scalar_select %p27, 0, %s26
    %s29 = ssub.s32 %s16, %s28
    %s30 = ssub.s32 %s17, %s24
    %s31 = sor.u32 %s29, %s30
    %p32 = scmp.eq.s32.totalorder %s31, 0
    %s34 = sadd.s32 %s33, 1
    %s35 = scalar_select %p32, %s33, %s34
    %p38 = pneg %p32
    %p39 = scmp.eq.s32.totalorder %s9, 1
    %p40 = por %p38, %p39
    %p41 = scmp.ne.s32.totalorder %s33, %s36
    %p42 = scmp.eq.s32.totalorder %s9, 0
    %p43 = por %p41, %p42
    %p44 = scmp.ne.s32.totalorder %s33, %s36
    %p45 = scmp.eq.s32.totalorder %s14, 1
    %p46 = por %p44, %p45
    %p47 = scmp.ne.s32.totalorder %s36, %s37
    %p48 = scmp.eq.s32.totalorder %s14, 0
    %p49 = por %p47, %p48
    %p50 = scmp.ne.s32.totalorder %s36, %s37
    %p51 = scmp.eq.s32.totalorder %s15, 1
    %p52 = por %p50, %p51
    %p54 = scmp.ne.s32.totalorder %s37, %s53
    %p55 = scmp.eq.s32.totalorder %s15, 0
    %p56 = por %p54, %p55
    %s57 = ssub.s32 %s16, %s28
    %p58 = scmp.eq.s32.totalorder %s57, 0
    %s60 = sadd.s32 %s59, 1
    %s61 = scalar_select %p58, %s59, %s60
    %p64 = pneg %p58
    %p65 = scmp.eq.s32.totalorder %s9, 1
    %p66 = por %p64, %p65
    %p67 = scmp.ne.s32.totalorder %s59, %s62
    %p68 = scmp.eq.s32.totalorder %s9, 0
    %p69 = por %p67, %p68
    %p70 = scmp.ne.s32.totalorder %s59, %s62
    %p71 = scmp.eq.s32.totalorder %s14, 1
    %p72 = por %p70, %p71
    %p73 = scmp.ne.s32.totalorder %s62, %s63
    %p74 = scmp.eq.s32.totalorder %s14, 0
    %p75 = por %p73, %p74
    %p76 = scmp.ne.s32.totalorder %s62, %s63
    %p77 = scmp.eq.s32.totalorder %s15, 1
    %p78 = por %p76, %p77
    %p80 = scmp.ne.s32.totalorder %s63, %s79
    %p81 = scmp.eq.s32.totalorder %s15, 0
    %p82 = por %p80, %p81
    %s83 = ssub.s32 %s16, %s28
    %p84 = scmp.eq.s32.totalorder %s83, 0
    %s86 = sadd.s32 %s85, 1
    %s87 = scalar_select %p84, %s85, %s86
    %p90 = pneg %p84
    %p91 = scmp.eq.s32.totalorder %s9, 1
    %p92 = por %p90, %p91
    %p93 = scmp.ne.s32.totalorder %s85, %s88
    %p94 = scmp.eq.s32.totalorder %s9, 0
    %p95 = por %p93, %p94
    %p96 = scmp.ne.s32.totalorder %s85, %s88
    %p97 = scmp.eq.s32.totalorder %s14, 1
    %p98 = por %p96, %p97
    %p99 = scmp.ne.s32.totalorder %s88, %s89
    %p100 = scmp.eq.s32.totalorder %s14, 0
    %p101 = por %p99, %p100
    %p102 = scmp.ne.s32.totalorder %s88, %s89
    %p103 = scmp.eq.s32.totalorder %s15, 1
    %p104 = por %p102, %p103
    %p106 = scmp.ne.s32.totalorder %s89, %s105
    %p107 = scmp.eq.s32.totalorder %s15, 0
    %p108 = por %p106, %p107
    %s109 = ssub.s32 %s16, %s28
    %s110 = ssub.s32 %s17, %s24
    %s111 = sor.u32 %s109, %s110
    %p112 = scmp.eq.s32.totalorder %s111, 0
    %s114 = sadd.s32 %s113, 1
    %s115 = scalar_select %p112, %s113, %s114
    %p118 = pneg %p112
    %p119 = scmp.eq.s32.totalorder %s9, 1
    %p120 = por %p118, %p119
    %p121 = scmp.ne.s32.totalorder %s113, %s116
    %p122 = scmp.eq.s32.totalorder %s9, 0
    %p123 = por %p121, %p122
    %p124 = scmp.ne.s32.totalorder %s113, %s116
    %p125 = scmp.eq.s32.totalorder %s14, 1
    %p126 = por %p124, %p125
    %p127 = scmp.ne.s32.totalorder %s116, %s117
    %p128 = scmp.eq.s32.totalorder %s14, 0
    %p129 = por %p127, %p128
    %p130 = scmp.ne.s32.totalorder %s116, %s117
    %p131 = scmp.eq.s32.totalorder %s15, 1
    %p132 = por %p130, %p131
    %p134 = scmp.ne.s32.totalorder %s117, %s133
    %p135 = scmp.eq.s32.totalorder %s15, 0
    %p136 = por %p134, %p135
    %p137 = scmp.le.s32.totalorder 1, %s9
    %p138 = scmp.lt.s32.totalorder %s9, 3
    %p139 = pnand %p137, %p138
    %p140 = pneg %p139
    // Predicated region
    $region9: #{feature_net.20} parent=5 // pred_check
      _
    $region10: #{feature_net.20} parent=5 // pred_check_branch
      %142 = sbr.rel (%p139) target = $region12
    $region11: #{feature_net.20} parent=5 // pred_region
      %s143 = ssub.s32 %s9, 1
    $region12: #{feature_net.20} parent=5 // pred_fallthru
      _
    %p144 = scmp.lt.s32.totalorder %s9, 2
    // Predicated region
    $region13: #{feature_net.20} parent=5 // pred_check
      %p145 = pneg %p144
    $region14: #{feature_net.20} parent=5 // pred_check_branch
      %147 = sbr.rel (%p145) target = $region16
    $region15: #{feature_net.20} parent=5 // pred_region
      // Predicated region
      $region17: #{feature_net.20} parent=15 // pred_check
        %p148 = pneg %p43
      $region18: #{feature_net.20} parent=15 // pred_check_branch
        %150 = sbr.rel (%p148) target = $region20
      $region19: #{feature_net.20} parent=15 // pred_region
        %s151 = smul.u32 24, %s17
        %p152 = scmp.lt.s32.totalorder %s16, 1
        %s153 = scalar_select %p152, %s16, 1
        %p154 = scmp.lt.s32.totalorder %s151, 23
        %s155 = scalar_select %p154, %s151, 23
        %s156 = smul.addr %s153, 24
        %s157 = sadd.s32 %s155, %s156
        %s158 = smul.addr %s157, 8
        %s159 = scalar_lea.vmem %s0, %s158
        %s160 = smul.u32 24, %s17
      $region20: #{feature_net.20} parent=15 // pred_fallthru
        _
      // Predicated region
      $region21: #{feature_net.20} parent=15 // pred_check
        %p161 = pneg %p69
      $region22: #{feature_net.20} parent=15 // pred_check_branch
        %163 = sbr.rel (%p161) target = $region24
      $region23: #{feature_net.20} parent=15 // pred_region
        %p164 = scmp.lt.s32.totalorder %s16, 1
        %s165 = scalar_select %p164, %s16, 1
        %s166 = scalar_lea.vmem %s1, %s165
      $region24: #{feature_net.20} parent=15 // pred_fallthru
        _
      // Predicated region
      $region25: #{feature_net.20} parent=15 // pred_check
        %p167 = pneg %p95
      $region26: #{feature_net.20} parent=15 // pred_check_branch
        %169 = sbr.rel (%p167) target = $region28
      $region27: #{feature_net.20} parent=15 // pred_region
        %p170 = scmp.lt.s32.totalorder %s16, 1
        %s171 = scalar_select %p170, %s16, 1
        %s172 = scalar_lea.vmem %s2, %s171
      $region28: #{feature_net.20} parent=15 // pred_fallthru
        _
    $region16: #{feature_net.20} parent=5 // pred_fallthru
      _
    %p173 = scmp.le.s32.totalorder 1, %s9
    %p174 = scmp.lt.s32.totalorder %s9, 3
    %p175 = pnand %p173, %p174
    %p176 = pneg %p175
    // Predicated region
    $region29: #{feature_net.20} parent=5 // pred_check
      _
    $region30: #{feature_net.20} parent=5 // pred_check_branch
      %178 = sbr.rel (%p175) target = $region32
    $region31: #{feature_net.20} parent=5 // pred_region
      %s179 = ssub.s32 %s9, 1
      %s180 = smul.u32 24, %s19
      %p181 = scmp.lt.s32.totalorder %s18, 1
      %s182 = scalar_select %p181, %s18, 1
      %p183 = scmp.lt.s32.totalorder %s180, 23
      %s184 = scalar_select %p183, %s180, 23
      %s185 = smul.addr %s182, 24
      %s186 = sadd.s32 %s184, %s185
      %s187 = smul.addr %s186, 8
      %s188 = scalar_lea.vmem %s0, %s187
      %p189 = pneg %p49
      %p190 = pneg %p46
      %p191 = scmp.lt.s32.totalorder %s18, 1
      %s192 = scalar_select %p191, %s18, 1
      %s193 = scalar_lea.vmem %s1, %s192
      %p194 = pneg %p75
      %p195 = pneg %p72
      %p196 = scmp.lt.s32.totalorder %s18, 1
      %s197 = scalar_select %p196, %s18, 1
      %s198 = scalar_lea.vmem %s2, %s197
      %p199 = pneg %p101
      %p200 = pneg %p98
      %p201 = pneg %p129
      %p202 = pneg %p126
      %s203 = smul.u32 24, %s19
      %p204 = scmp.lt.s32.totalorder %s18, 1
      %s205 = scalar_select %p204, %s18, 1
      %p206 = scmp.lt.s32.totalorder %s203, 23
      %s207 = scalar_select %p206, %s203, 23
      %s208 = smul.addr %s205, 24
      %s209 = sadd.s32 %s207, %s208
      %s210 = smul.addr %s209, 8
      %s211 = scalar_lea.vmem %s3, %s210
      %s212 = smul.u32 24, %s19
      %p213 = scmp.lt.s32.totalorder %s18, 1
      %s214 = scalar_select %p213, %s18, 1
      %p215 = scmp.lt.s32.totalorder %s212, 23
      %s216 = scalar_select %p215, %s212, 23
      %s217 = smul.addr %s214, 24
      %s218 = sadd.s32 %s216, %s217
      %s219 = smul.addr %s218, 8
      %s220 = scalar_lea.vmem %s0, %s219
      %s221 = smul.u32 24, %s19
      %p222 = scmp.lt.s32.totalorder %s18, 1
      %s223 = scalar_select %p222, %s18, 1
      %s224 = scalar_lea.vmem %s1, %s223
      %p225 = scmp.lt.s32.totalorder %s18, 1
      %s226 = scalar_select %p225, %s18, 1
      %s227 = scalar_lea.vmem %s2, %s226
      %s228 = smul.u32 24, %s19
      %p229 = scmp.lt.s32.totalorder %s18, 1
      %s230 = scalar_select %p229, %s18, 1
      %p231 = scmp.lt.s32.totalorder %s228, 23
      %s232 = scalar_select %p231, %s228, 23
      %s233 = smul.addr %s230, 24
      %s234 = sadd.s32 %s232, %s233
      %s235 = smul.addr %s234, 8
      %s236 = scalar_lea.vmem %s3, %s235
      %s237 = smul.u32 24, %s19
      %v238 = vld [vmem:[%s220] sm:$0xff]
      %v239 = vld [vmem:[%s220 + $0x8] sm:$0xff]
      %v240 = vld [vmem:[%s220 + $0x10] sm:$0xff]
      %v241 = vld [vmem:[%s220 + $0x18] sm:$0xff]
      %v242 = vld [vmem:[%s220 + $0x20] sm:$0xff]
      %v243 = vld [vmem:[%s220 + $0x28] sm:$0xff]
      %v244 = vld [vmem:[%s220 + $0x30] sm:$0xff]
      %v245 = vld [vmem:[%s220 + $0x38] sm:$0xff]
      %v246 = vld [vmem:[%s220 + $0x40] sm:$0xff]
      %v247 = vld [vmem:[%s220 + $0x48] sm:$0xff]
      %v248 = vld [vmem:[%s220 + $0x50] sm:$0xff]
      %v249 = vld [vmem:[%s220 + $0x58] sm:$0xff]
      %v250 = vld [vmem:[%s220 + $0x60] sm:$0xff]
      %v251 = vld [vmem:[%s220 + $0x68] sm:$0xff]
      %v252 = vld [vmem:[%s220 + $0x70] sm:$0xff]
      %v253 = vld [vmem:[%s220 + $0x78] sm:$0xff]
      %v254 = vld [vmem:[%s220 + $0x80] sm:$0xff]
      %v255 = vld [vmem:[%s220 + $0x88] sm:$0xff]
      %v256 = vld [vmem:[%s220 + $0x90] sm:$0xff]
      %v257 = vld [vmem:[%s220 + $0x98] sm:$0xff]
      %v258 = vld [vmem:[%s220 + $0xa0] sm:$0xff]
      %v259 = vld [vmem:[%s220 + $0xa8] sm:$0xff]
      %v260 = vld [vmem:[%s220 + $0xb0] sm:$0xff]
      %v261 = vld [vmem:[%s220 + $0xb8] sm:$0xff]
      %v262 = vld [vmem:[%s224] sm:$0x1]
      %v263 = vmul.f32 %v262, 0.0052083335
      %v264 = vld [vmem:[%s227] sm:$0x1]
      %v265 = vmul.f32 %v264, 0.0052083335
      %v266 = vmul.f32 %v263, %v263
      %v267 = vsub.f32 %v265, %v266
      %v268 = vmax.f32 %v267, 0.0
      %v270 = vlaneseq
      %v271 = vshrl.u32 %v270, 7
      %v272 = vsub.s32 0, %v271
      %v273 = vrot.slane %v263, %v272
      %v275 = vsub.f32 %v238, %v273
      %v276 = vsub.f32 %v239, %v273
      %v277 = vsub.f32 %v240, %v273
      %v278 = vsub.f32 %v241, %v273
      %v279 = vsub.f32 %v242, %v273
      %v280 = vsub.f32 %v243, %v273
      %v281 = vsub.f32 %v244, %v273
      %v282 = vsub.f32 %v245, %v273
      %v283 = vsub.f32 %v246, %v273
      %v284 = vsub.f32 %v247, %v273
      %v285 = vsub.f32 %v248, %v273
      %v286 = vsub.f32 %v249, %v273
      %v287 = vsub.f32 %v250, %v273
      %v288 = vsub.f32 %v251, %v273
      %v289 = vsub.f32 %v252, %v273
      %v290 = vsub.f32 %v253, %v273
      %v291 = vsub.f32 %v254, %v273
      %v292 = vsub.f32 %v255, %v273
      %v293 = vsub.f32 %v256, %v273
      %v294 = vsub.f32 %v257, %v273
      %v295 = vsub.f32 %v258, %v273
      %v296 = vsub.f32 %v259, %v273
      %v297 = vsub.f32 %v260, %v273
      %v298 = vsub.f32 %v261, %v273
      %v299 = vadd.f32 %v268, 1e-05
      %v300 = vrsqrt.pop %v299
      %v302 = vlaneseq
      %v303 = vshrl.u32 %v302, 7
      %v304 = vsub.s32 0, %v303
      %v305 = vrot.slane %v300, %v304
      %v307 = vmul.f32 %v275, %v305
      %v308 = vmul.f32 %v276, %v305
      %v309 = vmul.f32 %v277, %v305
      %v310 = vmul.f32 %v278, %v305
      %v311 = vmul.f32 %v279, %v305
      %v312 = vmul.f32 %v280, %v305
      %v313 = vmul.f32 %v281, %v305
      %v314 = vmul.f32 %v282, %v305
      %v315 = vmul.f32 %v283, %v305
      %v316 = vmul.f32 %v284, %v305
      %v317 = vmul.f32 %v285, %v305
      %v318 = vmul.f32 %v286, %v305
      %v319 = vmul.f32 %v287, %v305
      %v320 = vmul.f32 %v288, %v305
      %v321 = vmul.f32 %v289, %v305
      %v322 = vmul.f32 %v290, %v305
      %v323 = vmul.f32 %v291, %v305
      %v324 = vmul.f32 %v292, %v305
      %v325 = vmul.f32 %v293, %v305
      %v326 = vmul.f32 %v294, %v305
      %v327 = vmul.f32 %v295, %v305
      %v328 = vmul.f32 %v296, %v305
      %v329 = vmul.f32 %v297, %v305
      %v330 = vmul.f32 %v298, %v305
      %v331 = vmax.f32 %v307, 0.0
      %v332 = vmax.f32 %v308, 0.0
      %v333 = vmax.f32 %v309, 0.0
      %v334 = vmax.f32 %v310, 0.0
      %v335 = vmax.f32 %v311, 0.0
      %v336 = vmax.f32 %v312, 0.0
      %v337 = vmax.f32 %v313, 0.0
      %v338 = vmax.f32 %v314, 0.0
      %v339 = vmax.f32 %v315, 0.0
      %v340 = vmax.f32 %v316, 0.0
      %v341 = vmax.f32 %v317, 0.0
      %v342 = vmax.f32 %v318, 0.0
      %v343 = vmax.f32 %v319, 0.0
      %v344 = vmax.f32 %v320, 0.0
      %v345 = vmax.f32 %v321, 0.0
      %v346 = vmax.f32 %v322, 0.0
      %v347 = vmax.f32 %v323, 0.0
      %v348 = vmax.f32 %v324, 0.0
      %v349 = vmax.f32 %v325, 0.0
      %v350 = vmax.f32 %v326, 0.0
      %v351 = vmax.f32 %v327, 0.0
      %v352 = vmax.f32 %v328, 0.0
      %v353 = vmax.f32 %v329, 0.0
      %v354 = vmax.f32 %v330, 0.0
      %355 = vst [vmem:[%s236] sm:$0xff] %v331
      %356 = vst [vmem:[%s236 + $0x8] sm:$0xff] %v332
      %357 = vst [vmem:[%s236 + $0x10] sm:$0xff] %v333
      %358 = vst [vmem:[%s236 + $0x18] sm:$0xff] %v334
      %359 = vst [vmem:[%s236 + $0x20] sm:$0xff] %v335
      %360 = vst [vmem:[%s236 + $0x28] sm:$0xff] %v336
      %361 = vst [vmem:[%s236 + $0x30] sm:$0xff] %v337
      %362 = vst [vmem:[%s236 + $0x38] sm:$0xff] %v338
      %363 = vst [vmem:[%s236 + $0x40] sm:$0xff] %v339
      %364 = vst [vmem:[%s236 + $0x48] sm:$0xff] %v340
      %365 = vst [vmem:[%s236 + $0x50] sm:$0xff] %v341
      %366 = vst [vmem:[%s236 + $0x58] sm:$0xff] %v342
      %367 = vst [vmem:[%s236 + $0x60] sm:$0xff] %v343
      %368 = vst [vmem:[%s236 + $0x68] sm:$0xff] %v344
      %369 = vst [vmem:[%s236 + $0x70] sm:$0xff] %v345
      %370 = vst [vmem:[%s236 + $0x78] sm:$0xff] %v346
      %371 = vst [vmem:[%s236 + $0x80] sm:$0xff] %v347
      %372 = vst [vmem:[%s236 + $0x88] sm:$0xff] %v348
      %373 = vst [vmem:[%s236 + $0x90] sm:$0xff] %v349
      %374 = vst [vmem:[%s236 + $0x98] sm:$0xff] %v350
      %375 = vst [vmem:[%s236 + $0xa0] sm:$0xff] %v351
      %376 = vst [vmem:[%s236 + $0xa8] sm:$0xff] %v352
      %377 = vst [vmem:[%s236 + $0xb0] sm:$0xff] %v353
      %378 = vst [vmem:[%s236 + $0xb8] sm:$0xff] %v354
      %s379 = smul.u32 24, %s19
      %p380 = scmp.lt.s32.totalorder %s18, 1
      %s381 = scalar_select %p380, %s18, 1
      %p382 = scmp.lt.s32.totalorder %s379, 23
      %s383 = scalar_select %p382, %s379, 23
      %s384 = smul.addr %s381, 24
      %s385 = sadd.s32 %s383, %s384
      %s386 = smul.addr %s385, 8
      %s387 = scalar_lea.vmem %s3, %s386
      // Predicated region
      $region33: #{feature_net.20} parent=31 // pred_check
        %p388 = pneg %p126
      $region34: #{feature_net.20} parent=31 // pred_check_branch
        %390 = sbr.rel (%p388) target = $region36
      $region35: #{feature_net.20} parent=31 // pred_region
        %s391 = smul.u32 24, %s19
      $region36: #{feature_net.20} parent=31 // pred_fallthru
        _
    $region32: #{feature_net.20} parent=5 // pred_fallthru
      _
    %p392 = scmp.le.s32.totalorder 2, %s9
    // Predicated region
    $region37: #{feature_net.20} parent=5 // pred_check
      %p393 = pneg %p392
    $region38: #{feature_net.20} parent=5 // pred_check_branch
      %395 = sbr.rel (%p393) target = $region40
    $region39: #{feature_net.20} parent=5 // pred_region
      %s396 = ssub.s32 %s9, 2
      // Predicated region
      $region41: #{feature_net.20} parent=39 // pred_check
        %p397 = pneg %p132
      $region42: #{feature_net.20} parent=39 // pred_check_branch
        %399 = sbr.rel (%p397) target = $region44
      $region43: #{feature_net.20} parent=39 // pred_region
        %s400 = smul.u32 24, %s21
        %p401 = scmp.lt.s32.totalorder %s20, 1
        %s402 = scalar_select %p401, %s20, 1
        %p403 = scmp.lt.s32.totalorder %s400, 23
        %s404 = scalar_select %p403, %s400, 23
        %s405 = smul.addr %s402, 24
        %s406 = sadd.s32 %s404, %s405
        %s407 = smul.addr %s406, 8
        %s408 = scalar_lea.vmem %s3, %s407
      $region44: #{feature_net.20} parent=39 // pred_fallthru
        _
    $region40: #{feature_net.20} parent=5 // pred_fallthru
      _
  $region6: #{feature_net.20} parent=0 // loop_footer
    %s13 = sadd.s32 1, %s9
  $region7: #{feature_net.20} parent=0 // loop_footer_branch
    %8 = sbr.rel target = $region3
  $region8: #{feature_net.20} parent=0 // loop_exit
    _

// kernel: feature_net.18
$region0: #{feature_net.18}
  #allocation0 [shape = 'u32[]', space=smem, size = 0x4, offset = 0x4, fixed_abs, tag = 'smem constant byte address 0x4 - core index']
  #allocation1 [shape = 'u32[144,128]{1,0:T(1,128)}', space=vmem, size = 0x12000, scoped, tag = 'internal scratch']
  #allocation2 [shape = 'f32[192,128]{1,0:T(8,128)}', space=vmem, size = 0x18000, scoped, tag = 'scratch operand']
  %s0 = inlined_call_operand.vmem [shape: bf16[384,2304], index: 0, kind: input, shape index: {}]
  %s1 = inlined_call_operand.vmem [shape: bf16[2304,128], index: 1, kind: input, shape index: {}]
  %s2 = inlined_call_operand.vmem [shape: f32[384,128], index: 2, kind: output, shape index: {}]
  %s3 = sld [smem:[#allocation0]]
  $region75: #{feature_net.18} parent=0
    _
  %s5 = ssub.s32 1, %s3
  %s6 = scalar_select 0, %s5, %s3
  $region1: #{feature_net.18} parent=0
    #allocation3 [shape = 'u8[294912]{0}', space=vmem, size = 0x48000, scoped, tag = 'input window, operand 0']
    loop: start=0, step=1, limit=14
    $region2: #{feature_net.18} parent=1 // loop_pre_header
      _
    $region3: #{feature_net.18} parent=1 // loop_header
      %s8 = sphi 0, %s12
      %p9 = scmp.ge.s32.totalorder %s8, 14
      %s15 = sphi 0, %s27
      %s16 = sphi 0, %s23
      %s17 = sphi 0, %s15
      %s18 = sphi 0, %s16
      %s19 = sphi 0, %s17
      %s20 = sphi 0, %s18
      %s32 = sphi 0, %s34
      %s35 = sphi 0, %s32
      %s36 = sphi 0, %s35
      %s52 = sphi 0, %s36
      %s58 = sphi 0, %s60
      %s61 = sphi 0, %s58
      %s62 = sphi 0, %s61
      %s78 = sphi 0, %s62
      %s84 = sphi 0, %s86
      %s87 = sphi 0, %s84
      %s88 = sphi 0, %s87
      %s104 = sphi 0, %s88
    $region4: #{feature_net.18} parent=1 // loop_header_branch
      %11 = sbr.rel (%p9) target = $region8
    $region5: #{feature_net.18} parent=1 // loop_body
      %s13 = ssub.s32 %s8, 1
      %s14 = ssub.s32 %s8, 2
      %s21 = sadd.s32 1, %s16
      %p22 = scmp.ge.s32.totalorder %s21, 6
      %s23 = scalar_select %p22, 0, %s21
      %s24 = sadd.s32 1, %s15
      %s25 = scalar_select %p22, %s24, %s15
      %p26 = scmp.ge.s32.totalorder %s25, 2
      %s27 = scalar_select %p26, 0, %s25
      %s28 = ssub.s32 %s15, %s27
      %s29 = ssub.s32 %s16, %s23
      %s30 = sor.u32 %s28, %s29
      %p31 = scmp.eq.s32.totalorder %s30, 0
      %s33 = sadd.s32 %s32, 1
      %s34 = scalar_select %p31, %s32, %s33
      %p37 = pneg %p31
      %p38 = scmp.eq.s32.totalorder %s8, 11
      %p39 = por %p37, %p38
      %p40 = scmp.ne.s32.totalorder %s32, %s35
      %p41 = scmp.eq.s32.totalorder %s8, 0
      %p42 = por %p40, %p41
      %p43 = scmp.ne.s32.totalorder %s32, %s35
      %p44 = scmp.eq.s32.totalorder %s13, 11
      %p45 = por %p43, %p44
      %p46 = scmp.ne.s32.totalorder %s35, %s36
      %p47 = scmp.eq.s32.totalorder %s13, 0
      %p48 = por %p46, %p47
      %p49 = scmp.ne.s32.totalorder %s35, %s36
      %p50 = scmp.eq.s32.totalorder %s14, 11
      %p51 = por %p49, %p50
      %p53 = scmp.ne.s32.totalorder %s36, %s52
      %p54 = scmp.eq.s32.totalorder %s14, 0
      %p55 = por %p53, %p54
      %s56 = ssub.s32 %s16, %s23
      %p57 = scmp.eq.s32.totalorder %s56, 0
      %s59 = sadd.s32 %s58, 1
      %s60 = scalar_select %p57, %s58, %s59
      %p63 = pneg %p57
      %p64 = scmp.eq.s32.totalorder %s8, 11
      %p65 = por %p63, %p64
      %p66 = scmp.ne.s32.totalorder %s58, %s61
      %p67 = scmp.eq.s32.totalorder %s8, 0
      %p68 = por %p66, %p67
      %p69 = scmp.ne.s32.totalorder %s58, %s61
      %p70 = scmp.eq.s32.totalorder %s13, 11
      %p71 = por %p69, %p70
      %p72 = scmp.ne.s32.totalorder %s61, %s62
      %p73 = scmp.eq.s32.totalorder %s13, 0
      %p74 = por %p72, %p73
      %p75 = scmp.ne.s32.totalorder %s61, %s62
      %p76 = scmp.eq.s32.totalorder %s14, 11
      %p77 = por %p75, %p76
      %p79 = scmp.ne.s32.totalorder %s62, %s78
      %p80 = scmp.eq.s32.totalorder %s14, 0
      %p81 = por %p79, %p80
      %s82 = ssub.s32 %s15, %s27
      %p83 = scmp.eq.s32.totalorder %s82, 0
      %s85 = sadd.s32 %s84, 1
      %s86 = scalar_select %p83, %s84, %s85
      %p89 = pneg %p83
      %p90 = scmp.eq.s32.totalorder %s8, 11
      %p91 = por %p89, %p90
      %p92 = scmp.ne.s32.totalorder %s84, %s87
      %p93 = scmp.eq.s32.totalorder %s8, 0
      %p94 = por %p92, %p93
      %p95 = scmp.ne.s32.totalorder %s84, %s87
      %p96 = scmp.eq.s32.totalorder %s13, 11
      %p97 = por %p95, %p96
      %p98 = scmp.ne.s32.totalorder %s87, %s88
      %p99 = scmp.eq.s32.totalorder %s13, 0
      %p100 = por %p98, %p99
      %p101 = scmp.ne.s32.totalorder %s87, %s88
      %p102 = scmp.eq.s32.totalorder %s14, 11
      %p103 = por %p101, %p102
      %p105 = scmp.ne.s32.totalorder %s88, %s104
      %p106 = scmp.eq.s32.totalorder %s14, 0
      %p107 = por %p105, %p106
      %p108 = scmp.le.s32.totalorder 1, %s8
      %p109 = scmp.lt.s32.totalorder %s8, 13
      %p110 = pnand %p108, %p109
      %p111 = pneg %p110
      // Predicated region
      $region9: #{feature_net.18} parent=5 // pred_check
        _
      $region10: #{feature_net.18} parent=5 // pred_check_branch
        %113 = sbr.rel (%p110) target = $region12
      $region11: #{feature_net.18} parent=5 // pred_region
        %s114 = ssub.s32 %s8, 1
      $region12: #{feature_net.18} parent=5 // pred_fallthru
        _
      %p115 = scmp.lt.s32.totalorder %s8, 12
      // Predicated region
      $region13: #{feature_net.18} parent=5 // pred_check
        %p116 = pneg %p115
      $region14: #{feature_net.18} parent=5 // pred_check_branch
        %118 = sbr.rel (%p116) target = $region16
      $region15: #{feature_net.18} parent=5 // pred_region
        // Predicated region
        $region17: #{feature_net.18} parent=15 // pred_check
          %p119 = pneg %p42
        $region18: #{feature_net.18} parent=15 // pred_check_branch
          %121 = sbr.rel (%p119) target = $region20
        $region19: #{feature_net.18} parent=15 // pred_region
          %s122 = sand.u32 %s32, 1
          %s123 = sand.u32 %s32, 1
          %s124 = smul.addr %s123, 288
          %s125 = scalar_lea.vmem [#allocation3], %s124
          %s126 = smul.u32 24, %s15
          %s127 = smul.u32 3, %s16
          %s128 = smul.addr %s126, 18
          %s129 = sadd.s32 %s127, %s128
          %s130 = smul.addr %s129, 4
          %s131 = scalar_lea.vmem %s0, %s130
          // Predicated region
          $region21: #{feature_net.18} parent=19 // pred_check
            _
          $region22: #{feature_net.18} parent=19 // pred_check_branch
            %133 = sbr.rel (0) target = $region24
          $region23: #{feature_net.18} parent=19 // pred_region
            // Predicated region
            $region25: #{feature_net.18} parent=23 // pred_check
              _
            $region26: #{feature_net.18} parent=23 // pred_check_branch
              %135 = sbr.rel (0) target = $region28
            $region27: #{feature_net.18} parent=23 // pred_region
              %s136 = scalar_lea.vmem %s131, 8
              %s137 = scalar_lea.vmem %s125, 8 [#allocation3]
              loop: start=0, step=1, limit=1
              $region29: #{feature_net.18} parent=27 // loop_pre_header
                _
              $region30: #{feature_net.18} parent=27 // loop_header
                %s139 = sphi 0, %s143
                %p140 = scmp.ge.s32.totalorder %s139, 1
                %s144 = sphi %s131, %s131
                %s145 = sphi %s125, %s125
              $region31: #{feature_net.18} parent=27 // loop_header_branch
                %142 = sbr.rel (%p140) target = $region35
              $region32: #{feature_net.18} parent=27 // loop_body
                %v146 = vld [vmem:[%s144] sm:$0xff]
                %147 = vst [vmem:[%s145] sm:$0xff] %v146
                %v148 = vld [vmem:[%s144 + $0x48] sm:$0xff]
                %149 = vst [vmem:[%s145 + $0xc] sm:$0xff] %v148
                %v150 = vld [vmem:[%s144 + $0x90] sm:$0xff]
                %151 = vst [vmem:[%s145 + $0x18] sm:$0xff] %v150
                %v152 = vld [vmem:[%s144 + $0xd8] sm:$0xff]
                %153 = vst [vmem:[%s145 + $0x24] sm:$0xff] %v152
                %v154 = vld [vmem:[%s144 + $0x120] sm:$0xff]
                %155 = vst [vmem:[%s145 + $0x30] sm:$0xff] %v154
                %v156 = vld [vmem:[%s144 + $0x168] sm:$0xff]
                %157 = vst [vmem:[%s145 + $0x3c] sm:$0xff] %v156
                %v158 = vld [vmem:[%s144 + $0x1b0] sm:$0xff]
                %159 = vst [vmem:[%s145 + $0x48] sm:$0xff] %v158
                %v160 = vld [vmem:[%s144 + $0x1f8] sm:$0xff]
                %161 = vst [vmem:[%s145 + $0x54] sm:$0xff] %v160
                %v162 = vld [vmem:[%s144 + $0x240] sm:$0xff]
                %163 = vst [vmem:[%s145 + $0x60] sm:$0xff] %v162
                %v164 = vld [vmem:[%s144 + $0x288] sm:$0xff]
                %165 = vst [vmem:[%s145 + $0x6c] sm:$0xff] %v164
                %v166 = vld [vmem:[%s144 + $0x2d0] sm:$0xff]
                %167 = vst [vmem:[%s145 + $0x78] sm:$0xff] %v166
                %v168 = vld [vmem:[%s144 + $0x318] sm:$0xff]
                %169 = vst [vmem:[%s145 + $0x84] sm:$0xff] %v168
                %v170 = vld [vmem:[%s144 + $0x360] sm:$0xff]
                %171 = vst [vmem:[%s145 + $0x90] sm:$0xff] %v170
                %v172 = vld [vmem:[%s144 + $0x3a8] sm:$0xff]
                %173 = vst [vmem:[%s145 + $0x9c] sm:$0xff] %v172
                %v174 = vld [vmem:[%s144 + $0x3f0] sm:$0xff]
                %175 = vst [vmem:[%s145 + $0xa8] sm:$0xff] %v174
                %v176 = vld [vmem:[%s144 + $0x438] sm:$0xff]
                %177 = vst [vmem:[%s145 + $0xb4] sm:$0xff] %v176
                %v178 = vld [vmem:[%s144 + $0x480] sm:$0xff]
                %179 = vst [vmem:[%s145 + $0xc0] sm:$0xff] %v178
                %v180 = vld [vmem:[%s144 + $0x4c8] sm:$0xff]
                %181 = vst [vmem:[%s145 + $0xcc] sm:$0xff] %v180
                %v182 = vld [vmem:[%s144 + $0x510] sm:$0xff]
                %183 = vst [vmem:[%s145 + $0xd8] sm:$0xff] %v182
                %v184 = vld [vmem:[%s144 + $0x558] sm:$0xff]
                %185 = vst [vmem:[%s145 + $0xe4] sm:$0xff] %v184
                %v186 = vld [vmem:[%s144 + $0x5a0] sm:$0xff]
                %187 = vst [vmem:[%s145 + $0xf0] sm:$0xff] %v186
                %v188 = vld [vmem:[%s144 + $0x5e8] sm:$0xff]
                %189 = vst [vmem:[%s145 + $0xfc] sm:$0xff] %v188
                %v190 = vld [vmem:[%s144 + $0x630] sm:$0xff]
                %191 = vst [vmem:[%s145 + $0x108] sm:$0xff] %v190
                %v192 = vld [vmem:[%s144 + $0x678] sm:$0xff]
                %193 = vst [vmem:[%s145 + $0x114] sm:$0xff] %v192
              $region33: #{feature_net.18} parent=27 // loop_footer
                %s143 = sadd.s32 1, %s139
              $region34: #{feature_net.18} parent=27 // loop_footer_branch
                %138 = sbr.rel target = $region30
              $region35: #{feature_net.18} parent=27 // loop_exit
                _
              loop: start=0, step=1, limit=1
              $region36: #{feature_net.18} parent=27 // loop_pre_header
                _
              $region37: #{feature_net.18} parent=27 // loop_header
                %s196 = sphi 0, %s200
                %p197 = scmp.ge.s32.totalorder %s196, 1
                %s201 = sphi %s136, %s136
                %s202 = sphi %s137, %s137
              $region38: #{feature_net.18} parent=27 // loop_header_branch
                %199 = sbr.rel (%p197) target = $region42
              $region39: #{feature_net.18} parent=27 // loop_body
                %v203 = vld [vmem:[%s201] sm:$0xf]
                %204 = vst [vmem:[%s202] sm:$0xf] %v203
                %v205 = vld [vmem:[%s201 + $0x48] sm:$0xf]
                %206 = vst [vmem:[%s202 + $0xc] sm:$0xf] %v205
                %v207 = vld [vmem:[%s201 + $0x90] sm:$0xf]
                %208 = vst [vmem:[%s202 + $0x18] sm:$0xf] %v207
                %v209 = vld [vmem:[%s201 + $0xd8] sm:$0xf]
                %210 = vst [vmem:[%s202 + $0x24] sm:$0xf] %v209
                %v211 = vld [vmem:[%s201 + $0x120] sm:$0xf]
                %212 = vst [vmem:[%s202 + $0x30] sm:$0xf] %v211
                %v213 = vld [vmem:[%s201 + $0x168] sm:$0xf]
                %214 = vst [vmem:[%s202 + $0x3c] sm:$0xf] %v213
                %v215 = vld [vmem:[%s201 + $0x1b0] sm:$0xf]
                %216 = vst [vmem:[%s202 + $0x48] sm:$0xf] %v215
                %v217 = vld [vmem:[%s201 + $0x1f8] sm:$0xf]
                %218 = vst [vmem:[%s202 + $0x54] sm:$0xf] %v217
                %v219 = vld [vmem:[%s201 + $0x240] sm:$0xf]
                %220 = vst [vmem:[%s202 + $0x60] sm:$0xf] %v219
                %v221 = vld [vmem:[%s201 + $0x288] sm:$0xf]
                %222 = vst [vmem:[%s202 + $0x6c] sm:$0xf] %v221
                %v223 = vld [vmem:[%s201 + $0x2d0] sm:$0xf]
                %224 = vst [vmem:[%s202 + $0x78] sm:$0xf] %v223
                %v225 = vld [vmem:[%s201 + $0x318] sm:$0xf]
                %226 = vst [vmem:[%s202 + $0x84] sm:$0xf] %v225
                %v227 = vld [vmem:[%s201 + $0x360] sm:$0xf]
                %228 = vst [vmem:[%s202 + $0x90] sm:$0xf] %v227
                %v229 = vld [vmem:[%s201 + $0x3a8] sm:$0xf]
                %230 = vst [vmem:[%s202 + $0x9c] sm:$0xf] %v229
                %v231 = vld [vmem:[%s201 + $0x3f0] sm:$0xf]
                %232 = vst [vmem:[%s202 + $0xa8] sm:$0xf] %v231
                %v233 = vld [vmem:[%s201 + $0x438] sm:$0xf]
                %234 = vst [vmem:[%s202 + $0xb4] sm:$0xf] %v233
                %v235 = vld [vmem:[%s201 + $0x480] sm:$0xf]
                %236 = vst [vmem:[%s202 + $0xc0] sm:$0xf] %v235
                %v237 = vld [vmem:[%s201 + $0x4c8] sm:$0xf]
                %238 = vst [vmem:[%s202 + $0xcc] sm:$0xf] %v237
                %v239 = vld [vmem:[%s201 + $0x510] sm:$0xf]
                %240 = vst [vmem:[%s202 + $0xd8] sm:$0xf] %v239
                %v241 = vld [vmem:[%s201 + $0x558] sm:$0xf]
                %242 = vst [vmem:[%s202 + $0xe4] sm:$0xf] %v241
                %v243 = vld [vmem:[%s201 + $0x5a0] sm:$0xf]
                %244 = vst [vmem:[%s202 + $0xf0] sm:$0xf] %v243
                %v245 = vld [vmem:[%s201 + $0x5e8] sm:$0xf]
                %246 = vst [vmem:[%s202 + $0xfc] sm:$0xf] %v245
                %v247 = vld [vmem:[%s201 + $0x630] sm:$0xf]
                %248 = vst [vmem:[%s202 + $0x108] sm:$0xf] %v247
                %v249 = vld [vmem:[%s201 + $0x678] sm:$0xf]
                %250 = vst [vmem:[%s202 + $0x114] sm:$0xf] %v249
              $region40: #{feature_net.18} parent=27 // loop_footer
                %s200 = sadd.s32 1, %s196
              $region41: #{feature_net.18} parent=27 // loop_footer_branch
                %195 = sbr.rel target = $region37
              $region42: #{feature_net.18} parent=27 // loop_exit
                _
            $region28: #{feature_net.18} parent=23 // pred_fallthru
              _
          $region24: #{feature_net.18} parent=19 // pred_fallthru
            _
          %251 = vnop
        $region20: #{feature_net.18} parent=15 // pred_fallthru
          _
        // Predicated region
        $region43: #{feature_net.18} parent=15 // pred_check
          %p252 = pneg %p68
        $region44: #{feature_net.18} parent=15 // pred_check_branch
          %254 = sbr.rel (%p252) target = $region46
        $region45: #{feature_net.18} parent=15 // pred_region
          %s255 = smul.u32 48, %s16
          %p256 = scmp.lt.s32.totalorder %s255, 287
          %s257 = scalar_select %p256, %s255, 287
          %s258 = smul.addr %s257, 4
          %s259 = scalar_lea.vmem %s1, %s258
          %s260 = smul.u32 48, %s16
        $region46: #{feature_net.18} parent=15 // pred_fallthru
          _
      $region16: #{feature_net.18} parent=5 // pred_fallthru
        _
      %p261 = scmp.le.s32.totalorder 1, %s8
      %p262 = scmp.lt.s32.totalorder %s8, 13
      %p263 = pnand %p261, %p262
      %p264 = pneg %p263
      // Predicated region
      $region47: #{feature_net.18} parent=5 // pred_check
        _
      $region48: #{feature_net.18} parent=5 // pred_check_branch
        %266 = sbr.rel (%p263) target = $region50
      $region49: #{feature_net.18} parent=5 // pred_region
        %s267 = ssub.s32 %s8, 1
        %s268 = sand.u32 %s35, 1
        %s269 = sand.u32 %s35, 1
        %s270 = smul.addr %s269, 288
        %s271 = scalar_lea.vmem [#allocation3], %s270
        // Predicated region
        $region51: #{feature_net.18} parent=49 // pred_check
          %p272 = pneg %p48
        $region52: #{feature_net.18} parent=49 // pred_check_branch
          %274 = sbr.rel (%p272) target = $region54
        $region53: #{feature_net.18} parent=49 // pred_region
          _
        $region54: #{feature_net.18} parent=49 // pred_fallthru
          _
        %s275 = sand.u32 %s35, 1
        %s276 = sand.u32 %s35, 1
        %s277 = smul.addr %s276, 288
        %s278 = scalar_lea.vmem [#allocation3], %s277
        %p279 = pneg %p48
        %p280 = pneg %p45
        %s281 = smul.u32 48, %s18
        %p282 = scmp.lt.s32.totalorder %s281, 287
        %s283 = scalar_select %p282, %s281, 287
        %s284 = smul.addr %s283, 4
        %s285 = scalar_lea.vmem %s1, %s284
        %p286 = pneg %p74
        %p287 = pneg %p71
        %p288 = pneg %p100
        %p289 = pneg %p97
        %s290 = smul.u32 24, %s17
        %p291 = scmp.lt.s32.totalorder %s290, 47
        %s292 = scalar_select %p291, %s290, 47
        %s293 = smul.addr %s292, 8
        %s294 = scalar_lea.vmem %s2, %s293
        %s295 = smul.u32 24, %s17
        %s296 = smul.u32 3, %s18
        %s297 = smul.u32 48, %s18
        %p298 = scmp.lt.s32.totalorder %s297, 287
        %s299 = scalar_select %p298, %s297, 287
        %s300 = smul.addr %s299, 4
        %s301 = scalar_lea.vmem %s1, %s300
        %s302 = smul.u32 48, %s18
        %s303 = smul.u32 24, %s17
        %p304 = scmp.lt.s32.totalorder %s303, 47
        %s305 = scalar_select %p304, %s303, 47
        %s306 = smul.addr %s305, 8
        %s307 = scalar_lea.vmem %s2, %s306
        %s308 = smul.u32 24, %s17
        %p310 = scmp.eq.s32.totalorder %s18, 0
        // Predicated region
        $region55: #{feature_net.18} parent=49 // pred_check
          %p311 = pneg %p310
        $region56: #{feature_net.18} parent=49 // pred_check_branch
          %313 = sbr.rel (%p311) target = $region58
        $region57: #{feature_net.18} parent=49 // pred_region
          %314 = vst [vmem:[#allocation2] sm:$0xff] 0.0
          %315 = vst [vmem:[#allocation2 + $0x8] sm:$0xff] 0.0
          %316 = vst [vmem:[#allocation2 + $0x10] sm:$0xff] 0.0
          %317 = vst [vmem:[#allocation2 + $0x18] sm:$0xff] 0.0
          %318 = vst [vmem:[#allocation2 + $0x20] sm:$0xff] 0.0
          %319 = vst [vmem:[#allocation2 + $0x28] sm:$0xff] 0.0
          %320 = vst [vmem:[#allocation2 + $0x30] sm:$0xff] 0.0
          %321 = vst [vmem:[#allocation2 + $0x38] sm:$0xff] 0.0
          %322 = vst [vmem:[#allocation2 + $0x40] sm:$0xff] 0.0
          %323 = vst [vmem:[#allocation2 + $0x48] sm:$0xff] 0.0
          %324 = vst [vmem:[#allocation2 + $0x50] sm:$0xff] 0.0
          %325 = vst [vmem:[#allocation2 + $0x58] sm:$0xff] 0.0
          %326 = vst [vmem:[#allocation2 + $0x60] sm:$0xff] 0.0
          %327 = vst [vmem:[#allocation2 + $0x68] sm:$0xff] 0.0
          %328 = vst [vmem:[#allocation2 + $0x70] sm:$0xff] 0.0
          %329 = vst [vmem:[#allocation2 + $0x78] sm:$0xff] 0.0
          %330 = vst [vmem:[#allocation2 + $0x80] sm:$0xff] 0.0
          %331 = vst [vmem:[#allocation2 + $0x88] sm:$0xff] 0.0
          %332 = vst [vmem:[#allocation2 + $0x90] sm:$0xff] 0.0
          %333 = vst [vmem:[#allocation2 + $0x98] sm:$0xff] 0.0
          %334 = vst [vmem:[#allocation2 + $0xa0] sm:$0xff] 0.0
          %335 = vst [vmem:[#allocation2 + $0xa8] sm:$0xff] 0.0
          %336 = vst [vmem:[#allocation2 + $0xb0] sm:$0xff] 0.0
          %337 = vst [vmem:[#allocation2 + $0xb8] sm:$0xff] 0.0
        $region58: #{feature_net.18} parent=49 // pred_fallthru
          _
        %v338 = vld [vmem:[#allocation2] sm:$0xff]
        %v339 = vld [vmem:[#allocation2 + $0x8] sm:$0xff]
        %v340 = vld [vmem:[#allocation2 + $0x10] sm:$0xff]
        %v341 = vld [vmem:[#allocation2 + $0x18] sm:$0xff]
        %v342 = vld [vmem:[#allocation2 + $0x20] sm:$0xff]
        %v343 = vld [vmem:[#allocation2 + $0x28] sm:$0xff]
        %v344 = vld [vmem:[#allocation2 + $0x30] sm:$0xff]
        %v345 = vld [vmem:[#allocation2 + $0x38] sm:$0xff]
        %v346 = vld [vmem:[#allocation2 + $0x40] sm:$0xff]
        %v347 = vld [vmem:[#allocation2 + $0x48] sm:$0xff]
        %v348 = vld [vmem:[#allocation2 + $0x50] sm:$0xff]
        %v349 = vld [vmem:[#allocation2 + $0x58] sm:$0xff]
        %v350 = vld [vmem:[#allocation2 + $0x60] sm:$0xff]
        %v351 = vld [vmem:[#allocation2 + $0x68] sm:$0xff]
        %v352 = vld [vmem:[#allocation2 + $0x70] sm:$0xff]
        %v353 = vld [vmem:[#allocation2 + $0x78] sm:$0xff]
        %v354 = vld [vmem:[#allocation2 + $0x80] sm:$0xff]
        %v355 = vld [vmem:[#allocation2 + $0x88] sm:$0xff]
        %v356 = vld [vmem:[#allocation2 + $0x90] sm:$0xff]
        %v357 = vld [vmem:[#allocation2 + $0x98] sm:$0xff]
        %v358 = vld [vmem:[#allocation2 + $0xa0] sm:$0xff]
        %v359 = vld [vmem:[#allocation2 + $0xa8] sm:$0xff]
        %v360 = vld [vmem:[#allocation2 + $0xb0] sm:$0xff]
        %v361 = vld [vmem:[#allocation2 + $0xb8] sm:$0xff]
        %v362 = vld [vmem:[%s271] sm:$0xff]
        %v363 = vld [vmem:[%s271 + $0x8] sm:$0xf]
        %v364 = vld [vmem:[%s271 + $0xc] sm:$0xff]
        %v365 = vld [vmem:[%s271 + $0x14] sm:$0xf]
        %v366 = vld [vmem:[%s271 + $0x18] sm:$0xff]
        %v367 = vld [vmem:[%s271 + $0x20] sm:$0xf]
        %v368 = vld [vmem:[%s271 + $0x24] sm:$0xff]
        %v369 = vld [vmem:[%s271 + $0x2c] sm:$0xf]
        %v370 = vld [vmem:[%s271 + $0x30] sm:$0xff]
        %v371 = vld [vmem:[%s271 + $0x38] sm:$0xf]
        %v372 = vld [vmem:[%s271 + $0x3c] sm:$0xff]
        %v373 = vld [vmem:[%s271 + $0x44] sm:$0xf]
        %v374 = vld [vmem:[%s271 + $0x48] sm:$0xff]
        %v375 = vld [vmem:[%s271 + $0x50] sm:$0xf]
        %v376 = vld [vmem:[%s271 + $0x54] sm:$0xff]
        %v377 = vld [vmem:[%s271 + $0x5c] sm:$0xf]
        %v378 = vld [vmem:[%s271 + $0x60] sm:$0xff]
        %v379 = vld [vmem:[%s271 + $0x68] sm:$0xf]
        %v380 = vld [vmem:[%s271 + $0x6c] sm:$0xff]
        %v381 = vld [vmem:[%s271 + $0x74] sm:$0xf]
        %v382 = vld [vmem:[%s271 + $0x78] sm:$0xff]
        %v383 = vld [vmem:[%s271 + $0x80] sm:$0xf]
        %v384 = vld [vmem:[%s271 + $0x84] sm:$0xff]
        %v385 = vld [vmem:[%s271 + $0x8c] sm:$0xf]
        %v386 = vld [vmem:[%s271 + $0x90] sm:$0xff]
        %v387 = vld [vmem:[%s271 + $0x98] sm:$0xf]
        %v388 = vld [vmem:[%s271 + $0x9c] sm:$0xff]
        %v389 = vld [vmem:[%s271 + $0xa4] sm:$0xf]
        %v390 = vld [vmem:[%s271 + $0xa8] sm:$0xff]
        %v391 = vld [vmem:[%s271 + $0xb0] sm:$0xf]
        %v392 = vld [vmem:[%s271 + $0xb4] sm:$0xff]
        %v393 = vld [vmem:[%s271 + $0xbc] sm:$0xf]
        %v394 = vld [vmem:[%s271 + $0xc0] sm:$0xff]
        %v395 = vld [vmem:[%s271 + $0xc8] sm:$0xf]
        %v396 = vld [vmem:[%s271 + $0xcc] sm:$0xff]
        %v397 = vld [vmem:[%s271 + $0xd4] sm:$0xf]
        %v398 = vld [vmem:[%s271 + $0xd8] sm:$0xff]
        %v399 = vld [vmem:[%s271 + $0xe0] sm:$0xf]
        %v400 = vld [vmem:[%s271 + $0xe4] sm:$0xff]
        %v401 = vld [vmem:[%s271 + $0xec] sm:$0xf]
        %v402 = vld [vmem:[%s271 + $0xf0] sm:$0xff]
        %v403 = vld [vmem:[%s271 + $0xf8] sm:$0xf]
        %v404 = vld [vmem:[%s271 + $0xfc] sm:$0xff]
        %v405 = vld [vmem:[%s271 + $0x104] sm:$0xf]
        %v406 = vld [vmem:[%s271 + $0x108] sm:$0xff]
        %v407 = vld [vmem:[%s271 + $0x110] sm:$0xf]
        %v408 = vld [vmem:[%s271 + $0x114] sm:$0xff]
        %v409 = vld [vmem:[%s271 + $0x11c] sm:$0xf]
        %v410 = vld [vmem:[%s301] sm:$0xf]
        %v411 = vld [vmem:[%s301 + $0x4] sm:$0xf]
        %v412 = vld [vmem:[%s301 + $0x8] sm:$0xf]
        %v413 = vld [vmem:[%s301 + $0xc] sm:$0xf]
        %v414 = vld [vmem:[%s301 + $0x10] sm:$0xf]
        %v415 = vld [vmem:[%s301 + $0x14] sm:$0xf]
        %v416 = vld [vmem:[%s301 + $0x18] sm:$0xf]
        %v417 = vld [vmem:[%s301 + $0x1c] sm:$0xf]
        %v418 = vld [vmem:[%s301 + $0x20] sm:$0xf]
        %v419 = vld [vmem:[%s301 + $0x24] sm:$0xf]
        %v420 = vld [vmem:[%s301 + $0x28] sm:$0xf]
        %v421 = vld [vmem:[%s301 + $0x2c] sm:$0xf]
        %v422 = vld [vmem:[%s301 + $0x30] sm:$0xf]
        %v423 = vld [vmem:[%s301 + $0x34] sm:$0xf]
        %v424 = vld [vmem:[%s301 + $0x38] sm:$0xf]
        %v425 = vld [vmem:[%s301 + $0x3c] sm:$0xf]
        %v426 = vld [vmem:[%s301 + $0x40] sm:$0xf]
        %v427 = vld [vmem:[%s301 + $0x44] sm:$0xf]
        %v428 = vld [vmem:[%s301 + $0x48] sm:$0xf]
        %v429 = vld [vmem:[%s301 + $0x4c] sm:$0xf]
        %v430 = vld [vmem:[%s301 + $0x50] sm:$0xf]
        %v431 = vld [vmem:[%s301 + $0x54] sm:$0xf]
        %v432 = vld [vmem:[%s301 + $0x58] sm:$0xf]
        %v433 = vld [vmem:[%s301 + $0x5c] sm:$0xf]
        %v434 = vld [vmem:[%s301 + $0x60] sm:$0xf]
        %v435 = vld [vmem:[%s301 + $0x64] sm:$0xf]
        %v436 = vld [vmem:[%s301 + $0x68] sm:$0xf]
        %v437 = vld [vmem:[%s301 + $0x6c] sm:$0xf]
        %v438 = vld [vmem:[%s301 + $0x70] sm:$0xf]
        %v439 = vld [vmem:[%s301 + $0x74] sm:$0xf]
        %v440 = vld [vmem:[%s301 + $0x78] sm:$0xf]
        %v441 = vld [vmem:[%s301 + $0x7c] sm:$0xf]
        %v442 = vld [vmem:[%s301 + $0x80] sm:$0xf]
        %v443 = vld [vmem:[%s301 + $0x84] sm:$0xf]
        %v444 = vld [vmem:[%s301 + $0x88] sm:$0xf]
        %v445 = vld [vmem:[%s301 + $0x8c] sm:$0xf]
        %v446 = vld [vmem:[%s301 + $0x90] sm:$0xf]
        %v447 = vld [vmem:[%s301 + $0x94] sm:$0xf]
        %v448 = vld [vmem:[%s301 + $0x98] sm:$0xf]
        %v449 = vld [vmem:[%s301 + $0x9c] sm:$0xf]
        %v450 = vld [vmem:[%s301 + $0xa0] sm:$0xf]
        %v451 = vld [vmem:[%s301 + $0xa4] sm:$0xf]
        %v452 = vld [vmem:[%s301 + $0xa8] sm:$0xf]
        %v453 = vld [vmem:[%s301 + $0xac] sm:$0xf]
        %v454 = vld [vmem:[%s301 + $0xb0] sm:$0xf]
        %v455 = vld [vmem:[%s301 + $0xb4] sm:$0xf]
        %v456 = vld [vmem:[%s301 + $0xb8] sm:$0xf]
        %v457 = vld [vmem:[%s301 + $0xbc] sm:$0xf]
        %v506 = vunpack.c.l.b16 %v362
        %v507 = vunpack.c.h.b16 %v362
        %v508 = vunpack.c.l.b16 %v363
        %v509 = vunpack.c.l.b16 %v364
        %v510 = vunpack.c.h.b16 %v364
        %v511 = vunpack.c.l.b16 %v365
        %v512 = vunpack.c.l.b16 %v366
        %v513 = vunpack.c.h.b16 %v366
        %v514 = vunpack.c.l.b16 %v367
        %v515 = vunpack.c.l.b16 %v368
        %v516 = vunpack.c.h.b16 %v368
        %v517 = vunpack.c.l.b16 %v369
        %v518 = vunpack.c.l.b16 %v370
        %v519 = vunpack.c.h.b16 %v370
        %v520 = vunpack.c.l.b16 %v371
        %v521 = vunpack.c.l.b16 %v372
        %v522 = vunpack.c.h.b16 %v372
        %v523 = vunpack.c.l.b16 %v373
        %v524 = vunpack.c.l.b16 %v374
        %v525 = vunpack.c.h.b16 %v374
        %v526 = vunpack.c.l.b16 %v375
        %v527 = vunpack.c.l.b16 %v376
        %v528 = vunpack.c.h.b16 %v376
        %v529 = vunpack.c.l.b16 %v377
        %v530 = vunpack.c.l.b16 %v378
        %v531 = vunpack.c.h.b16 %v378
        %v532 = vunpack.c.l.b16 %v379
        %v533 = vunpack.c.l.b16 %v380
        %v534 = vunpack.c.h.b16 %v380
        %v535 = vunpack.c.l.b16 %v381
        %v536 = vunpack.c.l.b16 %v382
        %v537 = vunpack.c.h.b16 %v382
        %v538 = vunpack.c.l.b16 %v383
        %v539 = vunpack.c.l.b16 %v384
        %v540 = vunpack.c.h.b16 %v384
        %v541 = vunpack.c.l.b16 %v385
        %v542 = vunpack.c.l.b16 %v386
        %v543 = vunpack.c.h.b16 %v386
        %v544 = vunpack.c.l.b16 %v387
        %v545 = vunpack.c.l.b16 %v388
        %v546 = vunpack.c.h.b16 %v388
        %v547 = vunpack.c.l.b16 %v389
        %v548 = vunpack.c.l.b16 %v390
        %v549 = vunpack.c.h.b16 %v390
        %v550 = vunpack.c.l.b16 %v391
        %v551 = vunpack.c.l.b16 %v392
        %v552 = vunpack.c.h.b16 %v392
        %v553 = vunpack.c.l.b16 %v393
        %v554 = vunpack.c.l.b16 %v394
        %v555 = vunpack.c.h.b16 %v394
        %v556 = vunpack.c.l.b16 %v395
        %v557 = vunpack.c.l.b16 %v396
        %v558 = vunpack.c.h.b16 %v396
        %v559 = vunpack.c.l.b16 %v397
        %v560 = vunpack.c.l.b16 %v398
        %v561 = vunpack.c.h.b16 %v398
        %v562 = vunpack.c.l.b16 %v399
        %v563 = vunpack.c.l.b16 %v400
        %v564 = vunpack.c.h.b16 %v400
        %v565 = vunpack.c.l.b16 %v401
        %v566 = vunpack.c.l.b16 %v402
        %v567 = vunpack.c.h.b16 %v402
        %v568 = vunpack.c.l.b16 %v403
        %v569 = vunpack.c.l.b16 %v404
        %v570 = vunpack.c.h.b16 %v404
        %v571 = vunpack.c.l.b16 %v405
        %v572 = vunpack.c.l.b16 %v406
        %v573 = vunpack.c.h.b16 %v406
        %v574 = vunpack.c.l.b16 %v407
        %v575 = vunpack.c.l.b16 %v408
        %v576 = vunpack.c.h.b16 %v408
        %v577 = vunpack.c.l.b16 %v409
        %v578 = vpack.c.b16 %v509, %v506
        %v579 = vpack.c.b16 %v510, %v507
        %v580 = vpack.c.b16 %v511, %v508
        %v581 = vpack.c.b16 %v515, %v512
        %v582 = vpack.c.b16 %v516, %v513
        %v583 = vpack.c.b16 %v517, %v514
        %v584 = vpack.c.b16 %v521, %v518
        %v585 = vpack.c.b16 %v522, %v519
        %v586 = vpack.c.b16 %v523, %v520
        %v587 = vpack.c.b16 %v527, %v524
        %v588 = vpack.c.b16 %v528, %v525
        %v589 = vpack.c.b16 %v529, %v526
        %v590 = vpack.c.b16 %v533, %v530
        %v591 = vpack.c.b16 %v534, %v531
        %v592 = vpack.c.b16 %v535, %v532
        %v593 = vpack.c.b16 %v539, %v536
        %v594 = vpack.c.b16 %v540, %v537
        %v595 = vpack.c.b16 %v541, %v538
        %v596 = vpack.c.b16 %v545, %v542
        %v597 = vpack.c.b16 %v546, %v543
        %v598 = vpack.c.b16 %v547, %v544
        %v599 = vpack.c.b16 %v551, %v548
        %v600 = vpack.c.b16 %v552, %v549
        %v601 = vpack.c.b16 %v553, %v550
        %v602 = vpack.c.b16 %v557, %v554
        %v603 = vpack.c.b16 %v558, %v555
        %v604 = vpack.c.b16 %v559, %v556
        %v605 = vpack.c.b16 %v563, %v560
        %v606 = vpack.c.b16 %v564, %v561
        %v607 = vpack.c.b16 %v565, %v562
        %v608 = vpack.c.b16 %v569, %v566
        %v609 = vpack.c.b16 %v570, %v567
        %v610 = vpack.c.b16 %v571, %v568
        %v611 = vpack.c.b16 %v575, %v572
        %v612 = vpack.c.b16 %v576, %v573
        %v613 = vpack.c.b16 %v577, %v574
        %v698 = vunpack.c.l.b16 %v410
        %v699 = vunpack.c.l.b16 %v411
        %v700 = vunpack.c.l.b16 %v412
        %v701 = vunpack.c.l.b16 %v413
        %v702 = vunpack.c.l.b16 %v414
        %v703 = vunpack.c.l.b16 %v415
        %v704 = vunpack.c.l.b16 %v416
        %v705 = vunpack.c.l.b16 %v417
        %v706 = vunpack.c.l.b16 %v418
        %v707 = vunpack.c.l.b16 %v419
        %v708 = vunpack.c.l.b16 %v420
        %v709 = vunpack.c.l.b16 %v421
        %v710 = vunpack.c.l.b16 %v422
        %v711 = vunpack.c.l.b16 %v423
        %v712 = vunpack.c.l.b16 %v424
        %v713 = vunpack.c.l.b16 %v425
        %v714 = vunpack.c.l.b16 %v426
        %v715 = vunpack.c.l.b16 %v427
        %v716 = vunpack.c.l.b16 %v428
        %v717 = vunpack.c.l.b16 %v429
        %v718 = vunpack.c.l.b16 %v430
        %v719 = vunpack.c.l.b16 %v431
        %v720 = vunpack.c.l.b16 %v432
        %v721 = vunpack.c.l.b16 %v433
        %v722 = vunpack.c.l.b16 %v434
        %v723 = vunpack.c.l.b16 %v435
        %v724 = vunpack.c.l.b16 %v436
        %v725 = vunpack.c.l.b16 %v437
        %v726 = vunpack.c.l.b16 %v438
        %v727 = vunpack.c.l.b16 %v439
        %v728 = vunpack.c.l.b16 %v440
        %v729 = vunpack.c.l.b16 %v441
        %v730 = vunpack.c.l.b16 %v442
        %v731 = vunpack.c.l.b16 %v443
        %v732 = vunpack.c.l.b16 %v444
        %v733 = vunpack.c.l.b16 %v445
        %v734 = vunpack.c.l.b16 %v446
        %v735 = vunpack.c.l.b16 %v447
        %v736 = vunpack.c.l.b16 %v448
        %v737 = vunpack.c.l.b16 %v449
        %v738 = vunpack.c.l.b16 %v450
        %v739 = vunpack.c.l.b16 %v451
        %v740 = vunpack.c.l.b16 %v452
        %v741 = vunpack.c.l.b16 %v453
        %v742 = vunpack.c.l.b16 %v454
        %v743 = vunpack.c.l.b16 %v455
        %v744 = vunpack.c.l.b16 %v456
        %v745 = vunpack.c.l.b16 %v457
        %v746 = vpack.c.b16 %v699, %v698
        %v747 = vpack.c.b16 %v701, %v700
        %v748 = vpack.c.b16 %v703, %v702
        %v749 = vpack.c.b16 %v705, %v704
        %v750 = vpack.c.b16 %v707, %v706
        %v751 = vpack.c.b16 %v709, %v708
        %v752 = vpack.c.b16 %v711, %v710
        %v753 = vpack.c.b16 %v713, %v712
        %v754 = vpack.c.b16 %v715, %v714
        %v755 = vpack.c.b16 %v717, %v716
        %v756 = vpack.c.b16 %v719, %v718
        %v757 = vpack.c.b16 %v721, %v720
        %v758 = vpack.c.b16 %v723, %v722
        %v759 = vpack.c.b16 %v725, %v724
        %v760 = vpack.c.b16 %v727, %v726
        %v761 = vpack.c.b16 %v729, %v728
        %v762 = vpack.c.b16 %v731, %v730
        %v763 = vpack.c.b16 %v733, %v732
        %v764 = vpack.c.b16 %v735, %v734
        %v765 = vpack.c.b16 %v737, %v736
        %v766 = vpack.c.b16 %v739, %v738
        %v767 = vpack.c.b16 %v741, %v740
        %v768 = vpack.c.b16 %v743, %v742
        %v769 = vpack.c.b16 %v745, %v744
        %794 = vmatprep.subr.bf16.mxu0 0
        %795 = vmatpush1.bf16.msra.mxu0 %v746
        %796 = vmatprep.subr.bf16.mxu0 0
        %797 = vmatpush1.bf16.msra.mxu0 %v747
        %798 = vmatprep.subr.bf16.mxu0 0
        %799 = vmatpush1.bf16.msra.mxu0 %v748
        %800 = vmatprep.subr.bf16.mxu0 0
        %801 = vmatpush1.bf16.msra.mxu0 %v749
        %802 = vmatprep.subr.bf16.mxu0 0
        %803 = vmatpush1.bf16.msra.mxu0 %v750
        %804 = vmatprep.subr.bf16.mxu0 0
        %805 = vmatpush1.bf16.msra.mxu0 %v751
        %806 = vmatprep.subr.bf16.mxu0 0
        %807 = vmatpush1.bf16.msra.mxu0 %v752
        %808 = vmatprep.subr.bf16.mxu0 0
        %809 = vmatpush1.bf16.msra.mxu0 %v753
        %810 = vmatprep.subr.bf16.mxu0 0
        %811 = vmatpush1.bf16.msra.mxu0 %v754
        %812 = vmatprep.subr.bf16.mxu0 0
        %813 = vmatpush1.bf16.msra.mxu0 %v755
        %814 = vmatprep.subr.bf16.mxu0 0
        %815 = vmatpush1.bf16.msra.mxu0 %v756
        %816 = vmatprep.subr.bf16.mxu0 0
        %817 = vmatpush1.bf16.msra.mxu0 %v757
        %818 = vmatprep.subr.bf16.mxu0 0
        %819 = vmatpush1.bf16.msra.mxu0 %v758
        %820 = vmatprep.subr.bf16.mxu0 0
        %821 = vmatpush1.bf16.msra.mxu0 %v759
        %822 = vmatprep.subr.bf16.mxu0 0
        %823 = vmatpush1.bf16.msra.mxu0 %v760
        %824 = vmatprep.subr.bf16.mxu0 0
        %825 = vmatpush1.bf16.msra.mxu0 %v761
        %826 = vmatprep.mubr.bf16.mxu0 %v579
        %827 = vmatmul.mubr.bf16.gmra.mrb[0].mxu0 %v578
        %v828 = vpop.f32.mrb[0].mxu0
        %v829 = vadd.f32 0.0, %v828
        %v830 = vpop.f32.mrb[0].mxu0
        %v831 = vpop.f32.mrb[0].mxu0
        %v832 = vadd.f32 0.0, %v831
        %v833 = vpop.f32.mrb[0].mxu0
        %834 = vmatprep.mubr.bf16.mxu0 %v582
        %835 = vmatmul.mubr.bf16.gmra.mrb[0].mxu0 %v581
        %v836 = vpop.f32.mrb[0].mxu0
        %v837 = vadd.f32 0.0, %v836
        %v838 = vpop.f32.mrb[0].mxu0
        %v839 = vpop.f32.mrb[0].mxu0
        %v840 = vadd.f32 0.0, %v839
        %v841 = vpop.f32.mrb[0].mxu0
        %842 = vmatprep.mubr.bf16.mxu0 %v585
        %843 = vmatmul.mubr.bf16.gmra.mrb[0].mxu0 %v584
        %v844 = vpop.f32.mrb[0].mxu0
        %v845 = vadd.f32 0.0, %v844
        %v846 = vpop.f32.mrb[0].mxu0
        %v847 = vpop.f32.mrb[0].mxu0
        %v848 = vadd.f32 0.0, %v847
        %v849 = vpop.f32.mrb[0].mxu0
        %850 = vmatprep.mubr.bf16.mxu0 %v588
        %851 = vmatmul.mubr.bf16.gmra.mrb[0].mxu0 %v587
        %v852 = vpop.f32.mrb[0].mxu0
        %v853 = vadd.f32 0.0, %v852
        %v854 = vpop.f32.mrb[0].mxu0
        %v855 = vpop.f32.mrb[0].mxu0
        %v856 = vadd.f32 0.0, %v855
        %v857 = vpop.f32.mrb[0].mxu0
        %858 = vmatprep.mubr.bf16.mxu0 %v591
        %859 = vmatmul.mubr.bf16.gmra.mrb[0].mxu0 %v590
        %v860 = vpop.f32.mrb[0].mxu0
        %v861 = vadd.f32 0.0, %v860
        %v862 = vpop.f32.mrb[0].mxu0
        %v863 = vpop.f32.mrb[0].mxu0
        %v864 = vadd.f32 0.0, %v863
        %v865 = vpop.f32.mrb[0].mxu0
        %866 = vmatprep.mubr.bf16.mxu0 %v594
        %867 = vmatmul.mubr.bf16.gmra.mrb[0].mxu0 %v593
        %v868 = vpop.f32.mrb[0].mxu0
        %v869 = vadd.f32 0.0, %v868
        %v870 = vpop.f32.mrb[0].mxu0
        %v871 = vpop.f32.mrb[0].mxu0
        %v872 = vadd.f32 0.0, %v871
        %v873 = vpop.f32.mrb[0].mxu0
        %874 = vmatprep.mubr.bf16.mxu0 %v597
        %875 = vmatmul.mubr.bf16.gmra.mrb[0].mxu0 %v596
        %v876 = vpop.f32.mrb[0].mxu0
        %v877 = vadd.f32 0.0, %v876
        %v878 = vpop.f32.mrb[0].mxu0
        %v879 = vpop.f32.mrb[0].mxu0
        %v880 = vadd.f32 0.0, %v879
        %v881 = vpop.f32.mrb[0].mxu0
        %882 = vmatprep.mubr.bf16.mxu0 %v600
        %883 = vmatmul.mubr.bf16.gmra.mrb[0].mxu0 %v599
        %v884 = vpop.f32.mrb[0].mxu0
        %v885 = vadd.f32 0.0, %v884
        %v886 = vpop.f32.mrb[0].mxu0
        %v887 = vpop.f32.mrb[0].mxu0
        %v888 = vadd.f32 0.0, %v887
        %v889 = vpop.f32.mrb[0].mxu0
        %890 = vmatprep.mubr.bf16.mxu0 %v603
        %891 = vmatmul.mubr.bf16.gmra.mrb[0].mxu0 %v602
        %v892 = vpop.f32.mrb[0].mxu0
        %v893 = vadd.f32 0.0, %v892
        %v894 = vpop.f32.mrb[0].mxu0
        %v895 = vpop.f32.mrb[0].mxu0
        %v896 = vadd.f32 0.0, %v895
        %v897 = vpop.f32.mrb[0].mxu0
        %898 = vmatprep.mubr.bf16.mxu0 %v606
        %899 = vmatmul.mubr.bf16.gmra.mrb[0].mxu0 %v605
        %v900 = vpop.f32.mrb[0].mxu0
        %v901 = vadd.f32 0.0, %v900
        %v902 = vpop.f32.mrb[0].mxu0
        %v903 = vpop.f32.mrb[0].mxu0
        %v904 = vadd.f32 0.0, %v903
        %v905 = vpop.f32.mrb[0].mxu0
        %906 = vmatprep.mubr.bf16.mxu0 %v609
        %907 = vmatmul.mubr.bf16.gmra.mrb[0].mxu0 %v608
        %v908 = vpop.f32.mrb[0].mxu0
        %v909 = vadd.f32 0.0, %v908
        %v910 = vpop.f32.mrb[0].mxu0
        %v911 = vpop.f32.mrb[0].mxu0
        %v912 = vadd.f32 0.0, %v911
        %v913 = vpop.f32.mrb[0].mxu0
        %914 = vmatprep.mubr.bf16.mxu0 %v612
        %915 = vmatmul.mubr.bf16.gmra.mrb[0].mxu0 %v611
        %v916 = vpop.f32.mrb[0].mxu0
        %v917 = vadd.f32 0.0, %v916
        %v918 = vpop.f32.mrb[0].mxu0
        %v919 = vpop.f32.mrb[0].mxu0
        %v920 = vadd.f32 0.0, %v919
        %v921 = vpop.f32.mrb[0].mxu0
        %922 = vdwg.mxu0
        %923 = vmatprep.subr.bf16.mxu0 0
        %924 = vmatpush1.bf16.msra.mxu0 %v762
        %925 = vmatprep.subr.bf16.mxu0 0
        %926 = vmatpush1.bf16.msra.mxu0 %v763
        %927 = vmatprep.subr.bf16.mxu0 0
        %928 = vmatpush1.bf16.msra.mxu0 %v764
        %929 = vmatprep.subr.bf16.mxu0 0
        %930 = vmatpush1.bf16.msra.mxu0 %v765
        %931 = vmatprep.subr.bf16.mxu0 0
        %932 = vmatpush1.bf16.msra.mxu0 %v766
        %933 = vmatprep.subr.bf16.mxu0 0
        %934 = vmatpush1.bf16.msra.mxu0 %v767
        %935 = vmatprep.subr.bf16.mxu0 0
        %936 = vmatpush1.bf16.msra.mxu0 %v768
        %937 = vmatprep.subr.bf16.mxu0 0
        %938 = vmatpush1.bf16.msra.mxu0 %v769
        %939 = vmatprep.subr.bf16.mxu0 0
        %940 = vmatpush1.bf16.msra.mxu0 0
        %941 = vmatprep.subr.bf16.mxu0 0
        %942 = vmatpush1.bf16.msra.mxu0 0
        %943 = vmatprep.subr.bf16.mxu0 0
        %944 = vmatpush1.bf16.msra.mxu0 0
        %945 = vmatprep.subr.bf16.mxu0 0
        %946 = vmatpush1.bf16.msra.mxu0 0
        %947 = vmatprep.subr.bf16.mxu0 0
        %948 = vmatpush1.bf16.msra.mxu0 0
        %949 = vmatprep.subr.bf16.mxu0 0
        %950 = vmatpush1.bf16.msra.mxu0 0
        %951 = vmatprep.subr.bf16.mxu0 0
        %952 = vmatpush1.bf16.msra.mxu0 0
        %953 = vmatprep.subr.bf16.mxu0 0
        %954 = vmatpush1.bf16.msra.mxu0 0
        %955 = vmatprep.mubr.bf16.mxu0 0
        %956 = vmatmul.mubr.bf16.gmra.mrb[0].mxu0 %v580
        %v957 = vpop.f32.mrb[0].mxu0
        %v958 = vadd.f32 %v829, %v957
        %v959 = vpop.f32.mrb[0].mxu0
        %v960 = vpop.f32.mrb[0].mxu0
        %v961 = vadd.f32 %v832, %v960
        %v962 = vpop.f32.mrb[0].mxu0
        %963 = vmatprep.mubr.bf16.mxu0 0
        %964 = vmatmul.mubr.bf16.gmra.mrb[0].mxu0 %v583
        %v965 = vpop.f32.mrb[0].mxu0
        %v966 = vadd.f32 %v837, %v965
        %v967 = vpop.f32.mrb[0].mxu0
        %v968 = vpop.f32.mrb[0].mxu0
        %v969 = vadd.f32 %v840, %v968
        %v970 = vpop.f32.mrb[0].mxu0
        %971 = vmatprep.mubr.bf16.mxu0 0
        %972 = vmatmul.mubr.bf16.gmra.mrb[0].mxu0 %v586
        %v973 = vpop.f32.mrb[0].mxu0
        %v974 = vadd.f32 %v845, %v973
        %v975 = vpop.f32.mrb[0].mxu0
        %v976 = vpop.f32.mrb[0].mxu0
        %v977 = vadd.f32 %v848, %v976
        %v978 = vpop.f32.mrb[0].mxu0
        %979 = vmatprep.mubr.bf16.mxu0 0
        %980 = vmatmul.mubr.bf16.gmra.mrb[0].mxu0 %v589
        %v981 = vpop.f32.mrb[0].mxu0
        %v982 = vadd.f32 %v853, %v981
        %v983 = vpop.f32.mrb[0].mxu0
        %v984 = vpop.f32.mrb[0].mxu0
        %v985 = vadd.f32 %v856, %v984
        %v986 = vpop.f32.mrb[0].mxu0
        %987 = vmatprep.mubr.bf16.mxu0 0
        %988 = vmatmul.mubr.bf16.gmra.mrb[0].mxu0 %v592
        %v989 = vpop.f32.mrb[0].mxu0
        %v990 = vadd.f32 %v861, %v989
        %v991 = vpop.f32.mrb[0].mxu0
        %v992 = vpop.f32.mrb[0].mxu0
        %v993 = vadd.f32 %v864, %v992
        %v994 = vpop.f32.mrb[0].mxu0
        %995 = vmatprep.mubr.bf16.mxu0 0
        %996 = vmatmul.mubr.bf16.gmra.mrb[0].mxu0 %v595
        %v997 = vpop.f32.mrb[0].mxu0
        %v998 = vadd.f32 %v869, %v997
        %v999 = vpop.f32.mrb[0].mxu0
        %v1000 = vpop.f32.mrb[0].mxu0
        %v1001 = vadd.f32 %v872, %v1000
        %v1002 = vpop.f32.mrb[0].mxu0
        %1003 = vmatprep.mubr.bf16.mxu0 0
        %1004 = vmatmul.mubr.bf16.gmra.mrb[0].mxu0 %v598
        %v1005 = vpop.f32.mrb[0].mxu0
        %v1006 = vadd.f32 %v877, %v1005
        %v1007 = vpop.f32.mrb[0].mxu0
        %v1008 = vpop.f32.mrb[0].mxu0
        %v1009 = vadd.f32 %v880, %v1008
        %v1010 = vpop.f32.mrb[0].mxu0
        %1011 = vmatprep.mubr.bf16.mxu0 0
        %1012 = vmatmul.mubr.bf16.gmra.mrb[0].mxu0 %v601
        %v1013 = vpop.f32.mrb[0].mxu0
        %v1014 = vadd.f32 %v885, %v1013
        %v1015 = vpop.f32.mrb[0].mxu0
        %v1016 = vpop.f32.mrb[0].mxu0
        %v1017 = vadd.f32 %v888, %v1016
        %v1018 = vpop.f32.mrb[0].mxu0
        %1019 = vmatprep.mubr.bf16.mxu0 0
        %1020 = vmatmul.mubr.bf16.gmra.mrb[0].mxu0 %v604
        %v1021 = vpop.f32.mrb[0].mxu0
        %v1022 = vadd.f32 %v893, %v1021
        %v1023 = vpop.f32.mrb[0].mxu0
        %v1024 = vpop.f32.mrb[0].mxu0
        %v1025 = vadd.f32 %v896, %v1024
        %v1026 = vpop.f32.mrb[0].mxu0
        %1027 = vmatprep.mubr.bf16.mxu0 0
        %1028 = vmatmul.mubr.bf16.gmra.mrb[0].mxu0 %v607
        %v1029 = vpop.f32.mrb[0].mxu0
        %v1030 = vadd.f32 %v901, %v1029
        %v1031 = vpop.f32.mrb[0].mxu0
        %v1032 = vpop.f32.mrb[0].mxu0
        %v1033 = vadd.f32 %v904, %v1032
        %v1034 = vpop.f32.mrb[0].mxu0
        %1035 = vmatprep.mubr.bf16.mxu0 0
        %1036 = vmatmul.mubr.bf16.gmra.mrb[0].mxu0 %v610
        %v1037 = vpop.f32.mrb[0].mxu0
        %v1038 = vadd.f32 %v909, %v1037
        %v1039 = vpop.f32.mrb[0].mxu0
        %v1040 = vpop.f32.mrb[0].mxu0
        %v1041 = vadd.f32 %v912, %v1040
        %v1042 = vpop.f32.mrb[0].mxu0
        %1043 = vmatprep.mubr.bf16.mxu0 0
        %1044 = vmatmul.mubr.bf16.gmra.mrb[0].mxu0 %v613
        %v1045 = vpop.f32.mrb[0].mxu0
        %v1046 = vadd.f32 %v917, %v1045
        %v1047 = vpop.f32.mrb[0].mxu0
        %v1048 = vpop.f32.mrb[0].mxu0
        %v1049 = vadd.f32 %v920, %v1048
        %v1050 = vpop.f32.mrb[0].mxu0
        %1051 = vdwg.mxu0
        %v1052 = vadd.f32 %v338, %v958
        %v1053 = vadd.f32 %v339, %v961
        %v1054 = vadd.f32 %v340, %v966
        %v1055 = vadd.f32 %v341, %v969
        %v1056 = vadd.f32 %v342, %v974
        %v1057 = vadd.f32 %v343, %v977
        %v1058 = vadd.f32 %v344, %v982
        %v1059 = vadd.f32 %v345, %v985
        %v1060 = vadd.f32 %v346, %v990
        %v1061 = vadd.f32 %v347, %v993
        %v1062 = vadd.f32 %v348, %v998
        %v1063 = vadd.f32 %v349, %v1001
        %v1064 = vadd.f32 %v350, %v1006
        %v1065 = vadd.f32 %v351, %v1009
        %v1066 = vadd.f32 %v352, %v1014
        %v1067 = vadd.f32 %v353, %v1017
        %v1068 = vadd.f32 %v354, %v1022
        %v1069 = vadd.f32 %v355, %v1025
        %v1070 = vadd.f32 %v356, %v1030
        %v1071 = vadd.f32 %v357, %v1033
        %v1072 = vadd.f32 %v358, %v1038
        %v1073 = vadd.f32 %v359, %v1041
        %v1074 = vadd.f32 %v360, %v1046
        %v1075 = vadd.f32 %v361, %v1049
        %1076 = vst [vmem:[#allocation2] sm:$0xff] %v1052
        %1077 = vst [vmem:[#allocation2 + $0x8] sm:$0xff] %v1053
        %1078 = vst [vmem:[#allocation2 + $0x10] sm:$0xff] %v1054
        %1079 = vst [vmem:[#allocation2 + $0x18] sm:$0xff] %v1055
        %1080 = vst [vmem:[#allocation2 + $0x20] sm:$0xff] %v1056
        %1081 = vst [vmem:[#allocation2 + $0x28] sm:$0xff] %v1057
        %1082 = vst [vmem:[#allocation2 + $0x30] sm:$0xff] %v1058
        %1083 = vst [vmem:[#allocation2 + $0x38] sm:$0xff] %v1059
        %1084 = vst [vmem:[#allocation2 + $0x40] sm:$0xff] %v1060
        %1085 = vst [vmem:[#allocation2 + $0x48] sm:$0xff] %v1061
        %1086 = vst [vmem:[#allocation2 + $0x50] sm:$0xff] %v1062
        %1087 = vst [vmem:[#allocation2 + $0x58] sm:$0xff] %v1063
        %1088 = vst [vmem:[#allocation2 + $0x60] sm:$0xff] %v1064
        %1089 = vst [vmem:[#allocation2 + $0x68] sm:$0xff] %v1065
        %1090 = vst [vmem:[#allocation2 + $0x70] sm:$0xff] %v1066
        %1091 = vst [vmem:[#allocation2 + $0x78] sm:$0xff] %v1067
        %1092 = vst [vmem:[#allocation2 + $0x80] sm:$0xff] %v1068
        %1093 = vst [vmem:[#allocation2 + $0x88] sm:$0xff] %v1069
        %1094 = vst [vmem:[#allocation2 + $0x90] sm:$0xff] %v1070
        %1095 = vst [vmem:[#allocation2 + $0x98] sm:$0xff] %v1071
        %1096 = vst [vmem:[#allocation2 + $0xa0] sm:$0xff] %v1072
        %1097 = vst [vmem:[#allocation2 + $0xa8] sm:$0xff] %v1073
        %1098 = vst [vmem:[#allocation2 + $0xb0] sm:$0xff] %v1074
        %1099 = vst [vmem:[#allocation2 + $0xb8] sm:$0xff] %v1075
        %p1100 = scmp.eq.s32.totalorder %s18, 5
        // Predicated region
        $region59: #{feature_net.18} parent=49 // pred_check
          %p1101 = pneg %p1100
        $region60: #{feature_net.18} parent=49 // pred_check_branch
          %1103 = sbr.rel (%p1101) target = $region62
        $region61: #{feature_net.18} parent=49 // pred_region
          %v1104 = vld [vmem:[#allocation2] sm:$0xff]
          %v1105 = vld [vmem:[#allocation2 + $0x8] sm:$0xff]
          %v1106 = vld [vmem:[#allocation2 + $0x10] sm:$0xff]
          %v1107 = vld [vmem:[#allocation2 + $0x18] sm:$0xff]
          %v1108 = vld [vmem:[#allocation2 + $0x20] sm:$0xff]
          %v1109 = vld [vmem:[#allocation2 + $0x28] sm:$0xff]
          %v1110 = vld [vmem:[#allocation2 + $0x30] sm:$0xff]
          %v1111 = vld [vmem:[#allocation2 + $0x38] sm:$0xff]
          %v1112 = vld [vmem:[#allocation2 + $0x40] sm:$0xff]
          %v1113 = vld [vmem:[#allocation2 + $0x48] sm:$0xff]
          %v1114 = vld [vmem:[#allocation2 + $0x50] sm:$0xff]
          %v1115 = vld [vmem:[#allocation2 + $0x58] sm:$0xff]
          %v1116 = vld [vmem:[#allocation2 + $0x60] sm:$0xff]
          %v1117 = vld [vmem:[#allocation2 + $0x68] sm:$0xff]
          %v1118 = vld [vmem:[#allocation2 + $0x70] sm:$0xff]
          %v1119 = vld [vmem:[#allocation2 + $0x78] sm:$0xff]
          %v1120 = vld [vmem:[#allocation2 + $0x80] sm:$0xff]
          %v1121 = vld [vmem:[#allocation2 + $0x88] sm:$0xff]
          %v1122 = vld [vmem:[#allocation2 + $0x90] sm:$0xff]
          %v1123 = vld [vmem:[#allocation2 + $0x98] sm:$0xff]
          %v1124 = vld [vmem:[#allocation2 + $0xa0] sm:$0xff]
          %v1125 = vld [vmem:[#allocation2 + $0xa8] sm:$0xff]
          %v1126 = vld [vmem:[#allocation2 + $0xb0] sm:$0xff]
          %v1127 = vld [vmem:[#allocation2 + $0xb8] sm:$0xff]
          %1128 = vst [vmem:[%s307] sm:$0xff] %v1104
          %1129 = vst [vmem:[%s307 + $0x8] sm:$0xff] %v1105
          %1130 = vst [vmem:[%s307 + $0x10] sm:$0xff] %v1106
          %1131 = vst [vmem:[%s307 + $0x18] sm:$0xff] %v1107
          %1132 = vst [vmem:[%s307 + $0x20] sm:$0xff] %v1108
          %1133 = vst [vmem:[%s307 + $0x28] sm:$0xff] %v1109
          %1134 = vst [vmem:[%s307 + $0x30] sm:$0xff] %v1110
          %1135 = vst [vmem:[%s307 + $0x38] sm:$0xff] %v1111
          %1136 = vst [vmem:[%s307 + $0x40] sm:$0xff] %v1112
          %1137 = vst [vmem:[%s307 + $0x48] sm:$0xff] %v1113
          %1138 = vst [vmem:[%s307 + $0x50] sm:$0xff] %v1114
          %1139 = vst [vmem:[%s307 + $0x58] sm:$0xff] %v1115
          %1140 = vst [vmem:[%s307 + $0x60] sm:$0xff] %v1116
          %1141 = vst [vmem:[%s307 + $0x68] sm:$0xff] %v1117
          %1142 = vst [vmem:[%s307 + $0x70] sm:$0xff] %v1118
          %1143 = vst [vmem:[%s307 + $0x78] sm:$0xff] %v1119
          %1144 = vst [vmem:[%s307 + $0x80] sm:$0xff] %v1120
          %1145 = vst [vmem:[%s307 + $0x88] sm:$0xff] %v1121
          %1146 = vst [vmem:[%s307 + $0x90] sm:$0xff] %v1122
          %1147 = vst [vmem:[%s307 + $0x98] sm:$0xff] %v1123
          %1148 = vst [vmem:[%s307 + $0xa0] sm:$0xff] %v1124
          %1149 = vst [vmem:[%s307 + $0xa8] sm:$0xff] %v1125
          %1150 = vst [vmem:[%s307 + $0xb0] sm:$0xff] %v1126
          %1151 = vst [vmem:[%s307 + $0xb8] sm:$0xff] %v1127
        $region62: #{feature_net.18} parent=49 // pred_fallthru
          _
        %s1152 = smul.u32 24, %s17
        %p1153 = scmp.lt.s32.totalorder %s1152, 47
        %s1154 = scalar_select %p1153, %s1152, 47
        %s1155 = smul.addr %s1154, 8
        %s1156 = scalar_lea.vmem %s2, %s1155
        // Predicated region
        $region63: #{feature_net.18} parent=49 // pred_check
          %p1157 = pneg %p97
        $region64: #{feature_net.18} parent=49 // pred_check_branch
          %1159 = sbr.rel (%p1157) target = $region66
        $region65: #{feature_net.18} parent=49 // pred_region
          %s1160 = smul.u32 24, %s17
        $region66: #{feature_net.18} parent=49 // pred_fallthru
          _
      $region50: #{feature_net.18} parent=5 // pred_fallthru
        _
      %p1161 = scmp.le.s32.totalorder 2, %s8
      // Predicated region
      $region67: #{feature_net.18} parent=5 // pred_check
        %p1162 = pneg %p1161
      $region68: #{feature_net.18} parent=5 // pred_check_branch
        %1164 = sbr.rel (%p1162) target = $region70
      $region69: #{feature_net.18} parent=5 // pred_region
        %s1165 = ssub.s32 %s8, 2
        // Predicated region
        $region71: #{feature_net.18} parent=69 // pred_check
          %p1166 = pneg %p103
        $region72: #{feature_net.18} parent=69 // pred_check_branch
          %1168 = sbr.rel (%p1166) target = $region74
        $region73: #{feature_net.18} parent=69 // pred_region
          %s1169 = smul.u32 24, %s19
          %p1170 = scmp.lt.s32.totalorder %s1169, 47
          %s1171 = scalar_select %p1170, %s1169, 47
          %s1172 = smul.addr %s1171, 8
          %s1173 = scalar_lea.vmem %s2, %s1172
        $region74: #{feature_net.18} parent=69 // pred_fallthru
          _
      $region70: #{feature_net.18} parent=5 // pred_fallthru
        _
    $region6: #{feature_net.18} parent=1 // loop_footer
      %s12 = sadd.s32 1, %s8
    $region7: #{feature_net.18} parent=1 // loop_footer_branch
      %7 = sbr.rel target = $region3
    $region8: #{feature_net.18} parent=1 // loop_exit
      _

// kernel: feature_net.21
$region0: #{feature_net.21}
  #allocation0 [shape = 'u32[]', space=smem, size = 0x4, offset = 0x4, fixed_abs, tag = 'smem constant byte address 0x4 - core index']
  #allocation1 [shape = 'u32[144,128]{1,0:T(1,128)}', space=vmem, size = 0x12000, scoped, tag = 'internal scratch']
  #allocation2 [shape = 'f32[64,256]{1,0:T(8,128)}', space=vmem, size = 0x10000, scoped, tag = 'scratch operand']
  %s0 = inlined_call_operand.vmem [shape: bf16[64,2304], index: 0, kind: input, shape index: {}]
  %s1 = inlined_call_operand.vmem [shape: bf16[2304,256], index: 1, kind: input, shape index: {}]
  %s2 = inlined_call_operand.vmem [shape: f32[64,256], index: 2, kind: output, shape index: {}]
  %s3 = sld [smem:[#allocation0]]
  $region75: #{feature_net.21} parent=0
    _
  %s5 = ssub.s32 1, %s3
  %s6 = scalar_select 0, %s5, %s3
  $region1: #{feature_net.21} parent=0
    #allocation3 [shape = 'u8[98304]{0}', space=vmem, size = 0x18000, scoped, tag = 'input window, operand 0']
    loop: start=0, step=1, limit=8
    $region2: #{feature_net.21} parent=1 // loop_pre_header
      _
    $region3: #{feature_net.21} parent=1 // loop_header
      %s8 = sphi 0, %s12
      %p9 = scmp.ge.s32.totalorder %s8, 8
      %s15 = sphi 0, %s27
      %s16 = sphi 0, %s23
      %s17 = sphi 0, %s15
      %s18 = sphi 0, %s16
      %s19 = sphi 0, %s17
      %s20 = sphi 0, %s18
      %s32 = sphi 0, %s34
      %s35 = sphi 0, %s32
      %s36 = sphi 0, %s35
      %s52 = sphi 0, %s36
      %s58 = sphi 0, %s60
      %s61 = sphi 0, %s58
      %s62 = sphi 0, %s61
      %s78 = sphi 0, %s62
      %s84 = sphi 0, %s86
      %s87 = sphi 0, %s84
      %s88 = sphi 0, %s87
      %s104 = sphi 0, %s88
    $region4: #{feature_net.21} parent=1 // loop_header_branch
      %11 = sbr.rel (%p9) target = $region8
    $region5: #{feature_net.21} parent=1 // loop_body
      %s13 = ssub.s32 %s8, 1
      %s14 = ssub.s32 %s8, 2
      %s21 = sadd.s32 1, %s16
      %p22 = scmp.ge.s32.totalorder %s21, 6
      %s23 = scalar_select %p22, 0, %s21
      %s24 = sadd.s32 1, %s15
      %s25 = scalar_select %p22, %s24, %s15
      %p26 = scmp.ge.s32.totalorder %s25, 1
      %s27 = scalar_select %p26, 0, %s25
      %s28 = ssub.s32 %s15, %s27
      %s29 = ssub.s32 %s16, %s23
      %s30 = sor.u32 %s28, %s29
      %p31 = scmp.eq.s32.totalorder %s30, 0
      %s33 = sadd.s32 %s32, 1
      %s34 = scalar_select %p31, %s32, %s33
      %p37 = pneg %p31
      %p38 = scmp.eq.s32.totalorder %s8, 5
      %p39 = por %p37, %p38
      %p40 = scmp.ne.s32.totalorder %s32, %s35
      %p41 = scmp.eq.s32.totalorder %s8, 0
      %p42 = por %p40, %p41
      %p43 = scmp.ne.s32.totalorder %s32, %s35
      %p44 = scmp.eq.s32.totalorder %s13, 5
      %p45 = por %p43, %p44
      %p46 = scmp.ne.s32.totalorder %s35, %s36
      %p47 = scmp.eq.s32.totalorder %s13, 0
      %p48 = por %p46, %p47
      %p49 = scmp.ne.s32.totalorder %s35, %s36
      %p50 = scmp.eq.s32.totalorder %s14, 5
      %p51 = por %p49, %p50
      %p53 = scmp.ne.s32.totalorder %s36, %s52
      %p54 = scmp.eq.s32.totalorder %s14, 0
      %p55 = por %p53, %p54
      %s56 = ssub.s32 %s16, %s23
      %p57 = scmp.eq.s32.totalorder %s56, 0
      %s59 = sadd.s32 %s58, 1
      %s60 = scalar_select %p57, %s58, %s59
      %p63 = pneg %p57
      %p64 = scmp.eq.s32.totalorder %s8, 5
      %p65 = por %p63, %p64
      %p66 = scmp.ne.s32.totalorder %s58, %s61
      %p67 = scmp.eq.s32.totalorder %s8, 0
      %p68 = por %p66, %p67
      %p69 = scmp.ne.s32.totalorder %s58, %s61
      %p70 = scmp.eq.s32.totalorder %s13, 5
      %p71 = por %p69, %p70
      %p72 = scmp.ne.s32.totalorder %s61, %s62
      %p73 = scmp.eq.s32.totalorder %s13, 0
      %p74 = por %p72, %p73
      %p75 = scmp.ne.s32.totalorder %s61, %s62
      %p76 = scmp.eq.s32.totalorder %s14, 5
      %p77 = por %p75, %p76
      %p79 = scmp.ne.s32.totalorder %s62, %s78
      %p80 = scmp.eq.s32.totalorder %s14, 0
      %p81 = por %p79, %p80
      %s82 = ssub.s32 %s15, %s27
      %p83 = scmp.eq.s32.totalorder %s82, 0
      %s85 = sadd.s32 %s84, 1
      %s86 = scalar_select %p83, %s84, %s85
      %p89 = pneg %p83
      %p90 = scmp.eq.s32.totalorder %s8, 5
      %p91 = por %p89, %p90
      %p92 = scmp.ne.s32.totalorder %s84, %s87
      %p93 = scmp.eq.s32.totalorder %s8, 0
      %p94 = por %p92, %p93
      %p95 = scmp.ne.s32.totalorder %s84, %s87
      %p96 = scmp.eq.s32.totalorder %s13, 5
      %p97 = por %p95, %p96
      %p98 = scmp.ne.s32.totalorder %s87, %s88
      %p99 = scmp.eq.s32.totalorder %s13, 0
      %p100 = por %p98, %p99
      %p101 = scmp.ne.s32.totalorder %s87, %s88
      %p102 = scmp.eq.s32.totalorder %s14, 5
      %p103 = por %p101, %p102
      %p105 = scmp.ne.s32.totalorder %s88, %s104
      %p106 = scmp.eq.s32.totalorder %s14, 0
      %p107 = por %p105, %p106
      %p108 = scmp.le.s32.totalorder 1, %s8
      %p109 = scmp.lt.s32.totalorder %s8, 7
      %p110 = pnand %p108, %p109
      %p111 = pneg %p110
      // Predicated region
      $region9: #{feature_net.21} parent=5 // pred_check
        _
      $region10: #{feature_net.21} parent=5 // pred_check_branch
        %113 = sbr.rel (%p110) target = $region12
      $region11: #{feature_net.21} parent=5 // pred_region
        %s114 = ssub.s32 %s8, 1
      $region12: #{feature_net.21} parent=5 // pred_fallthru
        _
      %p115 = scmp.lt.s32.totalorder %s8, 6
      // Predicated region
      $region13: #{feature_net.21} parent=5 // pred_check
        %p116 = pneg %p115
      $region14: #{feature_net.21} parent=5 // pred_check_branch
        %118 = sbr.rel (%p116) target = $region16
      $region15: #{feature_net.21} parent=5 // pred_region
        // Predicated region
        $region17: #{feature_net.21} parent=15 // pred_check
          %p119 = pneg %p42
        $region18: #{feature_net.21} parent=15 // pred_check_branch
          %121 = sbr.rel (%p119) target = $region20
        $region19: #{feature_net.21} parent=15 // pred_region
          %s122 = sand.u32 %s32, 1
          %s123 = sand.u32 %s32, 1
          %s124 = smul.addr %s123, 96
          %s125 = scalar_lea.vmem [#allocation3], %s124
          %s126 = smul.u32 8, %s15
          %s127 = smul.u32 3, %s16
          %s128 = smul.addr %s126, 18
          %s129 = sadd.s32 %s127, %s128
          %s130 = smul.addr %s129, 4
          %s131 = scalar_lea.vmem %s0, %s130
          // Predicated region
          $region21: #{feature_net.21} parent=19 // pred_check
            _
          $region22: #{feature_net.21} parent=19 // pred_check_branch
            %133 = sbr.rel (0) target = $region24
          $region23: #{feature_net.21} parent=19 // pred_region
            // Predicated region
            $region25: #{feature_net.21} parent=23 // pred_check
              _
            $region26: #{feature_net.21} parent=23 // pred_check_branch
              %135 = sbr.rel (0) target = $region28
            $region27: #{feature_net.21} parent=23 // pred_region
              %s136 = scalar_lea.vmem %s131, 8
              %s137 = scalar_lea.vmem %s125, 8 [#allocation3]
              loop: start=0, step=1, limit=1
              $region29: #{feature_net.21} parent=27 // loop_pre_header
                _
              $region30: #{feature_net.21} parent=27 // loop_header
                %s139 = sphi 0, %s143
                %p140 = scmp.ge.s32.totalorder %s139, 1
                %s144 = sphi %s131, %s131
                %s145 = sphi %s125, %s125
              $region31: #{feature_net.21} parent=27 // loop_header_branch
                %142 = sbr.rel (%p140) target = $region35
              $region32: #{feature_net.21} parent=27 // loop_body
                %v146 = vld [vmem:[%s144] sm:$0xff]
                %147 = vst [vmem:[%s145] sm:$0xff] %v146
                %v148 = vld [vmem:[%s144 + $0x48] sm:$0xff]
                %149 = vst [vmem:[%s145 + $0xc] sm:$0xff] %v148
                %v150 = vld [vmem:[%s144 + $0x90] sm:$0xff]
                %151 = vst [vmem:[%s145 + $0x18] sm:$0xff] %v150
                %v152 = vld [vmem:[%s144 + $0xd8] sm:$0xff]
                %153 = vst [vmem:[%s145 + $0x24] sm:$0xff] %v152
                %v154 = vld [vmem:[%s144 + $0x120] sm:$0xff]
                %155 = vst [vmem:[%s145 + $0x30] sm:$0xff] %v154
                %v156 = vld [vmem:[%s144 + $0x168] sm:$0xff]
                %157 = vst [vmem:[%s145 + $0x3c] sm:$0xff] %v156
                %v158 = vld [vmem:[%s144 + $0x1b0] sm:$0xff]
                %159 = vst [vmem:[%s145 + $0x48] sm:$0xff] %v158
                %v160 = vld [vmem:[%s144 + $0x1f8] sm:$0xff]
                %161 = vst [vmem:[%s145 + $0x54] sm:$0xff] %v160
              $region33: #{feature_net.21} parent=27 // loop_footer
                %s143 = sadd.s32 1, %s139
              $region34: #{feature_net.21} parent=27 // loop_footer_branch
                %138 = sbr.rel target = $region30
              $region35: #{feature_net.21} parent=27 // loop_exit
                _
              loop: start=0, step=1, limit=1
              $region36: #{feature_net.21} parent=27 // loop_pre_header
                _
              $region37: #{feature_net.21} parent=27 // loop_header
                %s164 = sphi 0, %s168
                %p165 = scmp.ge.s32.totalorder %s164, 1
                %s169 = sphi %s136, %s136
                %s170 = sphi %s137, %s137
              $region38: #{feature_net.21} parent=27 // loop_header_branch
                %167 = sbr.rel (%p165) target = $region42
              $region39: #{feature_net.21} parent=27 // loop_body
                %v171 = vld [vmem:[%s169] sm:$0xf]
                %172 = vst [vmem:[%s170] sm:$0xf] %v171
                %v173 = vld [vmem:[%s169 + $0x48] sm:$0xf]
                %174 = vst [vmem:[%s170 + $0xc] sm:$0xf] %v173
                %v175 = vld [vmem:[%s169 + $0x90] sm:$0xf]
                %176 = vst [vmem:[%s170 + $0x18] sm:$0xf] %v175
                %v177 = vld [vmem:[%s169 + $0xd8] sm:$0xf]
                %178 = vst [vmem:[%s170 + $0x24] sm:$0xf] %v177
                %v179 = vld [vmem:[%s169 + $0x120] sm:$0xf]
                %180 = vst [vmem:[%s170 + $0x30] sm:$0xf] %v179
                %v181 = vld [vmem:[%s169 + $0x168] sm:$0xf]
                %182 = vst [vmem:[%s170 + $0x3c] sm:$0xf] %v181
                %v183 = vld [vmem:[%s169 + $0x1b0] sm:$0xf]
                %184 = vst [vmem:[%s170 + $0x48] sm:$0xf] %v183
                %v185 = vld [vmem:[%s169 + $0x1f8] sm:$0xf]
                %186 = vst [vmem:[%s170 + $0x54] sm:$0xf] %v185
              $region40: #{feature_net.21} parent=27 // loop_footer
                %s168 = sadd.s32 1, %s164
              $region41: #{feature_net.21} parent=27 // loop_footer_branch
                %163 = sbr.rel target = $region37
              $region42: #{feature_net.21} parent=27 // loop_exit
                _
            $region28: #{feature_net.21} parent=23 // pred_fallthru
              _
          $region24: #{feature_net.21} parent=19 // pred_fallthru
            _
          %187 = vnop
        $region20: #{feature_net.21} parent=15 // pred_fallthru
          _
        // Predicated region
        $region43: #{feature_net.21} parent=15 // pred_check
          %p188 = pneg %p68
        $region44: #{feature_net.21} parent=15 // pred_check_branch
          %190 = sbr.rel (%p188) target = $region46
        $region45: #{feature_net.21} parent=15 // pred_region
          %s191 = smul.u32 48, %s16
          %p192 = scmp.lt.s32.totalorder %s191, 287
          %s193 = scalar_select %p192, %s191, 287
          %s194 = smul.addr %s193, 2
          %s195 = smul.addr %s194, 4
          %s196 = scalar_lea.vmem %s1, %s195
          %s197 = smul.u32 48, %s16
        $region46: #{feature_net.21} parent=15 // pred_fallthru
          _
      $region16: #{feature_net.21} parent=5 // pred_fallthru
        _
      %p198 = scmp.le.s32.totalorder 1, %s8
      %p199 = scmp.lt.s32.totalorder %s8, 7
      %p200 = pnand %p198, %p199
      %p201 = pneg %p200
      // Predicated region
      $region47: #{feature_net.21} parent=5 // pred_check
        _
      $region48: #{feature_net.21} parent=5 // pred_check_branch
        %203 = sbr.rel (%p200) target = $region50
      $region49: #{feature_net.21} parent=5 // pred_region
        %s204 = ssub.s32 %s8, 1
        %s205 = sand.u32 %s35, 1
        %s206 = sand.u32 %s35, 1
        %s207 = smul.addr %s206, 96
        %s208 = scalar_lea.vmem [#allocation3], %s207
        // Predicated region
        $region51: #{feature_net.21} parent=49 // pred_check
          %p209 = pneg %p48
        $region52: #{feature_net.21} parent=49 // pred_check_branch
          %211 = sbr.rel (%p209) target = $region54
        $region53: #{feature_net.21} parent=49 // pred_region
          _
        $region54: #{feature_net.21} parent=49 // pred_fallthru
          _
        %s212 = sand.u32 %s35, 1
        %s213 = sand.u32 %s35, 1
        %s214 = smul.addr %s213, 96
        %s215 = scalar_lea.vmem [#allocation3], %s214
        %p216 = pneg %p48
        %p217 = pneg %p45
        %s218 = smul.u32 48, %s18
        %p219 = scmp.lt.s32.totalorder %s218, 287
        %s220 = scalar_select %p219, %s218, 287
        %s221 = smul.addr %s220, 2
        %s222 = smul.addr %s221, 4
        %s223 = scalar_lea.vmem %s1, %s222
        %p224 = pneg %p74
        %p225 = pneg %p71
        %p226 = pneg %p100
        %p227 = pneg %p97
        %s228 = smul.u32 8, %s17
        %p229 = scmp.lt.s32.totalorder %s228, 7
        %s230 = scalar_select %p229, %s228, 7
        %s231 = smul.addr %s230, 2
        %s232 = smul.addr %s231, 8
        %s233 = scalar_lea.vmem %s2, %s232
        %s234 = smul.u32 8, %s17
        %s235 = smul.u32 3, %s18
        %s236 = smul.u32 48, %s18
        %p237 = scmp.lt.s32.totalorder %s236, 287
        %s238 = scalar_select %p237, %s236, 287
        %s239 = smul.addr %s238, 2
        %s240 = smul.addr %s239, 4
        %s241 = scalar_lea.vmem %s1, %s240
        %s242 = smul.u32 48, %s18
        %s243 = smul.u32 8, %s17
        %p244 = scmp.lt.s32.totalorder %s243, 7
        %s245 = scalar_select %p244, %s243, 7
        %s246 = smul.addr %s245, 2
        %s247 = smul.addr %s246, 8
        %s248 = scalar_lea.vmem %s2, %s247
        %s249 = smul.u32 8, %s17
        %p251 = scmp.eq.s32.totalorder %s18, 0
        // Predicated region
        $region55: #{feature_net.21} parent=49 // pred_check
          %p252 = pneg %p251
        $region56: #{feature_net.21} parent=49 // pred_check_branch
          %254 = sbr.rel (%p252) target = $region58
        $region57: #{feature_net.21} parent=49 // pred_region
          %255 = vst [vmem:[#allocation2] sm:$0xff] 0.0
          %256 = vst [vmem:[#allocation2 + $0x8] sm:$0xff] 0.0
          %257 = vst [vmem:[#allocation2 + $0x10] sm:$0xff] 0.0
          %258 = vst [vmem:[#allocation2 + $0x18] sm:$0xff] 0.0
          %259 = vst [vmem:[#allocation2 + $0x20] sm:$0xff] 0.0
          %260 = vst [vmem:[#allocation2 + $0x28] sm:$0xff] 0.0
          %261 = vst [vmem:[#allocation2 + $0x30] sm:$0xff] 0.0
          %262 = vst [vmem:[#allocation2 + $0x38] sm:$0xff] 0.0
          %263 = vst [vmem:[#allocation2 + $0x40] sm:$0xff] 0.0
          %264 = vst [vmem:[#allocation2 + $0x48] sm:$0xff] 0.0
          %265 = vst [vmem:[#allocation2 + $0x50] sm:$0xff] 0.0
          %266 = vst [vmem:[#allocation2 + $0x58] sm:$0xff] 0.0
          %267 = vst [vmem:[#allocation2 + $0x60] sm:$0xff] 0.0
          %268 = vst [vmem:[#allocation2 + $0x68] sm:$0xff] 0.0
          %269 = vst [vmem:[#allocation2 + $0x70] sm:$0xff] 0.0
          %270 = vst [vmem:[#allocation2 + $0x78] sm:$0xff] 0.0
        $region58: #{feature_net.21} parent=49 // pred_fallthru
          _
        %v271 = vld [vmem:[#allocation2] sm:$0xff]
        %v272 = vld [vmem:[#allocation2 + $0x8] sm:$0xff]
        %v273 = vld [vmem:[#allocation2 + $0x10] sm:$0xff]
        %v274 = vld [vmem:[#allocation2 + $0x18] sm:$0xff]
        %v275 = vld [vmem:[#allocation2 + $0x20] sm:$0xff]
        %v276 = vld [vmem:[#allocation2 + $0x28] sm:$0xff]
        %v277 = vld [vmem:[#allocation2 + $0x30] sm:$0xff]
        %v278 = vld [vmem:[#allocation2 + $0x38] sm:$0xff]
        %v279 = vld [vmem:[#allocation2 + $0x40] sm:$0xff]
        %v280 = vld [vmem:[#allocation2 + $0x48] sm:$0xff]
        %v281 = vld [vmem:[#allocation2 + $0x50] sm:$0xff]
        %v282 = vld [vmem:[#allocation2 + $0x58] sm:$0xff]
        %v283 = vld [vmem:[#allocation2 + $0x60] sm:$0xff]
        %v284 = vld [vmem:[#allocation2 + $0x68] sm:$0xff]
        %v285 = vld [vmem:[#allocation2 + $0x70] sm:$0xff]
        %v286 = vld [vmem:[#allocation2 + $0x78] sm:$0xff]
        %v287 = vld [vmem:[%s208] sm:$0xff]
        %v288 = vld [vmem:[%s208 + $0x8] sm:$0xf]
        %v289 = vld [vmem:[%s208 + $0xc] sm:$0xff]
        %v290 = vld [vmem:[%s208 + $0x14] sm:$0xf]
        %v291 = vld [vmem:[%s208 + $0x18] sm:$0xff]
        %v292 = vld [vmem:[%s208 + $0x20] sm:$0xf]
        %v293 = vld [vmem:[%s208 + $0x24] sm:$0xff]
        %v294 = vld [vmem:[%s208 + $0x2c] sm:$0xf]
        %v295 = vld [vmem:[%s208 + $0x30] sm:$0xff]
        %v296 = vld [vmem:[%s208 + $0x38] sm:$0xf]
        %v297 = vld [vmem:[%s208 + $0x3c] sm:$0xff]
        %v298 = vld [vmem:[%s208 + $0x44] sm:$0xf]
        %v299 = vld [vmem:[%s208 + $0x48] sm:$0xff]
        %v300 = vld [vmem:[%s208 + $0x50] sm:$0xf]
        %v301 = vld [vmem:[%s208 + $0x54] sm:$0xff]
        %v302 = vld [vmem:[%s208 + $0x5c] sm:$0xf]
        %v303 = vld [vmem:[%s241] sm:$0xff]
        %v304 = vld [vmem:[%s241 + $0x8] sm:$0xff]
        %v305 = vld [vmem:[%s241 + $0x10] sm:$0xff]
        %v306 = vld [vmem:[%s241 + $0x18] sm:$0xff]
        %v307 = vld [vmem:[%s241 + $0x20] sm:$0xff]
        %v308 = vld [vmem:[%s241 + $0x28] sm:$0xff]
        %v309 = vld [vmem:[%s241 + $0x30] sm:$0xff]
        %v310 = vld [vmem:[%s241 + $0x38] sm:$0xff]
        %v311 = vld [vmem:[%s241 + $0x40] sm:$0xff]
        %v312 = vld [vmem:[%s241 + $0x48] sm:$0xff]
        %v313 = vld [vmem:[%s241 + $0x50] sm:$0xff]
        %v314 = vld [vmem:[%s241 + $0x58] sm:$0xff]
        %v315 = vld [vmem:[%s241 + $0x60] sm:$0xff]
        %v316 = vld [vmem:[%s241 + $0x68] sm:$0xff]
        %v317 = vld [vmem:[%s241 + $0x70] sm:$0xff]
        %v318 = vld [vmem:[%s241 + $0x78] sm:$0xff]
        %v319 = vld [vmem:[%s241 + $0x80] sm:$0xff]
        %v320 = vld [vmem:[%s241 + $0x88] sm:$0xff]
        %v321 = vld [vmem:[%s241 + $0x90] sm:$0xff]
        %v322 = vld [vmem:[%s241 + $0x98] sm:$0xff]
        %v323 = vld [vmem:[%s241 + $0xa0] sm:$0xff]
        %v324 = vld [vmem:[%s241 + $0xa8] sm:$0xff]
        %v325 = vld [vmem:[%s241 + $0xb0] sm:$0xff]
        %v326 = vld [vmem:[%s241 + $0xb8] sm:$0xff]
        %v327 = vld [vmem:[%s241 + $0xc0] sm:$0xff]
        %v328 = vld [vmem:[%s241 + $0xc8] sm:$0xff]
        %v329 = vld [vmem:[%s241 + $0xd0] sm:$0xff]
        %v330 = vld [vmem:[%s241 + $0xd8] sm:$0xff]
        %v331 = vld [vmem:[%s241 + $0xe0] sm:$0xff]
        %v332 = vld [vmem:[%s241 + $0xe8] sm:$0xff]
        %v333 = vld [vmem:[%s241 + $0xf0] sm:$0xff]
        %v334 = vld [vmem:[%s241 + $0xf8] sm:$0xff]
        %v335 = vld [vmem:[%s241 + $0x100] sm:$0xff]
        %v336 = vld [vmem:[%s241 + $0x108] sm:$0xff]
        %v337 = vld [vmem:[%s241 + $0x110] sm:$0xff]
        %v338 = vld [vmem:[%s241 + $0x118] sm:$0xff]
        %v339 = vld [vmem:[%s241 + $0x120] sm:$0xff]
        %v340 = vld [vmem:[%s241 + $0x128] sm:$0xff]
        %v341 = vld [vmem:[%s241 + $0x130] sm:$0xff]
        %v342 = vld [vmem:[%s241 + $0x138] sm:$0xff]
        %v343 = vld [vmem:[%s241 + $0x140] sm:$0xff]
        %v344 = vld [vmem:[%s241 + $0x148] sm:$0xff]
        %v345 = vld [vmem:[%s241 + $0x150] sm:$0xff]
        %v346 = vld [vmem:[%s241 + $0x158] sm:$0xff]
        %v347 = vld [vmem:[%s241 + $0x160] sm:$0xff]
        %v348 = vld [vmem:[%s241 + $0x168] sm:$0xff]
        %v349 = vld [vmem:[%s241 + $0x170] sm:$0xff]
        %v350 = vld [vmem:[%s241 + $0x178] sm:$0xff]
        %v367 = vunpack.c.l.b16 %v287
        %v368 = vunpack.c.h.b16 %v287
        %v369 = vunpack.c.l.b16 %v288
        %v370 = vunpack.c.l.b16 %v289
        %v371 = vunpack.c.h.b16 %v289
        %v372 = vunpack.c.l.b16 %v290
        %v373 = vunpack.c.l.b16 %v291
        %v374 = vunpack.c.h.b16 %v291
        %v375 = vunpack.c.l.b16 %v292
        %v376 = vunpack.c.l.b16 %v293
        %v377 = vunpack.c.h.b16 %v293
        %v378 = vunpack.c.l.b16 %v294
        %v379 = vunpack.c.l.b16 %v295
        %v380 = vunpack.c.h.b16 %v295
        %v381 = vunpack.c.l.b16 %v296
        %v382 = vunpack.c.l.b16 %v297
        %v383 = vunpack.c.h.b16 %v297
        %v384 = vunpack.c.l.b16 %v298
        %v385 = vunpack.c.l.b16 %v299
        %v386 = vunpack.c.h.b16 %v299
        %v387 = vunpack.c.l.b16 %v300
        %v388 = vunpack.c.l.b16 %v301
        %v389 = vunpack.c.h.b16 %v301
        %v390 = vunpack.c.l.b16 %v302
        %v391 = vpack.c.b16 %v370, %v367
        %v392 = vpack.c.b16 %v371, %v368
        %v393 = vpack.c.b16 %v372, %v369
        %v394 = vpack.c.b16 %v376, %v373
        %v395 = vpack.c.b16 %v377, %v374
        %v396 = vpack.c.b16 %v378, %v375
        %v397 = vpack.c.b16 %v382, %v379
        %v398 = vpack.c.b16 %v383, %v380
        %v399 = vpack.c.b16 %v384, %v381
        %v400 = vpack.c.b16 %v388, %v385
        %v401 = vpack.c.b16 %v389, %v386
        %v402 = vpack.c.b16 %v390, %v387
        %v463 = vunpack.c.l.b16 %v303
        %v464 = vunpack.c.h.b16 %v303
        %v465 = vunpack.c.l.b16 %v304
        %v466 = vunpack.c.h.b16 %v304
        %v467 = vunpack.c.l.b16 %v305
        %v468 = vunpack.c.h.b16 %v305
        %v469 = vunpack.c.l.b16 %v306
        %v470 = vunpack.c.h.b16 %v306
        %v471 = vunpack.c.l.b16 %v307
        %v472 = vunpack.c.h.b16 %v307
        %v473 = vunpack.c.l.b16 %v308
        %v474 = vunpack.c.h.b16 %v308
        %v475 = vunpack.c.l.b16 %v309
        %v476 = vunpack.c.h.b16 %v309
        %v477 = vunpack.c.l.b16 %v310
        %v478 = vunpack.c.h.b16 %v310
        %v479 = vunpack.c.l.b16 %v311
        %v480 = vunpack.c.h.b16 %v311
        %v481 = vunpack.c.l.b16 %v312
        %v482 = vunpack.c.h.b16 %v312
        %v483 = vunpack.c.l.b16 %v313
        %v484 = vunpack.c.h.b16 %v313
        %v485 = vunpack.c.l.b16 %v314
        %v486 = vunpack.c.h.b16 %v314
        %v487 = vunpack.c.l.b16 %v315
        %v488 = vunpack.c.h.b16 %v315
        %v489 = vunpack.c.l.b16 %v316
        %v490 = vunpack.c.h.b16 %v316
        %v491 = vunpack.c.l.b16 %v317
        %v492 = vunpack.c.h.b16 %v317
        %v493 = vunpack.c.l.b16 %v318
        %v494 = vunpack.c.h.b16 %v318
        %v495 = vunpack.c.l.b16 %v319
        %v496 = vunpack.c.h.b16 %v319
        %v497 = vunpack.c.l.b16 %v320
        %v498 = vunpack.c.h.b16 %v320
        %v499 = vunpack.c.l.b16 %v321
        %v500 = vunpack.c.h.b16 %v321
        %v501 = vunpack.c.l.b16 %v322
        %v502 = vunpack.c.h.b16 %v322
        %v503 = vunpack.c.l.b16 %v323
        %v504 = vunpack.c.h.b16 %v323
        %v505 = vunpack.c.l.b16 %v324
        %v506 = vunpack.c.h.b16 %v324
        %v507 = vunpack.c.l.b16 %v325
        %v508 = vunpack.c.h.b16 %v325
        %v509 = vunpack.c.l.b16 %v326
        %v510 = vunpack.c.h.b16 %v326
        %v511 = vunpack.c.l.b16 %v327
        %v512 = vunpack.c.h.b16 %v327
        %v513 = vunpack.c.l.b16 %v328
        %v514 = vunpack.c.h.b16 %v328
        %v515 = vunpack.c.l.b16 %v329
        %v516 = vunpack.c.h.b16 %v329
        %v517 = vunpack.c.l.b16 %v330
        %v518 = vunpack.c.h.b16 %v330
        %v519 = vunpack.c.l.b16 %v331
        %v520 = vunpack.c.h.b16 %v331
        %v521 = vunpack.c.l.b16 %v332
        %v522 = vunpack.c.h.b16 %v332
        %v523 = vunpack.c.l.b16 %v333
        %v524 = vunpack.c.h.b16 %v333
        %v525 = vunpack.c.l.b16 %v334
        %v526 = vunpack.c.h.b16 %v334
        %v527 = vunpack.c.l.b16 %v335
        %v528 = vunpack.c.h.b16 %v335
        %v529 = vunpack.c.l.b16 %v336
        %v530 = vunpack.c.h.b16 %v336
        %v531 = vunpack.c.l.b16 %v337
        %v532 = vunpack.c.h.b16 %v337
        %v533 = vunpack.c.l.b16 %v338
        %v534 = vunpack.c.h.b16 %v338
        %v535 = vunpack.c.l.b16 %v339
        %v536 = vunpack.c.h.b16 %v339
        %v537 = vunpack.c.l.b16 %v340
        %v538 = vunpack.c.h.b16 %v340
        %v539 = vunpack.c.l.b16 %v341
        %v540 = vunpack.c.h.b16 %v341
        %v541 = vunpack.c.l.b16 %v342
        %v542 = vunpack.c.h.b16 %v342
        %v543 = vunpack.c.l.b16 %v343
        %v544 = vunpack.c.h.b16 %v343
        %v545 = vunpack.c.l.b16 %v344
        %v546 = vunpack.c.h.b16 %v344
        %v547 = vunpack.c.l.b16 %v345
        %v548 = vunpack.c.h.b16 %v345
        %v549 = vunpack.c.l.b16 %v346
        %v550 = vunpack.c.h.b16 %v346
        %v551 = vunpack.c.l.b16 %v347
        %v552 = vunpack.c.h.b16 %v347
        %v553 = vunpack.c.l.b16 %v348
        %v554 = vunpack.c.h.b16 %v348
        %v555 = vunpack.c.l.b16 %v349
        %v556 = vunpack.c.h.b16 %v349
        %v557 = vunpack.c.l.b16 %v350
        %v558 = vunpack.c.h.b16 %v350
        %v559 = vpack.c.b16 %v465, %v463
        %v560 = vpack.c.b16 %v466, %v464
        %v561 = vpack.c.b16 %v469, %v467
        %v562 = vpack.c.b16 %v470, %v468
        %v563 = vpack.c.b16 %v473, %v471
        %v564 = vpack.c.b16 %v474, %v472
        %v565 = vpack.c.b16 %v477, %v475
        %v566 = vpack.c.b16 %v478, %v476
        %v567 = vpack.c.b16 %v481, %v479
        %v568 = vpack.c.b16 %v482, %v480
        %v569 = vpack.c.b16 %v485, %v483
        %v570 = vpack.c.b16 %v486, %v484
        %v571 = vpack.c.b16 %v489, %v487
        %v572 = vpack.c.b16 %v490, %v488
        %v573 = vpack.c.b16 %v493, %v491
        %v574 = vpack.c.b16 %v494, %v492
        %v575 = vpack.c.b16 %v497, %v495
        %v576 = vpack.c.b16 %v498, %v496
        %v577 = vpack.c.b16 %v501, %v499
        %v578 = vpack.c.b16 %v502, %v500
        %v579 = vpack.c.b16 %v505, %v503
        %v580 = vpack.c.b16 %v506, %v504
        %v581 = vpack.c.b16 %v509, %v507
        %v582 = vpack.c.b16 %v510, %v508
        %v583 = vpack.c.b16 %v513, %v511
        %v584 = vpack.c.b16 %v514, %v512
        %v585 = vpack.c.b16 %v517, %v515
        %v586 = vpack.c.b16 %v518, %v516
        %v587 = vpack.c.b16 %v521, %v519
        %v588 = vpack.c.b16 %v522, %v520
        %v589 = vpack.c.b16 %v525, %v523
        %v590 = vpack.c.b16 %v526, %v524
        %v591 = vpack.c.b16 %v529, %v527
        %v592 = vpack.c.b16 %v530, %v528
        %v593 = vpack.c.b16 %v533, %v531
        %v594 = vpack.c.b16 %v534, %v532
        %v595 = vpack.c.b16 %v537, %v535
        %v596 = vpack.c.b16 %v538, %v536
        %v597 = vpack.c.b16 %v541, %v539
        %v598 = vpack.c.b16 %v542, %v540
        %v599 = vpack.c.b16 %v545, %v543
        %v600 = vpack.c.b16 %v546, %v544
        %v601 = vpack.c.b16 %v549, %v547
        %v602 = vpack.c.b16 %v550, %v548
        %v603 = vpack.c.b16 %v553, %v551
        %v604 = vpack.c.b16 %v554, %v552
        %v605 = vpack.c.b16 %v557, %v555
        %v606 = vpack.c.b16 %v558, %v556
        %655 = vmatprep.subr.bf16.mxu0 %v560
        %656 = vmatpush1.bf16.msra.mxu0 %v559
        %657 = vmatprep.subr.bf16.mxu0 %v562
        %658 = vmatpush1.bf16.msra.mxu0 %v561
        %659 = vmatprep.subr.bf16.mxu0 %v564
        %660 = vmatpush1.bf16.msra.mxu0 %v563
        %661 = vmatprep.subr.bf16.mxu0 %v566
        %662 = vmatpush1.bf16.msra.mxu0 %v565
        %663 = vmatprep.subr.bf16.mxu0 %v568
        %664 = vmatpush1.bf16.msra.mxu0 %v567
        %665 = vmatprep.subr.bf16.mxu0 %v570
        %666 = vmatpush1.bf16.msra.mxu0 %v569
        %667 = vmatprep.subr.bf16.mxu0 %v572
        %668 = vmatpush1.bf16.msra.mxu0 %v571
        %669 = vmatprep.subr.bf16.mxu0 %v574
        %670 = vmatpush1.bf16.msra.mxu0 %v573
        %671 = vmatprep.subr.bf16.mxu0 %v576
        %672 = vmatpush1.bf16.msra.mxu0 %v575
        %673 = vmatprep.subr.bf16.mxu0 %v578
        %674 = vmatpush1.bf16.msra.mxu0 %v577
        %675 = vmatprep.subr.bf16.mxu0 %v580
        %676 = vmatpush1.bf16.msra.mxu0 %v579
        %677 = vmatprep.subr.bf16.mxu0 %v582
        %678 = vmatpush1.bf16.msra.mxu0 %v581
        %679 = vmatprep.subr.bf16.mxu0 %v584
        %680 = vmatpush1.bf16.msra.mxu0 %v583
        %681 = vmatprep.subr.bf16.mxu0 %v586
        %682 = vmatpush1.bf16.msra.mxu0 %v585
        %683 = vmatprep.subr.bf16.mxu0 %v588
        %684 = vmatpush1.bf16.msra.mxu0 %v587
        %685 = vmatprep.subr.bf16.mxu0 %v590
        %686 = vmatpush1.bf16.msra.mxu0 %v589
        %687 = vmatprep.mubr.bf16.mxu0 %v392
        %688 = vmatmul.mubr.bf16.gmra.mrb[0].mxu0 %v391
        %v689 = vpop.f32.mrb[0].mxu0
        %v690 = vadd.f32 0.0, %v689
        %v691 = vpop.f32.mrb[0].mxu0
        %v692 = vadd.f32 0.0, %v691
        %v693 = vpop.f32.mrb[0].mxu0
        %v694 = vadd.f32 0.0, %v693
        %v695 = vpop.f32.mrb[0].mxu0
        %v696 = vadd.f32 0.0, %v695
        %697 = vmatprep.mubr.bf16.mxu0 %v395
        %698 = vmatmul.mubr.bf16.gmra.mrb[0].mxu0 %v394
        %v699 = vpop.f32.mrb[0].mxu0
        %v700 = vadd.f32 0.0, %v699
        %v701 = vpop.f32.mrb[0].mxu0
        %v702 = vadd.f32 0.0, %v701
        %v703 = vpop.f32.mrb[0].mxu0
        %v704 = vadd.f32 0.0, %v703
        %v705 = vpop.f32.mrb[0].mxu0
        %v706 = vadd.f32 0.0, %v705
        %707 = vmatprep.mubr.bf16.mxu0 %v398
        %708 = vmatmul.mubr.bf16.gmra.mrb[0].mxu0 %v397
        %v709 = vpop.f32.mrb[0].mxu0
        %v710 = vadd.f32 0.0, %v709
        %v711 = vpop.f32.mrb[0].mxu0
        %v712 = vadd.f32 0.0, %v711
        %v713 = vpop.f32.mrb[0].mxu0
        %v714 = vadd.f32 0.0, %v713
        %v715 = vpop.f32.mrb[0].mxu0
        %v716 = vadd.f32 0.0, %v715
        %717 = vmatprep.mubr.bf16.mxu0 %v401
        %718 = vmatmul.mubr.bf16.gmra.mrb[0].mxu0 %v400
        %v719 = vpop.f32.mrb[0].mxu0
        %v720 = vadd.f32 0.0, %v719
        %v721 = vpop.f32.mrb[0].mxu0
        %v722 = vadd.f32 0.0, %v721
        %v723 = vpop.f32.mrb[0].mxu0
        %v724 = vadd.f32 0.0, %v723
        %v725 = vpop.f32.mrb[0].mxu0
        %v726 = vadd.f32 0.0, %v725
        %727 = vdwg.mxu0
        %728 = vmatprep.subr.bf16.mxu0 %v592
        %729 = vmatpush1.bf16.msra.mxu0 %v591
        %730 = vmatprep.subr.bf16.mxu0 %v594
        %731 = vmatpush1.bf16.msra.mxu0 %v593
        %732 = vmatprep.subr.bf16.mxu0 %v596
        %733 = vmatpush1.bf16.msra.mxu0 %v595
        %734 = vmatprep.subr.bf16.mxu0 %v598
        %735 = vmatpush1.bf16.msra.mxu0 %v597
        %736 = vmatprep.subr.bf16.mxu0 %v600
        %737 = vmatpush1.bf16.msra.mxu0 %v599
        %738 = vmatprep.subr.bf16.mxu0 %v602
        %739 = vmatpush1.bf16.msra.mxu0 %v601
        %740 = vmatprep.subr.bf16.mxu0 %v604
        %741 = vmatpush1.bf16.msra.mxu0 %v603
        %742 = vmatprep.subr.bf16.mxu0 %v606
        %743 = vmatpush1.bf16.msra.mxu0 %v605
        %744 = vmatprep.subr.bf16.mxu0 0
        %745 = vmatpush1.bf16.msra.mxu0 0
        %746 = vmatprep.subr.bf16.mxu0 0
        %747 = vmatpush1.bf16.msra.mxu0 0
        %748 = vmatprep.subr.bf16.mxu0 0
        %749 = vmatpush1.bf16.msra.mxu0 0
        %750 = vmatprep.subr.bf16.mxu0 0
        %751 = vmatpush1.bf16.msra.mxu0 0
        %752 = vmatprep.subr.bf16.mxu0 0
        %753 = vmatpush1.bf16.msra.mxu0 0
        %754 = vmatprep.subr.bf16.mxu0 0
        %755 = vmatpush1.bf16.msra.mxu0 0
        %756 = vmatprep.subr.bf16.mxu0 0
        %757 = vmatpush1.bf16.msra.mxu0 0
        %758 = vmatprep.subr.bf16.mxu0 0
        %759 = vmatpush1.bf16.msra.mxu0 0
        %760 = vmatprep.mubr.bf16.mxu0 0
        %761 = vmatmul.mubr.bf16.gmra.mrb[0].mxu0 %v393
        %v762 = vpop.f32.mrb[0].mxu0
        %v763 = vadd.f32 %v690, %v762
        %v764 = vpop.f32.mrb[0].mxu0
        %v765 = vadd.f32 %v692, %v764
        %v766 = vpop.f32.mrb[0].mxu0
        %v767 = vadd.f32 %v694, %v766
        %v768 = vpop.f32.mrb[0].mxu0
        %v769 = vadd.f32 %v696, %v768
        %770 = vmatprep.mubr.bf16.mxu0 0
        %771 = vmatmul.mubr.bf16.gmra.mrb[0].mxu0 %v396
        %v772 = vpop.f32.mrb[0].mxu0
        %v773 = vadd.f32 %v700, %v772
        %v774 = vpop.f32.mrb[0].mxu0
        %v775 = vadd.f32 %v702, %v774
        %v776 = vpop.f32.mrb[0].mxu0
        %v777 = vadd.f32 %v704, %v776
        %v778 = vpop.f32.mrb[0].mxu0
        %v779 = vadd.f32 %v706, %v778
        %780 = vmatprep.mubr.bf16.mxu0 0
        %781 = vmatmul.mubr.bf16.gmra.mrb[0].mxu0 %v399
        %v782 = vpop.f32.mrb[0].mxu0
        %v783 = vadd.f32 %v710, %v782
        %v784 = vpop.f32.mrb[0].mxu0
        %v785 = vadd.f32 %v712, %v784
        %v786 = vpop.f32.mrb[0].mxu0
        %v787 = vadd.f32 %v714, %v786
        %v788 = vpop.f32.mrb[0].mxu0
        %v789 = vadd.f32 %v716, %v788
        %790 = vmatprep.mubr.bf16.mxu0 0
        %791 = vmatmul.mubr.bf16.gmra.mrb[0].mxu0 %v402
        %v792 = vpop.f32.mrb[0].mxu0
        %v793 = vadd.f32 %v720, %v792
        %v794 = vpop.f32.mrb[0].mxu0
        %v795 = vadd.f32 %v722, %v794
        %v796 = vpop.f32.mrb[0].mxu0
        %v797 = vadd.f32 %v724, %v796
        %v798 = vpop.f32.mrb[0].mxu0
        %v799 = vadd.f32 %v726, %v798
        %800 = vdwg.mxu0
        %v801 = vadd.f32 %v271, %v763
        %v802 = vadd.f32 %v272, %v765
        %v803 = vadd.f32 %v273, %v767
        %v804 = vadd.f32 %v274, %v769
        %v805 = vadd.f32 %v275, %v773
        %v806 = vadd.f32 %v276, %v775
        %v807 = vadd.f32 %v277, %v777
        %v808 = vadd.f32 %v278, %v779
        %v809 = vadd.f32 %v279, %v783
        %v810 = vadd.f32 %v280, %v785
        %v811 = vadd.f32 %v281, %v787
        %v812 = vadd.f32 %v282, %v789
        %v813 = vadd.f32 %v283, %v793
        %v814 = vadd.f32 %v284, %v795
        %v815 = vadd.f32 %v285, %v797
        %v816 = vadd.f32 %v286, %v799
        %817 = vst [vmem:[#allocation2] sm:$0xff] %v801
        %818 = vst [vmem:[#allocation2 + $0x8] sm:$0xff] %v802
        %819 = vst [vmem:[#allocation2 + $0x10] sm:$0xff] %v803
        %820 = vst [vmem:[#allocation2 + $0x18] sm:$0xff] %v804
        %821 = vst [vmem:[#allocation2 + $0x20] sm:$0xff] %v805
        %822 = vst [vmem:[#allocation2 + $0x28] sm:$0xff] %v806
        %823 = vst [vmem:[#allocation2 + $0x30] sm:$0xff] %v807
        %824 = vst [vmem:[#allocation2 + $0x38] sm:$0xff] %v808
        %825 = vst [vmem:[#allocation2 + $0x40] sm:$0xff] %v809
        %826 = vst [vmem:[#allocation2 + $0x48] sm:$0xff] %v810
        %827 = vst [vmem:[#allocation2 + $0x50] sm:$0xff] %v811
        %828 = vst [vmem:[#allocation2 + $0x58] sm:$0xff] %v812
        %829 = vst [vmem:[#allocation2 + $0x60] sm:$0xff] %v813
        %830 = vst [vmem:[#allocation2 + $0x68] sm:$0xff] %v814
        %831 = vst [vmem:[#allocation2 + $0x70] sm:$0xff] %v815
        %832 = vst [vmem:[#allocation2 + $0x78] sm:$0xff] %v816
        %p833 = scmp.eq.s32.totalorder %s18, 5
        // Predicated region
        $region59: #{feature_net.21} parent=49 // pred_check
          %p834 = pneg %p833
        $region60: #{feature_net.21} parent=49 // pred_check_branch
          %836 = sbr.rel (%p834) target = $region62
        $region61: #{feature_net.21} parent=49 // pred_region
          %v837 = vld [vmem:[#allocation2] sm:$0xff]
          %v838 = vld [vmem:[#allocation2 + $0x8] sm:$0xff]
          %v839 = vld [vmem:[#allocation2 + $0x10] sm:$0xff]
          %v840 = vld [vmem:[#allocation2 + $0x18] sm:$0xff]
          %v841 = vld [vmem:[#allocation2 + $0x20] sm:$0xff]
          %v842 = vld [vmem:[#allocation2 + $0x28] sm:$0xff]
          %v843 = vld [vmem:[#allocation2 + $0x30] sm:$0xff]
          %v844 = vld [vmem:[#allocation2 + $0x38] sm:$0xff]
          %v845 = vld [vmem:[#allocation2 + $0x40] sm:$0xff]
          %v846 = vld [vmem:[#allocation2 + $0x48] sm:$0xff]
          %v847 = vld [vmem:[#allocation2 + $0x50] sm:$0xff]
          %v848 = vld [vmem:[#allocation2 + $0x58] sm:$0xff]
          %v849 = vld [vmem:[#allocation2 + $0x60] sm:$0xff]
          %v850 = vld [vmem:[#allocation2 + $0x68] sm:$0xff]
          %v851 = vld [vmem:[#allocation2 + $0x70] sm:$0xff]
          %v852 = vld [vmem:[#allocation2 + $0x78] sm:$0xff]
          %853 = vst [vmem:[%s248] sm:$0xff] %v837
          %854 = vst [vmem:[%s248 + $0x8] sm:$0xff] %v838
          %855 = vst [vmem:[%s248 + $0x10] sm:$0xff] %v839
          %856 = vst [vmem:[%s248 + $0x18] sm:$0xff] %v840
          %857 = vst [vmem:[%s248 + $0x20] sm:$0xff] %v841
          %858 = vst [vmem:[%s248 + $0x28] sm:$0xff] %v842
          %859 = vst [vmem:[%s248 + $0x30] sm:$0xff] %v843
          %860 = vst [vmem:[%s248 + $0x38] sm:$0xff] %v844
          %861 = vst [vmem:[%s248 + $0x40] sm:$0xff] %v845
          %862 = vst [vmem:[%s248 + $0x48] sm:$0xff] %v846
          %863 = vst [vmem:[%s248 + $0x50] sm:$0xff] %v847
          %864 = vst [vmem:[%s248 + $0x58] sm:$0xff] %v848
          %865 = vst [vmem:[%s248 + $0x60] sm:$0xff] %v849
          %866 = vst [vmem:[%s248 + $0x68] sm:$0xff] %v850
          %867 = vst [vmem:[%s248 + $0x70] sm:$0xff] %v851
          %868 = vst [vmem:[%s248 + $0x78] sm:$0xff] %v852
        $region62: #{feature_net.21} parent=49 // pred_fallthru
          _
        %s869 = smul.u32 8, %s17
        %p870 = scmp.lt.s32.totalorder %s869, 7
        %s871 = scalar_select %p870, %s869, 7
        %s872 = smul.addr %s871, 2
        %s873 = smul.addr %s872, 8
        %s874 = scalar_lea.vmem %s2, %s873
        // Predicated region
        $region63: #{feature_net.21} parent=49 // pred_check
          %p875 = pneg %p97
        $region64: #{feature_net.21} parent=49 // pred_check_branch
          %877 = sbr.rel (%p875) target = $region66
        $region65: #{feature_net.21} parent=49 // pred_region
          %s878 = smul.u32 8, %s17
        $region66: #{feature_net.21} parent=49 // pred_fallthru
          _
        // Predicated region
        $region67: #{feature_net.21} parent=49 // pred_check
          %p879 = pneg %p97
        $region68: #{feature_net.21} parent=49 // pred_check_branch
          %881 = sbr.rel (%p879) target = $region70
        $region69: #{feature_net.21} parent=49 // pred_region
          %s882 = smul.u32 8, %s17
          %p883 = scmp.lt.s32.totalorder %s882, 7
          %s884 = scalar_select %p883, %s882, 7
          %s885 = smul.addr %s884, 2
          %s886 = smul.addr %s885, 8
          %s887 = scalar_lea.vmem %s2, %s886
        $region70: #{feature_net.21} parent=49 // pred_fallthru
          _
      $region50: #{feature_net.21} parent=5 // pred_fallthru
        _
      %p888 = scmp.le.s32.totalorder 2, %s8
      // Predicated region
      $region71: #{feature_net.21} parent=5 // pred_check
        %p889 = pneg %p888
      $region72: #{feature_net.21} parent=5 // pred_check_branch
        %891 = sbr.rel (%p889) target = $region74
      $region73: #{feature_net.21} parent=5 // pred_region
        %s892 = ssub.s32 %s8, 2
      $region74: #{feature_net.21} parent=5 // pred_fallthru
        _
    $region6: #{feature_net.21} parent=1 // loop_footer
      %s12 = sadd.s32 1, %s8
    $region7: #{feature_net.21} parent=1 // loop_footer_branch
      %7 = sbr.rel target = $region3
    $region8: #{feature_net.21} parent=1 // loop_exit
      _

// kernel: feature_net.22
$region0: #{feature_net.22}
  #allocation0 [shape = 'u32[]', space=smem, size = 0x4, offset = 0x4, fixed_abs, tag = 'smem constant byte address 0x4 - core index']
  #allocation1 [shape = 'u32[144,128]{1,0:T(1,128)}', space=vmem, size = 0x12000, scoped, tag = 'internal scratch']
  %s0 = inlined_call_operand.vmem [shape: f32[2,32,256], index: 0, kind: input, shape index: {}]
  %s1 = inlined_call_operand.vmem [shape: f32[2,1,256], index: 1, kind: output, shape index: {0}]
  %s2 = inlined_call_operand.vmem [shape: f32[2,1,256], index: 2, kind: output, shape index: {1}]
  %3 = xla_tuple %s1, %s2
  %s4 = sld [smem:[#allocation0]]
  $region49: #{feature_net.22} parent=0
    _
  %s6 = ssub.s32 1, %s4
  %s7 = scalar_select 0, %s6, %s4
  loop: start=0, step=1, limit=4
  $region2: #{feature_net.22} parent=0 // loop_pre_header
    _
  $region3: #{feature_net.22} parent=0 // loop_header
    %s9 = sphi 0, %s13
    %p10 = scmp.ge.s32.totalorder %s9, 4
    %s16 = sphi 0, %s28
    %s17 = sphi 0, %s24
    %s18 = sphi 0, %s16
    %s19 = sphi 0, %s17
    %s20 = sphi 0, %s18
    %s21 = sphi 0, %s19
    %s33 = sphi 0, %s35
    %s36 = sphi 0, %s33
    %s37 = sphi 0, %s36
    %s53 = sphi 0, %s37
    %s59 = sphi 0, %s61
    %s62 = sphi 0, %s59
    %s63 = sphi 0, %s62
    %s79 = sphi 0, %s63
    %s85 = sphi 0, %s87
    %s88 = sphi 0, %s85
    %s89 = sphi 0, %s88
    %s105 = sphi 0, %s89
  $region4: #{feature_net.22} parent=0 // loop_header_branch
    %12 = sbr.rel (%p10) target = $region8
  $region5: #{feature_net.22} parent=0 // loop_body
    %s14 = ssub.s32 %s9, 1
    %s15 = ssub.s32 %s9, 2
    %s22 = sadd.s32 1, %s17
    %p23 = scmp.ge.s32.totalorder %s22, 1
    %s24 = scalar_select %p23, 0, %s22
    %s25 = sadd.s32 1, %s16
    %s26 = scalar_select %p23, %s25, %s16
    %p27 = scmp.ge.s32.totalorder %s26, 2
    %s28 = scalar_select %p27, 0, %s26
    %s29 = ssub.s32 %s16, %s28
    %s30 = ssub.s32 %s17, %s24
    %s31 = sor.u32 %s29, %s30
    %p32 = scmp.eq.s32.totalorder %s31, 0
    %s34 = sadd.s32 %s33, 1
    %s35 = scalar_select %p32, %s33, %s34
    %p38 = pneg %p32
    %p39 = scmp.eq.s32.totalorder %s9, 1
    %p40 = por %p38, %p39
    %p41 = scmp.ne.s32.totalorder %s33, %s36
    %p42 = scmp.eq.s32.totalorder %s9, 0
    %p43 = por %p41, %p42
    %p44 = scmp.ne.s32.totalorder %s33, %s36
    %p45 = scmp.eq.s32.totalorder %s14, 1
    %p46 = por %p44, %p45
    %p47 = scmp.ne.s32.totalorder %s36, %s37
    %p48 = scmp.eq.s32.totalorder %s14, 0
    %p49 = por %p47, %p48
    %p50 = scmp.ne.s32.totalorder %s36, %s37
    %p51 = scmp.eq.s32.totalorder %s15, 1
    %p52 = por %p50, %p51
    %p54 = scmp.ne.s32.totalorder %s37, %s53
    %p55 = scmp.eq.s32.totalorder %s15, 0
    %p56 = por %p54, %p55
    %s57 = ssub.s32 %s16, %s28
    %p58 = scmp.eq.s32.totalorder %s57, 0
    %s60 = sadd.s32 %s59, 1
    %s61 = scalar_select %p58, %s59, %s60
    %p64 = pneg %p58
    %p65 = scmp.eq.s32.totalorder %s9, 1
    %p66 = por %p64, %p65
    %p67 = scmp.ne.s32.totalorder %s59, %s62
    %p68 = scmp.eq.s32.totalorder %s9, 0
    %p69 = por %p67, %p68
    %p70 = scmp.ne.s32.totalorder %s59, %s62
    %p71 = scmp.eq.s32.totalorder %s14, 1
    %p72 = por %p70, %p71
    %p73 = scmp.ne.s32.totalorder %s62, %s63
    %p74 = scmp.eq.s32.totalorder %s14, 0
    %p75 = por %p73, %p74
    %p76 = scmp.ne.s32.totalorder %s62, %s63
    %p77 = scmp.eq.s32.totalorder %s15, 1
    %p78 = por %p76, %p77
    %p80 = scmp.ne.s32.totalorder %s63, %s79
    %p81 = scmp.eq.s32.totalorder %s15, 0
    %p82 = por %p80, %p81
    %s83 = ssub.s32 %s16, %s28
    %p84 = scmp.eq.s32.totalorder %s83, 0
    %s86 = sadd.s32 %s85, 1
    %s87 = scalar_select %p84, %s85, %s86
    %p90 = pneg %p84
    %p91 = scmp.eq.s32.totalorder %s9, 1
    %p92 = por %p90, %p91
    %p93 = scmp.ne.s32.totalorder %s85, %s88
    %p94 = scmp.eq.s32.totalorder %s9, 0
    %p95 = por %p93, %p94
    %p96 = scmp.ne.s32.totalorder %s85, %s88
    %p97 = scmp.eq.s32.totalorder %s14, 1
    %p98 = por %p96, %p97
    %p99 = scmp.ne.s32.totalorder %s88, %s89
    %p100 = scmp.eq.s32.totalorder %s14, 0
    %p101 = por %p99, %p100
    %p102 = scmp.ne.s32.totalorder %s88, %s89
    %p103 = scmp.eq.s32.totalorder %s15, 1
    %p104 = por %p102, %p103
    %p106 = scmp.ne.s32.totalorder %s89, %s105
    %p107 = scmp.eq.s32.totalorder %s15, 0
    %p108 = por %p106, %p107
    %p109 = scmp.le.s32.totalorder 1, %s9
    %p110 = scmp.lt.s32.totalorder %s9, 3
    %p111 = pnand %p109, %p110
    %p112 = pneg %p111
    // Predicated region
    $region9: #{feature_net.22} parent=5 // pred_check
      _
    $region10: #{feature_net.22} parent=5 // pred_check_branch
      %114 = sbr.rel (%p111) target = $region12
    $region11: #{feature_net.22} parent=5 // pred_region
      %s115 = ssub.s32 %s9, 1
    $region12: #{feature_net.22} parent=5 // pred_fallthru
      _
    %p116 = scmp.lt.s32.totalorder %s9, 2
    // Predicated region
    $region13: #{feature_net.22} parent=5 // pred_check
      %p117 = pneg %p116
    $region14: #{feature_net.22} parent=5 // pred_check_branch
      %119 = sbr.rel (%p117) target = $region16
    $region15: #{feature_net.22} parent=5 // pred_region
      // Predicated region
      $region17: #{feature_net.22} parent=15 // pred_check
        %p120 = pneg %p43
      $region18: #{feature_net.22} parent=15 // pred_check_branch
        %122 = sbr.rel (%p120) target = $region20
      $region19: #{feature_net.22} parent=15 // pred_region
        %s123 = smul.u32 4, %s17
        %p124 = scmp.lt.s32.totalorder %s16, 1
        %s125 = scalar_select %p124, %s16, 1
        %p126 = scmp.lt.s32.totalorder %s123, 3
        %s127 = scalar_select %p126, %s123, 3
        %s128 = smul.addr %s127, 2
        %s129 = smul.addr %s125, 8
        %s130 = sadd.s32 %s128, %s129
        %s131 = smul.addr %s130, 8
        %s132 = scalar_lea.vmem %s0, %s131
        %s133 = smul.u32 4, %s17
      $region20: #{feature_net.22} parent=15 // pred_fallthru
        _
    $region16: #{feature_net.22} parent=5 // pred_fallthru
      _
    %p134 = scmp.le.s32.totalorder 1, %s9
    %p135 = scmp.lt.s32.totalorder %s9, 3
    %p136 = pnand %p134, %p135
    %p137 = pneg %p136
    // Predicated region
    $region21: #{feature_net.22} parent=5 // pred_check
      _
    $region22: #{feature_net.22} parent=5 // pred_check_branch
      %139 = sbr.rel (%p136) target = $region24
    $region23: #{feature_net.22} parent=5 // pred_region
      %s140 = ssub.s32 %s9, 1
      %s141 = smul.u32 4, %s19
      %p142 = scmp.lt.s32.totalorder %s18, 1
      %s143 = scalar_select %p142, %s18, 1
      %p144 = scmp.lt.s32.totalorder %s141, 3
      %s145 = scalar_select %p144, %s141, 3
      %s146 = smul.addr %s145, 2
      %s147 = smul.addr %s143, 8
      %s148 = sadd.s32 %s146, %s147
      %s149 = smul.addr %s148, 8
      %s150 = scalar_lea.vmem %s0, %s149
      %p151 = pneg %p49
      %p152 = pneg %p46
      %p153 = pneg %p75
      %p154 = pneg %p72
      %p155 = scmp.lt.s32.totalorder %s18, 1
      %s156 = scalar_select %p155, %s18, 1
      %s157 = smul.addr %s156, 2
      %s158 = scalar_lea.vmem %s1, %s157
      %p159 = pneg %p101
      %p160 = pneg %p98
      %p161 = scmp.lt.s32.totalorder %s18, 1
      %s162 = scalar_select %p161, %s18, 1
      %s163 = smul.addr %s162, 2
      %s164 = scalar_lea.vmem %s2, %s163
      %s165 = smul.u32 4, %s19
      %p166 = scmp.lt.s32.totalorder %s18, 1
      %s167 = scalar_select %p166, %s18, 1
      %p168 = scmp.lt.s32.totalorder %s165, 3
      %s169 = scalar_select %p168, %s165, 3
      %s170 = smul.addr %s169, 2
      %s171 = smul.addr %s167, 8
      %s172 = sadd.s32 %s170, %s171
      %s173 = smul.addr %s172, 8
      %s174 = scalar_lea.vmem %s0, %s173
      %s175 = smul.u32 4, %s19
      %p176 = scmp.lt.s32.totalorder %s18, 1
      %s177 = scalar_select %p176, %s18, 1
      %s178 = smul.addr %s177, 2
      %s179 = scalar_lea.vmem %s1, %s178
      %p180 = scmp.lt.s32.totalorder %s18, 1
      %s181 = scalar_select %p180, %s18, 1
      %s182 = smul.addr %s181, 2
      %s183 = scalar_lea.vmem %s2, %s182
      %p184 = scmp.eq.s32.totalorder %s19, 0
      // Predicated region
      $region25: #{feature_net.22} parent=23 // pred_check
        %p185 = pneg %p184
      $region26: #{feature_net.22} parent=23 // pred_check_branch
        %187 = sbr.rel (%p185) target = $region28
      $region27: #{feature_net.22} parent=23 // pred_region
        %v188 = vlaneseq
        %vm189 = vcmp.ge.s32.totalorder %v188, 0
        %vm190 = vcmp.lt.s32.totalorder %v188, 256
        %vm191 = vmand %vm189, %vm190
        %192 = vst.msk [vmem:[%s179] sm:$0x3] %vm191, 0.0
        %193 = vst.msk [vmem:[%s183] sm:$0x3] %vm191, 0.0
      $region28: #{feature_net.22} parent=23 // pred_fallthru
        _
      %v194 = vld [vmem:[%s174] sm:$0xff]
      %v195 = vld [vmem:[%s174 + $0x8] sm:$0xff]
      %v196 = vld [vmem:[%s174 + $0x10] sm:$0xff]
      %v197 = vld [vmem:[%s174 + $0x18] sm:$0xff]
      %v198 = vld [vmem:[%s174 + $0x20] sm:$0xff]
      %v199 = vld [vmem:[%s174 + $0x28] sm:$0xff]
      %v200 = vld [vmem:[%s174 + $0x30] sm:$0xff]
      %v201 = vld [vmem:[%s174 + $0x38] sm:$0xff]
      %v202 = vld [vmem:[%s179] sm:$0x3]
      %v203 = vadd.f32 %v194, %v196
      %v204 = vadd.f32 %v203, %v198
      %v205 = vadd.f32 %v204, %v200
      %v206 = vrot.slane %v205, 4
      %v207 = vadd.f32 %v205, %v206
      %v208 = vrot.slane %v207, 2
      %v209 = vadd.f32 %v207, %v208
      %v210 = vrot.slane %v209, 1
      %v211 = vadd.f32 %v209, %v210
      %v212 = vadd.f32 %v195, %v197
      %v213 = vadd.f32 %v212, %v199
      %v214 = vadd.f32 %v213, %v201
      %v215 = vrot.slane %v214, 4
      %v216 = vadd.f32 %v214, %v215
      %v217 = vrot.slane %v216, 2
      %v218 = vadd.f32 %v216, %v217
      %v219 = vrot.slane %v218, 1
      %v220 = vadd.f32 %v218, %v219
      %v223 = vcombine.low %v211, %v220
      %v225 = vunpack.c.l.s4 1966171168
      %v226 = vunpack.c.0.s8 %v225
      %v227 = vlaneseq
      %v228 = vshrl.u32 %v227, 7
      %v229 = vsub.s32 %v226, %v228
      %v230 = vrot.slane %v223, %v229
      %v232 = vunpack.c.l.s4 1966171168
      %v233 = vunpack.c.0.s8 %v232
      %v234 = vlaneseq
      %v235 = vshrl.u32 %v234, 7
      %v236 = vsub.s32 %v233, %v235
      %v237 = vrot.slane %v230, %v236
      %v239 = vadd.f32 %v202, %v237
      %v240 = vlaneseq
      %vm241 = vcmp.ge.s32.totalorder %v240, 0
      %vm242 = vcmp.lt.s32.totalorder %v240, 256
      %vm243 = vmand %vm241, %vm242
      %244 = vst.msk [vmem:[%s179] sm:$0x3] %vm243, %v239
      %v245 = vld [vmem:[%s183] sm:$0x3]
      %v246 = vmul.f32 %v194, %v194
      %v247 = vmul.f32 %v195, %v195
      %v248 = vmul.f32 %v196, %v196
      %v249 = vmul.f32 %v197, %v197
      %v250 = vmul.f32 %v198, %v198
      %v251 = vmul.f32 %v199, %v199
      %v252 = vmul.f32 %v200, %v200
      %v253 = vmul.f32 %v201, %v201
      %v254 = vadd.f32 %v246, %v248
      %v255 = vadd.f32 %v254, %v250
      %v256 = vadd.f32 %v255, %v252
      %v257 = vrot.slane %v256, 4
      %v258 = vadd.f32 %v256, %v257
      %v259 = vrot.slane %v258, 2
      %v260 = vadd.f32 %v258, %v259
      %v261 = vrot.slane %v260, 1
      %v262 = vadd.f32 %v260, %v261
      %v263 = vadd.f32 %v247, %v249
      %v264 = vadd.f32 %v263, %v251
      %v265 = vadd.f32 %v264, %v253
      %v266 = vrot.slane %v265, 4
      %v267 = vadd.f32 %v265, %v266
      %v268 = vrot.slane %v267, 2
      %v269 = vadd.f32 %v267, %v268
      %v270 = vrot.slane %v269, 1
      %v271 = vadd.f32 %v269, %v270
      %v274 = vcombine.low %v262, %v271
      %v276 = vunpack.c.l.s4 1966171168
      %v277 = vunpack.c.0.s8 %v276
      %v278 = vlaneseq
      %v279 = vshrl.u32 %v278, 7
      %v280 = vsub.s32 %v277, %v279
      %v281 = vrot.slane %v274, %v280
      %v283 = vunpack.c.l.s4 1966171168
      %v284 = vunpack.c.0.s8 %v283
      %v285 = vlaneseq
      %v286 = vshrl.u32 %v285, 7
      %v287 = vsub.s32 %v284, %v286
      %v288 = vrot.slane %v281, %v287
      %v290 = vadd.f32 %v245, %v288
      %291 = vst.msk [vmem:[%s183] sm:$0x3] %vm243, %v290
      %p292 = scmp.lt.s32.totalorder %s18, 1
      %s293 = scalar_select %p292, %s18, 1
      %s294 = smul.addr %s293, 2
      %s295 = scalar_lea.vmem %s1, %s294
      %p296 = scmp.lt.s32.totalorder %s18, 1
      %s297 = scalar_select %p296, %s18, 1
      %s298 = smul.addr %s297, 2
      %s299 = scalar_lea.vmem %s2, %s298
      // Predicated region
      $region29: #{feature_net.22} parent=23 // pred_check
        %p300 = pneg %p72
      $region30: #{feature_net.22} parent=23 // pred_check_branch
        %302 = sbr.rel (%p300) target = $region32
      $region31: #{feature_net.22} parent=23 // pred_region
        _
      $region32: #{feature_net.22} parent=23 // pred_fallthru
        _
      // Predicated region
      $region33: #{feature_net.22} parent=23 // pred_check
        %p303 = pneg %p98
      $region34: #{feature_net.22} parent=23 // pred_check_branch
        %305 = sbr.rel (%p303) target = $region36
      $region35: #{feature_net.22} parent=23 // pred_region
        _
      $region36: #{feature_net.22} parent=23 // pred_fallthru
        _
    $region24: #{feature_net.22} parent=5 // pred_fallthru
      _
    %p306 = scmp.le.s32.totalorder 2, %s9
    // Predicated region
    $region37: #{feature_net.22} parent=5 // pred_check
      %p307 = pneg %p306
    $region38: #{feature_net.22} parent=5 // pred_check_branch
      %309 = sbr.rel (%p307) target = $region40
    $region39: #{feature_net.22} parent=5 // pred_region
      %s310 = ssub.s32 %s9, 2
      // Predicated region
      $region41: #{feature_net.22} parent=39 // pred_check
        %p311 = pneg %p78
      $region42: #{feature_net.22} parent=39 // pred_check_branch
        %313 = sbr.rel (%p311) target = $region44
      $region43: #{feature_net.22} parent=39 // pred_region
        %p314 = scmp.lt.s32.totalorder %s20, 1
        %s315 = scalar_select %p314, %s20, 1
        %s316 = smul.addr %s315, 2
        %s317 = scalar_lea.vmem %s1, %s316
      $region44: #{feature_net.22} parent=39 // pred_fallthru
        _
      // Predicated region
      $region45: #{feature_net.22} parent=39 // pred_check
        %p318 = pneg %p104
      $region46: #{feature_net.22} parent=39 // pred_check_branch
        %320 = sbr.rel (%p318) target = $region48
      $region47: #{feature_net.22} parent=39 // pred_region
        %p321 = scmp.lt.s32.totalorder %s20, 1
        %s322 = scalar_select %p321, %s20, 1
        %s323 = smul.addr %s322, 2
        %s324 = scalar_lea.vmem %s2, %s323
      $region48: #{feature_net.22} parent=39 // pred_fallthru
        _
    $region40: #{feature_net.22} parent=5 // pred_fallthru
      _
  $region6: #{feature_net.22} parent=0 // loop_footer
    %s13 = sadd.s32 1, %s9
  $region7: #{feature_net.22} parent=0 // loop_footer_branch
    %8 = sbr.rel target = $region3
  $region8: #{feature_net.22} parent=0 // loop_exit
    _

// kernel: feature_net.23
$region0: #{feature_net.23}
  #allocation0 [shape = 'u32[]', space=smem, size = 0x4, offset = 0x4, fixed_abs, tag = 'smem constant byte address 0x4 - core index']
  #allocation1 [shape = 'u32[144,128]{1,0:T(1,128)}', space=vmem, size = 0x12000, scoped, tag = 'internal scratch']
  %s0 = inlined_call_operand.vmem [shape: f32[2,32,256], index: 0, kind: input, shape index: {}]
  %s1 = inlined_call_operand.vmem [shape: f32[2,1,256], index: 1, kind: input, shape index: {}]
  %s2 = inlined_call_operand.vmem [shape: f32[2,1,256], index: 2, kind: input, shape index: {}]
  %s3 = inlined_call_operand.vmem [shape: f32[2,32,256], index: 3, kind: output, shape index: {}]
  %s4 = sld [smem:[#allocation0]]
  $region45: #{feature_net.23} parent=0
    _
  %s6 = ssub.s32 1, %s4
  %s7 = scalar_select 0, %s6, %s4
  loop: start=0, step=1, limit=4
  $region2: #{feature_net.23} parent=0 // loop_pre_header
    _
  $region3: #{feature_net.23} parent=0 // loop_header
    %s9 = sphi 0, %s13
    %p10 = scmp.ge.s32.totalorder %s9, 4
    %s16 = sphi 0, %s28
    %s17 = sphi 0, %s24
    %s18 = sphi 0, %s16
    %s19 = sphi 0, %s17
    %s20 = sphi 0, %s18
    %s21 = sphi 0, %s19
    %s33 = sphi 0, %s35
    %s36 = sphi 0, %s33
    %s37 = sphi 0, %s36
    %s53 = sphi 0, %s37
    %s59 = sphi 0, %s61
    %s62 = sphi 0, %s59
    %s63 = sphi 0, %s62
    %s79 = sphi 0, %s63
    %s85 = sphi 0, %s87
    %s88 = sphi 0, %s85
    %s89 = sphi 0, %s88
    %s105 = sphi 0, %s89
    %s113 = sphi 0, %s115
    %s116 = sphi 0, %s113
    %s117 = sphi 0, %s116
    %s133 = sphi 0, %s117
  $region4: #{feature_net.23} parent=0 // loop_header_branch
    %12 = sbr.rel (%p10) target = $region8
  $region5: #{feature_net.23} parent=0 // loop_body
    %s14 = ssub.s32 %s9, 1
    %s15 = ssub.s32 %s9, 2
    %s22 = sadd.s32 1, %s17
    %p23 = scmp.ge.s32.totalorder %s22, 1
    %s24 = scalar_select %p23, 0, %s22
    %s25 = sadd.s32 1, %s16
    %s26 = scalar_select %p23, %s25, %s16
    %p27 = scmp.ge.s32.totalorder %s26, 2
    %s28 = scalar_select %p27, 0, %s26
    %s29 = ssub.s32 %s16, %s28
    %s30 = ssub.s32 %s17, %s24
    %s31 = sor.u32 %s29, %s30
    %p32 = scmp.eq.s32.totalorder %s31, 0
    %s34 = sadd.s32 %s33, 1
    %s35 = scalar_select %p32, %s33, %s34
    %p38 = pneg %p32
    %p39 = scmp.eq.s32.totalorder %s9, 1
    %p40 = por %p38, %p39
    %p41 = scmp.ne.s32.totalorder %s33, %s36
    %p42 = scmp.eq.s32.totalorder %s9, 0
    %p43 = por %p41, %p42
    %p44 = scmp.ne.s32.totalorder %s33, %s36
    %p45 = scmp.eq.s32.totalorder %s14, 1
    %p46 = por %p44, %p45
    %p47 = scmp.ne.s32.totalorder %s36, %s37
    %p48 = scmp.eq.s32.totalorder %s14, 0
    %p49 = por %p47, %p48
    %p50 = scmp.ne.s32.totalorder %s36, %s37
    %p51 = scmp.eq.s32.totalorder %s15, 1
    %p52 = por %p50, %p51
    %p54 = scmp.ne.s32.totalorder %s37, %s53
    %p55 = scmp.eq.s32.totalorder %s15, 0
    %p56 = por %p54, %p55
    %s57 = ssub.s32 %s16, %s28
    %p58 = scmp.eq.s32.totalorder %s57, 0
    %s60 = sadd.s32 %s59, 1
    %s61 = scalar_select %p58, %s59, %s60
    %p64 = pneg %p58
    %p65 = scmp.eq.s32.totalorder %s9, 1
    %p66 = por %p64, %p65
    %p67 = scmp.ne.s32.totalorder %s59, %s62
    %p68 = scmp.eq.s32.totalorder %s9, 0
    %p69 = por %p67, %p68
    %p70 = scmp.ne.s32.totalorder %s59, %s62
    %p71 = scmp.eq.s32.totalorder %s14, 1
    %p72 = por %p70, %p71
    %p73 = scmp.ne.s32.totalorder %s62, %s63
    %p74 = scmp.eq.s32.totalorder %s14, 0
    %p75 = por %p73, %p74
    %p76 = scmp.ne.s32.totalorder %s62, %s63
    %p77 = scmp.eq.s32.totalorder %s15, 1
    %p78 = por %p76, %p77
    %p80 = scmp.ne.s32.totalorder %s63, %s79
    %p81 = scmp.eq.s32.totalorder %s15, 0
    %p82 = por %p80, %p81
    %s83 = ssub.s32 %s16, %s28
    %p84 = scmp.eq.s32.totalorder %s83, 0
    %s86 = sadd.s32 %s85, 1
    %s87 = scalar_select %p84, %s85, %s86
    %p90 = pneg %p84
    %p91 = scmp.eq.s32.totalorder %s9, 1
    %p92 = por %p90, %p91
    %p93 = scmp.ne.s32.totalorder %s85, %s88
    %p94 = scmp.eq.s32.totalorder %s9, 0
    %p95 = por %p93, %p94
    %p96 = scmp.ne.s32.totalorder %s85, %s88
    %p97 = scmp.eq.s32.totalorder %s14, 1
    %p98 = por %p96, %p97
    %p99 = scmp.ne.s32.totalorder %s88, %s89
    %p100 = scmp.eq.s32.totalorder %s14, 0
    %p101 = por %p99, %p100
    %p102 = scmp.ne.s32.totalorder %s88, %s89
    %p103 = scmp.eq.s32.totalorder %s15, 1
    %p104 = por %p102, %p103
    %p106 = scmp.ne.s32.totalorder %s89, %s105
    %p107 = scmp.eq.s32.totalorder %s15, 0
    %p108 = por %p106, %p107
    %s109 = ssub.s32 %s16, %s28
    %s110 = ssub.s32 %s17, %s24
    %s111 = sor.u32 %s109, %s110
    %p112 = scmp.eq.s32.totalorder %s111, 0
    %s114 = sadd.s32 %s113, 1
    %s115 = scalar_select %p112, %s113, %s114
    %p118 = pneg %p112
    %p119 = scmp.eq.s32.totalorder %s9, 1
    %p120 = por %p118, %p119
    %p121 = scmp.ne.s32.totalorder %s113, %s116
    %p122 = scmp.eq.s32.totalorder %s9, 0
    %p123 = por %p121, %p122
    %p124 = scmp.ne.s32.totalorder %s113, %s116
    %p125 = scmp.eq.s32.totalorder %s14, 1
    %p126 = por %p124, %p125
    %p127 = scmp.ne.s32.totalorder %s116, %s117
    %p128 = scmp.eq.s32.totalorder %s14, 0
    %p129 = por %p127, %p128
    %p130 = scmp.ne.s32.totalorder %s116, %s117
    %p131 = scmp.eq.s32.totalorder %s15, 1
    %p132 = por %p130, %p131
    %p134 = scmp.ne.s32.totalorder %s117, %s133
    %p135 = scmp.eq.s32.totalorder %s15, 0
    %p136 = por %p134, %p135
    %p137 = scmp.le.s32.totalorder 1, %s9
    %p138 = scmp.lt.s32.totalorder %s9, 3
    %p139 = pnand %p137, %p138
    %p140 = pneg %p139
    // Predicated region
    $region9: #{feature_net.23} parent=5 // pred_check
      _
    $region10: #{feature_net.23} parent=5 // pred_check_branch
      %142 = sbr.rel (%p139) target = $region12
    $region11: #{feature_net.23} parent=5 // pred_region
      %s143 = ssub.s32 %s9, 1
    $region12: #{feature_net.23} parent=5 // pred_fallthru
      _
    %p144 = scmp.lt.s32.totalorder %s9, 2
    // Predicated region
    $region13: #{feature_net.23} parent=5 // pred_check
      %p145 = pneg %p144
    $region14: #{feature_net.23} parent=5 // pred_check_branch
      %147 = sbr.rel (%p145) target = $region16
    $region15: #{feature_net.23} parent=5 // pred_region
      // Predicated region
      $region17: #{feature_net.23} parent=15 // pred_check
        %p148 = pneg %p43
      $region18: #{feature_net.23} parent=15 // pred_check_branch
        %150 = sbr.rel (%p148) target = $region20
      $region19: #{feature_net.23} parent=15 // pred_region
        %s151 = smul.u32 4, %s17
        %p152 = scmp.lt.s32.totalorder %s16, 1
        %s153 = scalar_select %p152, %s16, 1
        %p154 = scmp.lt.s32.totalorder %s151, 3
        %s155 = scalar_select %p154, %s151, 3
        %s156 = smul.addr %s155, 2
        %s157 = smul.addr %s153, 8
        %s158 = sadd.s32 %s156, %s157
        %s159 = smul.addr %s158, 8
        %s160 = scalar_lea.vmem %s0, %s159
        %s161 = smul.u32 4, %s17
      $region20: #{feature_net.23} parent=15 // pred_fallthru
        _
      // Predicated region
      $region21: #{feature_net.23} parent=15 // pred_check
        %p162 = pneg %p69
      $region22: #{feature_net.23} parent=15 // pred_check_branch
        %164 = sbr.rel (%p162) target = $region24
      $region23: #{feature_net.23} parent=15 // pred_region
        %p165 = scmp.lt.s32.totalorder %s16, 1
        %s166 = scalar_select %p165, %s16, 1
        %s167 = smul.addr %s166, 2
        %s168 = scalar_lea.vmem %s1, %s167
      $region24: #{feature_net.23} parent=15 // pred_fallthru
        _
      // Predicated region
      $region25: #{feature_net.23} parent=15 // pred_check
        %p169 = pneg %p95
      $region26: #{feature_net.23} parent=15 // pred_check_branch
        %171 = sbr.rel (%p169) target = $region28
      $region27: #{feature_net.23} parent=15 // pred_region
        %p172 = scmp.lt.s32.totalorder %s16, 1
        %s173 = scalar_select %p172, %s16, 1
        %s174 = smul.addr %s173, 2
        %s175 = scalar_lea.vmem %s2, %s174
      $region28: #{feature_net.23} parent=15 // pred_fallthru
        _
    $region16: #{feature_net.23} parent=5 // pred_fallthru
      _
    %p176 = scmp.le.s32.totalorder 1, %s9
    %p177 = scmp.lt.s32.totalorder %s9, 3
    %p178 = pnand %p176, %p177
    %p179 = pneg %p178
    // Predicated region
    $region29: #{feature_net.23} parent=5 // pred_check
      _
    $region30: #{feature_net.23} parent=5 // pred_check_branch
      %181 = sbr.rel (%p178) target = $region32
    $region31: #{feature_net.23} parent=5 // pred_region
      %s182 = ssub.s32 %s9, 1
      %s183 = smul.u32 4, %s19
      %p184 = scmp.lt.s32.totalorder %s18, 1
      %s185 = scalar_select %p184, %s18, 1
      %p186 = scmp.lt.s32.totalorder %s183, 3
      %s187 = scalar_select %p186, %s183, 3
      %s188 = smul.addr %s187, 2
      %s189 = smul.addr %s185, 8
      %s190 = sadd.s32 %s188, %s189
      %s191 = smul.addr %s190, 8
      %s192 = scalar_lea.vmem %s0, %s191
      %p193 = pneg %p49
      %p194 = pneg %p46
      %p195 = scmp.lt.s32.totalorder %s18, 1
      %s196 = scalar_select %p195, %s18, 1
      %s197 = smul.addr %s196, 2
      %s198 = scalar_lea.vmem %s1, %s197
      %p199 = pneg %p75
      %p200 = pneg %p72
      %p201 = scmp.lt.s32.totalorder %s18, 1
      %s202 = scalar_select %p201, %s18, 1
      %s203 = smul.addr %s202, 2
      %s204 = scalar_lea.vmem %s2, %s203
      %p205 = pneg %p101
      %p206 = pneg %p98
      %p207 = pneg %p129
      %p208 = pneg %p126
      %s209 = smul.u32 4, %s19
      %p210 = scmp.lt.s32.totalorder %s18, 1
      %s211 = scalar_select %p210, %s18, 1
      %p212 = scmp.lt.s32.totalorder %s209, 3
      %s213 = scalar_select %p212, %s209, 3
      %s214 = smul.addr %s213, 2
      %s215 = smul.addr %s211, 8
      %s216 = sadd.s32 %s214, %s215
      %s217 = smul.addr %s216, 8
      %s218 = scalar_lea.vmem %s3, %s217
      %s219 = smul.u32 4, %s19
      %p220 = scmp.lt.s32.totalorder %s18, 1
      %s221 = scalar_select %p220, %s18, 1
      %p222 = scmp.lt.s32.totalorder %s219, 3
      %s223 = scalar_select %p222, %s219, 3
      %s224 = smul.addr %s223, 2
      %s225 = smul.addr %s221, 8
      %s226 = sadd.s32 %s224, %s225
      %s227 = smul.addr %s226, 8
      %s228 = scalar_lea.vmem %s0, %s227
      %s229 = smul.u32 4, %s19
      %p230 = scmp.lt.s32.totalorder %s18, 1
      %s231 = scalar_select %p230, %s18, 1
      %s232 = smul.addr %s231, 2
      %s233 = scalar_lea.vmem %s1, %s232
      %p234 = scmp.lt.s32.totalorder %s18, 1
      %s235 = scalar_select %p234, %s18, 1
      %s236 = smul.addr %s235, 2
      %s237 = scalar_lea.vmem %s2, %s236
      %s238 = smul.u32 4, %s19
      %p239 = scmp.lt.s32.totalorder %s18, 1
      %s240 = scalar_select %p239, %s18, 1
      %p241 = scmp.lt.s32.totalorder %s238, 3
      %s242 = scalar_select %p241, %s238, 3
      %s243 = smul.addr %s242, 2
      %s244 = smul.addr %s240, 8
      %s245 = sadd.s32 %s243, %s244
      %s246 = smul.addr %s245, 8
      %s247 = scalar_lea.vmem %s3, %s246
      %s248 = smul.u32 4, %s19
      %v249 = vld [vmem:[%s228] sm:$0xff]
      %v250 = vld [vmem:[%s228 + $0x8] sm:$0xff]
      %v251 = vld [vmem:[%s228 + $0x10] sm:$0xff]
      %v252 = vld [vmem:[%s228 + $0x18] sm:$0xff]
      %v253 = vld [vmem:[%s228 + $0x20] sm:$0xff]
      %v254 = vld [vmem:[%s228 + $0x28] sm:$0xff]
      %v255 = vld [vmem:[%s228 + $0x30] sm:$0xff]
      %v256 = vld [vmem:[%s228 + $0x38] sm:$0xff]
      %v257 = vld [vmem:[%s233] sm:$0x3]
      %v258 = vmul.f32 %v257, 0.03125
      %v259 = vld [vmem:[%s237] sm:$0x3]
      %v260 = vmul.f32 %v259, 0.03125
      %v261 = vmul.f32 %v258, %v258
      %v262 = vsub.f32 %v260, %v261
      %v263 = vmax.f32 %v262, 0.0
      %v265 = vlaneseq
      %v266 = vshrl.u32 %v265, 7
      %v267 = vsub.s32 0, %v266
      %v268 = vrot.slane %v258, %v267
      %v269 = vlaneseq
      %v270 = vshrl.u32 %v269, 7
      %v271 = vsub.s32 1, %v270
      %v272 = vrot.slane %v258, %v271
      %v275 = vsub.f32 %v249, %v268
      %v276 = vsub.f32 %v250, %v272
      %v277 = vsub.f32 %v251, %v268
      %v278 = vsub.f32 %v252, %v272
      %v279 = vsub.f32 %v253, %v268
      %v280 = vsub.f32 %v254, %v272
      %v281 = vsub.f32 %v255, %v268
      %v282 = vsub.f32 %v256, %v272
      %v283 = vadd.f32 %v263, 1e-05
      %v284 = vrsqrt.pop %v283
      %v286 = vlaneseq
      %v287 = vshrl.u32 %v286, 7
      %v288 = vsub.s32 0, %v287
      %v289 = vrot.slane %v284, %v288
      %v290 = vlaneseq
      %v291 = vshrl.u32 %v290, 7
      %v292 = vsub.s32 1, %v291
      %v293 = vrot.slane %v284, %v292
      %v296 = vmul.f32 %v275, %v289
      %v297 = vmul.f32 %v276, %v293
      %v298 = vmul.f32 %v277, %v289
      %v299 = vmul.f32 %v278, %v293
      %v300 = vmul.f32 %v279, %v289
      %v301 = vmul.f32 %v280, %v293
      %v302 = vmul.f32 %v281, %v289
      %v303 = vmul.f32 %v282, %v293
      %v304 = vmax.f32 %v296, 0.0
      %v305 = vmax.f32 %v297, 0.0
      %v306 = vmax.f32 %v298, 0.0
      %v307 = vmax.f32 %v299, 0.0
      %v308 = vmax.f32 %v300, 0.0
      %v309 = vmax.f32 %v301, 0.0
      %v310 = vmax.f32 %v302, 0.0
      %v311 = vmax.f32 %v303, 0.0
      %312 = vst [vmem:[%s247] sm:$0xff] %v304
      %313 = vst [vmem:[%s247 + $0x8] sm:$0xff] %v305
      %314 = vst [vmem:[%s247 + $0x10] sm:$0xff] %v306
      %315 = vst [vmem:[%s247 + $0x18] sm:$0xff] %v307
      %316 = vst [vmem:[%s247 + $0x20] sm:$0xff] %v308
      %317 = vst [vmem:[%s247 + $0x28] sm:$0xff] %v309
      %318 = vst [vmem:[%s247 + $0x30] sm:$0xff] %v310
      %319 = vst [vmem:[%s247 + $0x38] sm:$0xff] %v311
      %s320 = smul.u32 4, %s19
      %p321 = scmp.lt.s32.totalorder %s18, 1
      %s322 = scalar_select %p321, %s18, 1
      %p323 = scmp.lt.s32.totalorder %s320, 3
      %s324 = scalar_select %p323, %s320, 3
      %s325 = smul.addr %s324, 2
      %s326 = smul.addr %s322, 8
      %s327 = sadd.s32 %s325, %s326
      %s328 = smul.addr %s327, 8
      %s329 = scalar_lea.vmem %s3, %s328
      // Predicated region
      $region33: #{feature_net.23} parent=31 // pred_check
        %p330 = pneg %p126
      $region34: #{feature_net.23} parent=31 // pred_check_branch
        %332 = sbr.rel (%p330) target = $region36
      $region35: #{feature_net.23} parent=31 // pred_region
        %s333 = smul.u32 4, %s19
      $region36: #{feature_net.23} parent=31 // pred_fallthru
        _
    $region32: #{feature_net.23} parent=5 // pred_fallthru
      _
    %p334 = scmp.le.s32.totalorder 2, %s9
    // Predicated region
    $region37: #{feature_net.23} parent=5 // pred_check
      %p335 = pneg %p334
    $region38: #{feature_net.23} parent=5 // pred_check_branch
      %337 = sbr.rel (%p335) target = $region40
    $region39: #{feature_net.23} parent=5 // pred_region
      %s338 = ssub.s32 %s9, 2
      // Predicated region
      $region41: #{feature_net.23} parent=39 // pred_check
        %p339 = pneg %p132
      $region42: #{feature_net.23} parent=39 // pred_check_branch
        %341 = sbr.rel (%p339) target = $region44
      $region43: #{feature_net.23} parent=39 // pred_region
        %s342 = smul.u32 4, %s21
        %p343 = scmp.lt.s32.totalorder %s20, 1
        %s344 = scalar_select %p343, %s20, 1
        %p345 = scmp.lt.s32.totalorder %s342, 3
        %s346 = scalar_select %p345, %s342, 3
        %s347 = smul.addr %s346, 2
        %s348 = smul.addr %s344, 8
        %s349 = sadd.s32 %s347, %s348
        %s350 = smul.addr %s349, 8
        %s351 = scalar_lea.vmem %s3, %s350
      $region44: #{feature_net.23} parent=39 // pred_fallthru
        _
    $region40: #{feature_net.23} parent=5 // pred_fallthru
      _
  $region6: #{feature_net.23} parent=0 // loop_footer
    %s13 = sadd.s32 1, %s9
  $region7: #{feature_net.23} parent=0 // loop_footer_branch
    %8 = sbr.rel target = $region3
  $region8: #{feature_net.23} parent=0 // loop_exit
    _

// kernel: feature_net.25
$region0: #{feature_net.25}
  #allocation0 [shape = 'u32[]', space=smem, size = 0x4, offset = 0x4, fixed_abs, tag = 'smem constant byte address 0x4 - core index']
  #allocation1 [shape = 'u32[144,128]{1,0:T(1,128)}', space=vmem, size = 0x12000, scoped, tag = 'internal scratch']
  %s0 = inlined_call_operand.vmem [shape: f32[2,4,512], index: 0, kind: input, shape index: {}]
  %s1 = inlined_call_operand.vmem [shape: f32[2,1,512], index: 1, kind: output, shape index: {0}]
  %s2 = inlined_call_operand.vmem [shape: f32[2,1,512], index: 2, kind: output, shape index: {1}]
  %3 = xla_tuple %s1, %s2
  %s4 = sld [smem:[#allocation0]]
  $region49: #{feature_net.25} parent=0
    _
  %s6 = ssub.s32 1, %s4
  %s7 = scalar_select 0, %s6, %s4
  loop: start=0, step=1, limit=4
  $region2: #{feature_net.25} parent=0 // loop_pre_header
    _
  $region3: #{feature_net.25} parent=0 // loop_header
    %s9 = sphi 0, %s13
    %p10 = scmp.ge.s32.totalorder %s9, 4
    %s16 = sphi 0, %s28
    %s17 = sphi 0, %s24
    %s18 = sphi 0, %s16
    %s19 = sphi 0, %s17
    %s20 = sphi 0, %s18
    %s21 = sphi 0, %s19
    %s33 = sphi 0, %s35
    %s36 = sphi 0, %s33
    %s37 = sphi 0, %s36
    %s53 = sphi 0, %s37
    %s59 = sphi 0, %s61
    %s62 = sphi 0, %s59
    %s63 = sphi 0, %s62
    %s79 = sphi 0, %s63
    %s85 = sphi 0, %s87
    %s88 = sphi 0, %s85
    %s89 = sphi 0, %s88
    %s105 = sphi 0, %s89
  $region4: #{feature_net.25} parent=0 // loop_header_branch
    %12 = sbr.rel (%p10) target = $region8
  $region5: #{feature_net.25} parent=0 // loop_body
    %s14 = ssub.s32 %s9, 1
    %s15 = ssub.s32 %s9, 2
    %s22 = sadd.s32 1, %s17
    %p23 = scmp.ge.s32.totalorder %s22, 1
    %s24 = scalar_select %p23, 0, %s22
    %s25 = sadd.s32 1, %s16
    %s26 = scalar_select %p23, %s25, %s16
    %p27 = scmp.ge.s32.totalorder %s26, 2
    %s28 = scalar_select %p27, 0, %s26
    %s29 = ssub.s32 %s16, %s28
    %s30 = ssub.s32 %s17, %s24
    %s31 = sor.u32 %s29, %s30
    %p32 = scmp.eq.s32.totalorder %s31, 0
    %s34 = sadd.s32 %s33, 1
    %s35 = scalar_select %p32, %s33, %s34
    %p38 = pneg %p32
    %p39 = scmp.eq.s32.totalorder %s9, 1
    %p40 = por %p38, %p39
    %p41 = scmp.ne.s32.totalorder %s33, %s36
    %p42 = scmp.eq.s32.totalorder %s9, 0
    %p43 = por %p41, %p42
    %p44 = scmp.ne.s32.totalorder %s33, %s36
    %p45 = scmp.eq.s32.totalorder %s14, 1
    %p46 = por %p44, %p45
    %p47 = scmp.ne.s32.totalorder %s36, %s37
    %p48 = scmp.eq.s32.totalorder %s14, 0
    %p49 = por %p47, %p48
    %p50 = scmp.ne.s32.totalorder %s36, %s37
    %p51 = scmp.eq.s32.totalorder %s15, 1
    %p52 = por %p50, %p51
    %p54 = scmp.ne.s32.totalorder %s37, %s53
    %p55 = scmp.eq.s32.totalorder %s15, 0
    %p56 = por %p54, %p55
    %s57 = ssub.s32 %s16, %s28
    %p58 = scmp.eq.s32.totalorder %s57, 0
    %s60 = sadd.s32 %s59, 1
    %s61 = scalar_select %p58, %s59, %s60
    %p64 = pneg %p58
    %p65 = scmp.eq.s32.totalorder %s9, 1
    %p66 = por %p64, %p65
    %p67 = scmp.ne.s32.totalorder %s59, %s62
    %p68 = scmp.eq.s32.totalorder %s9, 0
    %p69 = por %p67, %p68
    %p70 = scmp.ne.s32.totalorder %s59, %s62
    %p71 = scmp.eq.s32.totalorder %s14, 1
    %p72 = por %p70, %p71
    %p73 = scmp.ne.s32.totalorder %s62, %s63
    %p74 = scmp.eq.s32.totalorder %s14, 0
    %p75 = por %p73, %p74
    %p76 = scmp.ne.s32.totalorder %s62, %s63
    %p77 = scmp.eq.s32.totalorder %s15, 1
    %p78 = por %p76, %p77
    %p80 = scmp.ne.s32.totalorder %s63, %s79
    %p81 = scmp.eq.s32.totalorder %s15, 0
    %p82 = por %p80, %p81
    %s83 = ssub.s32 %s16, %s28
    %p84 = scmp.eq.s32.totalorder %s83, 0
    %s86 = sadd.s32 %s85, 1
    %s87 = scalar_select %p84, %s85, %s86
    %p90 = pneg %p84
    %p91 = scmp.eq.s32.totalorder %s9, 1
    %p92 = por %p90, %p91
    %p93 = scmp.ne.s32.totalorder %s85, %s88
    %p94 = scmp.eq.s32.totalorder %s9, 0
    %p95 = por %p93, %p94
    %p96 = scmp.ne.s32.totalorder %s85, %s88
    %p97 = scmp.eq.s32.totalorder %s14, 1
    %p98 = por %p96, %p97
    %p99 = scmp.ne.s32.totalorder %s88, %s89
    %p100 = scmp.eq.s32.totalorder %s14, 0
    %p101 = por %p99, %p100
    %p102 = scmp.ne.s32.totalorder %s88, %s89
    %p103 = scmp.eq.s32.totalorder %s15, 1
    %p104 = por %p102, %p103
    %p106 = scmp.ne.s32.totalorder %s89, %s105
    %p107 = scmp.eq.s32.totalorder %s15, 0
    %p108 = por %p106, %p107
    %p109 = scmp.le.s32.totalorder 1, %s9
    %p110 = scmp.lt.s32.totalorder %s9, 3
    %p111 = pnand %p109, %p110
    %p112 = pneg %p111
    // Predicated region
    $region9: #{feature_net.25} parent=5 // pred_check
      _
    $region10: #{feature_net.25} parent=5 // pred_check_branch
      %114 = sbr.rel (%p111) target = $region12
    $region11: #{feature_net.25} parent=5 // pred_region
      %s115 = ssub.s32 %s9, 1
    $region12: #{feature_net.25} parent=5 // pred_fallthru
      _
    %p116 = scmp.lt.s32.totalorder %s9, 2
    // Predicated region
    $region13: #{feature_net.25} parent=5 // pred_check
      %p117 = pneg %p116
    $region14: #{feature_net.25} parent=5 // pred_check_branch
      %119 = sbr.rel (%p117) target = $region16
    $region15: #{feature_net.25} parent=5 // pred_region
      // Predicated region
      $region17: #{feature_net.25} parent=15 // pred_check
        %p120 = pneg %p43
      $region18: #{feature_net.25} parent=15 // pred_check_branch
        %122 = sbr.rel (%p120) target = $region20
      $region19: #{feature_net.25} parent=15 // pred_region
        %p123 = scmp.lt.s32.totalorder %s16, 1
        %s124 = scalar_select %p123, %s16, 1
        %p125 = scmp.lt.s32.totalorder %s17, 0
        %s126 = scalar_select %p125, %s17, 0
        %s127 = smul.addr %s126, 4
        %s128 = smul.addr %s124, 4
        %s129 = sadd.s32 %s127, %s128
        %s130 = smul.addr %s129, 4
        %s131 = scalar_lea.vmem %s0, %s130
      $region20: #{feature_net.25} parent=15 // pred_fallthru
        _
    $region16: #{feature_net.25} parent=5 // pred_fallthru
      _
    %p132 = scmp.le.s32.totalorder 1, %s9
    %p133 = scmp.lt.s32.totalorder %s9, 3
    %p134 = pnand %p132, %p133
    %p135 = pneg %p134
    // Predicated region
    $region21: #{feature_net.25} parent=5 // pred_check
      _
    $region22: #{feature_net.25} parent=5 // pred_check_branch
      %137 = sbr.rel (%p134) target = $region24
    $region23: #{feature_net.25} parent=5 // pred_region
      %s138 = ssub.s32 %s9, 1
      %p139 = scmp.lt.s32.totalorder %s18, 1
      %s140 = scalar_select %p139, %s18, 1
      %p141 = scmp.lt.s32.totalorder %s19, 0
      %s142 = scalar_select %p141, %s19, 0
      %s143 = smul.addr %s142, 4
      %s144 = smul.addr %s140, 4
      %s145 = sadd.s32 %s143, %s144
      %s146 = smul.addr %s145, 4
      %s147 = scalar_lea.vmem %s0, %s146
      %p148 = pneg %p49
      %p149 = pneg %p46
      %p150 = pneg %p75
      %p151 = pneg %p72
      %p152 = scmp.lt.s32.totalorder %s18, 1
      %s153 = scalar_select %p152, %s18, 1
      %s154 = smul.addr %s153, 4
      %s155 = scalar_lea.vmem %s1, %s154
      %p156 = pneg %p101
      %p157 = pneg %p98
      %p158 = scmp.lt.s32.totalorder %s18, 1
      %s159 = scalar_select %p158, %s18, 1
      %s160 = smul.addr %s159, 4
      %s161 = scalar_lea.vmem %s2, %s160
      %p162 = scmp.lt.s32.totalorder %s18, 1
      %s163 = scalar_select %p162, %s18, 1
      %p164 = scmp.lt.s32.totalorder %s19, 0
      %s165 = scalar_select %p164, %s19, 0
      %s166 = smul.addr %s165, 4
      %s167 = smul.addr %s163, 4
      %s168 = sadd.s32 %s166, %s167
      %s169 = smul.addr %s168, 4
      %s170 = scalar_lea.vmem %s0, %s169
      %p171 = scmp.lt.s32.totalorder %s18, 1
      %s172 = scalar_select %p171, %s18, 1
      %s173 = smul.addr %s172, 4
      %s174 = scalar_lea.vmem %s1, %s173
      %p175 = scmp.lt.s32.totalorder %s18, 1
      %s176 = scalar_select %p175, %s18, 1
      %s177 = smul.addr %s176, 4
      %s178 = scalar_lea.vmem %s2, %s177
      %p179 = scmp.eq.s32.totalorder %s19, 0
      // Predicated region
      $region25: #{feature_net.25} parent=23 // pred_check
        %p180 = pneg %p179
      $region26: #{feature_net.25} parent=23 // pred_check_branch
        %182 = sbr.rel (%p180) target = $region28
      $region27: #{feature_net.25} parent=23 // pred_region
        %v183 = vlaneseq
        %vm184 = vcmp.ge.s32.totalorder %v183, 0
        %vm185 = vcmp.lt.s32.totalorder %v183, 512
        %vm186 = vmand %vm184, %vm185
        %187 = vst.msk [vmem:[%s174] sm:$0xf] %vm186, 0.0
        %188 = vst.msk [vmem:[%s178] sm:$0xf] %vm186, 0.0
      $region28: #{feature_net.25} parent=23 // pred_fallthru
        _
      %v189 = vld [vmem:[%s170] sm:$0xff]
      %v190 = vld [vmem:[%s170 + $0x8] sm:$0xff]
      %v191 = vld [vmem:[%s174] sm:$0xf]
      %v194 = vcombine.high %v189, %v189
      %v195 = vcombine.high %v190, %v190
      %vm198 = vcmask 1043456
      %v199 = vsel %vm198, %v189, 0.0
      %v200 = vrot.slane %v199, 4
      %v201 = vadd.f32 %v199, %v200
      %v202 = vrot.slane %v201, 2
      %v203 = vadd.f32 %v201, %v202
      %v204 = vrot.slane %v203, 1
      %v205 = vadd.f32 %v203, %v204
      %v206 = vsel %vm198, %v194, 0.0
      %v207 = vrot.slane %v206, 4
      %v208 = vadd.f32 %v206, %v207
      %v209 = vrot.slane %v208, 2
      %v210 = vadd.f32 %v208, %v209
      %v211 = vrot.slane %v210, 1
      %v212 = vadd.f32 %v210, %v211
      %v213 = vsel %vm198, %v190, 0.0
      %v214 = vrot.slane %v213, 4
      %v215 = vadd.f32 %v213, %v214
      %v216 = vrot.slane %v215, 2
      %v217 = vadd.f32 %v215, %v216
      %v218 = vrot.slane %v217, 1
      %v219 = vadd.f32 %v217, %v218
      %v220 = vsel %vm198, %v195, 0.0
      %v221 = vrot.slane %v220, 4
      %v222 = vadd.f32 %v220, %v221
      %v223 = vrot.slane %v222, 2
      %v224 = vadd.f32 %v222, %v223
      %v225 = vrot.slane %v224, 1
      %v226 = vadd.f32 %v224, %v225
      %v231 = vcombine.low %v205, %v212
      %v232 = vcombine.low %v219, %v226
      %v234 = vunpack.c.l.s4 1966171168
      %v235 = vunpack.c.0.s8 %v234
      %v236 = vlaneseq
      %v237 = vshrl.u32 %v236, 7
      %v238 = vsub.s32 %v235, %v237
      %v239 = vrot.slane %v231, %v238
      %v241 = vunpack.c.l.s4 1966171168
      %v242 = vunpack.c.0.s8 %v241
      %v243 = vlaneseq
      %v244 = vshrl.u32 %v243, 7
      %v245 = vsub.s32 %v242, %v244
      %v246 = vrot.slane %v232, %v245
      %v247 = vcombine.low %v239, %v246
      %v249 = vunpack.c.l.s4 1966171168
      %v250 = vunpack.c.0.s8 %v249
      %v251 = vlaneseq
      %v252 = vshrl.u32 %v251, 7
      %v253 = vsub.s32 %v250, %v252
      %v254 = vrot.slane %v247, %v253
      %v256 = vadd.f32 %v191, %v254
      %v257 = vlaneseq
      %vm258 = vcmp.ge.s32.totalorder %v257, 0
      %vm259 = vcmp.lt.s32.totalorder %v257, 512
      %vm260 = vmand %vm258, %vm259
      %261 = vst.msk [vmem:[%s174] sm:$0xf] %vm260, %v256
      %v262 = vld [vmem:[%s178] sm:$0xf]
      %v263 = vmul.f32 %v189, %v189
      %v264 = vmul.f32 %v190, %v190
      %v267 = vcombine.high %v263, %v263
      %v268 = vcombine.high %v264, %v264
      %v271 = vsel %vm198, %v263, 0.0
      %v272 = vrot.slane %v271, 4
      %v273 = vadd.f32 %v271, %v272
      %v274 = vrot.slane %v273, 2
      %v275 = vadd.f32 %v273, %v274
      %v276 = vrot.slane %v275, 1
      %v277 = vadd.f32 %v275, %v276
      %v278 = vsel %vm198, %v267, 0.0
      %v279 = vrot.slane %v278, 4
      %v280 = vadd.f32 %v278, %v279
      %v281 = vrot.slane %v280, 2
      %v282 = vadd.f32 %v280, %v281
      %v283 = vrot.slane %v282, 1
      %v284 = vadd.f32 %v282, %v283
      %v285 = vsel %vm198, %v264, 0.0
      %v286 = vrot.slane %v285, 4
      %v287 = vadd.f32 %v285, %v286
      %v288 = vrot.slane %v287, 2
      %v289 = vadd.f32 %v287, %v288
      %v290 = vrot.slane %v289, 1
      %v291 = vadd.f32 %v289, %v290
      %v292 = vsel %vm198, %v268, 0.0
      %v293 = vrot.slane %v292, 4
      %v294 = vadd.f32 %v292, %v293
      %v295 = vrot.slane %v294, 2
      %v296 = vadd.f32 %v294, %v295
      %v297 = vrot.slane %v296, 1
      %v298 = vadd.f32 %v296, %v297
      %v303 = vcombine.low %v277, %v284
      %v304 = vcombine.low %v291, %v298
      %v306 = vunpack.c.l.s4 1966171168
      %v307 = vunpack.c.0.s8 %v306
      %v308 = vlaneseq
      %v309 = vshrl.u32 %v308, 7
      %v310 = vsub.s32 %v307, %v309
      %v311 = vrot.slane %v303, %v310
      %v313 = vunpack.c.l.s4 1966171168
      %v314 = vunpack.c.0.s8 %v313
      %v315 = vlaneseq
      %v316 = vshrl.u32 %v315, 7
      %v317 = vsub.s32 %v314, %v316
      %v318 = vrot.slane %v304, %v317
      %v319 = vcombine.low %v311, %v318
      %v321 = vunpack.c.l.s4 1966171168
      %v322 = vunpack.c.0.s8 %v321
      %v323 = vlaneseq
      %v324 = vshrl.u32 %v323, 7
      %v325 = vsub.s32 %v322, %v324
      %v326 = vrot.slane %v319, %v325
      %v328 = vadd.f32 %v262, %v326
      %329 = vst.msk [vmem:[%s178] sm:$0xf] %vm260, %v328
      %p330 = scmp.lt.s32.totalorder %s18, 1
      %s331 = scalar_select %p330, %s18, 1
      %s332 = smul.addr %s331, 4
      %s333 = scalar_lea.vmem %s1, %s332
      %p334 = scmp.lt.s32.totalorder %s18, 1
      %s335 = scalar_select %p334, %s18, 1
      %s336 = smul.addr %s335, 4
      %s337 = scalar_lea.vmem %s2, %s336
      // Predicated region
      $region29: #{feature_net.25} parent=23 // pred_check
        %p338 = pneg %p72
      $region30: #{feature_net.25} parent=23 // pred_check_branch
        %340 = sbr.rel (%p338) target = $region32
      $region31: #{feature_net.25} parent=23 // pred_region
        _
      $region32: #{feature_net.25} parent=23 // pred_fallthru
        _
      // Predicated region
      $region33: #{feature_net.25} parent=23 // pred_check
        %p341 = pneg %p98
      $region34: #{feature_net.25} parent=23 // pred_check_branch
        %343 = sbr.rel (%p341) target = $region36
      $region35: #{feature_net.25} parent=23 // pred_region
        _
      $region36: #{feature_net.25} parent=23 // pred_fallthru
        _
    $region24: #{feature_net.25} parent=5 // pred_fallthru
      _
    %p344 = scmp.le.s32.totalorder 2, %s9
    // Predicated region
    $region37: #{feature_net.25} parent=5 // pred_check
      %p345 = pneg %p344
    $region38: #{feature_net.25} parent=5 // pred_check_branch
      %347 = sbr.rel (%p345) target = $region40
    $region39: #{feature_net.25} parent=5 // pred_region
      %s348 = ssub.s32 %s9, 2
      // Predicated region
      $region41: #{feature_net.25} parent=39 // pred_check
        %p349 = pneg %p78
      $region42: #{feature_net.25} parent=39 // pred_check_branch
        %351 = sbr.rel (%p349) target = $region44
      $region43: #{feature_net.25} parent=39 // pred_region
        %p352 = scmp.lt.s32.totalorder %s20, 1
        %s353 = scalar_select %p352, %s20, 1
        %s354 = smul.addr %s353, 4
        %s355 = scalar_lea.vmem %s1, %s354
      $region44: #{feature_net.25} parent=39 // pred_fallthru
        _
      // Predicated region
      $region45: #{feature_net.25} parent=39 // pred_check
        %p356 = pneg %p104
      $region46: #{feature_net.25} parent=39 // pred_check_branch
        %358 = sbr.rel (%p356) target = $region48
      $region47: #{feature_net.25} parent=39 // pred_region
        %p359 = scmp.lt.s32.totalorder %s20, 1
        %s360 = scalar_select %p359, %s20, 1
        %s361 = smul.addr %s360, 4
        %s362 = scalar_lea.vmem %s2, %s361
      $region48: #{feature_net.25} parent=39 // pred_fallthru
        _
    $region40: #{feature_net.25} parent=5 // pred_fallthru
      _
  $region6: #{feature_net.25} parent=0 // loop_footer
    %s13 = sadd.s32 1, %s9
  $region7: #{feature_net.25} parent=0 // loop_footer_branch
    %8 = sbr.rel target = $region3
  $region8: #{feature_net.25} parent=0 // loop_exit
    _

// kernel: feature_net.24
$region0: #{feature_net.24}
  #allocation0 [shape = 'u32[]', space=smem, size = 0x4, offset = 0x4, fixed_abs, tag = 'smem constant byte address 0x4 - core index']
  #allocation1 [shape = 'u32[144,128]{1,0:T(1,128)}', space=vmem, size = 0x12000, scoped, tag = 'internal scratch']
  #allocation2 [shape = 'f32[8,512]{1,0:T(8,128)}', space=vmem, size = 0x4000, scoped, tag = 'scratch operand']
  %s0 = inlined_call_operand.vmem [shape: bf16[8,4608], index: 0, kind: input, shape index: {}]
  %s1 = inlined_call_operand.vmem [shape: bf16[4608,512], index: 1, kind: input, shape index: {}]
  %s2 = inlined_call_operand.vmem [shape: f32[8,512], index: 2, kind: output, shape index: {}]
  %s3 = sld [smem:[#allocation0]]
  $region49: #{feature_net.24} parent=0
    _
  %s5 = ssub.s32 1, %s3
  %s6 = scalar_select 0, %s5, %s3
  loop: start=0, step=1, limit=11
  $region2: #{feature_net.24} parent=0 // loop_pre_header
    _
  $region3: #{feature_net.24} parent=0 // loop_header
    %s8 = sphi 0, %s12
    %p9 = scmp.ge.s32.totalorder %s8, 11
    %s15 = sphi 0, %s27
    %s16 = sphi 0, %s23
    %s17 = sphi 0, %s15
    %s18 = sphi 0, %s16
    %s19 = sphi 0, %s17
    %s20 = sphi 0, %s18
    %s32 = sphi 0, %s34
    %s35 = sphi 0, %s32
    %s36 = sphi 0, %s35
    %s52 = sphi 0, %s36
    %s58 = sphi 0, %s60
    %s61 = sphi 0, %s58
    %s62 = sphi 0, %s61
    %s78 = sphi 0, %s62
    %s84 = sphi 0, %s86
    %s87 = sphi 0, %s84
    %s88 = sphi 0, %s87
    %s104 = sphi 0, %s88
  $region4: #{feature_net.24} parent=0 // loop_header_branch
    %11 = sbr.rel (%p9) target = $region8
  $region5: #{feature_net.24} parent=0 // loop_body
    %s13 = ssub.s32 %s8, 1
    %s14 = ssub.s32 %s8, 2
    %s21 = sadd.s32 1, %s16
    %p22 = scmp.ge.s32.totalorder %s21, 9
    %s23 = scalar_select %p22, 0, %s21
    %s24 = sadd.s32 1, %s15
    %s25 = scalar_select %p22, %s24, %s15
    %p26 = scmp.ge.s32.totalorder %s25, 1
    %s27 = scalar_select %p26, 0, %s25
    %s28 = ssub.s32 %s15, %s27
    %s29 = ssub.s32 %s16, %s23
    %s30 = sor.u32 %s28, %s29
    %p31 = scmp.eq.s32.totalorder %s30, 0
    %s33 = sadd.s32 %s32, 1
    %s34 = scalar_select %p31, %s32, %s33
    %p37 = pneg %p31
    %p38 = scmp.eq.s32.totalorder %s8, 8
    %p39 = por %p37, %p38
    %p40 = scmp.ne.s32.totalorder %s32, %s35
    %p41 = scmp.eq.s32.totalorder %s8, 0
    %p42 = por %p40, %p41
    %p43 = scmp.ne.s32.totalorder %s32, %s35
    %p44 = scmp.eq.s32.totalorder %s13, 8
    %p45 = por %p43, %p44
    %p46 = scmp.ne.s32.totalorder %s35, %s36
    %p47 = scmp.eq.s32.totalorder %s13, 0
    %p48 = por %p46, %p47
    %p49 = scmp.ne.s32.totalorder %s35, %s36
    %p50 = scmp.eq.s32.totalorder %s14, 8
    %p51 = por %p49, %p50
    %p53 = scmp.ne.s32.totalorder %s36, %s52
    %p54 = scmp.eq.s32.totalorder %s14, 0
    %p55 = por %p53, %p54
    %s56 = ssub.s32 %s16, %s23
    %p57 = scmp.eq.s32.totalorder %s56, 0
    %s59 = sadd.s32 %s58, 1
    %s60 = scalar_select %p57, %s58, %s59
    %p63 = pneg %p57
    %p64 = scmp.eq.s32.totalorder %s8, 8
    %p65 = por %p63, %p64
    %p66 = scmp.ne.s32.totalorder %s58, %s61
    %p67 = scmp.eq.s32.totalorder %s8, 0
    %p68 = por %p66, %p67
    %p69 = scmp.ne.s32.totalorder %s58, %s61
    %p70 = scmp.eq.s32.totalorder %s13, 8
    %p71 = por %p69, %p70
    %p72 = scmp.ne.s32.totalorder %s61, %s62
    %p73 = scmp.eq.s32.totalorder %s13, 0
    %p74 = por %p72, %p73
    %p75 = scmp.ne.s32.totalorder %s61, %s62
    %p76 = scmp.eq.s32.totalorder %s14, 8
    %p77 = por %p75, %p76
    %p79 = scmp.ne.s32.totalorder %s62, %s78
    %p80 = scmp.eq.s32.totalorder %s14, 0
    %p81 = por %p79, %p80
    %s82 = ssub.s32 %s15, %s27
    %p83 = scmp.eq.s32.totalorder %s82, 0
    %s85 = sadd.s32 %s84, 1
    %s86 = scalar_select %p83, %s84, %s85
    %p89 = pneg %p83
    %p90 = scmp.eq.s32.totalorder %s8, 8
    %p91 = por %p89, %p90
    %p92 = scmp.ne.s32.totalorder %s84, %s87
    %p93 = scmp.eq.s32.totalorder %s8, 0
    %p94 = por %p92, %p93
    %p95 = scmp.ne.s32.totalorder %s84, %s87
    %p96 = scmp.eq.s32.totalorder %s13, 8
    %p97 = por %p95, %p96
    %p98 = scmp.ne.s32.totalorder %s87, %s88
    %p99 = scmp.eq.s32.totalorder %s13, 0
    %p100 = por %p98, %p99
    %p101 = scmp.ne.s32.totalorder %s87, %s88
    %p102 = scmp.eq.s32.totalorder %s14, 8
    %p103 = por %p101, %p102
    %p105 = scmp.ne.s32.totalorder %s88, %s104
    %p106 = scmp.eq.s32.totalorder %s14, 0
    %p107 = por %p105, %p106
    %p108 = scmp.le.s32.totalorder 1, %s8
    %p109 = scmp.lt.s32.totalorder %s8, 10
    %p110 = pnand %p108, %p109
    %p111 = pneg %p110
    // Predicated region
    $region9: #{feature_net.24} parent=5 // pred_check
      _
    $region10: #{feature_net.24} parent=5 // pred_check_branch
      %113 = sbr.rel (%p110) target = $region12
    $region11: #{feature_net.24} parent=5 // pred_region
      %s114 = ssub.s32 %s8, 1
    $region12: #{feature_net.24} parent=5 // pred_fallthru
      _
    %p115 = scmp.lt.s32.totalorder %s8, 9
    // Predicated region
    $region13: #{feature_net.24} parent=5 // pred_check
      %p116 = pneg %p115
    $region14: #{feature_net.24} parent=5 // pred_check_branch
      %118 = sbr.rel (%p116) target = $region16
    $region15: #{feature_net.24} parent=5 // pred_region
      // Predicated region
      $region17: #{feature_net.24} parent=15 // pred_check
        %p119 = pneg %p42
      $region18: #{feature_net.24} parent=15 // pred_check_branch
        %121 = sbr.rel (%p119) target = $region20
      $region19: #{feature_net.24} parent=15 // pred_region
        %s122 = smul.u32 4, %s16
        %p123 = scmp.lt.s32.totalorder %s15, 0
        %s124 = scalar_select %p123, %s15, 0
        %p125 = scmp.lt.s32.totalorder %s122, 35
        %s126 = scalar_select %p125, %s122, 35
        %s127 = smul.addr %s124, 36
        %s128 = sadd.s32 %s126, %s127
        %s129 = smul.addr %s128, 4
        %s130 = scalar_lea.vmem %s0, %s129
        %s131 = smul.u32 4, %s16
      $region20: #{feature_net.24} parent=15 // pred_fallthru
        _
      // Predicated region
      $region21: #{feature_net.24} parent=15 // pred_check
        %p132 = pneg %p68
      $region22: #{feature_net.24} parent=15 // pred_check_branch
        %134 = sbr.rel (%p132) target = $region24
      $region23: #{feature_net.24} parent=15 // pred_region
        %s135 = smul.u32 64, %s16
        %p136 = scmp.lt.s32.totalorder %s135, 575
        %s137 = scalar_select %p136, %s135, 575
        %s138 = smul.addr %s137, 4
        %s139 = smul.addr %s138, 4
        %s140 = scalar_lea.vmem %s1, %s139
        %s141 = smul.u32 64, %s16
      $region24: #{feature_net.24} parent=15 // pred_fallthru
        _
    $region16: #{feature_net.24} parent=5 // pred_fallthru
      _
    %p142 = scmp.le.s32.totalorder 1, %s8
    %p143 = scmp.lt.s32.totalorder %s8, 10
    %p144 = pnand %p142, %p143
    %p145 = pneg %p144
    // Predicated region
    $region25: #{feature_net.24} parent=5 // pred_check
      _
    $region26: #{feature_net.24} parent=5 // pred_check_branch
      %147 = sbr.rel (%p144) target = $region28
    $region27: #{feature_net.24} parent=5 // pred_region
      %s148 = ssub.s32 %s8, 1
      %s149 = smul.u32 4, %s18
      %p150 = scmp.lt.s32.totalorder %s17, 0
      %s151 = scalar_select %p150, %s17, 0
      %p152 = scmp.lt.s32.totalorder %s149, 35
      %s153 = scalar_select %p152, %s149, 35
      %s154 = smul.addr %s151, 36
      %s155 = sadd.s32 %s153, %s154
      %s156 = smul.addr %s155, 4
      %s157 = scalar_lea.vmem %s0, %s156
      %p158 = pneg %p48
      %p159 = pneg %p45
      %s160 = smul.u32 64, %s18
      %p161 = scmp.lt.s32.totalorder %s160, 575
      %s162 = scalar_select %p161, %s160, 575
      %s163 = smul.addr %s162, 4
      %s164 = smul.addr %s163, 4
      %s165 = scalar_lea.vmem %s1, %s164
      %p166 = pneg %p74
      %p167 = pneg %p71
      %p168 = pneg %p100
      %p169 = pneg %p97
      %p170 = scmp.lt.s32.totalorder %s17, 0
      %s171 = scalar_select %p170, %s17, 0
      %s172 = smul.addr %s171, 4
      %s173 = smul.addr %s172, 8
      %s174 = scalar_lea.vmem %s2, %s173
      %s175 = smul.u32 4, %s18
      %p176 = scmp.lt.s32.totalorder %s17, 0
      %s177 = scalar_select %p176, %s17, 0
      %p178 = scmp.lt.s32.totalorder %s175, 35
      %s179 = scalar_select %p178, %s175, 35
      %s180 = smul.addr %s177, 36
      %s181 = sadd.s32 %s179, %s180
      %s182 = smul.addr %s181, 4
      %s183 = scalar_lea.vmem %s0, %s182
      %s184 = smul.u32 4, %s18
      %s185 = smul.u32 64, %s18
      %p186 = scmp.lt.s32.totalorder %s185, 575
      %s187 = scalar_select %p186, %s185, 575
      %s188 = smul.addr %s187, 4
      %s189 = smul.addr %s188, 4
      %s190 = scalar_lea.vmem %s1, %s189
      %s191 = smul.u32 64, %s18
      %p192 = scmp.lt.s32.totalorder %s17, 0
      %s193 = scalar_select %p192, %s17, 0
      %s194 = smul.addr %s193, 4
      %s195 = smul.addr %s194, 8
      %s196 = scalar_lea.vmem %s2, %s195
      %p197 = scmp.eq.s32.totalorder %s18, 0
      // Predicated region
      $region29: #{feature_net.24} parent=27 // pred_check
        %p198 = pneg %p197
      $region30: #{feature_net.24} parent=27 // pred_check_branch
        %200 = sbr.rel (%p198) target = $region32
      $region31: #{feature_net.24} parent=27 // pred_region
        %201 = vst [vmem:[#allocation2] sm:$0xff] 0.0
        %202 = vst [vmem:[#allocation2 + $0x8] sm:$0xff] 0.0
        %203 = vst [vmem:[#allocation2 + $0x10] sm:$0xff] 0.0
        %204 = vst [vmem:[#allocation2 + $0x18] sm:$0xff] 0.0
      $region32: #{feature_net.24} parent=27 // pred_fallthru
        _
      %v205 = vld [vmem:[#allocation2] sm:$0xff]
      %v206 = vld [vmem:[#allocation2 + $0x8] sm:$0xff]
      %v207 = vld [vmem:[#allocation2 + $0x10] sm:$0xff]
      %v208 = vld [vmem:[#allocation2 + $0x18] sm:$0xff]
      %v209 = vld [vmem:[%s183] sm:$0xff]
      %v210 = vld [vmem:[%s183 + $0x8] sm:$0xff]
      %v211 = vld [vmem:[%s190] sm:$0xff]
      %v212 = vld [vmem:[%s190 + $0x8] sm:$0xff]
      %v213 = vld [vmem:[%s190 + $0x10] sm:$0xff]
      %v214 = vld [vmem:[%s190 + $0x18] sm:$0xff]
      %v215 = vld [vmem:[%s190 + $0x20] sm:$0xff]
      %v216 = vld [vmem:[%s190 + $0x28] sm:$0xff]
      %v217 = vld [vmem:[%s190 + $0x30] sm:$0xff]
      %v218 = vld [vmem:[%s190 + $0x38] sm:$0xff]
      %v219 = vld [vmem:[%s190 + $0x40] sm:$0xff]
      %v220 = vld [vmem:[%s190 + $0x48] sm:$0xff]
      %v221 = vld [vmem:[%s190 + $0x50] sm:$0xff]
      %v222 = vld [vmem:[%s190 + $0x58] sm:$0xff]
      %v223 = vld [vmem:[%s190 + $0x60] sm:$0xff]
      %v224 = vld [vmem:[%s190 + $0x68] sm:$0xff]
      %v225 = vld [vmem:[%s190 + $0x70] sm:$0xff]
      %v226 = vld [vmem:[%s190 + $0x78] sm:$0xff]
      %v227 = vld [vmem:[%s190 + $0x80] sm:$0xff]
      %v228 = vld [vmem:[%s190 + $0x88] sm:$0xff]
      %v229 = vld [vmem:[%s190 + $0x90] sm:$0xff]
      %v230 = vld [vmem:[%s190 + $0x98] sm:$0xff]
      %v231 = vld [vmem:[%s190 + $0xa0] sm:$0xff]
      %v232 = vld [vmem:[%s190 + $0xa8] sm:$0xff]
      %v233 = vld [vmem:[%s190 + $0xb0] sm:$0xff]
      %v234 = vld [vmem:[%s190 + $0xb8] sm:$0xff]
      %v235 = vld [vmem:[%s190 + $0xc0] sm:$0xff]
      %v236 = vld [vmem:[%s190 + $0xc8] sm:$0xff]
      %v237 = vld [vmem:[%s190 + $0xd0] sm:$0xff]
      %v238 = vld [vmem:[%s190 + $0xd8] sm:$0xff]
      %v239 = vld [vmem:[%s190 + $0xe0] sm:$0xff]
      %v240 = vld [vmem:[%s190 + $0xe8] sm:$0xff]
      %v241 = vld [vmem:[%s190 + $0xf0] sm:$0xff]
      %v242 = vld [vmem:[%s190 + $0xf8] sm:$0xff]
      %v243 = vld [vmem:[%s190 + $0x100] sm:$0xff]
      %v244 = vld [vmem:[%s190 + $0x108] sm:$0xff]
      %v245 = vld [vmem:[%s190 + $0x110] sm:$0xff]
      %v246 = vld [vmem:[%s190 + $0x118] sm:$0xff]
      %v247 = vld [vmem:[%s190 + $0x120] sm:$0xff]
      %v248 = vld [vmem:[%s190 + $0x128] sm:$0xff]
      %v249 = vld [vmem:[%s190 + $0x130] sm:$0xff]
      %v250 = vld [vmem:[%s190 + $0x138] sm:$0xff]
      %v251 = vld [vmem:[%s190 + $0x140] sm:$0xff]
      %v252 = vld [vmem:[%s190 + $0x148] sm:$0xff]
      %v253 = vld [vmem:[%s190 + $0x150] sm:$0xff]
      %v254 = vld [vmem:[%s190 + $0x158] sm:$0xff]
      %v255 = vld [vmem:[%s190 + $0x160] sm:$0xff]
      %v256 = vld [vmem:[%s190 + $0x168] sm:$0xff]
      %v257 = vld [vmem:[%s190 + $0x170] sm:$0xff]
      %v258 = vld [vmem:[%s190 + $0x178] sm:$0xff]
      %v259 = vld [vmem:[%s190 + $0x180] sm:$0xff]
      %v260 = vld [vmem:[%s190 + $0x188] sm:$0xff]
      %v261 = vld [vmem:[%s190 + $0x190] sm:$0xff]
      %v262 = vld [vmem:[%s190 + $0x198] sm:$0xff]
      %v263 = vld [vmem:[%s190 + $0x1a0] sm:$0xff]
      %v264 = vld [vmem:[%s190 + $0x1a8] sm:$0xff]
      %v265 = vld [vmem:[%s190 + $0x1b0] sm:$0xff]
      %v266 = vld [vmem:[%s190 + $0x1b8] sm:$0xff]
      %v267 = vld [vmem:[%s190 + $0x1c0] sm:$0xff]
      %v268 = vld [vmem:[%s190 + $0x1c8] sm:$0xff]
      %v269 = vld [vmem:[%s190 + $0x1d0] sm:$0xff]
      %v270 = vld [vmem:[%s190 + $0x1d8] sm:$0xff]
      %v271 = vld [vmem:[%s190 + $0x1e0] sm:$0xff]
      %v272 = vld [vmem:[%s190 + $0x1e8] sm:$0xff]
      %v273 = vld [vmem:[%s190 + $0x1f0] sm:$0xff]
      %v274 = vld [vmem:[%s190 + $0x1f8] sm:$0xff]
      %v275 = vld [vmem:[%s190 + $0x200] sm:$0xff]
      %v276 = vld [vmem:[%s190 + $0x208] sm:$0xff]
      %v277 = vld [vmem:[%s190 + $0x210] sm:$0xff]
      %v278 = vld [vmem:[%s190 + $0x218] sm:$0xff]
      %v279 = vld [vmem:[%s190 + $0x220] sm:$0xff]
      %v280 = vld [vmem:[%s190 + $0x228] sm:$0xff]
      %v281 = vld [vmem:[%s190 + $0x230] sm:$0xff]
      %v282 = vld [vmem:[%s190 + $0x238] sm:$0xff]
      %v283 = vld [vmem:[%s190 + $0x240] sm:$0xff]
      %v284 = vld [vmem:[%s190 + $0x248] sm:$0xff]
      %v285 = vld [vmem:[%s190 + $0x250] sm:$0xff]
      %v286 = vld [vmem:[%s190 + $0x258] sm:$0xff]
      %v287 = vld [vmem:[%s190 + $0x260] sm:$0xff]
      %v288 = vld [vmem:[%s190 + $0x268] sm:$0xff]
      %v289 = vld [vmem:[%s190 + $0x270] sm:$0xff]
      %v290 = vld [vmem:[%s190 + $0x278] sm:$0xff]
      %v291 = vld [vmem:[%s190 + $0x280] sm:$0xff]
      %v292 = vld [vmem:[%s190 + $0x288] sm:$0xff]
      %v293 = vld [vmem:[%s190 + $0x290] sm:$0xff]
      %v294 = vld [vmem:[%s190 + $0x298] sm:$0xff]
      %v295 = vld [vmem:[%s190 + $0x2a0] sm:$0xff]
      %v296 = vld [vmem:[%s190 + $0x2a8] sm:$0xff]
      %v297 = vld [vmem:[%s190 + $0x2b0] sm:$0xff]
      %v298 = vld [vmem:[%s190 + $0x2b8] sm:$0xff]
      %v299 = vld [vmem:[%s190 + $0x2c0] sm:$0xff]
      %v300 = vld [vmem:[%s190 + $0x2c8] sm:$0xff]
      %v301 = vld [vmem:[%s190 + $0x2d0] sm:$0xff]
      %v302 = vld [vmem:[%s190 + $0x2d8] sm:$0xff]
      %v303 = vld [vmem:[%s190 + $0x2e0] sm:$0xff]
      %v304 = vld [vmem:[%s190 + $0x2e8] sm:$0xff]
      %v305 = vld [vmem:[%s190 + $0x2f0] sm:$0xff]
      %v306 = vld [vmem:[%s190 + $0x2f8] sm:$0xff]
      %v307 = vld [vmem:[%s190 + $0x300] sm:$0xff]
      %v308 = vld [vmem:[%s190 + $0x308] sm:$0xff]
      %v309 = vld [vmem:[%s190 + $0x310] sm:$0xff]
      %v310 = vld [vmem:[%s190 + $0x318] sm:$0xff]
      %v311 = vld [vmem:[%s190 + $0x320] sm:$0xff]
      %v312 = vld [vmem:[%s190 + $0x328] sm:$0xff]
      %v313 = vld [vmem:[%s190 + $0x330] sm:$0xff]
      %v314 = vld [vmem:[%s190 + $0x338] sm:$0xff]
      %v315 = vld [vmem:[%s190 + $0x340] sm:$0xff]
      %v316 = vld [vmem:[%s190 + $0x348] sm:$0xff]
      %v317 = vld [vmem:[%s190 + $0x350] sm:$0xff]
      %v318 = vld [vmem:[%s190 + $0x358] sm:$0xff]
      %v319 = vld [vmem:[%s190 + $0x360] sm:$0xff]
      %v320 = vld [vmem:[%s190 + $0x368] sm:$0xff]
      %v321 = vld [vmem:[%s190 + $0x370] sm:$0xff]
      %v322 = vld [vmem:[%s190 + $0x378] sm:$0xff]
      %v323 = vld [vmem:[%s190 + $0x380] sm:$0xff]
      %v324 = vld [vmem:[%s190 + $0x388] sm:$0xff]
      %v325 = vld [vmem:[%s190 + $0x390] sm:$0xff]
      %v326 = vld [vmem:[%s190 + $0x398] sm:$0xff]
      %v327 = vld [vmem:[%s190 + $0x3a0] sm:$0xff]
      %v328 = vld [vmem:[%s190 + $0x3a8] sm:$0xff]
      %v329 = vld [vmem:[%s190 + $0x3b0] sm:$0xff]
      %v330 = vld [vmem:[%s190 + $0x3b8] sm:$0xff]
      %v331 = vld [vmem:[%s190 + $0x3c0] sm:$0xff]
      %v332 = vld [vmem:[%s190 + $0x3c8] sm:$0xff]
      %v333 = vld [vmem:[%s190 + $0x3d0] sm:$0xff]
      %v334 = vld [vmem:[%s190 + $0x3d8] sm:$0xff]
      %v335 = vld [vmem:[%s190 + $0x3e0] sm:$0xff]
      %v336 = vld [vmem:[%s190 + $0x3e8] sm:$0xff]
      %v337 = vld [vmem:[%s190 + $0x3f0] sm:$0xff]
      %v338 = vld [vmem:[%s190 + $0x3f8] sm:$0xff]
      %v341 = vunpack.c.l.b16 %v209
      %v342 = vunpack.c.h.b16 %v209
      %v343 = vunpack.c.l.b16 %v210
      %v344 = vunpack.c.h.b16 %v210
      %v345 = vpack.c.b16 %v341, %v341
      %v346 = vpack.c.b16 %v342, %v342
      %v347 = vpack.c.b16 %v343, %v343
      %v348 = vpack.c.b16 %v344, %v344
      %v481 = vunpack.c.l.b16 %v211
      %v482 = vunpack.c.h.b16 %v211
      %v483 = vunpack.c.l.b16 %v212
      %v484 = vunpack.c.h.b16 %v212
      %v485 = vunpack.c.l.b16 %v213
      %v486 = vunpack.c.h.b16 %v213
      %v487 = vunpack.c.l.b16 %v214
      %v488 = vunpack.c.h.b16 %v214
      %v489 = vunpack.c.l.b16 %v215
      %v490 = vunpack.c.h.b16 %v215
      %v491 = vunpack.c.l.b16 %v216
      %v492 = vunpack.c.h.b16 %v216
      %v493 = vunpack.c.l.b16 %v217
      %v494 = vunpack.c.h.b16 %v217
      %v495 = vunpack.c.l.b16 %v218
      %v496 = vunpack.c.h.b16 %v218
      %v497 = vunpack.c.l.b16 %v219
      %v498 = vunpack.c.h.b16 %v219
      %v499 = vunpack.c.l.b16 %v220
      %v500 = vunpack.c.h.b16 %v220
      %v501 = vunpack.c.l.b16 %v221
      %v502 = vunpack.c.h.b16 %v221
      %v503 = vunpack.c.l.b16 %v222
      %v504 = vunpack.c.h.b16 %v222
      %v505 = vunpack.c.l.b16 %v223
      %v506 = vunpack.c.h.b16 %v223
      %v507 = vunpack.c.l.b16 %v224
      %v508 = vunpack.c.h.b16 %v224
      %v509 = vunpack.c.l.b16 %v225
      %v510 = vunpack.c.h.b16 %v225
      %v511 = vunpack.c.l.b16 %v226
      %v512 = vunpack.c.h.b16 %v226
      %v513 = vunpack.c.l.b16 %v227
      %v514 = vunpack.c.h.b16 %v227
      %v515 = vunpack.c.l.b16 %v228
      %v516 = vunpack.c.h.b16 %v228
      %v517 = vunpack.c.l.b16 %v229
      %v518 = vunpack.c.h.b16 %v229
      %v519 = vunpack.c.l.b16 %v230
      %v520 = vunpack.c.h.b16 %v230
      %v521 = vunpack.c.l.b16 %v231
      %v522 = vunpack.c.h.b16 %v231
      %v523 = vunpack.c.l.b16 %v232
      %v524 = vunpack.c.h.b16 %v232
      %v525 = vunpack.c.l.b16 %v233
      %v526 = vunpack.c.h.b16 %v233
      %v527 = vunpack.c.l.b16 %v234
      %v528 = vunpack.c.h.b16 %v234
      %v529 = vunpack.c.l.b16 %v235
      %v530 = vunpack.c.h.b16 %v235
      %v531 = vunpack.c.l.b16 %v236
      %v532 = vunpack.c.h.b16 %v236
      %v533 = vunpack.c.l.b16 %v237
      %v534 = vunpack.c.h.b16 %v237
      %v535 = vunpack.c.l.b16 %v238
      %v536 = vunpack.c.h.b16 %v238
      %v537 = vunpack.c.l.b16 %v239
      %v538 = vunpack.c.h.b16 %v239
      %v539 = vunpack.c.l.b16 %v240
      %v540 = vunpack.c.h.b16 %v240
      %v541 = vunpack.c.l.b16 %v241
      %v542 = vunpack.c.h.b16 %v241
      %v543 = vunpack.c.l.b16 %v242
      %v544 = vunpack.c.h.b16 %v242
      %v545 = vunpack.c.l.b16 %v243
      %v546 = vunpack.c.h.b16 %v243
      %v547 = vunpack.c.l.b16 %v244
      %v548 = vunpack.c.h.b16 %v244
      %v549 = vunpack.c.l.b16 %v245
      %v550 = vunpack.c.h.b16 %v245
      %v551 = vunpack.c.l.b16 %v246
      %v552 = vunpack.c.h.b16 %v246
      %v553 = vunpack.c.l.b16 %v247
      %v554 = vunpack.c.h.b16 %v247
      %v555 = vunpack.c.l.b16 %v248
      %v556 = vunpack.c.h.b16 %v248
      %v557 = vunpack.c.l.b16 %v249
      %v558 = vunpack.c.h.b16 %v249
      %v559 = vunpack.c.l.b16 %v250
      %v560 = vunpack.c.h.b16 %v250
      %v561 = vunpack.c.l.b16 %v251
      %v562 = vunpack.c.h.b16 %v251
      %v563 = vunpack.c.l.b16 %v252
      %v564 = vunpack.c.h.b16 %v252
      %v565 = vunpack.c.l.b16 %v253
      %v566 = vunpack.c.h.b16 %v253
      %v567 = vunpack.c.l.b16 %v254
      %v568 = vunpack.c.h.b16 %v254
      %v569 = vunpack.c.l.b16 %v255
      %v570 = vunpack.c.h.b16 %v255
      %v571 = vunpack.c.l.b16 %v256
      %v572 = vunpack.c.h.b16 %v256
      %v573 = vunpack.c.l.b16 %v257
      %v574 = vunpack.c.h.b16 %v257
      %v575 = vunpack.c.l.b16 %v258
      %v576 = vunpack.c.h.b16 %v258
      %v577 = vunpack.c.l.b16 %v259
      %v578 = vunpack.c.h.b16 %v259
      %v579 = vunpack.c.l.b16 %v260
      %v580 = vunpack.c.h.b16 %v260
      %v581 = vunpack.c.l.b16 %v261
      %v582 = vunpack.c.h.b16 %v261
      %v583 = vunpack.c.l.b16 %v262
      %v584 = vunpack.c.h.b16 %v262
      %v585 = vunpack.c.l.b16 %v263
      %v586 = vunpack.c.h.b16 %v263
      %v587 = vunpack.c.l.b16 %v264
      %v588 = vunpack.c.h.b16 %v264
      %v589 = vunpack.c.l.b16 %v265
      %v590 = vunpack.c.h.b16 %v265
      %v591 = vunpack.c.l.b16 %v266
      %v592 = vunpack.c.h.b16 %v266
      %v593 = vunpack.c.l.b16 %v267
      %v594 = vunpack.c.h.b16 %v267
      %v595 = vunpack.c.l.b16 %v268
      %v596 = vunpack.c.h.b16 %v268
      %v597 = vunpack.c.l.b16 %v269
      %v598 = vunpack.c.h.b16 %v269
      %v599 = vunpack.c.l.b16 %v270
      %v600 = vunpack.c.h.b16 %v270
      %v601 = vunpack.c.l.b16 %v271
      %v602 = vunpack.c.h.b16 %v271
      %v603 = vunpack.c.l.b16 %v272
      %v604 = vunpack.c.h.b16 %v272
      %v605 = vunpack.c.l.b16 %v273
      %v606 = vunpack.c.h.b16 %v273
      %v607 = vunpack.c.l.b16 %v274
      %v608 = vunpack.c.h.b16 %v274
      %v609 = vunpack.c.l.b16 %v275
      %v610 = vunpack.c.h.b16 %v275
      %v611 = vunpack.c.l.b16 %v276
      %v612 = vunpack.c.h.b16 %v276
      %v613 = vunpack.c.l.b16 %v277
      %v614 = vunpack.c.h.b16 %v277
      %v615 = vunpack.c.l.b16 %v278
      %v616 = vunpack.c.h.b16 %v278
      %v617 = vunpack.c.l.b16 %v279
      %v618 = vunpack.c.h.b16 %v279
      %v619 = vunpack.c.l.b16 %v280
      %v620 = vunpack.c.h.b16 %v280
      %v621 = vunpack.c.l.b16 %v281
      %v622 = vunpack.c.h.b16 %v281
      %v623 = vunpack.c.l.b16 %v282
      %v624 = vunpack.c.h.b16 %v282
      %v625 = vunpack.c.l.b16 %v283
      %v626 = vunpack.c.h.b16 %v283
      %v627 = vunpack.c.l.b16 %v284
      %v628 = vunpack.c.h.b16 %v284
      %v629 = vunpack.c.l.b16 %v285
      %v630 = vunpack.c.h.b16 %v285
      %v631 = vunpack.c.l.b16 %v286
      %v632 = vunpack.c.h.b16 %v286
      %v633 = vunpack.c.l.b16 %v287
      %v634 = vunpack.c.h.b16 %v287
      %v635 = vunpack.c.l.b16 %v288
      %v636 = vunpack.c.h.b16 %v288
      %v637 = vunpack.c.l.b16 %v289
      %v638 = vunpack.c.h.b16 %v289
      %v639 = vunpack.c.l.b16 %v290
      %v640 = vunpack.c.h.b16 %v290
      %v641 = vunpack.c.l.b16 %v291
      %v642 = vunpack.c.h.b16 %v291
      %v643 = vunpack.c.l.b16 %v292
      %v644 = vunpack.c.h.b16 %v292
      %v645 = vunpack.c.l.b16 %v293
      %v646 = vunpack.c.h.b16 %v293
      %v647 = vunpack.c.l.b16 %v294
      %v648 = vunpack.c.h.b16 %v294
      %v649 = vunpack.c.l.b16 %v295
      %v650 = vunpack.c.h.b16 %v295
      %v651 = vunpack.c.l.b16 %v296
      %v652 = vunpack.c.h.b16 %v296
      %v653 = vunpack.c.l.b16 %v297
      %v654 = vunpack.c.h.b16 %v297
      %v655 = vunpack.c.l.b16 %v298
      %v656 = vunpack.c.h.b16 %v298
      %v657 = vunpack.c.l.b16 %v299
      %v658 = vunpack.c.h.b16 %v299
      %v659 = vunpack.c.l.b16 %v300
      %v660 = vunpack.c.h.b16 %v300
      %v661 = vunpack.c.l.b16 %v301
      %v662 = vunpack.c.h.b16 %v301
      %v663 = vunpack.c.l.b16 %v302
      %v664 = vunpack.c.h.b16 %v302
      %v665 = vunpack.c.l.b16 %v303
      %v666 = vunpack.c.h.b16 %v303
      %v667 = vunpack.c.l.b16 %v304
      %v668 = vunpack.c.h.b16 %v304
      %v669 = vunpack.c.l.b16 %v305
      %v670 = vunpack.c.h.b16 %v305
      %v671 = vunpack.c.l.b16 %v306
      %v672 = vunpack.c.h.b16 %v306
      %v673 = vunpack.c.l.b16 %v307
      %v674 = vunpack.c.h.b16 %v307
      %v675 = vunpack.c.l.b16 %v308
      %v676 = vunpack.c.h.b16 %v308
      %v677 = vunpack.c.l.b16 %v309
      %v678 = vunpack.c.h.b16 %v309
      %v679 = vunpack.c.l.b16 %v310
      %v680 = vunpack.c.h.b16 %v310
      %v681 = vunpack.c.l.b16 %v311
      %v682 = vunpack.c.h.b16 %v311
      %v683 = vunpack.c.l.b16 %v312
      %v684 = vunpack.c.h.b16 %v312
      %v685 = vunpack.c.l.b16 %v313
      %v686 = vunpack.c.h.b16 %v313
      %v687 = vunpack.c.l.b16 %v314
      %v688 = vunpack.c.h.b16 %v314
      %v689 = vunpack.c.l.b16 %v315
      %v690 = vunpack.c.h.b16 %v315
      %v691 = vunpack.c.l.b16 %v316
      %v692 = vunpack.c.h.b16 %v316
      %v693 = vunpack.c.l.b16 %v317
      %v694 = vunpack.c.h.b16 %v317
      %v695 = vunpack.c.l.b16 %v318
      %v696 = vunpack.c.h.b16 %v318
      %v697 = vunpack.c.l.b16 %v319
      %v698 = vunpack.c.h.b16 %v319
      %v699 = vunpack.c.l.b16 %v320
      %v700 = vunpack.c.h.b16 %v320
      %v701 = vunpack.c.l.b16 %v321
      %v702 = vunpack.c.h.b16 %v321
      %v703 = vunpack.c.l.b16 %v322
      %v704 = vunpack.c.h.b16 %v322
      %v705 = vunpack.c.l.b16 %v323
      %v706 = vunpack.c.h.b16 %v323
      %v707 = vunpack.c.l.b16 %v324
      %v708 = vunpack.c.h.b16 %v324
      %v709 = vunpack.c.l.b16 %v325
      %v710 = vunpack.c.h.b16 %v325
      %v711 = vunpack.c.l.b16 %v326
      %v712 = vunpack.c.h.b16 %v326
      %v713 = vunpack.c.l.b16 %v327
      %v714 = vunpack.c.h.b16 %v327
      %v715 = vunpack.c.l.b16 %v328
      %v716 = vunpack.c.h.b16 %v328
      %v717 = vunpack.c.l.b16 %v329
      %v718 = vunpack.c.h.b16 %v329
      %v719 = vunpack.c.l.b16 %v330
      %v720 = vunpack.c.h.b16 %v330
      %v721 = vunpack.c.l.b16 %v331
      %v722 = vunpack.c.h.b16 %v331
      %v723 = vunpack.c.l.b16 %v332
      %v724 = vunpack.c.h.b16 %v332
      %v725 = vunpack.c.l.b16 %v333
      %v726 = vunpack.c.h.b16 %v333
      %v727 = vunpack.c.l.b16 %v334
      %v728 = vunpack.c.h.b16 %v334
      %v729 = vunpack.c.l.b16 %v335
      %v730 = vunpack.c.h.b16 %v335
      %v731 = vunpack.c.l.b16 %v336
      %v732 = vunpack.c.h.b16 %v336
      %v733 = vunpack.c.l.b16 %v337
      %v734 = vunpack.c.h.b16 %v337
      %v735 = vunpack.c.l.b16 %v338
      %v736 = vunpack.c.h.b16 %v338
      %v737 = vpack.c.b16 %v485, %v481
      %v738 = vpack.c.b16 %v486, %v482
      %v739 = vpack.c.b16 %v487, %v483
      %v740 = vpack.c.b16 %v488, %v484
      %v741 = vpack.c.b16 %v493, %v489
      %v742 = vpack.c.b16 %v494, %v490
      %v743 = vpack.c.b16 %v495, %v491
      %v744 = vpack.c.b16 %v496, %v492
      %v745 = vpack.c.b16 %v501, %v497
      %v746 = vpack.c.b16 %v502, %v498
      %v747 = vpack.c.b16 %v503, %v499
      %v748 = vpack.c.b16 %v504, %v500
      %v749 = vpack.c.b16 %v509, %v505
      %v750 = vpack.c.b16 %v510, %v506
      %v751 = vpack.c.b16 %v511, %v507
      %v752 = vpack.c.b16 %v512, %v508
      %v753 = vpack.c.b16 %v517, %v513
      %v754 = vpack.c.b16 %v518, %v514
      %v755 = vpack.c.b16 %v519, %v515
      %v756 = vpack.c.b16 %v520, %v516
      %v757 = vpack.c.b16 %v525, %v521
      %v758 = vpack.c.b16 %v526, %v522
      %v759 = vpack.c.b16 %v527, %v523
      %v760 = vpack.c.b16 %v528, %v524
      %v761 = vpack.c.b16 %v533, %v529
      %v762 = vpack.c.b16 %v534, %v530
      %v763 = vpack.c.b16 %v535, %v531
      %v764 = vpack.c.b16 %v536, %v532
      %v765 = vpack.c.b16 %v541, %v537
      %v766 = vpack.c.b16 %v542, %v538
      %v767 = vpack.c.b16 %v543, %v539
      %v768 = vpack.c.b16 %v544, %v540
      %v769 = vpack.c.b16 %v549, %v545
      %v770 = vpack.c.b16 %v550, %v546
      %v771 = vpack.c.b16 %v551, %v547
      %v772 = vpack.c.b16 %v552, %v548
      %v773 = vpack.c.b16 %v557, %v553
      %v774 = vpack.c.b16 %v558, %v554
      %v775 = vpack.c.b16 %v559, %v555
      %v776 = vpack.c.b16 %v560, %v556
      %v777 = vpack.c.b16 %v565, %v561
      %v778 = vpack.c.b16 %v566, %v562
      %v779 = vpack.c.b16 %v567, %v563
      %v780 = vpack.c.b16 %v568, %v564
      %v781 = vpack.c.b16 %v573, %v569
      %v782 = vpack.c.b16 %v574, %v570
      %v783 = vpack.c.b16 %v575, %v571
      %v784 = vpack.c.b16 %v576, %v572
      %v785 = vpack.c.b16 %v581, %v577
      %v786 = vpack.c.b16 %v582, %v578
      %v787 = vpack.c.b16 %v583, %v579
      %v788 = vpack.c.b16 %v584, %v580
      %v789 = vpack.c.b16 %v589, %v585
      %v790 = vpack.c.b16 %v590, %v586
      %v791 = vpack.c.b16 %v591, %v587
      %v792 = vpack.c.b16 %v592, %v588
      %v793 = vpack.c.b16 %v597, %v593
      %v794 = vpack.c.b16 %v598, %v594
      %v795 = vpack.c.b16 %v599, %v595
      %v796 = vpack.c.b16 %v600, %v596
      %v797 = vpack.c.b16 %v605, %v601
      %v798 = vpack.c.b16 %v606, %v602
      %v799 = vpack.c.b16 %v607, %v603
      %v800 = vpack.c.b16 %v608, %v604
      %v801 = vpack.c.b16 %v613, %v609
      %v802 = vpack.c.b16 %v614, %v610
      %v803 = vpack.c.b16 %v615, %v611
      %v804 = vpack.c.b16 %v616, %v612
      %v805 = vpack.c.b16 %v621, %v617
      %v806 = vpack.c.b16 %v622, %v618
      %v807 = vpack.c.b16 %v623, %v619
      %v808 = vpack.c.b16 %v624, %v620
      %v809 = vpack.c.b16 %v629, %v625
      %v810 = vpack.c.b16 %v630, %v626
      %v811 = vpack.c.b16 %v631, %v627
      %v812 = vpack.c.b16 %v632, %v628
      %v813 = vpack.c.b16 %v637, %v633
      %v814 = vpack.c.b16 %v638, %v634
      %v815 = vpack.c.b16 %v639, %v635
      %v816 = vpack.c.b16 %v640, %v636
      %v817 = vpack.c.b16 %v645, %v641
      %v818 = vpack.c.b16 %v646, %v642
      %v819 = vpack.c.b16 %v647, %v643
      %v820 = vpack.c.b16 %v648, %v644
      %v821 = vpack.c.b16 %v653, %v649
      %v822 = vpack.c.b16 %v654, %v650
      %v823 = vpack.c.b16 %v655, %v651
      %v824 = vpack.c.b16 %v656, %v652
      %v825 = vpack.c.b16 %v661, %v657
      %v826 = vpack.c.b16 %v662, %v658
      %v827 = vpack.c.b16 %v663, %v659
      %v828 = vpack.c.b16 %v664, %v660
      %v829 = vpack.c.b16 %v669, %v665
      %v830 = vpack.c.b16 %v670, %v666
      %v831 = vpack.c.b16 %v671, %v667
      %v832 = vpack.c.b16 %v672, %v668
      %v833 = vpack.c.b16 %v677, %v673
      %v834 = vpack.c.b16 %v678, %v674
      %v835 = vpack.c.b16 %v679, %v675
      %v836 = vpack.c.b16 %v680, %v676
      %v837 = vpack.c.b16 %v685, %v681
      %v838 = vpack.c.b16 %v686, %v682
      %v839 = vpack.c.b16 %v687, %v683
      %v840 = vpack.c.b16 %v688, %v684
      %v841 = vpack.c.b16 %v693, %v689
      %v842 = vpack.c.b16 %v694, %v690
      %v843 = vpack.c.b16 %v695, %v691
      %v844 = vpack.c.b16 %v696, %v692
      %v845 = vpack.c.b16 %v701, %v697
      %v846 = vpack.c.b16 %v702, %v698
      %v847 = vpack.c.b16 %v703, %v699
      %v848 = vpack.c.b16 %v704, %v700
      %v849 = vpack.c.b16 %v709, %v705
      %v850 = vpack.c.b16 %v710, %v706
      %v851 = vpack.c.b16 %v711, %v707
      %v852 = vpack.c.b16 %v712, %v708
      %v853 = vpack.c.b16 %v717, %v713
      %v854 = vpack.c.b16 %v718, %v714
      %v855 = vpack.c.b16 %v719, %v715
      %v856 = vpack.c.b16 %v720, %v716
      %v857 = vpack.c.b16 %v725, %v721
      %v858 = vpack.c.b16 %v726, %v722
      %v859 = vpack.c.b16 %v727, %v723
      %v860 = vpack.c.b16 %v728, %v724
      %v861 = vpack.c.b16 %v733, %v729
      %v862 = vpack.c.b16 %v734, %v730
      %v863 = vpack.c.b16 %v735, %v731
      %v864 = vpack.c.b16 %v736, %v732
      %993 = vmatprep.subr.bf16.mxu0 %v738
      %994 = vmatpush1.bf16.msra.mxu0 %v737
      %995 = vmatprep.subr.bf16.mxu0 %v742
      %996 = vmatpush1.bf16.msra.mxu0 %v741
      %997 = vmatprep.subr.bf16.mxu0 %v746
      %998 = vmatpush1.bf16.msra.mxu0 %v745
      %999 = vmatprep.subr.bf16.mxu0 %v750
      %1000 = vmatpush1.bf16.msra.mxu0 %v749
      %1001 = vmatprep.subr.bf16.mxu0 %v754
      %1002 = vmatpush1.bf16.msra.mxu0 %v753
      %1003 = vmatprep.subr.bf16.mxu0 %v758
      %1004 = vmatpush1.bf16.msra.mxu0 %v757
      %1005 = vmatprep.subr.bf16.mxu0 %v762
      %1006 = vmatpush1.bf16.msra.mxu0 %v761
      %1007 = vmatprep.subr.bf16.mxu0 %v766
      %1008 = vmatpush1.bf16.msra.mxu0 %v765
      %1009 = vmatprep.subr.bf16.mxu0 %v770
      %1010 = vmatpush1.bf16.msra.mxu0 %v769
      %1011 = vmatprep.subr.bf16.mxu0 %v774
      %1012 = vmatpush1.bf16.msra.mxu0 %v773
      %1013 = vmatprep.subr.bf16.mxu0 %v778
      %1014 = vmatpush1.bf16.msra.mxu0 %v777
      %1015 = vmatprep.subr.bf16.mxu0 %v782
      %1016 = vmatpush1.bf16.msra.mxu0 %v781
      %1017 = vmatprep.subr.bf16.mxu0 %v786
      %1018 = vmatpush1.bf16.msra.mxu0 %v785
      %1019 = vmatprep.subr.bf16.mxu0 %v790
      %1020 = vmatpush1.bf16.msra.mxu0 %v789
      %1021 = vmatprep.subr.bf16.mxu0 %v794
      %1022 = vmatpush1.bf16.msra.mxu0 %v793
      %1023 = vmatprep.subr.bf16.mxu0 %v798
      %1024 = vmatpush1.bf16.msra.mxu0 %v797
      %1025 = vmatprep.mubr.bf16.mxu0 %v346
      %1026 = vmatmul.mubr.bf16.gmra.mrb[0].mxu0 %v345
      %v1027 = vpop.f32.mrb[0].mxu0
      %v1028 = vadd.f32 0.0, %v1027
      %v1029 = vpop.f32.mrb[0].mxu0
      %v1030 = vadd.f32 0.0, %v1029
      %v1031 = vpop.f32.mrb[0].mxu0
      %v1032 = vpop.f32.mrb[0].mxu0
      %1033 = vdwg.mxu0
      %1034 = vmatprep.subr.bf16.mxu0 %v802
      %1035 = vmatpush1.bf16.msra.mxu0 %v801
      %1036 = vmatprep.subr.bf16.mxu0 %v806
      %1037 = vmatpush1.bf16.msra.mxu0 %v805
      %1038 = vmatprep.subr.bf16.mxu0 %v810
      %1039 = vmatpush1.bf16.msra.mxu0 %v809
      %1040 = vmatprep.subr.bf16.mxu0 %v814
      %1041 = vmatpush1.bf16.msra.mxu0 %v813
      %1042 = vmatprep.subr.bf16.mxu0 %v818
      %1043 = vmatpush1.bf16.msra.mxu0 %v817
      %1044 = vmatprep.subr.bf16.mxu0 %v822
      %1045 = vmatpush1.bf16.msra.mxu0 %v821
      %1046 = vmatprep.subr.bf16.mxu0 %v826
      %1047 = vmatpush1.bf16.msra.mxu0 %v825
      %1048 = vmatprep.subr.bf16.mxu0 %v830
      %1049 = vmatpush1.bf16.msra.mxu0 %v829
      %1050 = vmatprep.subr.bf16.mxu0 %v834
      %1051 = vmatpush1.bf16.msra.mxu0 %v833
      %1052 = vmatprep.subr.bf16.mxu0 %v838
      %1053 = vmatpush1.bf16.msra.mxu0 %v837
      %1054 = vmatprep.subr.bf16.mxu0 %v842
      %1055 = vmatpush1.bf16.msra.mxu0 %v841
      %1056 = vmatprep.subr.bf16.mxu0 %v846
      %1057 = vmatpush1.bf16.msra.mxu0 %v845
      %1058 = vmatprep.subr.bf16.mxu0 %v850
      %1059 = vmatpush1.bf16.msra.mxu0 %v849
      %1060 = vmatprep.subr.bf16.mxu0 %v854
      %1061 = vmatpush1.bf16.msra.mxu0 %v853
      %1062 = vmatprep.subr.bf16.mxu0 %v858
      %1063 = vmatpush1.bf16.msra.mxu0 %v857
      %1064 = vmatprep.subr.bf16.mxu0 %v862
      %1065 = vmatpush1.bf16.msra.mxu0 %v861
      %1066 = vmatprep.mubr.bf16.mxu0 %v348
      %1067 = vmatmul.mubr.bf16.gmra.mrb[0].mxu0 %v347
      %v1068 = vpop.f32.mrb[0].mxu0
      %v1069 = vadd.f32 %v1028, %v1068
      %v1070 = vpop.f32.mrb[0].mxu0
      %v1071 = vadd.f32 %v1030, %v1070
      %v1072 = vpop.f32.mrb[0].mxu0
      %v1073 = vpop.f32.mrb[0].mxu0
      %1074 = vdwg.mxu0
      %1075 = vmatprep.subr.bf16.mxu0 %v740
      %1076 = vmatpush1.bf16.msra.mxu0 %v739
      %1077 = vmatprep.subr.bf16.mxu0 %v744
      %1078 = vmatpush1.bf16.msra.mxu0 %v743
      %1079 = vmatprep.subr.bf16.mxu0 %v748
      %1080 = vmatpush1.bf16.msra.mxu0 %v747
      %1081 = vmatprep.subr.bf16.mxu0 %v752
      %1082 = vmatpush1.bf16.msra.mxu0 %v751
      %1083 = vmatprep.subr.bf16.mxu0 %v756
      %1084 = vmatpush1.bf16.msra.mxu0 %v755
      %1085 = vmatprep.subr.bf16.mxu0 %v760
      %1086 = vmatpush1.bf16.msra.mxu0 %v759
      %1087 = vmatprep.subr.bf16.mxu0 %v764
      %1088 = vmatpush1.bf16.msra.mxu0 %v763
      %1089 = vmatprep.subr.bf16.mxu0 %v768
      %1090 = vmatpush1.bf16.msra.mxu0 %v767
      %1091 = vmatprep.subr.bf16.mxu0 %v772
      %1092 = vmatpush1.bf16.msra.mxu0 %v771
      %1093 = vmatprep.subr.bf16.mxu0 %v776
      %1094 = vmatpush1.bf16.msra.mxu0 %v775
      %1095 = vmatprep.subr.bf16.mxu0 %v780
      %1096 = vmatpush1.bf16.msra.mxu0 %v779
      %1097 = vmatprep.subr.bf16.mxu0 %v784
      %1098 = vmatpush1.bf16.msra.mxu0 %v783
      %1099 = vmatprep.subr.bf16.mxu0 %v788
      %1100 = vmatpush1.bf16.msra.mxu0 %v787
      %1101 = vmatprep.subr.bf16.mxu0 %v792
      %1102 = vmatpush1.bf16.msra.mxu0 %v791
      %1103 = vmatprep.subr.bf16.mxu0 %v796
      %1104 = vmatpush1.bf16.msra.mxu0 %v795
      %1105 = vmatprep.subr.bf16.mxu0 %v800
      %1106 = vmatpush1.bf16.msra.mxu0 %v799
      %1107 = vmatprep.mubr.bf16.mxu0 %v346
      %1108 = vmatmul.mubr.bf16.gmra.mrb[0].mxu0 %v345
      %v1109 = vpop.f32.mrb[0].mxu0
      %v1110 = vadd.f32 0.0, %v1109
      %v1111 = vpop.f32.mrb[0].mxu0
      %v1112 = vadd.f32 0.0, %v1111
      %v1113 = vpop.f32.mrb[0].mxu0
      %v1114 = vpop.f32.mrb[0].mxu0
      %1115 = vdwg.mxu0
      %1116 = vmatprep.subr.bf16.mxu0 %v804
      %1117 = vmatpush1.bf16.msra.mxu0 %v803
      %1118 = vmatprep.subr.bf16.mxu0 %v808
      %1119 = vmatpush1.bf16.msra.mxu0 %v807
      %1120 = vmatprep.subr.bf16.mxu0 %v812
      %1121 = vmatpush1.bf16.msra.mxu0 %v811
      %1122 = vmatprep.subr.bf16.mxu0 %v816
      %1123 = vmatpush1.bf16.msra.mxu0 %v815
      %1124 = vmatprep.subr.bf16.mxu0 %v820
      %1125 = vmatpush1.bf16.msra.mxu0 %v819
      %1126 = vmatprep.subr.bf16.mxu0 %v824
      %1127 = vmatpush1.bf16.msra.mxu0 %v823
      %1128 = vmatprep.subr.bf16.mxu0 %v828
      %1129 = vmatpush1.bf16.msra.mxu0 %v827
      %1130 = vmatprep.subr.bf16.mxu0 %v832
      %1131 = vmatpush1.bf16.msra.mxu0 %v831
      %1132 = vmatprep.subr.bf16.mxu0 %v836
      %1133 = vmatpush1.bf16.msra.mxu0 %v835
      %1134 = vmatprep.subr.bf16.mxu0 %v840
      %1135 = vmatpush1.bf16.msra.mxu0 %v839
      %1136 = vmatprep.subr.bf16.mxu0 %v844
      %1137 = vmatpush1.bf16.msra.mxu0 %v843
      %1138 = vmatprep.subr.bf16.mxu0 %v848
      %1139 = vmatpush1.bf16.msra.mxu0 %v847
      %1140 = vmatprep.subr.bf16.mxu0 %v852
      %1141 = vmatpush1.bf16.msra.mxu0 %v851
      %1142 = vmatprep.subr.bf16.mxu0 %v856
      %1143 = vmatpush1.bf16.msra.mxu0 %v855
      %1144 = vmatprep.subr.bf16.mxu0 %v860
      %1145 = vmatpush1.bf16.msra.mxu0 %v859
      %1146 = vmatprep.subr.bf16.mxu0 %v864
      %1147 = vmatpush1.bf16.msra.mxu0 %v863
      %1148 = vmatprep.mubr.bf16.mxu0 %v348
      %1149 = vmatmul.mubr.bf16.gmra.mrb[0].mxu0 %v347
      %v1150 = vpop.f32.mrb[0].mxu0
      %v1151 = vadd.f32 %v1110, %v1150
      %v1152 = vpop.f32.mrb[0].mxu0
      %v1153 = vadd.f32 %v1112, %v1152
      %v1154 = vpop.f32.mrb[0].mxu0
      %v1155 = vpop.f32.mrb[0].mxu0
      %1156 = vdwg.mxu0
      %v1157 = vadd.f32 %v205, %v1069
      %v1158 = vadd.f32 %v206, %v1071
      %v1159 = vadd.f32 %v207, %v1151
      %v1160 = vadd.f32 %v208, %v1153
      %1161 = vst [vmem:[#allocation2] sm:$0xff] %v1157
      %1162 = vst [vmem:[#allocation2 + $0x8] sm:$0xff] %v1158
      %1163 = vst [vmem:[#allocation2 + $0x10] sm:$0xff] %v1159
      %1164 = vst [vmem:[#allocation2 + $0x18] sm:$0xff] %v1160
      %p1165 = scmp.eq.s32.totalorder %s18, 8
      // Predicated region
      $region33: #{feature_net.24} parent=27 // pred_check
        %p1166 = pneg %p1165
      $region34: #{feature_net.24} parent=27 // pred_check_branch
        %1168 = sbr.rel (%p1166) target = $region36
      $region35: #{feature_net.24} parent=27 // pred_region
        %v1169 = vld [vmem:[#allocation2] sm:$0xff]
        %v1170 = vld [vmem:[#allocation2 + $0x8] sm:$0xff]
        %v1171 = vld [vmem:[#allocation2 + $0x10] sm:$0xff]
        %v1172 = vld [vmem:[#allocation2 + $0x18] sm:$0xff]
        %1173 = vst [vmem:[%s196] sm:$0xff] %v1169
        %1174 = vst [vmem:[%s196 + $0x8] sm:$0xff] %v1170
        %1175 = vst [vmem:[%s196 + $0x10] sm:$0xff] %v1171
        %1176 = vst [vmem:[%s196 + $0x18] sm:$0xff] %v1172
      $region36: #{feature_net.24} parent=27 // pred_fallthru
        _
      %p1177 = scmp.lt.s32.totalorder %s17, 0
      %s1178 = scalar_select %p1177, %s17, 0
      %s1179 = smul.addr %s1178, 4
      %s1180 = smul.addr %s1179, 8
      %s1181 = scalar_lea.vmem %s2, %s1180
      // Predicated region
      $region37: #{feature_net.24} parent=27 // pred_check
        %p1182 = pneg %p97
      $region38: #{feature_net.24} parent=27 // pred_check_branch
        %1184 = sbr.rel (%p1182) target = $region40
      $region39: #{feature_net.24} parent=27 // pred_region
        _
      $region40: #{feature_net.24} parent=27 // pred_fallthru
        _
      // Predicated region
      $region41: #{feature_net.24} parent=27 // pred_check
        %p1185 = pneg %p97
      $region42: #{feature_net.24} parent=27 // pred_check_branch
        %1187 = sbr.rel (%p1185) target = $region44
      $region43: #{feature_net.24} parent=27 // pred_region
        %p1188 = scmp.lt.s32.totalorder %s17, 0
        %s1189 = scalar_select %p1188, %s17, 0
        %s1190 = smul.addr %s1189, 4
        %s1191 = smul.addr %s1190, 8
        %s1192 = scalar_lea.vmem %s2, %s1191
      $region44: #{feature_net.24} parent=27 // pred_fallthru
        _
    $region28: #{feature_net.24} parent=5 // pred_fallthru
      _
    %p1193 = scmp.le.s32.totalorder 2, %s8
    // Predicated region
    $region45: #{feature_net.24} parent=5 // pred_check
      %p1194 = pneg %p1193
    $region46: #{feature_net.24} parent=5 // pred_check_branch
      %1196 = sbr.rel (%p1194) target = $region48
    $region47: #{feature_net.24} parent=5 // pred_region
      %s1197 = ssub.s32 %s8, 2
    $region48: #{feature_net.24} parent=5 // pred_fallthru
      _
  $region6: #{feature_net.24} parent=0 // loop_footer
    %s12 = sadd.s32 1, %s8
  $region7: #{feature_net.24} parent=0 // loop_footer_branch
    %7 = sbr.rel target = $region3
  $region8: #{feature_net.24} parent=0 // loop_exit
    _

// kernel: feature_net.26
$region0: #{feature_net.26}
  #allocation0 [shape = 'u32[]', space=smem, size = 0x4, offset = 0x4, fixed_abs, tag = 'smem constant byte address 0x4 - core index']
  #allocation1 [shape = 'u32[144,128]{1,0:T(1,128)}', space=vmem, size = 0x12000, scoped, tag = 'internal scratch']
  %s0 = inlined_call_operand.vmem [shape: f32[2,4,512], index: 0, kind: input, shape index: {}]
  %s1 = inlined_call_operand.vmem [shape: f32[2,1,512], index: 1, kind: input, shape index: {}]
  %s2 = inlined_call_operand.vmem [shape: f32[2,1,512], index: 2, kind: input, shape index: {}]
  %s3 = inlined_call_operand.vmem [shape: f32[2,4,512], index: 3, kind: output, shape index: {}]
  %s4 = sld [smem:[#allocation0]]
  $region45: #{feature_net.26} parent=0
    _
  %s6 = ssub.s32 1, %s4
  %s7 = scalar_select 0, %s6, %s4
  loop: start=0, step=1, limit=4
  $region2: #{feature_net.26} parent=0 // loop_pre_header
    _
  $region3: #{feature_net.26} parent=0 // loop_header
    %s9 = sphi 0, %s13
    %p10 = scmp.ge.s32.totalorder %s9, 4
    %s16 = sphi 0, %s28
    %s17 = sphi 0, %s24
    %s18 = sphi 0, %s16
    %s19 = sphi 0, %s17
    %s20 = sphi 0, %s18
    %s21 = sphi 0, %s19
    %s33 = sphi 0, %s35
    %s36 = sphi 0, %s33
    %s37 = sphi 0, %s36
    %s53 = sphi 0, %s37
    %s59 = sphi 0, %s61
    %s62 = sphi 0, %s59
    %s63 = sphi 0, %s62
    %s79 = sphi 0, %s63
    %s85 = sphi 0, %s87
    %s88 = sphi 0, %s85
    %s89 = sphi 0, %s88
    %s105 = sphi 0, %s89
    %s113 = sphi 0, %s115
    %s116 = sphi 0, %s113
    %s117 = sphi 0, %s116
    %s133 = sphi 0, %s117
  $region4: #{feature_net.26} parent=0 // loop_header_branch
    %12 = sbr.rel (%p10) target = $region8
  $region5: #{feature_net.26} parent=0 // loop_body
    %s14 = ssub.s32 %s9, 1
    %s15 = ssub.s32 %s9, 2
    %s22 = sadd.s32 1, %s17
    %p23 = scmp.ge.s32.totalorder %s22, 1
    %s24 = scalar_select %p23, 0, %s22
    %s25 = sadd.s32 1, %s16
    %s26 = scalar_select %p23, %s25, %s16
    %p27 = scmp.ge.s32.totalorder %s26, 2
    %s28 = scalar_select %p27, 0, %s26
    %s29 = ssub.s32 %s16, %s28
    %s30 = ssub.s32 %s17, %s24
    %s31 = sor.u32 %s29, %s30
    %p32 = scmp.eq.s32.totalorder %s31, 0
    %s34 = sadd.s32 %s33, 1
    %s35 = scalar_select %p32, %s33, %s34
    %p38 = pneg %p32
    %p39 = scmp.eq.s32.totalorder %s9, 1
    %p40 = por %p38, %p39
    %p41 = scmp.ne.s32.totalorder %s33, %s36
    %p42 = scmp.eq.s32.totalorder %s9, 0
    %p43 = por %p41, %p42
    %p44 = scmp.ne.s32.totalorder %s33, %s36
    %p45 = scmp.eq.s32.totalorder %s14, 1
    %p46 = por %p44, %p45
    %p47 = scmp.ne.s32.totalorder %s36, %s37
    %p48 = scmp.eq.s32.totalorder %s14, 0
    %p49 = por %p47, %p48
    %p50 = scmp.ne.s32.totalorder %s36, %s37
    %p51 = scmp.eq.s32.totalorder %s15, 1
    %p52 = por %p50, %p51
    %p54 = scmp.ne.s32.totalorder %s37, %s53
    %p55 = scmp.eq.s32.totalorder %s15, 0
    %p56 = por %p54, %p55
    %s57 = ssub.s32 %s16, %s28
    %p58 = scmp.eq.s32.totalorder %s57, 0
    %s60 = sadd.s32 %s59, 1
    %s61 = scalar_select %p58, %s59, %s60
    %p64 = pneg %p58
    %p65 = scmp.eq.s32.totalorder %s9, 1
    %p66 = por %p64, %p65
    %p67 = scmp.ne.s32.totalorder %s59, %s62
    %p68 = scmp.eq.s32.totalorder %s9, 0
    %p69 = por %p67, %p68
    %p70 = scmp.ne.s32.totalorder %s59, %s62
    %p71 = scmp.eq.s32.totalorder %s14, 1
    %p72 = por %p70, %p71
    %p73 = scmp.ne.s32.totalorder %s62, %s63
    %p74 = scmp.eq.s32.totalorder %s14, 0
    %p75 = por %p73, %p74
    %p76 = scmp.ne.s32.totalorder %s62, %s63
    %p77 = scmp.eq.s32.totalorder %s15, 1
    %p78 = por %p76, %p77
    %p80 = scmp.ne.s32.totalorder %s63, %s79
    %p81 = scmp.eq.s32.totalorder %s15, 0
    %p82 = por %p80, %p81
    %s83 = ssub.s32 %s16, %s28
    %p84 = scmp.eq.s32.totalorder %s83, 0
    %s86 = sadd.s32 %s85, 1
    %s87 = scalar_select %p84, %s85, %s86
    %p90 = pneg %p84
    %p91 = scmp.eq.s32.totalorder %s9, 1
    %p92 = por %p90, %p91
    %p93 = scmp.ne.s32.totalorder %s85, %s88
    %p94 = scmp.eq.s32.totalorder %s9, 0
    %p95 = por %p93, %p94
    %p96 = scmp.ne.s32.totalorder %s85, %s88
    %p97 = scmp.eq.s32.totalorder %s14, 1
    %p98 = por %p96, %p97
    %p99 = scmp.ne.s32.totalorder %s88, %s89
    %p100 = scmp.eq.s32.totalorder %s14, 0
    %p101 = por %p99, %p100
    %p102 = scmp.ne.s32.totalorder %s88, %s89
    %p103 = scmp.eq.s32.totalorder %s15, 1
    %p104 = por %p102, %p103
    %p106 = scmp.ne.s32.totalorder %s89, %s105
    %p107 = scmp.eq.s32.totalorder %s15, 0
    %p108 = por %p106, %p107
    %s109 = ssub.s32 %s16, %s28
    %s110 = ssub.s32 %s17, %s24
    %s111 = sor.u32 %s109, %s110
    %p112 = scmp.eq.s32.totalorder %s111, 0
    %s114 = sadd.s32 %s113, 1
    %s115 = scalar_select %p112, %s113, %s114
    %p118 = pneg %p112
    %p119 = scmp.eq.s32.totalorder %s9, 1
    %p120 = por %p118, %p119
    %p121 = scmp.ne.s32.totalorder %s113, %s116
    %p122 = scmp.eq.s32.totalorder %s9, 0
    %p123 = por %p121, %p122
    %p124 = scmp.ne.s32.totalorder %s113, %s116
    %p125 = scmp.eq.s32.totalorder %s14, 1
    %p126 = por %p124, %p125
    %p127 = scmp.ne.s32.totalorder %s116, %s117
    %p128 = scmp.eq.s32.totalorder %s14, 0
    %p129 = por %p127, %p128
    %p130 = scmp.ne.s32.totalorder %s116, %s117
    %p131 = scmp.eq.s32.totalorder %s15, 1
    %p132 = por %p130, %p131
    %p134 = scmp.ne.s32.totalorder %s117, %s133
    %p135 = scmp.eq.s32.totalorder %s15, 0
    %p136 = por %p134, %p135
    %p137 = scmp.le.s32.totalorder 1, %s9
    %p138 = scmp.lt.s32.totalorder %s9, 3
    %p139 = pnand %p137, %p138
    %p140 = pneg %p139
    // Predicated region
    $region9: #{feature_net.26} parent=5 // pred_check
      _
    $region10: #{feature_net.26} parent=5 // pred_check_branch
      %142 = sbr.rel (%p139) target = $region12
    $region11: #{feature_net.26} parent=5 // pred_region
      %s143 = ssub.s32 %s9, 1
    $region12: #{feature_net.26} parent=5 // pred_fallthru
      _
    %p144 = scmp.lt.s32.totalorder %s9, 2
    // Predicated region
    $region13: #{feature_net.26} parent=5 // pred_check
      %p145 = pneg %p144
    $region14: #{feature_net.26} parent=5 // pred_check_branch
      %147 = sbr.rel (%p145) target = $region16
    $region15: #{feature_net.26} parent=5 // pred_region
      // Predicated region
      $region17: #{feature_net.26} parent=15 // pred_check
        %p148 = pneg %p43
      $region18: #{feature_net.26} parent=15 // pred_check_branch
        %150 = sbr.rel (%p148) target = $region20
      $region19: #{feature_net.26} parent=15 // pred_region
        %p151 = scmp.lt.s32.totalorder %s16, 1
        %s152 = scalar_select %p151, %s16, 1
        %p153 = scmp.lt.s32.totalorder %s17, 0
        %s154 = scalar_select %p153, %s17, 0
        %s155 = smul.addr %s154, 4
        %s156 = smul.addr %s152, 4
        %s157 = sadd.s32 %s155, %s156
        %s158 = smul.addr %s157, 4
        %s159 = scalar_lea.vmem %s0, %s158
      $region20: #{feature_net.26} parent=15 // pred_fallthru
        _
      // Predicated region
      $region21: #{feature_net.26} parent=15 // pred_check
        %p160 = pneg %p69
      $region22: #{feature_net.26} parent=15 // pred_check_branch
        %162 = sbr.rel (%p160) target = $region24
      $region23: #{feature_net.26} parent=15 // pred_region
        %p163 = scmp.lt.s32.totalorder %s16, 1
        %s164 = scalar_select %p163, %s16, 1
        %s165 = smul.addr %s164, 4
        %s166 = scalar_lea.vmem %s1, %s165
      $region24: #{feature_net.26} parent=15 // pred_fallthru
        _
      // Predicated region
      $region25: #{feature_net.26} parent=15 // pred_check
        %p167 = pneg %p95
      $region26: #{feature_net.26} parent=15 // pred_check_branch
        %169 = sbr.rel (%p167) target = $region28
      $region27: #{feature_net.26} parent=15 // pred_region
        %p170 = scmp.lt.s32.totalorder %s16, 1
        %s171 = scalar_select %p170, %s16, 1
        %s172 = smul.addr %s171, 4
        %s173 = scalar_lea.vmem %s2, %s172
      $region28: #{feature_net.26} parent=15 // pred_fallthru
        _
    $region16: #{feature_net.26} parent=5 // pred_fallthru
      _
    %p174 = scmp.le.s32.totalorder 1, %s9
    %p175 = scmp.lt.s32.totalorder %s9, 3
    %p176 = pnand %p174, %p175
    %p177 = pneg %p176
    // Predicated region
    $region29: #{feature_net.26} parent=5 // pred_check
      _
    $region30: #{feature_net.26} parent=5 // pred_check_branch
      %179 = sbr.rel (%p176) target = $region32
    $region31: #{feature_net.26} parent=5 // pred_region
      %s180 = ssub.s32 %s9, 1
      %p181 = scmp.lt.s32.totalorder %s18, 1
      %s182 = scalar_select %p181, %s18, 1
      %p183 = scmp.lt.s32.totalorder %s19, 0
      %s184 = scalar_select %p183, %s19, 0
      %s185 = smul.addr %s184, 4
      %s186 = smul.addr %s182, 4
      %s187 = sadd.s32 %s185, %s186
      %s188 = smul.addr %s187, 4
      %s189 = scalar_lea.vmem %s0, %s188
      %p190 = pneg %p49
      %p191 = pneg %p46
      %p192 = scmp.lt.s32.totalorder %s18, 1
      %s193 = scalar_select %p192, %s18, 1
      %s194 = smul.addr %s193, 4
      %s195 = scalar_lea.vmem %s1, %s194
      %p196 = pneg %p75
      %p197 = pneg %p72
      %p198 = scmp.lt.s32.totalorder %s18, 1
      %s199 = scalar_select %p198, %s18, 1
      %s200 = smul.addr %s199, 4
      %s201 = scalar_lea.vmem %s2, %s200
      %p202 = pneg %p101
      %p203 = pneg %p98
      %p204 = pneg %p129
      %p205 = pneg %p126
      %p206 = scmp.lt.s32.totalorder %s18, 1
      %s207 = scalar_select %p206, %s18, 1
      %p208 = scmp.lt.s32.totalorder %s19, 0
      %s209 = scalar_select %p208, %s19, 0
      %s210 = smul.addr %s209, 4
      %s211 = smul.addr %s207, 4
      %s212 = sadd.s32 %s210, %s211
      %s213 = smul.addr %s212, 4
      %s214 = scalar_lea.vmem %s3, %s213
      %p215 = scmp.lt.s32.totalorder %s18, 1
      %s216 = scalar_select %p215, %s18, 1
      %p217 = scmp.lt.s32.totalorder %s19, 0
      %s218 = scalar_select %p217, %s19, 0
      %s219 = smul.addr %s218, 4
      %s220 = smul.addr %s216, 4
      %s221 = sadd.s32 %s219, %s220
      %s222 = smul.addr %s221, 4
      %s223 = scalar_lea.vmem %s0, %s222
      %p224 = scmp.lt.s32.totalorder %s18, 1
      %s225 = scalar_select %p224, %s18, 1
      %s226 = smul.addr %s225, 4
      %s227 = scalar_lea.vmem %s1, %s226
      %p228 = scmp.lt.s32.totalorder %s18, 1
      %s229 = scalar_select %p228, %s18, 1
      %s230 = smul.addr %s229, 4
      %s231 = scalar_lea.vmem %s2, %s230
      %p232 = scmp.lt.s32.totalorder %s18, 1
      %s233 = scalar_select %p232, %s18, 1
      %p234 = scmp.lt.s32.totalorder %s19, 0
      %s235 = scalar_select %p234, %s19, 0
      %s236 = smul.addr %s235, 4
      %s237 = smul.addr %s233, 4
      %s238 = sadd.s32 %s236, %s237
      %s239 = smul.addr %s238, 4
      %s240 = scalar_lea.vmem %s3, %s239
      %v241 = vld [vmem:[%s223] sm:$0xff]
      %v242 = vld [vmem:[%s223 + $0x8] sm:$0xff]
      %v243 = vld [vmem:[%s227] sm:$0xf]
      %v244 = vmul.f32 %v243, 0.25
      %v245 = vld [vmem:[%s231] sm:$0xf]
      %v246 = vmul.f32 %v245, 0.25
      %v247 = vmul.f32 %v244, %v244
      %v248 = vsub.f32 %v246, %v247
      %v249 = vmax.f32 %v248, 0.0
      %v251 = vlaneseq
      %v252 = vshrl.u32 %v251, 7
      %v253 = vsub.s32 0, %v252
      %v254 = vrot.slane %v244, %v253
      %v255 = vlaneseq
      %v256 = vshrl.u32 %v255, 7
      %v257 = vsub.s32 1, %v256
      %v258 = vrot.slane %v244, %v257
      %v259 = vlaneseq
      %v260 = vshrl.u32 %v259, 7
      %v261 = vsub.s32 2, %v260
      %v262 = vrot.slane %v244, %v261
      %v263 = vlaneseq
      %v264 = vshrl.u32 %v263, 7
      %v265 = vsub.s32 3, %v264
      %v266 = vrot.slane %v244, %v265
      %v267 = vcombine.low %v254, %v258
      %v268 = vcombine.low %v262, %v266
      %v271 = vsub.f32 %v241, %v267
      %v272 = vsub.f32 %v242, %v268
      %v273 = vadd.f32 %v249, 1e-05
      %v274 = vrsqrt.pop %v273
      %v276 = vlaneseq
      %v277 = vshrl.u32 %v276, 7
      %v278 = vsub.s32 0, %v277
      %v279 = vrot.slane %v274, %v278
      %v280 = vlaneseq
      %v281 = vshrl.u32 %v280, 7
      %v282 = vsub.s32 1, %v281
      %v283 = vrot.slane %v274, %v282
      %v284 = vlaneseq
      %v285 = vshrl.u32 %v284, 7
      %v286 = vsub.s32 2, %v285
      %v287 = vrot.slane %v274, %v286
      %v288 = vlaneseq
      %v289 = vshrl.u32 %v288, 7
      %v290 = vsub.s32 3, %v289
      %v291 = vrot.slane %v274, %v290
      %v292 = vcombine.low %v279, %v283
      %v293 = vcombine.low %v287, %v291
      %v296 = vmul.f32 %v271, %v292
      %v297 = vmul.f32 %v272, %v293
      %v298 = vmax.f32 %v296, 0.0
      %v299 = vmax.f32 %v297, 0.0
      %300 = vst [vmem:[%s240] sm:$0xff] %v298
      %301 = vst [vmem:[%s240 + $0x8] sm:$0xff] %v299
      %p302 = scmp.lt.s32.totalorder %s18, 1
      %s303 = scalar_select %p302, %s18, 1
      %p304 = scmp.lt.s32.totalorder %s19, 0
      %s305 = scalar_select %p304, %s19, 0
      %s306 = smul.addr %s305, 4
      %s307 = smul.addr %s303, 4
      %s308 = sadd.s32 %s306, %s307
      %s309 = smul.addr %s308, 4
      %s310 = scalar_lea.vmem %s3, %s309
      // Predicated region
      $region33: #{feature_net.26} parent=31 // pred_check
        %p311 = pneg %p126
      $region34: #{feature_net.26} parent=31 // pred_check_branch
        %313 = sbr.rel (%p311) target = $region36
      $region35: #{feature_net.26} parent=31 // pred_region
        _
      $region36: #{feature_net.26} parent=31 // pred_fallthru
        _
    $region32: #{feature_net.26} parent=5 // pred_fallthru
      _
    %p314 = scmp.le.s32.totalorder 2, %s9
    // Predicated region
    $region37: #{feature_net.26} parent=5 // pred_check
      %p315 = pneg %p314
    $region38: #{feature_net.26} parent=5 // pred_check_branch
      %317 = sbr.rel (%p315) target = $region40
    $region39: #{feature_net.26} parent=5 // pred_region
      %s318 = ssub.s32 %s9, 2
      // Predicated region
      $region41: #{feature_net.26} parent=39 // pred_check
        %p319 = pneg %p132
      $region42: #{feature_net.26} parent=39 // pred_check_branch
        %321 = sbr.rel (%p319) target = $region44
      $region43: #{feature_net.26} parent=39 // pred_region
        %p322 = scmp.lt.s32.totalorder %s20, 1
        %s323 = scalar_select %p322, %s20, 1
        %p324 = scmp.lt.s32.totalorder %s21, 0
        %s325 = scalar_select %p324, %s21, 0
        %s326 = smul.addr %s325, 4
        %s327 = smul.addr %s323, 4
        %s328 = sadd.s32 %s326, %s327
        %s329 = smul.addr %s328, 4
        %s330 = scalar_lea.vmem %s3, %s329
      $region44: #{feature_net.26} parent=39 // pred_fallthru
        _
    $region40: #{feature_net.26} parent=5 // pred_fallthru
      _
  $region6: #{feature_net.26} parent=0 // loop_footer
    %s13 = sadd.s32 1, %s9
  $region7: #{feature_net.26} parent=0 // loop_footer_branch
    %8 = sbr.rel target = $region3
  $region8: #{feature_net.26} parent=0 // loop_exit
    _

// kernel: feature_net.27
$region0: #{feature_net.27}
  #allocation0 [shape = 'u32[]', space=smem, size = 0x4, offset = 0x4, fixed_abs, tag = 'smem constant byte address 0x4 - core index']
  #allocation1 [shape = 'u32[144,128]{1,0:T(1,128)}', space=vmem, size = 0x12000, scoped, tag = 'internal scratch']
  #allocation2 [shape = 'f32[2,512]{1,0:T(2,128)}', space=vmem, size = 0x1000, scoped, tag = 'scratch operand']
  %s0 = inlined_call_operand.vmem [shape: bf16[2,13824], index: 0, kind: input, shape index: {}]
  %s1 = inlined_call_operand.vmem [shape: bf16[13824,512], index: 1, kind: input, shape index: {}]
  %s2 = inlined_call_operand.vmem [shape: f32[2,512], index: 2, kind: output, shape index: {}]
  %s3 = sld [smem:[#allocation0]]
  $region49: #{feature_net.27} parent=0
    _
  %s5 = ssub.s32 1, %s3
  %s6 = scalar_select 0, %s5, %s3
  loop: start=0, step=1, limit=29
  $region2: #{feature_net.27} parent=0 // loop_pre_header
    _
  $region3: #{feature_net.27} parent=0 // loop_header
    %s8 = sphi 0, %s12
    %p9 = scmp.ge.s32.totalorder %s8, 29
    %s15 = sphi 0, %s27
    %s16 = sphi 0, %s23
    %s17 = sphi 0, %s15
    %s18 = sphi 0, %s16
    %s19 = sphi 0, %s17
    %s20 = sphi 0, %s18
    %s32 = sphi 0, %s34
    %s35 = sphi 0, %s32
    %s36 = sphi 0, %s35
    %s52 = sphi 0, %s36
    %s58 = sphi 0, %s60
    %s61 = sphi 0, %s58
    %s62 = sphi 0, %s61
    %s78 = sphi 0, %s62
    %s84 = sphi 0, %s86
    %s87 = sphi 0, %s84
    %s88 = sphi 0, %s87
    %s104 = sphi 0, %s88
  $region4: #{feature_net.27} parent=0 // loop_header_branch
    %11 = sbr.rel (%p9) target = $region8
  $region5: #{feature_net.27} parent=0 // loop_body
    %s13 = ssub.s32 %s8, 1
    %s14 = ssub.s32 %s8, 2
    %s21 = sadd.s32 1, %s16
    %p22 = scmp.ge.s32.totalorder %s21, 27
    %s23 = scalar_select %p22, 0, %s21
    %s24 = sadd.s32 1, %s15
    %s25 = scalar_select %p22, %s24, %s15
    %p26 = scmp.ge.s32.totalorder %s25, 1
    %s27 = scalar_select %p26, 0, %s25
    %s28 = ssub.s32 %s15, %s27
    %s29 = ssub.s32 %s16, %s23
    %s30 = sor.u32 %s28, %s29
    %p31 = scmp.eq.s32.totalorder %s30, 0
    %s33 = sadd.s32 %s32, 1
    %s34 = scalar_select %p31, %s32, %s33
    %p37 = pneg %p31
    %p38 = scmp.eq.s32.totalorder %s8, 26
    %p39 = por %p37, %p38
    %p40 = scmp.ne.s32.totalorder %s32, %s35
    %p41 = scmp.eq.s32.totalorder %s8, 0
    %p42 = por %p40, %p41
    %p43 = scmp.ne.s32.totalorder %s32, %s35
    %p44 = scmp.eq.s32.totalorder %s13, 26
    %p45 = por %p43, %p44
    %p46 = scmp.ne.s32.totalorder %s35, %s36
    %p47 = scmp.eq.s32.totalorder %s13, 0
    %p48 = por %p46, %p47
    %p49 = scmp.ne.s32.totalorder %s35, %s36
    %p50 = scmp.eq.s32.totalorder %s14, 26
    %p51 = por %p49, %p50
    %p53 = scmp.ne.s32.totalorder %s36, %s52
    %p54 = scmp.eq.s32.totalorder %s14, 0
    %p55 = por %p53, %p54
    %s56 = ssub.s32 %s16, %s23
    %p57 = scmp.eq.s32.totalorder %s56, 0
    %s59 = sadd.s32 %s58, 1
    %s60 = scalar_select %p57, %s58, %s59
    %p63 = pneg %p57
    %p64 = scmp.eq.s32.totalorder %s8, 26
    %p65 = por %p63, %p64
    %p66 = scmp.ne.s32.totalorder %s58, %s61
    %p67 = scmp.eq.s32.totalorder %s8, 0
    %p68 = por %p66, %p67
    %p69 = scmp.ne.s32.totalorder %s58, %s61
    %p70 = scmp.eq.s32.totalorder %s13, 26
    %p71 = por %p69, %p70
    %p72 = scmp.ne.s32.totalorder %s61, %s62
    %p73 = scmp.eq.s32.totalorder %s13, 0
    %p74 = por %p72, %p73
    %p75 = scmp.ne.s32.totalorder %s61, %s62
    %p76 = scmp.eq.s32.totalorder %s14, 26
    %p77 = por %p75, %p76
    %p79 = scmp.ne.s32.totalorder %s62, %s78
    %p80 = scmp.eq.s32.totalorder %s14, 0
    %p81 = por %p79, %p80
    %s82 = ssub.s32 %s15, %s27
    %p83 = scmp.eq.s32.totalorder %s82, 0
    %s85 = sadd.s32 %s84, 1
    %s86 = scalar_select %p83, %s84, %s85
    %p89 = pneg %p83
    %p90 = scmp.eq.s32.totalorder %s8, 26
    %p91 = por %p89, %p90
    %p92 = scmp.ne.s32.totalorder %s84, %s87
    %p93 = scmp.eq.s32.totalorder %s8, 0
    %p94 = por %p92, %p93
    %p95 = scmp.ne.s32.totalorder %s84, %s87
    %p96 = scmp.eq.s32.totalorder %s13, 26
    %p97 = por %p95, %p96
    %p98 = scmp.ne.s32.totalorder %s87, %s88
    %p99 = scmp.eq.s32.totalorder %s13, 0
    %p100 = por %p98, %p99
    %p101 = scmp.ne.s32.totalorder %s87, %s88
    %p102 = scmp.eq.s32.totalorder %s14, 26
    %p103 = por %p101, %p102
    %p105 = scmp.ne.s32.totalorder %s88, %s104
    %p106 = scmp.eq.s32.totalorder %s14, 0
    %p107 = por %p105, %p106
    %p108 = scmp.le.s32.totalorder 1, %s8
    %p109 = scmp.lt.s32.totalorder %s8, 28
    %p110 = pnand %p108, %p109
    %p111 = pneg %p110
    // Predicated region
    $region9: #{feature_net.27} parent=5 // pred_check
      _
    $region10: #{feature_net.27} parent=5 // pred_check_branch
      %113 = sbr.rel (%p110) target = $region12
    $region11: #{feature_net.27} parent=5 // pred_region
      %s114 = ssub.s32 %s8, 1
    $region12: #{feature_net.27} parent=5 // pred_fallthru
      _
    %p115 = scmp.lt.s32.totalorder %s8, 27
    // Predicated region
    $region13: #{feature_net.27} parent=5 // pred_check
      %p116 = pneg %p115
    $region14: #{feature_net.27} parent=5 // pred_check_branch
      %118 = sbr.rel (%p116) target = $region16
    $region15: #{feature_net.27} parent=5 // pred_region
      // Predicated region
      $region17: #{feature_net.27} parent=15 // pred_check
        %p119 = pneg %p42
      $region18: #{feature_net.27} parent=15 // pred_check_branch
        %121 = sbr.rel (%p119) target = $region20
      $region19: #{feature_net.27} parent=15 // pred_region
        %s122 = smul.u32 4, %s16
        %p123 = scmp.lt.s32.totalorder %s15, 0
        %s124 = scalar_select %p123, %s15, 0
        %p125 = scmp.lt.s32.totalorder %s122, 107
        %s126 = scalar_select %p125, %s122, 107
        %s127 = smul.addr %s124, 108
        %s128 = sadd.s32 %s126, %s127
        %s129 = scalar_lea.vmem %s0, %s128
        %s130 = smul.u32 4, %s16
      $region20: #{feature_net.27} parent=15 // pred_fallthru
        _
      // Predicated region
      $region21: #{feature_net.27} parent=15 // pred_check
        %p131 = pneg %p68
      $region22: #{feature_net.27} parent=15 // pred_check_branch
        %133 = sbr.rel (%p131) target = $region24
      $region23: #{feature_net.27} parent=15 // pred_region
        %s134 = smul.u32 64, %s16
        %p135 = scmp.lt.s32.totalorder %s134, 1727
        %s136 = scalar_select %p135, %s134, 1727
        %s137 = smul.addr %s136, 4
        %s138 = smul.addr %s137, 4
        %s139 = scalar_lea.vmem %s1, %s138
        %s140 = smul.u32 64, %s16
      $region24: #{feature_net.27} parent=15 // pred_fallthru
        _
    $region16: #{feature_net.27} parent=5 // pred_fallthru
      _
    %p141 = scmp.le.s32.totalorder 1, %s8
    %p142 = scmp.lt.s32.totalorder %s8, 28
    %p143 = pnand %p141, %p142
    %p144 = pneg %p143
    // Predicated region
    $region25: #{feature_net.27} parent=5 // pred_check
      _
    $region26: #{feature_net.27} parent=5 // pred_check_branch
      %146 = sbr.rel (%p143) target = $region28
    $region27: #{feature_net.27} parent=5 // pred_region
      %s147 = ssub.s32 %s8, 1
      %s148 = smul.u32 4, %s18
      %p149 = scmp.lt.s32.totalorder %s17, 0
      %s150 = scalar_select %p149, %s17, 0
      %p151 = scmp.lt.s32.totalorder %s148, 107
      %s152 = scalar_select %p151, %s148, 107
      %s153 = smul.addr %s150, 108
      %s154 = sadd.s32 %s152, %s153
      %s155 = scalar_lea.vmem %s0, %s154
      %p156 = pneg %p48
      %p157 = pneg %p45
      %s158 = smul.u32 64, %s18
      %p159 = scmp.lt.s32.totalorder %s158, 1727
      %s160 = scalar_select %p159, %s158, 1727
      %s161 = smul.addr %s160, 4
      %s162 = smul.addr %s161, 4
      %s163 = scalar_lea.vmem %s1, %s162
      %p164 = pneg %p74
      %p165 = pneg %p71
      %p166 = pneg %p100
      %p167 = pneg %p97
      %p168 = scmp.lt.s32.totalorder %s17, 0
      %s169 = scalar_select %p168, %s17, 0
      %s170 = smul.addr %s169, 4
      %s171 = smul.addr %s170, 2
      %s172 = scalar_lea.vmem %s2, %s171
      %s173 = smul.u32 4, %s18
      %p174 = scmp.lt.s32.totalorder %s17, 0
      %s175 = scalar_select %p174, %s17, 0
      %p176 = scmp.lt.s32.totalorder %s173, 107
      %s177 = scalar_select %p176, %s173, 107
      %s178 = smul.addr %s175, 108
      %s179 = sadd.s32 %s177, %s178
      %s180 = scalar_lea.vmem %s0, %s179
      %s181 = smul.u32 4, %s18
      %s182 = smul.u32 64, %s18
      %p183 = scmp.lt.s32.totalorder %s182, 1727
      %s184 = scalar_select %p183, %s182, 1727
      %s185 = smul.addr %s184, 4
      %s186 = smul.addr %s185, 4
      %s187 = scalar_lea.vmem %s1, %s186
      %s188 = smul.u32 64, %s18
      %p189 = scmp.lt.s32.totalorder %s17, 0
      %s190 = scalar_select %p189, %s17, 0
      %s191 = smul.addr %s190, 4
      %s192 = smul.addr %s191, 2
      %s193 = scalar_lea.vmem %s2, %s192
      %p194 = scmp.eq.s32.totalorder %s18, 0
      // Predicated region
      $region29: #{feature_net.27} parent=27 // pred_check
        %p195 = pneg %p194
      $region30: #{feature_net.27} parent=27 // pred_check_branch
        %197 = sbr.rel (%p195) target = $region32
      $region31: #{feature_net.27} parent=27 // pred_region
        %198 = vst [vmem:[#allocation2] sm:$0xff] 0.0
      $region32: #{feature_net.27} parent=27 // pred_fallthru
        _
      %v199 = vld [vmem:[#allocation2] sm:$0xff]
      %v200 = vld [vmem:[%s180] sm:$0xf]
      %v201 = vld [vmem:[%s187] sm:$0xff]
      %v202 = vld [vmem:[%s187 + $0x8] sm:$0xff]
      %v203 = vld [vmem:[%s187 + $0x10] sm:$0xff]
      %v204 = vld [vmem:[%s187 + $0x18] sm:$0xff]
      %v205 = vld [vmem:[%s187 + $0x20] sm:$0xff]
      %v206 = vld [vmem:[%s187 + $0x28] sm:$0xff]
      %v207 = vld [vmem:[%s187 + $0x30] sm:$0xff]
      %v208 = vld [vmem:[%s187 + $0x38] sm:$0xff]
      %v209 = vld [vmem:[%s187 + $0x40] sm:$0xff]
      %v210 = vld [vmem:[%s187 + $0x48] sm:$0xff]
      %v211 = vld [vmem:[%s187 + $0x50] sm:$0xff]
      %v212 = vld [vmem:[%s187 + $0x58] sm:$0xff]
      %v213 = vld [vmem:[%s187 + $0x60] sm:$0xff]
      %v214 = vld [vmem:[%s187 + $0x68] sm:$0xff]
      %v215 = vld [vmem:[%s187 + $0x70] sm:$0xff]
      %v216 = vld [vmem:[%s187 + $0x78] sm:$0xff]
      %v217 = vld [vmem:[%s187 + $0x80] sm:$0xff]
      %v218 = vld [vmem:[%s187 + $0x88] sm:$0xff]
      %v219 = vld [vmem:[%s187 + $0x90] sm:$0xff]
      %v220 = vld [vmem:[%s187 + $0x98] sm:$0xff]
      %v221 = vld [vmem:[%s187 + $0xa0] sm:$0xff]
      %v222 = vld [vmem:[%s187 + $0xa8] sm:$0xff]
      %v223 = vld [vmem:[%s187 + $0xb0] sm:$0xff]
      %v224 = vld [vmem:[%s187 + $0xb8] sm:$0xff]
      %v225 = vld [vmem:[%s187 + $0xc0] sm:$0xff]
      %v226 = vld [vmem:[%s187 + $0xc8] sm:$0xff]
      %v227 = vld [vmem:[%s187 + $0xd0] sm:$0xff]
      %v228 = vld [vmem:[%s187 + $0xd8] sm:$0xff]
      %v229 = vld [vmem:[%s187 + $0xe0] sm:$0xff]
      %v230 = vld [vmem:[%s187 + $0xe8] sm:$0xff]
      %v231 = vld [vmem:[%s187 + $0xf0] sm:$0xff]
      %v232 = vld [vmem:[%s187 + $0xf8] sm:$0xff]
      %v233 = vld [vmem:[%s187 + $0x100] sm:$0xff]
      %v234 = vld [vmem:[%s187 + $0x108] sm:$0xff]
      %v235 = vld [vmem:[%s187 + $0x110] sm:$0xff]
      %v236 = vld [vmem:[%s187 + $0x118] sm:$0xff]
      %v237 = vld [vmem:[%s187 + $0x120] sm:$0xff]
      %v238 = vld [vmem:[%s187 + $0x128] sm:$0xff]
      %v239 = vld [vmem:[%s187 + $0x130] sm:$0xff]
      %v240 = vld [vmem:[%s187 + $0x138] sm:$0xff]
      %v241 = vld [vmem:[%s187 + $0x140] sm:$0xff]
      %v242 = vld [vmem:[%s187 + $0x148] sm:$0xff]
      %v243 = vld [vmem:[%s187 + $0x150] sm:$0xff]
      %v244 = vld [vmem:[%s187 + $0x158] sm:$0xff]
      %v245 = vld [vmem:[%s187 + $0x160] sm:$0xff]
      %v246 = vld [vmem:[%s187 + $0x168] sm:$0xff]
      %v247 = vld [vmem:[%s187 + $0x170] sm:$0xff]
      %v248 = vld [vmem:[%s187 + $0x178] sm:$0xff]
      %v249 = vld [vmem:[%s187 + $0x180] sm:$0xff]
      %v250 = vld [vmem:[%s187 + $0x188] sm:$0xff]
      %v251 = vld [vmem:[%s187 + $0x190] sm:$0xff]
      %v252 = vld [vmem:[%s187 + $0x198] sm:$0xff]
      %v253 = vld [vmem:[%s187 + $0x1a0] sm:$0xff]
      %v254 = vld [vmem:[%s187 + $0x1a8] sm:$0xff]
      %v255 = vld [vmem:[%s187 + $0x1b0] sm:$0xff]
      %v256 = vld [vmem:[%s187 + $0x1b8] sm:$0xff]
      %v257 = vld [vmem:[%s187 + $0x1c0] sm:$0xff]
      %v258 = vld [vmem:[%s187 + $0x1c8] sm:$0xff]
      %v259 = vld [vmem:[%s187 + $0x1d0] sm:$0xff]
      %v260 = vld [vmem:[%s187 + $0x1d8] sm:$0xff]
      %v261 = vld [vmem:[%s187 + $0x1e0] sm:$0xff]
      %v262 = vld [vmem:[%s187 + $0x1e8] sm:$0xff]
      %v263 = vld [vmem:[%s187 + $0x1f0] sm:$0xff]
      %v264 = vld [vmem:[%s187 + $0x1f8] sm:$0xff]
      %v265 = vld [vmem:[%s187 + $0x200] sm:$0xff]
      %v266 = vld [vmem:[%s187 + $0x208] sm:$0xff]
      %v267 = vld [vmem:[%s187 + $0x210] sm:$0xff]
      %v268 = vld [vmem:[%s187 + $0x218] sm:$0xff]
      %v269 = vld [vmem:[%s187 + $0x220] sm:$0xff]
      %v270 = vld [vmem:[%s187 + $0x228] sm:$0xff]
      %v271 = vld [vmem:[%s187 + $0x230] sm:$0xff]
      %v272 = vld [vmem:[%s187 + $0x238] sm:$0xff]
      %v273 = vld [vmem:[%s187 + $0x240] sm:$0xff]
      %v274 = vld [vmem:[%s187 + $0x248] sm:$0xff]
      %v275 = vld [vmem:[%s187 + $0x250] sm:$0xff]
      %v276 = vld [vmem:[%s187 + $0x258] sm:$0xff]
      %v277 = vld [vmem:[%s187 + $0x260] sm:$0xff]
      %v278 = vld [vmem:[%s187 + $0x268] sm:$0xff]
      %v279 = vld [vmem:[%s187 + $0x270] sm:$0xff]
      %v280 = vld [vmem:[%s187 + $0x278] sm:$0xff]
      %v281 = vld [vmem:[%s187 + $0x280] sm:$0xff]
      %v282 = vld [vmem:[%s187 + $0x288] sm:$0xff]
      %v283 = vld [vmem:[%s187 + $0x290] sm:$0xff]
      %v284 = vld [vmem:[%s187 + $0x298] sm:$0xff]
      %v285 = vld [vmem:[%s187 + $0x2a0] sm:$0xff]
      %v286 = vld [vmem:[%s187 + $0x2a8] sm:$0xff]
      %v287 = vld [vmem:[%s187 + $0x2b0] sm:$0xff]
      %v288 = vld [vmem:[%s187 + $0x2b8] sm:$0xff]
      %v289 = vld [vmem:[%s187 + $0x2c0] sm:$0xff]
      %v290 = vld [vmem:[%s187 + $0x2c8] sm:$0xff]
      %v291 = vld [vmem:[%s187 + $0x2d0] sm:$0xff]
      %v292 = vld [vmem:[%s187 + $0x2d8] sm:$0xff]
      %v293 = vld [vmem:[%s187 + $0x2e0] sm:$0xff]
      %v294 = vld [vmem:[%s187 + $0x2e8] sm:$0xff]
      %v295 = vld [vmem:[%s187 + $0x2f0] sm:$0xff]
      %v296 = vld [vmem:[%s187 + $0x2f8] sm:$0xff]
      %v297 = vld [vmem:[%s187 + $0x300] sm:$0xff]
      %v298 = vld [vmem:[%s187 + $0x308] sm:$0xff]
      %v299 = vld [vmem:[%s187 + $0x310] sm:$0xff]
      %v300 = vld [vmem:[%s187 + $0x318] sm:$0xff]
      %v301 = vld [vmem:[%s187 + $0x320] sm:$0xff]
      %v302 = vld [vmem:[%s187 + $0x328] sm:$0xff]
      %v303 = vld [vmem:[%s187 + $0x330] sm:$0xff]
      %v304 = vld [vmem:[%s187 + $0x338] sm:$0xff]
      %v305 = vld [vmem:[%s187 + $0x340] sm:$0xff]
      %v306 = vld [vmem:[%s187 + $0x348] sm:$0xff]
      %v307 = vld [vmem:[%s187 + $0x350] sm:$0xff]
      %v308 = vld [vmem:[%s187 + $0x358] sm:$0xff]
      %v309 = vld [vmem:[%s187 + $0x360] sm:$0xff]
      %v310 = vld [vmem:[%s187 + $0x368] sm:$0xff]
      %v311 = vld [vmem:[%s187 + $0x370] sm:$0xff]
      %v312 = vld [vmem:[%s187 + $0x378] sm:$0xff]
      %v313 = vld [vmem:[%s187 + $0x380] sm:$0xff]
      %v314 = vld [vmem:[%s187 + $0x388] sm:$0xff]
      %v315 = vld [vmem:[%s187 + $0x390] sm:$0xff]
      %v316 = vld [vmem:[%s187 + $0x398] sm:$0xff]
      %v317 = vld [vmem:[%s187 + $0x3a0] sm:$0xff]
      %v318 = vld [vmem:[%s187 + $0x3a8] sm:$0xff]
      %v319 = vld [vmem:[%s187 + $0x3b0] sm:$0xff]
      %v320 = vld [vmem:[%s187 + $0x3b8] sm:$0xff]
      %v321 = vld [vmem:[%s187 + $0x3c0] sm:$0xff]
      %v322 = vld [vmem:[%s187 + $0x3c8] sm:$0xff]
      %v323 = vld [vmem:[%s187 + $0x3d0] sm:$0xff]
      %v324 = vld [vmem:[%s187 + $0x3d8] sm:$0xff]
      %v325 = vld [vmem:[%s187 + $0x3e0] sm:$0xff]
      %v326 = vld [vmem:[%s187 + $0x3e8] sm:$0xff]
      %v327 = vld [vmem:[%s187 + $0x3f0] sm:$0xff]
      %v328 = vld [vmem:[%s187 + $0x3f8] sm:$0xff]
      %v331 = vunpack.c.l.s4 1966171168
      %v332 = vunpack.c.0.s8 %v331
      %v333 = vlaneseq
      %v334 = vshrl.u32 %v333, 7
      %v335 = vsub.s32 %v332, %v334
      %v336 = vrot.slane %v200, %v335
      %v337 = vcombine.high %v336, %v336
      %v339 = vunpack.c.l.s4 1966171168
      %v340 = vunpack.c.0.s8 %v339
      %v341 = vlaneseq
      %v342 = vshrl.u32 %v341, 7
      %v343 = vsub.s32 %v340, %v342
      %v344 = vrot.slane %v336, %v343
      %v346 = vunpack.c.l.s4 1966171168
      %v347 = vunpack.c.0.s8 %v346
      %v348 = vlaneseq
      %v349 = vshrl.u32 %v348, 7
      %v350 = vsub.s32 %v347, %v349
      %v351 = vrot.slane %v337, %v350
      %v352 = vcombine.high %v344, %v344
      %v353 = vcombine.high %v351, %v351
      %v486 = vunpack.c.l.b16 %v201
      %v487 = vunpack.c.h.b16 %v201
      %v488 = vunpack.c.l.b16 %v202
      %v489 = vunpack.c.h.b16 %v202
      %v490 = vunpack.c.l.b16 %v203
      %v491 = vunpack.c.h.b16 %v203
      %v492 = vunpack.c.l.b16 %v204
      %v493 = vunpack.c.h.b16 %v204
      %v494 = vunpack.c.l.b16 %v205
      %v495 = vunpack.c.h.b16 %v205
      %v496 = vunpack.c.l.b16 %v206
      %v497 = vunpack.c.h.b16 %v206
      %v498 = vunpack.c.l.b16 %v207
      %v499 = vunpack.c.h.b16 %v207
      %v500 = vunpack.c.l.b16 %v208
      %v501 = vunpack.c.h.b16 %v208
      %v502 = vunpack.c.l.b16 %v209
      %v503 = vunpack.c.h.b16 %v209
      %v504 = vunpack.c.l.b16 %v210
      %v505 = vunpack.c.h.b16 %v210
      %v506 = vunpack.c.l.b16 %v211
      %v507 = vunpack.c.h.b16 %v211
      %v508 = vunpack.c.l.b16 %v212
      %v509 = vunpack.c.h.b16 %v212
      %v510 = vunpack.c.l.b16 %v213
      %v511 = vunpack.c.h.b16 %v213
      %v512 = vunpack.c.l.b16 %v214
      %v513 = vunpack.c.h.b16 %v214
      %v514 = vunpack.c.l.b16 %v215
      %v515 = vunpack.c.h.b16 %v215
      %v516 = vunpack.c.l.b16 %v216
      %v517 = vunpack.c.h.b16 %v216
      %v518 = vunpack.c.l.b16 %v217
      %v519 = vunpack.c.h.b16 %v217
      %v520 = vunpack.c.l.b16 %v218
      %v521 = vunpack.c.h.b16 %v218
      %v522 = vunpack.c.l.b16 %v219
      %v523 = vunpack.c.h.b16 %v219
      %v524 = vunpack.c.l.b16 %v220
      %v525 = vunpack.c.h.b16 %v220
      %v526 = vunpack.c.l.b16 %v221
      %v527 = vunpack.c.h.b16 %v221
      %v528 = vunpack.c.l.b16 %v222
      %v529 = vunpack.c.h.b16 %v222
      %v530 = vunpack.c.l.b16 %v223
      %v531 = vunpack.c.h.b16 %v223
      %v532 = vunpack.c.l.b16 %v224
      %v533 = vunpack.c.h.b16 %v224
      %v534 = vunpack.c.l.b16 %v225
      %v535 = vunpack.c.h.b16 %v225
      %v536 = vunpack.c.l.b16 %v226
      %v537 = vunpack.c.h.b16 %v226
      %v538 = vunpack.c.l.b16 %v227
      %v539 = vunpack.c.h.b16 %v227
      %v540 = vunpack.c.l.b16 %v228
      %v541 = vunpack.c.h.b16 %v228
      %v542 = vunpack.c.l.b16 %v229
      %v543 = vunpack.c.h.b16 %v229
      %v544 = vunpack.c.l.b16 %v230
      %v545 = vunpack.c.h.b16 %v230
      %v546 = vunpack.c.l.b16 %v231
      %v547 = vunpack.c.h.b16 %v231
      %v548 = vunpack.c.l.b16 %v232
      %v549 = vunpack.c.h.b16 %v232
      %v550 = vunpack.c.l.b16 %v233
      %v551 = vunpack.c.h.b16 %v233
      %v552 = vunpack.c.l.b16 %v234
      %v553 = vunpack.c.h.b16 %v234
      %v554 = vunpack.c.l.b16 %v235
      %v555 = vunpack.c.h.b16 %v235
      %v556 = vunpack.c.l.b16 %v236
      %v557 = vunpack.c.h.b16 %v236
      %v558 = vunpack.c.l.b16 %v237
      %v559 = vunpack.c.h.b16 %v237
      %v560 = vunpack.c.l.b16 %v238
      %v561 = vunpack.c.h.b16 %v238
      %v562 = vunpack.c.l.b16 %v239
      %v563 = vunpack.c.h.b16 %v239
      %v564 = vunpack.c.l.b16 %v240
      %v565 = vunpack.c.h.b16 %v240
      %v566 = vunpack.c.l.b16 %v241
      %v567 = vunpack.c.h.b16 %v241
      %v568 = vunpack.c.l.b16 %v242
      %v569 = vunpack.c.h.b16 %v242
      %v570 = vunpack.c.l.b16 %v243
      %v571 = vunpack.c.h.b16 %v243
      %v572 = vunpack.c.l.b16 %v244
      %v573 = vunpack.c.h.b16 %v244
      %v574 = vunpack.c.l.b16 %v245
      %v575 = vunpack.c.h.b16 %v245
      %v576 = vunpack.c.l.b16 %v246
      %v577 = vunpack.c.h.b16 %v246
      %v578 = vunpack.c.l.b16 %v247
      %v579 = vunpack.c.h.b16 %v247
      %v580 = vunpack.c.l.b16 %v248
      %v581 = vunpack.c.h.b16 %v248
      %v582 = vunpack.c.l.b16 %v249
      %v583 = vunpack.c.h.b16 %v249
      %v584 = vunpack.c.l.b16 %v250
      %v585 = vunpack.c.h.b16 %v250
      %v586 = vunpack.c.l.b16 %v251
      %v587 = vunpack.c.h.b16 %v251
      %v588 = vunpack.c.l.b16 %v252
      %v589 = vunpack.c.h.b16 %v252
      %v590 = vunpack.c.l.b16 %v253
      %v591 = vunpack.c.h.b16 %v253
      %v592 = vunpack.c.l.b16 %v254
      %v593 = vunpack.c.h.b16 %v254
      %v594 = vunpack.c.l.b16 %v255
      %v595 = vunpack.c.h.b16 %v255
      %v596 = vunpack.c.l.b16 %v256
      %v597 = vunpack.c.h.b16 %v256
      %v598 = vunpack.c.l.b16 %v257
      %v599 = vunpack.c.h.b16 %v257
      %v600 = vunpack.c.l.b16 %v258
      %v601 = vunpack.c.h.b16 %v258
      %v602 = vunpack.c.l.b16 %v259
      %v603 = vunpack.c.h.b16 %v259
      %v604 = vunpack.c.l.b16 %v260
      %v605 = vunpack.c.h.b16 %v260
      %v606 = vunpack.c.l.b16 %v261
      %v607 = vunpack.c.h.b16 %v261
      %v608 = vunpack.c.l.b16 %v262
      %v609 = vunpack.c.h.b16 %v262
      %v610 = vunpack.c.l.b16 %v263
      %v611 = vunpack.c.h.b16 %v263
      %v612 = vunpack.c.l.b16 %v264
      %v613 = vunpack.c.h.b16 %v264
      %v614 = vunpack.c.l.b16 %v265
      %v615 = vunpack.c.h.b16 %v265
      %v616 = vunpack.c.l.b16 %v266
      %v617 = vunpack.c.h.b16 %v266
      %v618 = vunpack.c.l.b16 %v267
      %v619 = vunpack.c.h.b16 %v267
      %v620 = vunpack.c.l.b16 %v268
      %v621 = vunpack.c.h.b16 %v268
      %v622 = vunpack.c.l.b16 %v269
      %v623 = vunpack.c.h.b16 %v269
      %v624 = vunpack.c.l.b16 %v270
      %v625 = vunpack.c.h.b16 %v270
      %v626 = vunpack.c.l.b16 %v271
      %v627 = vunpack.c.h.b16 %v271
      %v628 = vunpack.c.l.b16 %v272
      %v629 = vunpack.c.h.b16 %v272
      %v630 = vunpack.c.l.b16 %v273
      %v631 = vunpack.c.h.b16 %v273
      %v632 = vunpack.c.l.b16 %v274
      %v633 = vunpack.c.h.b16 %v274
      %v634 = vunpack.c.l.b16 %v275
      %v635 = vunpack.c.h.b16 %v275
      %v636 = vunpack.c.l.b16 %v276
      %v637 = vunpack.c.h.b16 %v276
      %v638 = vunpack.c.l.b16 %v277
      %v639 = vunpack.c.h.b16 %v277
      %v640 = vunpack.c.l.b16 %v278
      %v641 = vunpack.c.h.b16 %v278
      %v642 = vunpack.c.l.b16 %v279
      %v643 = vunpack.c.h.b16 %v279
      %v644 = vunpack.c.l.b16 %v280
      %v645 = vunpack.c.h.b16 %v280
      %v646 = vunpack.c.l.b16 %v281
      %v647 = vunpack.c.h.b16 %v281
      %v648 = vunpack.c.l.b16 %v282
      %v649 = vunpack.c.h.b16 %v282
      %v650 = vunpack.c.l.b16 %v283
      %v651 = vunpack.c.h.b16 %v283
      %v652 = vunpack.c.l.b16 %v284
      %v653 = vunpack.c.h.b16 %v284
      %v654 = vunpack.c.l.b16 %v285
      %v655 = vunpack.c.h.b16 %v285
      %v656 = vunpack.c.l.b16 %v286
      %v657 = vunpack.c.h.b16 %v286
      %v658 = vunpack.c.l.b16 %v287
      %v659 = vunpack.c.h.b16 %v287
      %v660 = vunpack.c.l.b16 %v288
      %v661 = vunpack.c.h.b16 %v288
      %v662 = vunpack.c.l.b16 %v289
      %v663 = vunpack.c.h.b16 %v289
      %v664 = vunpack.c.l.b16 %v290
      %v665 = vunpack.c.h.b16 %v290
      %v666 = vunpack.c.l.b16 %v291
      %v667 = vunpack.c.h.b16 %v291
      %v668 = vunpack.c.l.b16 %v292
      %v669 = vunpack.c.h.b16 %v292
      %v670 = vunpack.c.l.b16 %v293
      %v671 = vunpack.c.h.b16 %v293
      %v672 = vunpack.c.l.b16 %v294
      %v673 = vunpack.c.h.b16 %v294
      %v674 = vunpack.c.l.b16 %v295
      %v675 = vunpack.c.h.b16 %v295
      %v676 = vunpack.c.l.b16 %v296
      %v677 = vunpack.c.h.b16 %v296
      %v678 = vunpack.c.l.b16 %v297
      %v679 = vunpack.c.h.b16 %v297
      %v680 = vunpack.c.l.b16 %v298
      %v681 = vunpack.c.h.b16 %v298
      %v682 = vunpack.c.l.b16 %v299
      %v683 = vunpack.c.h.b16 %v299
      %v684 = vunpack.c.l.b16 %v300
      %v685 = vunpack.c.h.b16 %v300
      %v686 = vunpack.c.l.b16 %v301
      %v687 = vunpack.c.h.b16 %v301
      %v688 = vunpack.c.l.b16 %v302
      %v689 = vunpack.c.h.b16 %v302
      %v690 = vunpack.c.l.b16 %v303
      %v691 = vunpack.c.h.b16 %v303
      %v692 = vunpack.c.l.b16 %v304
      %v693 = vunpack.c.h.b16 %v304
      %v694 = vunpack.c.l.b16 %v305
      %v695 = vunpack.c.h.b16 %v305
      %v696 = vunpack.c.l.b16 %v306
      %v697 = vunpack.c.h.b16 %v306
      %v698 = vunpack.c.l.b16 %v307
      %v699 = vunpack.c.h.b16 %v307
      %v700 = vunpack.c.l.b16 %v308
      %v701 = vunpack.c.h.b16 %v308
      %v702 = vunpack.c.l.b16 %v309
      %v703 = vunpack.c.h.b16 %v309
      %v704 = vunpack.c.l.b16 %v310
      %v705 = vunpack.c.h.b16 %v310
      %v706 = vunpack.c.l.b16 %v311
      %v707 = vunpack.c.h.b16 %v311
      %v708 = vunpack.c.l.b16 %v312
      %v709 = vunpack.c.h.b16 %v312
      %v710 = vunpack.c.l.b16 %v313
      %v711 = vunpack.c.h.b16 %v313
      %v712 = vunpack.c.l.b16 %v314
      %v713 = vunpack.c.h.b16 %v314
      %v714 = vunpack.c.l.b16 %v315
      %v715 = vunpack.c.h.b16 %v315
      %v716 = vunpack.c.l.b16 %v316
      %v717 = vunpack.c.h.b16 %v316
      %v718 = vunpack.c.l.b16 %v317
      %v719 = vunpack.c.h.b16 %v317
      %v720 = vunpack.c.l.b16 %v318
      %v721 = vunpack.c.h.b16 %v318
      %v722 = vunpack.c.l.b16 %v319
      %v723 = vunpack.c.h.b16 %v319
      %v724 = vunpack.c.l.b16 %v320
      %v725 = vunpack.c.h.b16 %v320
      %v726 = vunpack.c.l.b16 %v321
      %v727 = vunpack.c.h.b16 %v321
      %v728 = vunpack.c.l.b16 %v322
      %v729 = vunpack.c.h.b16 %v322
      %v730 = vunpack.c.l.b16 %v323
      %v731 = vunpack.c.h.b16 %v323
      %v732 = vunpack.c.l.b16 %v324
      %v733 = vunpack.c.h.b16 %v324
      %v734 = vunpack.c.l.b16 %v325
      %v735 = vunpack.c.h.b16 %v325
      %v736 = vunpack.c.l.b16 %v326
      %v737 = vunpack.c.h.b16 %v326
      %v738 = vunpack.c.l.b16 %v327
      %v739 = vunpack.c.h.b16 %v327
      %v740 = vunpack.c.l.b16 %v328
      %v741 = vunpack.c.h.b16 %v328
      %v742 = vpack.c.b16 %v490, %v486
      %v743 = vpack.c.b16 %v491, %v487
      %v744 = vpack.c.b16 %v492, %v488
      %v745 = vpack.c.b16 %v493, %v489
      %v746 = vpack.c.b16 %v498, %v494
      %v747 = vpack.c.b16 %v499, %v495
      %v748 = vpack.c.b16 %v500, %v496
      %v749 = vpack.c.b16 %v501, %v497
      %v750 = vpack.c.b16 %v506, %v502
      %v751 = vpack.c.b16 %v507, %v503
      %v752 = vpack.c.b16 %v508, %v504
      %v753 = vpack.c.b16 %v509, %v505
      %v754 = vpack.c.b16 %v514, %v510
      %v755 = vpack.c.b16 %v515, %v511
      %v756 = vpack.c.b16 %v516, %v512
      %v757 = vpack.c.b16 %v517, %v513
      %v758 = vpack.c.b16 %v522, %v518
      %v759 = vpack.c.b16 %v523, %v519
      %v760 = vpack.c.b16 %v524, %v520
      %v761 = vpack.c.b16 %v525, %v521
      %v762 = vpack.c.b16 %v530, %v526
      %v763 = vpack.c.b16 %v531, %v527
      %v764 = vpack.c.b16 %v532, %v528
      %v765 = vpack.c.b16 %v533, %v529
      %v766 = vpack.c.b16 %v538, %v534
      %v767 = vpack.c.b16 %v539, %v535
      %v768 = vpack.c.b16 %v540, %v536
      %v769 = vpack.c.b16 %v541, %v537
      %v770 = vpack.c.b16 %v546, %v542
      %v771 = vpack.c.b16 %v547, %v543
      %v772 = vpack.c.b16 %v548, %v544
      %v773 = vpack.c.b16 %v549, %v545
      %v774 = vpack.c.b16 %v554, %v550
      %v775 = vpack.c.b16 %v555, %v551
      %v776 = vpack.c.b16 %v556, %v552
      %v777 = vpack.c.b16 %v557, %v553
      %v778 = vpack.c.b16 %v562, %v558
      %v779 = vpack.c.b16 %v563, %v559
      %v780 = vpack.c.b16 %v564, %v560
      %v781 = vpack.c.b16 %v565, %v561
      %v782 = vpack.c.b16 %v570, %v566
      %v783 = vpack.c.b16 %v571, %v567
      %v784 = vpack.c.b16 %v572, %v568
      %v785 = vpack.c.b16 %v573, %v569
      %v786 = vpack.c.b16 %v578, %v574
      %v787 = vpack.c.b16 %v579, %v575
      %v788 = vpack.c.b16 %v580, %v576
      %v789 = vpack.c.b16 %v581, %v577
      %v790 = vpack.c.b16 %v586, %v582
      %v791 = vpack.c.b16 %v587, %v583
      %v792 = vpack.c.b16 %v588, %v584
      %v793 = vpack.c.b16 %v589, %v585
      %v794 = vpack.c.b16 %v594, %v590
      %v795 = vpack.c.b16 %v595, %v591
      %v796 = vpack.c.b16 %v596, %v592
      %v797 = vpack.c.b16 %v597, %v593
      %v798 = vpack.c.b16 %v602, %v598
      %v799 = vpack.c.b16 %v603, %v599
      %v800 = vpack.c.b16 %v604, %v600
      %v801 = vpack.c.b16 %v605, %v601
      %v802 = vpack.c.b16 %v610, %v606
      %v803 = vpack.c.b16 %v611, %v607
      %v804 = vpack.c.b16 %v612, %v608
      %v805 = vpack.c.b16 %v613, %v609
      %v806 = vpack.c.b16 %v618, %v614
      %v807 = vpack.c.b16 %v619, %v615
      %v808 = vpack.c.b16 %v620, %v616
      %v809 = vpack.c.b16 %v621, %v617
      %v810 = vpack.c.b16 %v626, %v622
      %v811 = vpack.c.b16 %v627, %v623
      %v812 = vpack.c.b16 %v628, %v624
      %v813 = vpack.c.b16 %v629, %v625
      %v814 = vpack.c.b16 %v634, %v630
      %v815 = vpack.c.b16 %v635, %v631
      %v816 = vpack.c.b16 %v636, %v632
      %v817 = vpack.c.b16 %v637, %v633
      %v818 = vpack.c.b16 %v642, %v638
      %v819 = vpack.c.b16 %v643, %v639
      %v820 = vpack.c.b16 %v644, %v640
      %v821 = vpack.c.b16 %v645, %v641
      %v822 = vpack.c.b16 %v650, %v646
      %v823 = vpack.c.b16 %v651, %v647
      %v824 = vpack.c.b16 %v652, %v648
      %v825 = vpack.c.b16 %v653, %v649
      %v826 = vpack.c.b16 %v658, %v654
      %v827 = vpack.c.b16 %v659, %v655
      %v828 = vpack.c.b16 %v660, %v656
      %v829 = vpack.c.b16 %v661, %v657
      %v830 = vpack.c.b16 %v666, %v662
      %v831 = vpack.c.b16 %v667, %v663
      %v832 = vpack.c.b16 %v668, %v664
      %v833 = vpack.c.b16 %v669, %v665
      %v834 = vpack.c.b16 %v674, %v670
      %v835 = vpack.c.b16 %v675, %v671
      %v836 = vpack.c.b16 %v676, %v672
      %v837 = vpack.c.b16 %v677, %v673
      %v838 = vpack.c.b16 %v682, %v678
      %v839 = vpack.c.b16 %v683, %v679
      %v840 = vpack.c.b16 %v684, %v680
      %v841 = vpack.c.b16 %v685, %v681
      %v842 = vpack.c.b16 %v690, %v686
      %v843 = vpack.c.b16 %v691, %v687
      %v844 = vpack.c.b16 %v692, %v688
      %v845 = vpack.c.b16 %v693, %v689
      %v846 = vpack.c.b16 %v698, %v694
      %v847 = vpack.c.b16 %v699, %v695
      %v848 = vpack.c.b16 %v700, %v696
      %v849 = vpack.c.b16 %v701, %v697
      %v850 = vpack.c.b16 %v706, %v702
      %v851 = vpack.c.b16 %v707, %v703
      %v852 = vpack.c.b16 %v708, %v704
      %v853 = vpack.c.b16 %v709, %v705
      %v854 = vpack.c.b16 %v714, %v710
      %v855 = vpack.c.b16 %v715, %v711
      %v856 = vpack.c.b16 %v716, %v712
      %v857 = vpack.c.b16 %v717, %v713
      %v858 = vpack.c.b16 %v722, %v718
      %v859 = vpack.c.b16 %v723, %v719
      %v860 = vpack.c.b16 %v724, %v720
      %v861 = vpack.c.b16 %v725, %v721
      %v862 = vpack.c.b16 %v730, %v726
      %v863 = vpack.c.b16 %v731, %v727
      %v864 = vpack.c.b16 %v732, %v728
      %v865 = vpack.c.b16 %v733, %v729
      %v866 = vpack.c.b16 %v738, %v734
      %v867 = vpack.c.b16 %v739, %v735
      %v868 = vpack.c.b16 %v740, %v736
      %v869 = vpack.c.b16 %v741, %v737
      %998 = vmatprep.subr.bf16.mxu0 %v743
      %999 = vmatpush1.bf16.msra.mxu0 %v742
      %1000 = vmatprep.subr.bf16.mxu0 %v747
      %1001 = vmatpush1.bf16.msra.mxu0 %v746
      %1002 = vmatprep.subr.bf16.mxu0 %v751
      %1003 = vmatpush1.bf16.msra.mxu0 %v750
      %1004 = vmatprep.subr.bf16.mxu0 %v755
      %1005 = vmatpush1.bf16.msra.mxu0 %v754
      %1006 = vmatprep.subr.bf16.mxu0 %v759
      %1007 = vmatpush1.bf16.msra.mxu0 %v758
      %1008 = vmatprep.subr.bf16.mxu0 %v763
      %1009 = vmatpush1.bf16.msra.mxu0 %v762
      %1010 = vmatprep.subr.bf16.mxu0 %v767
      %1011 = vmatpush1.bf16.msra.mxu0 %v766
      %1012 = vmatprep.subr.bf16.mxu0 %v771
      %1013 = vmatpush1.bf16.msra.mxu0 %v770
      %1014 = vmatprep.subr.bf16.mxu0 %v775
      %1015 = vmatpush1.bf16.msra.mxu0 %v774
      %1016 = vmatprep.subr.bf16.mxu0 %v779
      %1017 = vmatpush1.bf16.msra.mxu0 %v778
      %1018 = vmatprep.subr.bf16.mxu0 %v783
      %1019 = vmatpush1.bf16.msra.mxu0 %v782
      %1020 = vmatprep.subr.bf16.mxu0 %v787
      %1021 = vmatpush1.bf16.msra.mxu0 %v786
      %1022 = vmatprep.subr.bf16.mxu0 %v791
      %1023 = vmatpush1.bf16.msra.mxu0 %v790
      %1024 = vmatprep.subr.bf16.mxu0 %v795
      %1025 = vmatpush1.bf16.msra.mxu0 %v794
      %1026 = vmatprep.subr.bf16.mxu0 %v799
      %1027 = vmatpush1.bf16.msra.mxu0 %v798
      %1028 = vmatprep.subr.bf16.mxu0 %v803
      %1029 = vmatpush1.bf16.msra.mxu0 %v802
      %1030 = vmatprep.mubr.bf16.mxu0 %v351
      %1031 = vmatmul.mubr.bf16.gmra.mrb[0].mxu0 %v344
      %v1032 = vpop.f32.mrb[0].mxu0
      %v1033 = vadd.f32 0.0, %v1032
      %v1034 = vpop.f32.mrb[0].mxu0
      %v1035 = vadd.f32 0.0, %v1034
      %v1036 = vpop.f32.mrb[0].mxu0
      %v1037 = vpop.f32.mrb[0].mxu0
      %1038 = vdwg.mxu0
      %1039 = vmatprep.subr.bf16.mxu0 %v807
      %1040 = vmatpush1.bf16.msra.mxu0 %v806
      %1041 = vmatprep.subr.bf16.mxu0 %v811
      %1042 = vmatpush1.bf16.msra.mxu0 %v810
      %1043 = vmatprep.subr.bf16.mxu0 %v815
      %1044 = vmatpush1.bf16.msra.mxu0 %v814
      %1045 = vmatprep.subr.bf16.mxu0 %v819
      %1046 = vmatpush1.bf16.msra.mxu0 %v818
      %1047 = vmatprep.subr.bf16.mxu0 %v823
      %1048 = vmatpush1.bf16.msra.mxu0 %v822
      %1049 = vmatprep.subr.bf16.mxu0 %v827
      %1050 = vmatpush1.bf16.msra.mxu0 %v826
      %1051 = vmatprep.subr.bf16.mxu0 %v831
      %1052 = vmatpush1.bf16.msra.mxu0 %v830
      %1053 = vmatprep.subr.bf16.mxu0 %v835
      %1054 = vmatpush1.bf16.msra.mxu0 %v834
      %1055 = vmatprep.subr.bf16.mxu0 %v839
      %1056 = vmatpush1.bf16.msra.mxu0 %v838
      %1057 = vmatprep.subr.bf16.mxu0 %v843
      %1058 = vmatpush1.bf16.msra.mxu0 %v842
      %1059 = vmatprep.subr.bf16.mxu0 %v847
      %1060 = vmatpush1.bf16.msra.mxu0 %v846
      %1061 = vmatprep.subr.bf16.mxu0 %v851
      %1062 = vmatpush1.bf16.msra.mxu0 %v850
      %1063 = vmatprep.subr.bf16.mxu0 %v855
      %1064 = vmatpush1.bf16.msra.mxu0 %v854
      %1065 = vmatprep.subr.bf16.mxu0 %v859
      %1066 = vmatpush1.bf16.msra.mxu0 %v858
      %1067 = vmatprep.subr.bf16.mxu0 %v863
      %1068 = vmatpush1.bf16.msra.mxu0 %v862
      %1069 = vmatprep.subr.bf16.mxu0 %v867
      %1070 = vmatpush1.bf16.msra.mxu0 %v866
      %1071 = vmatprep.mubr.bf16.mxu0 %v353
      %1072 = vmatmul.mubr.bf16.gmra.mrb[0].mxu0 %v352
      %v1073 = vpop.f32.mrb[0].mxu0
      %v1074 = vadd.f32 %v1033, %v1073
      %v1075 = vpop.f32.mrb[0].mxu0
      %v1076 = vadd.f32 %v1035, %v1075
      %v1077 = vpop.f32.mrb[0].mxu0
      %v1078 = vpop.f32.mrb[0].mxu0
      %1079 = vdwg.mxu0
      %1080 = vmatprep.subr.bf16.mxu0 %v745
      %1081 = vmatpush1.bf16.msra.mxu0 %v744
      %1082 = vmatprep.subr.bf16.mxu0 %v749
      %1083 = vmatpush1.bf16.msra.mxu0 %v748
      %1084 = vmatprep.subr.bf16.mxu0 %v753
      %1085 = vmatpush1.bf16.msra.mxu0 %v752
      %1086 = vmatprep.subr.bf16.mxu0 %v757
      %1087 = vmatpush1.bf16.msra.mxu0 %v756
      %1088 = vmatprep.subr.bf16.mxu0 %v761
      %1089 = vmatpush1.bf16.msra.mxu0 %v760
      %1090 = vmatprep.subr.bf16.mxu0 %v765
      %1091 = vmatpush1.bf16.msra.mxu0 %v764
      %1092 = vmatprep.subr.bf16.mxu0 %v769
      %1093 = vmatpush1.bf16.msra.mxu0 %v768
      %1094 = vmatprep.subr.bf16.mxu0 %v773
      %1095 = vmatpush1.bf16.msra.mxu0 %v772
      %1096 = vmatprep.subr.bf16.mxu0 %v777
      %1097 = vmatpush1.bf16.msra.mxu0 %v776
      %1098 = vmatprep.subr.bf16.mxu0 %v781
      %1099 = vmatpush1.bf16.msra.mxu0 %v780
      %1100 = vmatprep.subr.bf16.mxu0 %v785
      %1101 = vmatpush1.bf16.msra.mxu0 %v784
      %1102 = vmatprep.subr.bf16.mxu0 %v789
      %1103 = vmatpush1.bf16.msra.mxu0 %v788
      %1104 = vmatprep.subr.bf16.mxu0 %v793
      %1105 = vmatpush1.bf16.msra.mxu0 %v792
      %1106 = vmatprep.subr.bf16.mxu0 %v797
      %1107 = vmatpush1.bf16.msra.mxu0 %v796
      %1108 = vmatprep.subr.bf16.mxu0 %v801
      %1109 = vmatpush1.bf16.msra.mxu0 %v800
      %1110 = vmatprep.subr.bf16.mxu0 %v805
      %1111 = vmatpush1.bf16.msra.mxu0 %v804
      %1112 = vmatprep.mubr.bf16.mxu0 %v351
      %1113 = vmatmul.mubr.bf16.gmra.mrb[0].mxu0 %v344
      %v1114 = vpop.f32.mrb[0].mxu0
      %v1115 = vadd.f32 0.0, %v1114
      %v1116 = vpop.f32.mrb[0].mxu0
      %v1117 = vadd.f32 0.0, %v1116
      %v1118 = vpop.f32.mrb[0].mxu0
      %v1119 = vpop.f32.mrb[0].mxu0
      %1120 = vdwg.mxu0
      %1121 = vmatprep.subr.bf16.mxu0 %v809
      %1122 = vmatpush1.bf16.msra.mxu0 %v808
      %1123 = vmatprep.subr.bf16.mxu0 %v813
      %1124 = vmatpush1.bf16.msra.mxu0 %v812
      %1125 = vmatprep.subr.bf16.mxu0 %v817
      %1126 = vmatpush1.bf16.msra.mxu0 %v816
      %1127 = vmatprep.subr.bf16.mxu0 %v821
      %1128 = vmatpush1.bf16.msra.mxu0 %v820
      %1129 = vmatprep.subr.bf16.mxu0 %v825
      %1130 = vmatpush1.bf16.msra.mxu0 %v824
      %1131 = vmatprep.subr.bf16.mxu0 %v829
      %1132 = vmatpush1.bf16.msra.mxu0 %v828
      %1133 = vmatprep.subr.bf16.mxu0 %v833
      %1134 = vmatpush1.bf16.msra.mxu0 %v832
      %1135 = vmatprep.subr.bf16.mxu0 %v837
      %1136 = vmatpush1.bf16.msra.mxu0 %v836
      %1137 = vmatprep.subr.bf16.mxu0 %v841
      %1138 = vmatpush1.bf16.msra.mxu0 %v840
      %1139 = vmatprep.subr.bf16.mxu0 %v845
      %1140 = vmatpush1.bf16.msra.mxu0 %v844
      %1141 = vmatprep.subr.bf16.mxu0 %v849
      %1142 = vmatpush1.bf16.msra.mxu0 %v848
      %1143 = vmatprep.subr.bf16.mxu0 %v853
      %1144 = vmatpush1.bf16.msra.mxu0 %v852
      %1145 = vmatprep.subr.bf16.mxu0 %v857
      %1146 = vmatpush1.bf16.msra.mxu0 %v856
      %1147 = vmatprep.subr.bf16.mxu0 %v861
      %1148 = vmatpush1.bf16.msra.mxu0 %v860
      %1149 = vmatprep.subr.bf16.mxu0 %v865
      %1150 = vmatpush1.bf16.msra.mxu0 %v864
      %1151 = vmatprep.subr.bf16.mxu0 %v869
      %1152 = vmatpush1.bf16.msra.mxu0 %v868
      %1153 = vmatprep.mubr.bf16.mxu0 %v353
      %1154 = vmatmul.mubr.bf16.gmra.mrb[0].mxu0 %v352
      %v1155 = vpop.f32.mrb[0].mxu0
      %v1156 = vadd.f32 %v1115, %v1155
      %v1157 = vpop.f32.mrb[0].mxu0
      %v1158 = vadd.f32 %v1117, %v1157
      %v1159 = vpop.f32.mrb[0].mxu0
      %v1160 = vpop.f32.mrb[0].mxu0
      %1161 = vdwg.mxu0
      %v1166 = vcombine.low %v1074, %v1076
      %v1167 = vcombine.low %v1156, %v1158
      %v1169 = vunpack.c.l.s4 1983009808
      %v1170 = vunpack.c.0.s8 %v1169
      %v1171 = vlaneseq
      %v1172 = vshrl.u32 %v1171, 7
      %v1173 = vsub.s32 %v1170, %v1172
      %v1174 = vrot.slane %v1166, %v1173
      %v1176 = vunpack.c.l.s4 1983009808
      %v1177 = vunpack.c.0.s8 %v1176
      %v1178 = vlaneseq
      %v1179 = vshrl.u32 %v1178, 7
      %v1180 = vsub.s32 %v1177, %v1179
      %v1181 = vrot.slane %v1167, %v1180
      %v1182 = vcombine.low %v1174, %v1181
      %v1184 = vadd.f32 %v199, %v1182
      %1185 = vst [vmem:[#allocation2] sm:$0xff] %v1184
      %p1186 = scmp.eq.s32.totalorder %s18, 26
      // Predicated region
      $region33: #{feature_net.27} parent=27 // pred_check
        %p1187 = pneg %p1186
      $region34: #{feature_net.27} parent=27 // pred_check_branch
        %1189 = sbr.rel (%p1187) target = $region36
      $region35: #{feature_net.27} parent=27 // pred_region
        %v1190 = vld [vmem:[#allocation2] sm:$0xff]
        %1191 = vst [vmem:[%s193] sm:$0xff] %v1190
      $region36: #{feature_net.27} parent=27 // pred_fallthru
        _
      %p1192 = scmp.lt.s32.totalorder %s17, 0
      %s1193 = scalar_select %p1192, %s17, 0
      %s1194 = smul.addr %s1193, 4
      %s1195 = smul.addr %s1194, 2
      %s1196 = scalar_lea.vmem %s2, %s1195
      // Predicated region
      $region37: #{feature_net.27} parent=27 // pred_check
        %p1197 = pneg %p97
      $region38: #{feature_net.27} parent=27 // pred_check_branch
        %1199 = sbr.rel (%p1197) target = $region40
      $region39: #{feature_net.27} parent=27 // pred_region
        _
      $region40: #{feature_net.27} parent=27 // pred_fallthru
        _
      // Predicated region
      $region41: #{feature_net.27} parent=27 // pred_check
        %p1200 = pneg %p97
      $region42: #{feature_net.27} parent=27 // pred_check_branch
        %1202 = sbr.rel (%p1200) target = $region44
      $region43: #{feature_net.27} parent=27 // pred_region
        %p1203 = scmp.lt.s32.totalorder %s17, 0
        %s1204 = scalar_select %p1203, %s17, 0
        %s1205 = smul.addr %s1204, 4
        %s1206 = smul.addr %s1205, 2
        %s1207 = scalar_lea.vmem %s2, %s1206
      $region44: #{feature_net.27} parent=27 // pred_fallthru
        _
    $region28: #{feature_net.27} parent=5 // pred_fallthru
      _
    %p1208 = scmp.le.s32.totalorder 2, %s8
    // Predicated region
    $region45: #{feature_net.27} parent=5 // pred_check
      %p1209 = pneg %p1208
    $region46: #{feature_net.27} parent=5 // pred_check_branch
      %1211 = sbr.rel (%p1209) target = $region48
    $region47: #{feature_net.27} parent=5 // pred_region
      %s1212 = ssub.s32 %s8, 2
    $region48: #{feature_net.27} parent=5 // pred_fallthru
      _
  $region6: #{feature_net.27} parent=0 // loop_footer
    %s12 = sadd.s32 1, %s8
  $region7: #{feature_net.27} parent=0 // loop_footer_branch
    %7 = sbr.rel target = $region3
  $region8: #{feature_net.27} parent=0 // loop_exit
    _

// kernel: feature_net.28
$region0: #{feature_net.28}
  #allocation0 [shape = 'u32[]', space=smem, size = 0x4, offset = 0x4, fixed_abs, tag = 'smem constant byte address 0x4 - core index']
  #allocation1 [shape = 'u32[144,128]{1,0:T(1,128)}', space=vmem, size = 0x12000, scoped, tag = 'internal scratch']
  %s0 = inlined_call_operand.vmem [shape: f32[2,1,512], index: 0, kind: input, shape index: {}]
  %s1 = inlined_call_operand.vmem [shape: f32[2,1,512], index: 1, kind: output, shape index: {0}]
  %s2 = inlined_call_operand.vmem [shape: f32[2,1,512], index: 2, kind: output, shape index: {1}]
  %3 = xla_tuple %s1, %s2
  %s4 = sld [smem:[#allocation0]]
  $region49: #{feature_net.28} parent=0
    _
  %s6 = ssub.s32 1, %s4
  %s7 = scalar_select 0, %s6, %s4
  loop: start=0, step=1, limit=4
  $region2: #{feature_net.28} parent=0 // loop_pre_header
    _
  $region3: #{feature_net.28} parent=0 // loop_header
    %s9 = sphi 0, %s13
    %p10 = scmp.ge.s32.totalorder %s9, 4
    %s16 = sphi 0, %s28
    %s17 = sphi 0, %s24
    %s18 = sphi 0, %s16
    %s19 = sphi 0, %s17
    %s20 = sphi 0, %s18
    %s21 = sphi 0, %s19
    %s33 = sphi 0, %s35
    %s36 = sphi 0, %s33
    %s37 = sphi 0, %s36
    %s53 = sphi 0, %s37
    %s59 = sphi 0, %s61
    %s62 = sphi 0, %s59
    %s63 = sphi 0, %s62
    %s79 = sphi 0, %s63
    %s85 = sphi 0, %s87
    %s88 = sphi 0, %s85
    %s89 = sphi 0, %s88
    %s105 = sphi 0, %s89
  $region4: #{feature_net.28} parent=0 // loop_header_branch
    %12 = sbr.rel (%p10) target = $region8
  $region5: #{feature_net.28} parent=0 // loop_body
    %s14 = ssub.s32 %s9, 1
    %s15 = ssub.s32 %s9, 2
    %s22 = sadd.s32 1, %s17
    %p23 = scmp.ge.s32.totalorder %s22, 1
    %s24 = scalar_select %p23, 0, %s22
    %s25 = sadd.s32 1, %s16
    %s26 = scalar_select %p23, %s25, %s16
    %p27 = scmp.ge.s32.totalorder %s26, 2
    %s28 = scalar_select %p27, 0, %s26
    %s29 = ssub.s32 %s16, %s28
    %s30 = ssub.s32 %s17, %s24
    %s31 = sor.u32 %s29, %s30
    %p32 = scmp.eq.s32.totalorder %s31, 0
    %s34 = sadd.s32 %s33, 1
    %s35 = scalar_select %p32, %s33, %s34
    %p38 = pneg %p32
    %p39 = scmp.eq.s32.totalorder %s9, 1
    %p40 = por %p38, %p39
    %p41 = scmp.ne.s32.totalorder %s33, %s36
    %p42 = scmp.eq.s32.totalorder %s9, 0
    %p43 = por %p41, %p42
    %p44 = scmp.ne.s32.totalorder %s33, %s36
    %p45 = scmp.eq.s32.totalorder %s14, 1
    %p46 = por %p44, %p45
    %p47 = scmp.ne.s32.totalorder %s36, %s37
    %p48 = scmp.eq.s32.totalorder %s14, 0
    %p49 = por %p47, %p48
    %p50 = scmp.ne.s32.totalorder %s36, %s37
    %p51 = scmp.eq.s32.totalorder %s15, 1
    %p52 = por %p50, %p51
    %p54 = scmp.ne.s32.totalorder %s37, %s53
    %p55 = scmp.eq.s32.totalorder %s15, 0
    %p56 = por %p54, %p55
    %s57 = ssub.s32 %s16, %s28
    %p58 = scmp.eq.s32.totalorder %s57, 0
    %s60 = sadd.s32 %s59, 1
    %s61 = scalar_select %p58, %s59, %s60
    %p64 = pneg %p58
    %p65 = scmp.eq.s32.totalorder %s9, 1
    %p66 = por %p64, %p65
    %p67 = scmp.ne.s32.totalorder %s59, %s62
    %p68 = scmp.eq.s32.totalorder %s9, 0
    %p69 = por %p67, %p68
    %p70 = scmp.ne.s32.totalorder %s59, %s62
    %p71 = scmp.eq.s32.totalorder %s14, 1
    %p72 = por %p70, %p71
    %p73 = scmp.ne.s32.totalorder %s62, %s63
    %p74 = scmp.eq.s32.totalorder %s14, 0
    %p75 = por %p73, %p74
    %p76 = scmp.ne.s32.totalorder %s62, %s63
    %p77 = scmp.eq.s32.totalorder %s15, 1
    %p78 = por %p76, %p77
    %p80 = scmp.ne.s32.totalorder %s63, %s79
    %p81 = scmp.eq.s32.totalorder %s15, 0
    %p82 = por %p80, %p81
    %s83 = ssub.s32 %s16, %s28
    %p84 = scmp.eq.s32.totalorder %s83, 0
    %s86 = sadd.s32 %s85, 1
    %s87 = scalar_select %p84, %s85, %s86
    %p90 = pneg %p84
    %p91 = scmp.eq.s32.totalorder %s9, 1
    %p92 = por %p90, %p91
    %p93 = scmp.ne.s32.totalorder %s85, %s88
    %p94 = scmp.eq.s32.totalorder %s9, 0
    %p95 = por %p93, %p94
    %p96 = scmp.ne.s32.totalorder %s85, %s88
    %p97 = scmp.eq.s32.totalorder %s14, 1
    %p98 = por %p96, %p97
    %p99 = scmp.ne.s32.totalorder %s88, %s89
    %p100 = scmp.eq.s32.totalorder %s14, 0
    %p101 = por %p99, %p100
    %p102 = scmp.ne.s32.totalorder %s88, %s89
    %p103 = scmp.eq.s32.totalorder %s15, 1
    %p104 = por %p102, %p103
    %p106 = scmp.ne.s32.totalorder %s89, %s105
    %p107 = scmp.eq.s32.totalorder %s15, 0
    %p108 = por %p106, %p107
    %p109 = scmp.le.s32.totalorder 1, %s9
    %p110 = scmp.lt.s32.totalorder %s9, 3
    %p111 = pnand %p109, %p110
    %p112 = pneg %p111
    // Predicated region
    $region9: #{feature_net.28} parent=5 // pred_check
      _
    $region10: #{feature_net.28} parent=5 // pred_check_branch
      %114 = sbr.rel (%p111) target = $region12
    $region11: #{feature_net.28} parent=5 // pred_region
      %s115 = ssub.s32 %s9, 1
    $region12: #{feature_net.28} parent=5 // pred_fallthru
      _
    %p116 = scmp.lt.s32.totalorder %s9, 2
    // Predicated region
    $region13: #{feature_net.28} parent=5 // pred_check
      %p117 = pneg %p116
    $region14: #{feature_net.28} parent=5 // pred_check_branch
      %119 = sbr.rel (%p117) target = $region16
    $region15: #{feature_net.28} parent=5 // pred_region
      // Predicated region
      $region17: #{feature_net.28} parent=15 // pred_check
        %p120 = pneg %p43
      $region18: #{feature_net.28} parent=15 // pred_check_branch
        %122 = sbr.rel (%p120) target = $region20
      $region19: #{feature_net.28} parent=15 // pred_region
        %p123 = scmp.lt.s32.totalorder %s16, 1
        %s124 = scalar_select %p123, %s16, 1
        %p125 = scmp.lt.s32.totalorder %s17, 0
        %s126 = scalar_select %p125, %s17, 0
        %s127 = smul.addr %s126, 4
        %s128 = smul.addr %s124, 4
        %s129 = sadd.s32 %s127, %s128
        %s130 = scalar_lea.vmem %s0, %s129
      $region20: #{feature_net.28} parent=15 // pred_fallthru
        _
    $region16: #{feature_net.28} parent=5 // pred_fallthru
      _
    %p131 = scmp.le.s32.totalorder 1, %s9
    %p132 = scmp.lt.s32.totalorder %s9, 3
    %p133 = pnand %p131, %p132
    %p134 = pneg %p133
    // Predicated region
    $region21: #{feature_net.28} parent=5 // pred_check
      _
    $region22: #{feature_net.28} parent=5 // pred_check_branch
      %136 = sbr.rel (%p133) target = $region24
    $region23: #{feature_net.28} parent=5 // pred_region
      %s137 = ssub.s32 %s9, 1
      %p138 = scmp.lt.s32.totalorder %s18, 1
      %s139 = scalar_select %p138, %s18, 1
      %p140 = scmp.lt.s32.totalorder %s19, 0
      %s141 = scalar_select %p140, %s19, 0
      %s142 = smul.addr %s141, 4
      %s143 = smul.addr %s139, 4
      %s144 = sadd.s32 %s142, %s143
      %s145 = scalar_lea.vmem %s0, %s144
      %p146 = pneg %p49
      %p147 = pneg %p46
      %p148 = pneg %p75
      %p149 = pneg %p72
      %p150 = scmp.lt.s32.totalorder %s18, 1
      %s151 = scalar_select %p150, %s18, 1
      %s152 = smul.addr %s151, 4
      %s153 = scalar_lea.vmem %s1, %s152
      %p154 = pneg %p101
      %p155 = pneg %p98
      %p156 = scmp.lt.s32.totalorder %s18, 1
      %s157 = scalar_select %p156, %s18, 1
      %s158 = smul.addr %s157, 4
      %s159 = scalar_lea.vmem %s2, %s158
      %p160 = scmp.lt.s32.totalorder %s18, 1
      %s161 = scalar_select %p160, %s18, 1
      %p162 = scmp.lt.s32.totalorder %s19, 0
      %s163 = scalar_select %p162, %s19, 0
      %s164 = smul.addr %s163, 4
      %s165 = smul.addr %s161, 4
      %s166 = sadd.s32 %s164, %s165
      %s167 = scalar_lea.vmem %s0, %s166
      %p168 = scmp.lt.s32.totalorder %s18, 1
      %s169 = scalar_select %p168, %s18, 1
      %s170 = smul.addr %s169, 4
      %s171 = scalar_lea.vmem %s1, %s170
      %p172 = scmp.lt.s32.totalorder %s18, 1
      %s173 = scalar_select %p172, %s18, 1
      %s174 = smul.addr %s173, 4
      %s175 = scalar_lea.vmem %s2, %s174
      %p176 = scmp.eq.s32.totalorder %s19, 0
      // Predicated region
      $region25: #{feature_net.28} parent=23 // pred_check
        %p177 = pneg %p176
      $region26: #{feature_net.28} parent=23 // pred_check_branch
        %179 = sbr.rel (%p177) target = $region28
      $region27: #{feature_net.28} parent=23 // pred_region
        %v180 = vlaneseq
        %vm181 = vcmp.ge.s32.totalorder %v180, 0
        %vm182 = vcmp.lt.s32.totalorder %v180, 512
        %vm183 = vmand %vm181, %vm182
        %184 = vst.msk [vmem:[%s171] sm:$0xf] %vm183, 0.0
        %185 = vst.msk [vmem:[%s175] sm:$0xf] %vm183, 0.0
      $region28: #{feature_net.28} parent=23 // pred_fallthru
        _
      %v186 = vld [vmem:[%s167] sm:$0xf]
      %v187 = vld [vmem:[%s171] sm:$0xf]
      %v188 = vadd.f32 %v186, 0.0
      %v189 = vadd.f32 %v187, %v188
      %v190 = vlaneseq
      %vm191 = vcmp.ge.s32.totalorder %v190, 0
      %vm192 = vcmp.lt.s32.totalorder %v190, 512
      %vm193 = vmand %vm191, %vm192
      %194 = vst.msk [vmem:[%s171] sm:$0xf] %vm193, %v189
      %v195 = vld [vmem:[%s175] sm:$0xf]
      %v196 = vmul.f32 %v186, %v186
      %v197 = vadd.f32 %v196, 0.0
      %v198 = vadd.f32 %v195, %v197
      %199 = vst.msk [vmem:[%s175] sm:$0xf] %vm193, %v198
      %p200 = scmp.lt.s32.totalorder %s18, 1
      %s201 = scalar_select %p200, %s18, 1
      %s202 = smul.addr %s201, 4
      %s203 = scalar_lea.vmem %s1, %s202
      %p204 = scmp.lt.s32.totalorder %s18, 1
      %s205 = scalar_select %p204, %s18, 1
      %s206 = smul.addr %s205, 4
      %s207 = scalar_lea.vmem %s2, %s206
      // Predicated region
      $region29: #{feature_net.28} parent=23 // pred_check
        %p208 = pneg %p72
      $region30: #{feature_net.28} parent=23 // pred_check_branch
        %210 = sbr.rel (%p208) target = $region32
      $region31: #{feature_net.28} parent=23 // pred_region
        _
      $region32: #{feature_net.28} parent=23 // pred_fallthru
        _
      // Predicated region
      $region33: #{feature_net.28} parent=23 // pred_check
        %p211 = pneg %p98
      $region34: #{feature_net.28} parent=23 // pred_check_branch
        %213 = sbr.rel (%p211) target = $region36
      $region35: #{feature_net.28} parent=23 // pred_region
        _
      $region36: #{feature_net.28} parent=23 // pred_fallthru
        _
    $region24: #{feature_net.28} parent=5 // pred_fallthru
      _
    %p214 = scmp.le.s32.totalorder 2, %s9
    // Predicated region
    $region37: #{feature_net.28} parent=5 // pred_check
      %p215 = pneg %p214
    $region38: #{feature_net.28} parent=5 // pred_check_branch
      %217 = sbr.rel (%p215) target = $region40
    $region39: #{feature_net.28} parent=5 // pred_region
      %s218 = ssub.s32 %s9, 2
      // Predicated region
      $region41: #{feature_net.28} parent=39 // pred_check
        %p219 = pneg %p78
      $region42: #{feature_net.28} parent=39 // pred_check_branch
        %221 = sbr.rel (%p219) target = $region44
      $region43: #{feature_net.28} parent=39 // pred_region
        %p222 = scmp.lt.s32.totalorder %s20, 1
        %s223 = scalar_select %p222, %s20, 1
        %s224 = smul.addr %s223, 4
        %s225 = scalar_lea.vmem %s1, %s224
      $region44: #{feature_net.28} parent=39 // pred_fallthru
        _
      // Predicated region
      $region45: #{feature_net.28} parent=39 // pred_check
        %p226 = pneg %p104
      $region46: #{feature_net.28} parent=39 // pred_check_branch
        %228 = sbr.rel (%p226) target = $region48
      $region47: #{feature_net.28} parent=39 // pred_region
        %p229 = scmp.lt.s32.totalorder %s20, 1
        %s230 = scalar_select %p229, %s20, 1
        %s231 = smul.addr %s230, 4
        %s232 = scalar_lea.vmem %s2, %s231
      $region48: #{feature_net.28} parent=39 // pred_fallthru
        _
    $region40: #{feature_net.28} parent=5 // pred_fallthru
      _
  $region6: #{feature_net.28} parent=0 // loop_footer
    %s13 = sadd.s32 1, %s9
  $region7: #{feature_net.28} parent=0 // loop_footer_branch
    %8 = sbr.rel target = $region3
  $region8: #{feature_net.28} parent=0 // loop_exit
    _

// kernel: feature_net.29
$region0: #{feature_net.29}
  #allocation0 [shape = 'u32[]', space=smem, size = 0x4, offset = 0x4, fixed_abs, tag = 'smem constant byte address 0x4 - core index']
  #allocation1 [shape = 'u32[144,128]{1,0:T(1,128)}', space=vmem, size = 0x12000, scoped, tag = 'internal scratch']
  %s0 = inlined_call_operand.vmem [shape: f32[2,1,512], index: 0, kind: input, shape index: {}]
  %s1 = inlined_call_operand.vmem [shape: f32[2,1,512], index: 1, kind: input, shape index: {}]
  %s2 = inlined_call_operand.vmem [shape: f32[2,1,512], index: 2, kind: input, shape index: {}]
  %s3 = inlined_call_operand.hbm [shape: f32[2,1,512], index: 3, kind: output, shape index: {}]
  %s4 = sld [smem:[#allocation0]]
  $region45: #{feature_net.29} parent=0
    _
  %s6 = ssub.s32 1, %s4
  %s7 = scalar_select 0, %s6, %s4
  $region1: #{feature_net.29} parent=0
    #allocation2 [shape = 'u8[4096]{0}', space=vmem, size = 0x1000, scoped, tag = 'output window, operand 0']
    #allocation3 [shape = 's32[2]{0}', space=sflag, size = 0x8, scoped, tag = 'scoped memory for feature_net.29']
    %8 = vsyncpa [#allocation3], 0
    %s9 = scalar_lea.sflag [#allocation3], 1
    %10 = vsyncpa %s9, 0
    loop: start=0, step=1, limit=4
    $region2: #{feature_net.29} parent=1 // loop_pre_header
      _
    $region3: #{feature_net.29} parent=1 // loop_header
      %s12 = sphi 0, %s16
      %p13 = scmp.ge.s32.totalorder %s12, 4
      %s19 = sphi 0, %s31
      %s20 = sphi 0, %s27
      %s21 = sphi 0, %s19
      %s22 = sphi 0, %s20
      %s23 = sphi 0, %s21
      %s24 = sphi 0, %s22
      %s36 = sphi 0, %s38
      %s39 = sphi 0, %s36
      %s40 = sphi 0, %s39
      %s56 = sphi 0, %s40
      %s62 = sphi 0, %s64
      %s65 = sphi 0, %s62
      %s66 = sphi 0, %s65
      %s82 = sphi 0, %s66
      %s88 = sphi 0, %s90
      %s91 = sphi 0, %s88
      %s92 = sphi 0, %s91
      %s108 = sphi 0, %s92
      %s116 = sphi 0, %s118
      %s119 = sphi 0, %s116
      %s120 = sphi 0, %s119
      %s136 = sphi 0, %s120
    $region4: #{feature_net.29} parent=1 // loop_header_branch
      %15 = sbr.rel (%p13) target = $region8
    $region5: #{feature_net.29} parent=1 // loop_body
      %s17 = ssub.s32 %s12, 1
      %s18 = ssub.s32 %s12, 2
      %s25 = sadd.s32 1, %s20
      %p26 = scmp.ge.s32.totalorder %s25, 1
      %s27 = scalar_select %p26, 0, %s25
      %s28 = sadd.s32 1, %s19
      %s29 = scalar_select %p26, %s28, %s19
      %p30 = scmp.ge.s32.totalorder %s29, 2
      %s31 = scalar_select %p30, 0, %s29
      %s32 = ssub.s32 %s19, %s31
      %s33 = ssub.s32 %s20, %s27
      %s34 = sor.u32 %s32, %s33
      %p35 = scmp.eq.s32.totalorder %s34, 0
      %s37 = sadd.s32 %s36, 1
      %s38 = scalar_select %p35, %s36, %s37
      %p41 = pneg %p35
      %p42 = scmp.eq.s32.totalorder %s12, 1
      %p43 = por %p41, %p42
      %p44 = scmp.ne.s32.totalorder %s36, %s39
      %p45 = scmp.eq.s32.totalorder %s12, 0
      %p46 = por %p44, %p45
      %p47 = scmp.ne.s32.totalorder %s36, %s39
      %p48 = scmp.eq.s32.totalorder %s17, 1
      %p49 = por %p47, %p48
      %p50 = scmp.ne.s32.totalorder %s39, %s40
      %p51 = scmp.eq.s32.totalorder %s17, 0
      %p52 = por %p50, %p51
      %p53 = scmp.ne.s32.totalorder %s39, %s40
      %p54 = scmp.eq.s32.totalorder %s18, 1
      %p55 = por %p53, %p54
      %p57 = scmp.ne.s32.totalorder %s40, %s56
      %p58 = scmp.eq.s32.totalorder %s18, 0
      %p59 = por %p57, %p58
      %s60 = ssub.s32 %s19, %s31
      %p61 = scmp.eq.s32.totalorder %s60, 0
      %s63 = sadd.s32 %s62, 1
      %s64 = scalar_select %p61, %s62, %s63
      %p67 = pneg %p61
      %p68 = scmp.eq.s32.totalorder %s12, 1
      %p69 = por %p67, %p68
      %p70 = scmp.ne.s32.totalorder %s62, %s65
      %p71 = scmp.eq.s32.totalorder %s12, 0
      %p72 = por %p70, %p71
      %p73 = scmp.ne.s32.totalorder %s62, %s65
      %p74 = scmp.eq.s32.totalorder %s17, 1
      %p75 = por %p73, %p74
      %p76 = scmp.ne.s32.totalorder %s65, %s66
      %p77 = scmp.eq.s32.totalorder %s17, 0
      %p78 = por %p76, %p77
      %p79 = scmp.ne.s32.totalorder %s65, %s66
      %p80 = scmp.eq.s32.totalorder %s18, 1
      %p81 = por %p79, %p80
      %p83 = scmp.ne.s32.totalorder %s66, %s82
      %p84 = scmp.eq.s32.totalorder %s18, 0
      %p85 = por %p83, %p84
      %s86 = ssub.s32 %s19, %s31
      %p87 = scmp.eq.s32.totalorder %s86, 0
      %s89 = sadd.s32 %s88, 1
      %s90 = scalar_select %p87, %s88, %s89
      %p93 = pneg %p87
      %p94 = scmp.eq.s32.totalorder %s12, 1
      %p95 = por %p93, %p94
      %p96 = scmp.ne.s32.totalorder %s88, %s91
      %p97 = scmp.eq.s32.totalorder %s12, 0
      %p98 = por %p96, %p97
      %p99 = scmp.ne.s32.totalorder %s88, %s91
      %p100 = scmp.eq.s32.totalorder %s17, 1
      %p101 = por %p99, %p100
      %p102 = scmp.ne.s32.totalorder %s91, %s92
      %p103 = scmp.eq.s32.totalorder %s17, 0
      %p104 = por %p102, %p103
      %p105 = scmp.ne.s32.totalorder %s91, %s92
      %p106 = scmp.eq.s32.totalorder %s18, 1
      %p107 = por %p105, %p106
      %p109 = scmp.ne.s32.totalorder %s92, %s108
      %p110 = scmp.eq.s32.totalorder %s18, 0
      %p111 = por %p109, %p110
      %s112 = ssub.s32 %s19, %s31
      %s113 = ssub.s32 %s20, %s27
      %s114 = sor.u32 %s112, %s113
      %p115 = scmp.eq.s32.totalorder %s114, 0
      %s117 = sadd.s32 %s116, 1
      %s118 = scalar_select %p115, %s116, %s117
      %p121 = pneg %p115
      %p122 = scmp.eq.s32.totalorder %s12, 1
      %p123 = por %p121, %p122
      %p124 = scmp.ne.s32.totalorder %s116, %s119
      %p125 = scmp.eq.s32.totalorder %s12, 0
      %p126 = por %p124, %p125
      %p127 = scmp.ne.s32.totalorder %s116, %s119
      %p128 = scmp.eq.s32.totalorder %s17, 1
      %p129 = por %p127, %p128
      %p130 = scmp.ne.s32.totalorder %s119, %s120
      %p131 = scmp.eq.s32.totalorder %s17, 0
      %p132 = por %p130, %p131
      %p133 = scmp.ne.s32.totalorder %s119, %s120
      %p134 = scmp.eq.s32.totalorder %s18, 1
      %p135 = por %p133, %p134
      %p137 = scmp.ne.s32.totalorder %s120, %s136
      %p138 = scmp.eq.s32.totalorder %s18, 0
      %p139 = por %p137, %p138
      %p140 = scmp.le.s32.totalorder 1, %s12
      %p141 = scmp.lt.s32.totalorder %s12, 3
      %p142 = pnand %p140, %p141
      %p143 = pneg %p142
      // Predicated region
      $region9: #{feature_net.29} parent=5 // pred_check
        _
      $region10: #{feature_net.29} parent=5 // pred_check_branch
        %145 = sbr.rel (%p142) target = $region12
      $region11: #{feature_net.29} parent=5 // pred_region
        %s146 = ssub.s32 %s12, 1
      $region12: #{feature_net.29} parent=5 // pred_fallthru
        _
      %p147 = scmp.lt.s32.totalorder %s12, 2
      // Predicated region
      $region13: #{feature_net.29} parent=5 // pred_check
        %p148 = pneg %p147
      $region14: #{feature_net.29} parent=5 // pred_check_branch
        %150 = sbr.rel (%p148) target = $region16
      $region15: #{feature_net.29} parent=5 // pred_region
        // Predicated region
        $region17: #{feature_net.29} parent=15 // pred_check
          %p151 = pneg %p46
        $region18: #{feature_net.29} parent=15 // pred_check_branch
          %153 = sbr.rel (%p151) target = $region20
        $region19: #{feature_net.29} parent=15 // pred_region
          %p154 = scmp.lt.s32.totalorder %s19, 1
          %s155 = scalar_select %p154, %s19, 1
          %p156 = scmp.lt.s32.totalorder %s20, 0
          %s157 = scalar_select %p156, %s20, 0
          %s158 = smul.addr %s157, 4
          %s159 = smul.addr %s155, 4
          %s160 = sadd.s32 %s158, %s159
          %s161 = scalar_lea.vmem %s0, %s160
        $region20: #{feature_net.29} parent=15 // pred_fallthru
          _
        // Predicated region
        $region21: #{feature_net.29} parent=15 // pred_check
          %p162 = pneg %p72
        $region22: #{feature_net.29} parent=15 // pred_check_branch
          %164 = sbr.rel (%p162) target = $region24
        $region23: #{feature_net.29} parent=15 // pred_region
          %p165 = scmp.lt.s32.totalorder %s19, 1
          %s166 = scalar_select %p165, %s19, 1
          %s167 = smul.addr %s166, 4
          %s168 = scalar_lea.vmem %s1, %s167
        $region24: #{feature_net.29} parent=15 // pred_fallthru
          _
        // Predicated region
        $region25: #{feature_net.29} parent=15 // pred_check
          %p169 = pneg %p98
        $region26: #{feature_net.29} parent=15 // pred_check_branch
          %171 = sbr.rel (%p169) target = $region28
        $region27: #{feature_net.29} parent=15 // pred_region
          %p172 = scmp.lt.s32.totalorder %s19, 1
          %s173 = scalar_select %p172, %s19, 1
          %s174 = smul.addr %s173, 4
          %s175 = scalar_lea.vmem %s2, %s174
        $region28: #{feature_net.29} parent=15 // pred_fallthru
          _
      $region16: #{feature_net.29} parent=5 // pred_fallthru
        _
      %p176 = scmp.le.s32.totalorder 1, %s12
      %p177 = scmp.lt.s32.totalorder %s12, 3
      %p178 = pnand %p176, %p177
      %p179 = pneg %p178
      // Predicated region
      $region29: #{feature_net.29} parent=5 // pred_check
        _
      $region30: #{feature_net.29} parent=5 // pred_check_branch
        %181 = sbr.rel (%p178) target = $region32
      $region31: #{feature_net.29} parent=5 // pred_region
        %s182 = ssub.s32 %s12, 1
        %p183 = scmp.lt.s32.totalorder %s21, 1
        %s184 = scalar_select %p183, %s21, 1
        %p185 = scmp.lt.s32.totalorder %s22, 0
        %s186 = scalar_select %p185, %s22, 0
        %s187 = smul.addr %s186, 4
        %s188 = smul.addr %s184, 4
        %s189 = sadd.s32 %s187, %s188
        %s190 = scalar_lea.vmem %s0, %s189
        %p191 = pneg %p52
        %p192 = pneg %p49
        %p193 = scmp.lt.s32.totalorder %s21, 1
        %s194 = scalar_select %p193, %s21, 1
        %s195 = smul.addr %s194, 4
        %s196 = scalar_lea.vmem %s1, %s195
        %p197 = pneg %p78
        %p198 = pneg %p75
        %p199 = scmp.lt.s32.totalorder %s21, 1
        %s200 = scalar_select %p199, %s21, 1
        %s201 = smul.addr %s200, 4
        %s202 = scalar_lea.vmem %s2, %s201
        %p203 = pneg %p104
        %p204 = pneg %p101
        %p205 = pneg %p132
        %p206 = pneg %p129
        %s207 = sand.u32 %s119, 1
        %s208 = scalar_lea.sflag [#allocation3], %s207
        %s209 = sand.u32 %s119, 1
        %s210 = smul.addr %s209, 4
        %s211 = scalar_lea.vmem [#allocation2], %s210
        %p212 = scmp.lt.s32.totalorder %s21, 1
        %s213 = scalar_select %p212, %s21, 1
        %p214 = scmp.lt.s32.totalorder %s22, 0
        %s215 = scalar_select %p214, %s22, 0
        %s216 = smul.addr %s215, 4
        %s217 = smul.addr %s213, 4
        %s218 = sadd.s32 %s216, %s217
        %s219 = scalar_lea.vmem %s0, %s218
        %p220 = scmp.lt.s32.totalorder %s21, 1
        %s221 = scalar_select %p220, %s21, 1
        %s222 = smul.addr %s221, 4
        %s223 = scalar_lea.vmem %s1, %s222
        %p224 = scmp.lt.s32.totalorder %s21, 1
        %s225 = scalar_select %p224, %s21, 1
        %s226 = smul.addr %s225, 4
        %s227 = scalar_lea.vmem %s2, %s226
        %v228 = vld [vmem:[%s219] sm:$0xf]
        %v229 = vld [vmem:[%s223] sm:$0xf]
        %v230 = vld [vmem:[%s227] sm:$0xf]
        %v231 = vmul.f32 %v229, %v229
        %v232 = vsub.f32 %v230, %v231
        %v233 = vmax.f32 %v232, 0.0
        %v234 = vsub.f32 %v228, %v229
        %v235 = vadd.f32 %v233, 1e-05
        %v236 = vrsqrt.pop %v235
        %v237 = vmul.f32 %v234, %v236
        %v238 = vmax.f32 %v237, 0.0
        %v239 = vlaneseq
        %vm240 = vcmp.ge.s32.totalorder %v239, 0
        %vm241 = vcmp.lt.s32.totalorder %v239, 512
        %vm242 = vmand %vm240, %vm241
        %243 = vst.msk [vmem:[%s211] sm:$0xf] %vm242, %v238
        %s244 = sand.u32 %s119, 1
        %s245 = scalar_lea.sflag [#allocation3], %s244
        %s246 = sand.u32 %s119, 1
        %s247 = smul.addr %s246, 4
        %s248 = scalar_lea.vmem [#allocation2], %s247
        // Predicated region
        $region33: #{feature_net.29} parent=31 // pred_check
          %p249 = pneg %p129
        $region34: #{feature_net.29} parent=31 // pred_check_branch
          %251 = sbr.rel (%p249) target = $region36
        $region35: #{feature_net.29} parent=31 // pred_region
          %s253 = ssub.s32 64, 64
          %254 = vsyncadd %s245, %s253
          %s255 = smul.addr %s22, 4
          %s256 = smul.addr %s21, 4
          %s257 = sadd.s32 %s255, %s256
          %s258 = smul.addr %s257, 16
          %s259 = scalar_lea.hbm %s3, %s258
          %s261 = sshll.u32 %s248, 4
          %s262 = int_to_ptr.vmem [resolvable:$true] %s261
          %264 = dma.vmem_to_hbm [thread:$0]  %s262, 64, %s259, %s245
        $region36: #{feature_net.29} parent=31 // pred_fallthru
          _
      $region32: #{feature_net.29} parent=5 // pred_fallthru
        _
      %p265 = scmp.le.s32.totalorder 2, %s12
      // Predicated region
      $region37: #{feature_net.29} parent=5 // pred_check
        %p266 = pneg %p265
      $region38: #{feature_net.29} parent=5 // pred_check_branch
        %268 = sbr.rel (%p266) target = $region40
      $region39: #{feature_net.29} parent=5 // pred_region
        %s269 = ssub.s32 %s12, 2
        // Predicated region
        $region41: #{feature_net.29} parent=39 // pred_check
          %p270 = pneg %p135
        $region42: #{feature_net.29} parent=39 // pred_check_branch
          %272 = sbr.rel (%p270) target = $region44
        $region43: #{feature_net.29} parent=39 // pred_region
          %s273 = sand.u32 %s120, 1
          %s274 = scalar_lea.sflag [#allocation3], %s273
          %s275 = sand.u32 %s120, 1
          %s276 = smul.addr %s275, 4
          %s277 = scalar_lea.vmem [#allocation2], %s276
          %278 = dma.done %s274, 64
        $region44: #{feature_net.29} parent=39 // pred_fallthru
          _
      $region40: #{feature_net.29} parent=5 // pred_fallthru
        _
    $region6: #{feature_net.29} parent=1 // loop_footer
      %s16 = sadd.s32 1, %s12
    $region7: #{feature_net.29} parent=1 // loop_footer_branch
      %11 = sbr.rel target = $region3
    $region8: #{feature_net.29} parent=1 // loop_exit
      _
    %279 = vsyncpa [#allocation3], 1
    %s280 = scalar_lea.sflag [#allocation3], 1
    %281 = vsyncpa %s280, 1

</llo_original>
